<compile_context>
chip_gen: v7x
topology: tpu7x:2x2x1
jax: 0.10.0
libtpu: 0.0.40
codegen_flags: <defaults>
</compile_context>

<pallas_src>
import jax
import jax.numpy as jnp
from jax import lax
from jax.experimental import pallas as pl
from jax.experimental.pallas import tpu as pltpu

EPS = 1e-8


# ----------------------------------------------------------------------------
# Fused TemporalConvNet kernel (one batch sample per grid step)
# ----------------------------------------------------------------------------
def make_tcn_kernel(X, R, P, loc_by_x, H, Bc, K, lead, pad_max):
    """loc_by_x[x] : list of (r_value, feature_slot) pairs for inner index x.
    lead          : lane-aligned offset of y inside the zero-edged scratch.
    """
    inv_hk = 1.0 / float(H * K)
    c_tap = (P - 1) // 2

    def kernel(x_ref, cln_ref, wb_ref, w1_ref, wd_ref, gln1_ref, gln2_ref,
               wp_ref, wm_ref, alpha_ref, mask_ref, feat_ref, yp_ref):
        # Zero ONLY the padding edge columns of the depthwise scratch: they are
        # never overwritten, and the interior [lead, lead+K) is rewritten every
        # block.  Done unconditionally every grid step (megacore-safe: each
        # TensorCore owns its own scratch and its own subset of grid indices).
        if pad_max > 0:
            zeros_edge = jnp.zeros((H, pad_max), jnp.float32)
            yp_ref[:, lead - pad_max:lead] = zeros_edge
            yp_ref[:, lead + K:lead + K + pad_max] = zeros_edge

        # ---- channelwise LayerNorm (over N) + bottleneck 1x1 conv (N -> B) ----
        xin = x_ref[0]                                     # (N, K) f32
        n_ch = xin.shape[0]
        mean = jnp.sum(xin, axis=0, keepdims=True) / n_ch
        var = jnp.maximum(
            jnp.sum(xin * xin, axis=0, keepdims=True) / n_ch - mean * mean, 0.0)
        inv = lax.rsqrt(var + EPS)                         # (1, K) on EUP
        xn = cln_ref[:, 0:1] * ((xin - mean) * inv) + cln_ref[:, 1:2]
        score0 = jnp.dot(wb_ref[...], xn.astype(jnp.bfloat16),
                         preferred_element_type=jnp.float32)   # (B, K) f32

        # ---- R repeats of X temporal blocks; `score` is the fori carry ----
        def repeat_body(r, score):
            for x_i in range(X):                       # unrolled (static dils)
                dilation = 2 ** x_i
                pad = (P - 1) * dilation // 2
                i = r * X + x_i                        # dynamic block index
                w1 = w1_ref[i]                         # (H, B)  bf16
                wd = wd_ref[i]                         # (H, P)  f32
                gln1 = gln1_ref[i]                     # (H, 2)  [g1 b1]
                gln2 = gln2_ref[i]                     # (2, H)  [g2 ; b2]
                wp = wp_ref[i].astype(jnp.float32)     # (B, H)
                a1 = alpha_ref[2 * i]                  # PReLU slopes (SMEM)
                a2 = alpha_ref[2 * i + 1]

                # 1x1 conv (B -> H) on the MXU, then PReLU
                y = jnp.dot(w1, score.astype(jnp.bfloat16),
                            preferred_element_type=jnp.float32)  # (H, K)
                y = jnp.where(y >= 0, y, a1 * y)

                # gLN1: row partial sums -> tiny final reduce; clamped variance
                ps = jnp.sum(y, axis=-1, keepdims=True)          # (H, 1)
                pss = jnp.sum(y * y, axis=-1, keepdims=True)     # (H, 1)
                m1 = jnp.sum(ps) * inv_hk
                v1 = jnp.maximum(jnp.sum(pss) * inv_hk - m1 * m1, 0.0)
                scale1 = gln1[:, 0:1] * lax.rsqrt(v1 + EPS)      # (H, 1)
                shift1 = gln1[:, 1:2] - m1 * scale1
                yn = y * scale1 + shift1                         # one FMA pass

                # dilated depthwise conv (H -> H, stride 1, 'same'):
                # one lane-aligned store of yn; center tap reuses the live
                # value; the other taps are shifted static-slice reads from the
                # zero-edged scratch.
                yp_ref[:, lead:lead + K] = yn
                z = wd[:, c_tap:c_tap + 1] * yn
                for p in range(P):
                    if p == c_tap:
                        continue
                    off = lead - pad + p * dilation
                    z = z + wd[:, p:p + 1] * yp_ref[:, off:off + K]

                # PReLU
                z = jnp.where(z >= 0, z, a2 * z)

                # gLN2 statistics (row partials, clamped variance)
                zs = jnp.sum(z, axis=-1, keepdims=True)
                zss = jnp.sum(z * z, axis=-1, keepdims=True)
                m2 = jnp.sum(zs) * inv_hk
                v2 = jnp.maximum(jnp.sum(zss) * inv_hk - m2 * m2, 0.0)
                scale2 = gln2[0:1, :] * lax.rsqrt(v2 + EPS)      # (1, H)
                shift2 = gln2[1:2, :] - m2 * scale2              # (1, H)

                # Fold the gLN2 affine into the pointwise conv (exact: the
                # scale is per-H = the contraction dim):
                #   wp @ (z*scale2 + shift2) = (wp*scale2) @ z + (wp @ shift2)
                wp_s = (wp * scale2).astype(jnp.bfloat16)            # (B, H)
                bias = jnp.sum(wp * shift2, axis=1, keepdims=True)   # (B, 1)
                score = score + bias + jnp.dot(
                    wp_s, z.astype(jnp.bfloat16),
                    preferred_element_type=jnp.float32)

                # feat_loc == 'residual': requested block outputs -> HBM slab
                # (static slice per slot, gated on the repeat index).
                for r_val, slot in loc_by_x[x_i]:
                    @pl.when(r == r_val)
                    def _(slot=slot, cur=score):
                        feat_ref[0, slot * Bc:(slot + 1) * Bc, :] = cur
            return score

        score = lax.fori_loop(0, R, repeat_body, score0)

        # ---- mask 1x1 conv (B -> C*N) + ReLU ----
        mk = jnp.dot(wm_ref[...], score.astype(jnp.bfloat16),
                     preferred_element_type=jnp.float32)
        mask_ref[0] = jnp.maximum(mk, 0.0)

    return kernel


# ----------------------------------------------------------------------------
# Wrapper (pallas_call setup)
# ----------------------------------------------------------------------------
def temporal_conv_net_forward(mixture_w, params, cfg):
    """mixture_w: [M, N, K] -> (est_mask [M, C, N, K], feature [M, n_loc*B, K])."""
    M, N, K = mixture_w.shape
    C, X, R, P = cfg["C"], cfg["X"], cfg["R"], cfg["P"]
    assert P % 2 == 1, "non-causal 'same' depthwise conv requires odd P"
    RX = R * X

    pads_x = [(P - 1) * (2 ** x) // 2 for x in range(X)]
    pad_max = max(pads_x)
    lead = (-(-pad_max // 128) * 128) if pad_max > 0 else 0   # lane-aligned
    scratch_w = lead + K + pad_max

    loc_idx = sorted(cfg["loc_idx"])
    n_loc = len(loc_idx)
    loc_by_x = [[] for _ in range(X)]
    for slot, bi in enumerate(loc_idx):
        loc_by_x[bi % X].append((bi // X, slot))

    blocks = params["blocks"]
    # Stacked per-block weights: one DMA per kind; bf16 for the MXU operands.
    w1_all = jnp.stack([bp["w1"] for bp in blocks]).astype(jnp.bfloat16)   # (RX,H,B)
    wp_all = jnp.stack([bp["wp"] for bp in blocks]).astype(jnp.bfloat16)   # (RX,B,H)
    wd_all = jnp.stack([bp["wd"] for bp in blocks])                        # (RX,H,P)
    gln1_all = jnp.stack([jnp.concatenate([bp["g1"], bp["b1"]], axis=1)
                          for bp in blocks])                               # (RX,H,2)
    gln2_all = jnp.stack([jnp.concatenate([bp["g2"].T, bp["b2"].T], axis=0)
                          for bp in blocks])                               # (RX,2,H)
    alpha_all = jnp.stack([jnp.stack([bp["a1"][0, 0], bp["a2"][0, 0]])
                           for bp in blocks]).reshape(-1)                  # (2*RX,)
    cln = jnp.concatenate([params["cln_gamma"], params["cln_beta"]], axis=1)  # (N,2)
    w_bottle = params["w_bottle"].astype(jnp.bfloat16)                     # (B,N)
    w_mask = params["w_mask"].astype(jnp.bfloat16)                         # (C*N,B)

    Bc = w_bottle.shape[0]
    H = w1_all.shape[1]
    CN = w_mask.shape[0]

    kern = make_tcn_kernel(X, R, P, loc_by_x, H, Bc, K, lead, pad_max)

    # VMEM footprint components (bytes, single copy each).
    wt_bytes = ((w1_all.size + wp_all.size + w_bottle.size + w_mask.size) * 2
                + (wd_all.size + gln1_all.size + gln2_all.size) * 4)
    act_bytes = 4 * (Bc * K + 4 * H * K + H * scratch_w)
    in_bytes = 4 * N * K
    out_bytes = 4 * (CN * K + n_loc * Bc * K)

    def run(single_buffer_weights):
        def const_spec(shape):
            nd = len(shape)
            idx = lambda *_a, _nd=nd: (0,) * _nd
            if single_buffer_weights:
                # Constant index_map => DMA'd once; no need for 2 buffers.
                return pl.BlockSpec(shape, idx, pipeline_mode=pl.Buffered(1))
            return pl.BlockSpec(shape, idx)

        # Generation-aware scoped-VMEM budget: io/out double-buffered, weights
        # single- or double-buffered depending on the spec, + 4 MiB slack.
        wt_factor = 1 if single_buffer_weights else 2
        need = (act_bytes + wt_factor * wt_bytes + 2 * in_bytes + 2 * out_bytes
                + (4 << 20))
        try:
            cap = int(getattr(pltpu.get_tpu_info(), "vmem_capacity_bytes",
                              64 << 20))
        except Exception:
            cap = 64 << 20                      # conservative (v7x physical)
        hi = max(int(cap * 0.85), 32 << 20)     # ~108 MiB v5e/v6e, ~54 MiB v7x
        vmem_limit = int(min(max(need, 32 << 20), hi))

        return pl.pallas_call(
            kern,
            out_shape=(jax.ShapeDtypeStruct((M, CN, K), jnp.float32),
                       jax.ShapeDtypeStruct((M, n_loc * Bc, K), jnp.float32)),
            grid=(M,),
            in_specs=[
                pl.BlockSpec((1, N, K), lambda m: (m, 0, 0)),    # mixture_w
                const_spec(cln.shape),                           # cLN gamma|beta
                const_spec(w_bottle.shape),                      # bottleneck 1x1
                const_spec(w1_all.shape),                        # block 1x1 convs
                const_spec(wd_all.shape),                        # depthwise taps
                const_spec(gln1_all.shape),                      # gLN1 g|b (cols)
                const_spec(gln2_all.shape),                      # gLN2 g|b (rows)
                const_spec(wp_all.shape),                        # pointwise convs
                const_spec(w_mask.shape),                        # mask 1x1
                pl.BlockSpec(alpha_all.shape, lambda m: (0,),
                             memory_space=pltpu.MemorySpace.SMEM),  # PReLU slopes
            ],
            out_specs=(pl.BlockSpec((1, CN, K), lambda m: (m, 0, 0)),
                       pl.BlockSpec((1, n_loc * Bc, K), lambda m: (m, 0, 0))),
            scratch_shapes=[pltpu.VMEM((H, scratch_w), jnp.float32)],
            compiler_params=pltpu.CompilerParams(
                dimension_semantics=("parallel",),
                vmem_limit_bytes=vmem_limit),
        )(mixture_w, cln, w_bottle, w1_all, wd_all, gln1_all, gln2_all,
          wp_all, w_mask, alpha_all)

    use_single = hasattr(pl, "Buffered")
    try:
        mask_out, feat_out = jax.block_until_ready(run(use_single))
    except Exception:
        if not use_single:
            raise
        # Fallback if Buffered(1) is unsupported by this jax/Mosaic version.
        mask_out, feat_out = jax.block_until_ready(run(False))

    est_mask = mask_out.reshape(M, C, N, K)
    return est_mask, feat_out


# ----------------------------------------------------------------------------
# Pure-JAX f32 reference (for correctness check)
# ----------------------------------------------------------------------------
def _ref_forward(mixture_w, params, cfg):
    C, X, R, P = cfg["C"], cfg["X"], cfg["R"], cfg["P"]
    M, N, K = mixture_w.shape

    def cln(x, g, b):
        mean = jnp.mean(x, axis=1, keepdims=True)
        var = jnp.mean((x - mean) ** 2, axis=1, keepdims=True)
        return g[None] * (x - mean) / jnp.sqrt(var + EPS) + b[None]

    def gln(x, g, b):
        mean = jnp.mean(x, axis=(1, 2), keepdims=True)
        var = jnp.mean((x - mean) ** 2, axis=(1, 2), keepdims=True)
        return g[None] * (x - mean) / jnp.sqrt(var + EPS) + b[None]

    def conv1x1(x, w):
        return jnp.einsum("oi,mik->mok", w, x)

    def prelu(x, a):
        return jnp.where(x >= 0, x, a * x)

    score = cln(mixture_w, params["cln_gamma"], params["cln_beta"])
    score = conv1x1(score, params["w_bottle"])

    feats = []
    for r in range(R):
        for x in range(X):
            dilation = 2 ** x
            pad = (P - 1) * dilation // 2
            bp = params["blocks"][r * X + x]
            res = score
            y = conv1x1(score, bp["w1"])
            y = prelu(y, bp["a1"][0, 0])
            y = gln(y, bp["g1"], bp["b1"])
            yp = jnp.pad(y, ((0, 0), (0, 0), (pad, pad)))
            z = jnp.zeros_like(y)
            for p in range(P):
                z = z + bp["wd"][None, :, p:p + 1] * yp[:, :, p * dilation: p * dilation + K]
            z = prelu(z, bp["a2"][0, 0])
            z = gln(z, bp["g2"], bp["b2"])
            score = conv1x1(z, bp["wp"]) + res
            feats.append(score)

    score = jnp.maximum(conv1x1(score, params["w_mask"]), 0.0)
    est_mask = score.reshape(M, C, N, K)
    sel = [feats[i] for i in sorted(cfg["loc_idx"])]
    feature = jnp.concatenate(sel, axis=1) if len(sel) > 1 else sel[0]
    return est_mask, feature


# ----------------------------------------------------------------------------
# Deterministic parameter construction
# ----------------------------------------------------------------------------
def make_params(key, N, B, H, P, X, R, C):
    keys = jax.random.split(key, 2 + R * X)
    params = {
        "cln_gamma": jnp.ones((N, 1), jnp.float32),
        "cln_beta": jnp.zeros((N, 1), jnp.float32),
        "w_bottle": 0.1 * jax.random.normal(keys[0], (B, N), jnp.float32),
        "w_mask": 0.1 * jax.random.normal(keys[1], (C * N, B), jnp.float32),
        "blocks": [],
    }
    for i in range(R * X):
        k1, k2, k3 = jax.random.split(keys[2 + i], 3)
        params["blocks"].append({
            "w1": 0.1 * jax.random.normal(k1, (H, B), jnp.float32),
            "a1": jnp.full((1, 1), 0.25, jnp.float32),      # nn.PReLU default
            "g1": jnp.ones((H, 1), jnp.float32),
            "b1": jnp.zeros((H, 1), jnp.float32),
            "wd": 0.1 * jax.random.normal(k2, (H, P), jnp.float32),
            "a2": jnp.full((1, 1), 0.25, jnp.float32),
            "g2": jnp.ones((H, 1), jnp.float32),
            "b2": jnp.zeros((H, 1), jnp.float32),
            "wp": 0.1 * jax.random.normal(k3, (B, H), jnp.float32),
        })
    return params


# ----------------------------------------------------------------------------
if __name__ == "__main__":
    # Small config (channels multiples of 8 sublanes; K a multiple of 128 lanes,
    # batch M even so both v7x TensorCores are busy):
    # N filters, B bottleneck, H block channels, P kernel, X blocks/repeat,
    # R repeats, C speakers, K time frames, M batch.
    N, B, H, P, X, R, C = 16, 32, 64, 3, 2, 2, 2
    M, K = 2, 256
    locs = [(0, 1), (1, 0)]                     # -> block indices [1, 2]
    cfg = {"C": C, "X": X, "R": R, "P": P,
           "loc_idx": [r * X + x for (r, x) in locs]}

    key = jax.random.PRNGKey(0)
    kx, kp = jax.random.split(key)
    mixture_w = jax.random.normal(kx, (M, N, K), jnp.float32)
    params = make_params(kp, N, B, H, P, X, R, C)

    est_mask, feature = temporal_conv_net_forward(mixture_w, params, cfg)
    est_mask = jax.block_until_ready(est_mask)
    feature = jax.block_until_ready(feature)

    # sanity check against a pure-JAX f32 reference (kernel matmuls run in bf16)
    ref_mask, ref_feat = _ref_forward(mixture_w, params, cfg)
    assert est_mask.shape == (M, C, N, K)
    assert feature.shape == (M, len(cfg["loc_idx"]) * B, K)
    assert jnp.allclose(est_mask, ref_mask, rtol=5e-2, atol=5e-2)
    assert jnp.allclose(feature, ref_feat, rtol=5e-2, atol=5e-2)

    print("KERNEL_OK")
</pallas_src>

<mosaic_0001>
module attributes {stable_mosaic.version = 11 : i64} {
  func.func @kernel(%arg0: i32, %arg1: memref<1x16x256xf32, #tpu.memory_space<vmem>>, %arg2: memref<16x2xf32, #tpu.memory_space<vmem>>, %arg3: memref<32x16xbf16, #tpu.memory_space<vmem>>, %arg4: memref<4x64x32xbf16, #tpu.memory_space<vmem>>, %arg5: memref<4x64x3xf32, #tpu.memory_space<vmem>>, %arg6: memref<4x64x2xf32, #tpu.memory_space<vmem>>, %arg7: memref<4x2x64xf32, #tpu.memory_space<vmem>>, %arg8: memref<4x32x64xbf16, #tpu.memory_space<vmem>>, %arg9: memref<32x32xbf16, #tpu.memory_space<vmem>>, %arg10: memref<8xf32, #tpu.memory_space<smem>>, %arg11: memref<1x32x256xf32, #tpu.memory_space<vmem>>, %arg12: memref<1x64x256xf32, #tpu.memory_space<vmem>>, %arg13: memref<64x386xf32, #tpu.memory_space<vmem>>) attributes {dimension_semantics = [#tpu.dimension_semantics<parallel>], iteration_bounds = array<i64: 2>, scalar_prefetch = 0 : i64, scratch_operands = 1 : i64, tpu.core_type = #tpu.core_type<tc>, window_params = [{transform_indices = @transform_0, window_bounds = array<i64: 1, 16, 256>}, {pipeline_mode = #tpu.pipeline_mode<synchronous>, transform_indices = @transform_1, window_bounds = array<i64: 16, 2>}, {pipeline_mode = #tpu.pipeline_mode<synchronous>, transform_indices = @transform_2, window_bounds = array<i64: 32, 16>}, {pipeline_mode = #tpu.pipeline_mode<synchronous>, transform_indices = @transform_3, window_bounds = array<i64: 4, 64, 32>}, {pipeline_mode = #tpu.pipeline_mode<synchronous>, transform_indices = @transform_4, window_bounds = array<i64: 4, 64, 3>}, {pipeline_mode = #tpu.pipeline_mode<synchronous>, transform_indices = @transform_5, window_bounds = array<i64: 4, 64, 2>}, {pipeline_mode = #tpu.pipeline_mode<synchronous>, transform_indices = @transform_6, window_bounds = array<i64: 4, 2, 64>}, {pipeline_mode = #tpu.pipeline_mode<synchronous>, transform_indices = @transform_7, window_bounds = array<i64: 4, 32, 64>}, {pipeline_mode = #tpu.pipeline_mode<synchronous>, transform_indices = @transform_8, window_bounds = array<i64: 32, 32>}, {transform_indices = @transform_9, window_bounds = array<i64: 8>}, {transform_indices = @transform_10, window_bounds = array<i64: 1, 32, 256>}, {transform_indices = @transform_11, window_bounds = array<i64: 1, 64, 256>}]} {
    %cst = arith.constant 0.000000e+00 : f32
    %0 = vector.broadcast %cst : f32 to vector<64x2xf32>
    %c0 = arith.constant 0 : index
    %c126 = arith.constant 126 : index
    %1 = vector.load %arg13[%c0, %c126] : memref<64x386xf32, #tpu.memory_space<vmem>>, vector<64x2xf32>
    tpu.vector_store %arg13[%c0, %c126], %0 {strides = array<i32>} : memref<64x386xf32, #tpu.memory_space<vmem>>, vector<64x2xf32>,
    %c0_0 = arith.constant 0 : index
    %c384 = arith.constant 384 : index
    %2 = vector.load %arg13[%c0_0, %c384] : memref<64x386xf32, #tpu.memory_space<vmem>>, vector<64x2xf32>
    tpu.vector_store %arg13[%c0_0, %c384], %0 {strides = array<i32>} : memref<64x386xf32, #tpu.memory_space<vmem>>, vector<64x2xf32>,
    %c0_1 = arith.constant 0 : index
    %c0_2 = arith.constant 0 : index
    %c0_3 = arith.constant 0 : index
    %3 = vector.load %arg1[%c0_1, %c0_2, %c0_3] : memref<1x16x256xf32, #tpu.memory_space<vmem>>, vector<1x16x256xf32>
    %4 = vector.shape_cast %3 : vector<1x16x256xf32> to vector<16x256xf32>
    %cst_4 = arith.constant dense<0.000000e+00> : vector<256xf32>
    %5 = vector.multi_reduction <add>, %4, %cst_4 [0] : vector<16x256xf32> to vector<256xf32>
    %6 = vector.shape_cast %5 : vector<256xf32> to vector<1x256xf32>
    %cst_5 = arith.constant 1.600000e+01 : f32
    %7 = vector.broadcast %cst_5 : f32 to vector<1x256xf32>
    %8 = arith.divf %6, %7 : vector<1x256xf32>
    %9 = arith.mulf %4, %4 : vector<16x256xf32>
    %cst_6 = arith.constant dense<0.000000e+00> : vector<256xf32>
    %10 = vector.multi_reduction <add>, %9, %cst_6 [0] : vector<16x256xf32> to vector<256xf32>
    %11 = vector.shape_cast %10 : vector<256xf32> to vector<1x256xf32>
    %cst_7 = arith.constant 1.600000e+01 : f32
    %12 = vector.broadcast %cst_7 : f32 to vector<1x256xf32>
    %13 = arith.divf %11, %12 : vector<1x256xf32>
    %14 = arith.mulf %8, %8 : vector<1x256xf32>
    %15 = arith.subf %13, %14 : vector<1x256xf32>
    %cst_8 = arith.constant 0.000000e+00 : f32
    %16 = vector.broadcast %cst_8 : f32 to vector<1x256xf32>
    %17 = arith.maximumf %15, %16 : vector<1x256xf32>
    %cst_9 = arith.constant 9.99999993E-9 : f32
    %18 = vector.broadcast %cst_9 : f32 to vector<1x256xf32>
    %19 = arith.addf %17, %18 : vector<1x256xf32>
    %20 = math.rsqrt %19 : vector<1x256xf32>
    %c0_10 = arith.constant 0 : index
    %c0_11 = arith.constant 0 : index
    %21 = vector.load %arg2[%c0_10, %c0_11] : memref<16x2xf32, #tpu.memory_space<vmem>>, vector<16x1xf32>
    %22 = vector.broadcast %8 : vector<1x256xf32> to vector<16x256xf32>
    %23 = arith.subf %4, %22 : vector<16x256xf32>
    %24 = vector.broadcast %20 : vector<1x256xf32> to vector<16x256xf32>
    %25 = arith.mulf %23, %24 : vector<16x256xf32>
    %26 = vector.broadcast %21 : vector<16x1xf32> to vector<16x256xf32>
    %27 = arith.mulf %26, %25 : vector<16x256xf32>
    %c0_12 = arith.constant 0 : index
    %c1 = arith.constant 1 : index
    %28 = vector.load %arg2[%c0_12, %c1] : memref<16x2xf32, #tpu.memory_space<vmem>>, vector<16x1xf32>
    %29 = vector.broadcast %28 : vector<16x1xf32> to vector<16x256xf32>
    %30 = arith.addf %27, %29 : vector<16x256xf32>
    %c0_13 = arith.constant 0 : index
    %c0_14 = arith.constant 0 : index
    %31 = vector.load %arg3[%c0_13, %c0_14] : memref<32x16xbf16, #tpu.memory_space<vmem>>, vector<32x16xbf16>
    %32 = arith.truncf %30 : vector<16x256xf32> to vector<16x256xbf16>
    %cst_15 = arith.constant dense<0.000000e+00> : vector<32x256xf32>
    %33 = tpu.matmul %31, %32, %cst_15 {dimension_numbers = #tpu.dot_dimension_numbers<[1], [0], [0], [1], [0, 0, 1, 1], [], []>} : vector<32x16xbf16>, vector<16x256xbf16>, vector<32x256xf32> -> vector<32x256xf32>
    %c0_i32 = arith.constant 0 : i32
    %c2_i32 = arith.constant 2 : i32
    %34 = arith.addi %c0_i32, %c2_i32 : i32
    %c1_i32 = arith.constant 1 : i32
    %35 = scf.for %arg14 = %c0_i32 to %34 step %c1_i32 iter_args(%arg15 = %33) -> (vector<32x256xf32>)  : i32 {
      %c2_i32_24 = arith.constant 2 : i32
      %44 = arith.muli %arg14, %c2_i32_24 : i32
      %c0_i32_25 = arith.constant 0 : i32
      %45 = arith.addi %44, %c0_i32_25 : i32
      %46 = arith.index_cast %45 : i32 to index
      %c0_26 = arith.constant 0 : index
      %c0_27 = arith.constant 0 : index
      %47 = vector.load %arg4[%46, %c0_26, %c0_27] : memref<4x64x32xbf16, #tpu.memory_space<vmem>>, vector<1x64x32xbf16>
      %48 = vector.shape_cast %47 : vector<1x64x32xbf16> to vector<64x32xbf16>
      %49 = arith.index_cast %45 : i32 to index
      %c0_28 = arith.constant 0 : index
      %c0_29 = arith.constant 0 : index
      %50 = vector.load %arg5[%49, %c0_28, %c0_29] : memref<4x64x3xf32, #tpu.memory_space<vmem>>, vector<1x64x3xf32>
      %51 = vector.shape_cast %50 : vector<1x64x3xf32> to vector<64x3xf32>
      %52 = arith.index_cast %45 : i32 to index
      %c0_30 = arith.constant 0 : index
      %c0_31 = arith.constant 0 : index
      %53 = vector.load %arg6[%52, %c0_30, %c0_31] : memref<4x64x2xf32, #tpu.memory_space<vmem>>, vector<1x64x2xf32>
      %54 = vector.shape_cast %53 : vector<1x64x2xf32> to vector<64x2xf32>
      %55 = arith.index_cast %45 : i32 to index
      %c0_32 = arith.constant 0 : index
      %c0_33 = arith.constant 0 : index
      %56 = vector.load %arg7[%55, %c0_32, %c0_33] : memref<4x2x64xf32, #tpu.memory_space<vmem>>, vector<1x2x64xf32>
      %57 = vector.shape_cast %56 : vector<1x2x64xf32> to vector<2x64xf32>
      %58 = arith.index_cast %45 : i32 to index
      %c0_34 = arith.constant 0 : index
      %c0_35 = arith.constant 0 : index
      %59 = vector.load %arg8[%58, %c0_34, %c0_35] : memref<4x32x64xbf16, #tpu.memory_space<vmem>>, vector<1x32x64xbf16>
      %60 = vector.shape_cast %59 : vector<1x32x64xbf16> to vector<32x64xbf16>
      %61 = arith.extf %60 : vector<32x64xbf16> to vector<32x64xf32>
      %c2_i32_36 = arith.constant 2 : i32
      %62 = arith.muli %c2_i32_36, %45 : i32
      %63 = arith.index_cast %62 : i32 to index
      %64 = memref.load %arg10[%63] : memref<8xf32, #tpu.memory_space<smem>>
      %c2_i32_37 = arith.constant 2 : i32
      %65 = arith.muli %c2_i32_37, %45 : i32
      %c1_i32_38 = arith.constant 1 : i32
      %66 = arith.addi %65, %c1_i32_38 : i32
      %67 = arith.index_cast %66 : i32 to index
      %68 = memref.load %arg10[%67] : memref<8xf32, #tpu.memory_space<smem>>
      %69 = arith.truncf %arg15 : vector<32x256xf32> to vector<32x256xbf16>
      %cst_39 = arith.constant dense<0.000000e+00> : vector<64x256xf32>
      %70 = tpu.matmul %48, %69, %cst_39 {dimension_numbers = #tpu.dot_dimension_numbers<[1], [0], [0], [1], [0, 0, 1, 1], [], []>} : vector<64x32xbf16>, vector<32x256xbf16>, vector<64x256xf32> -> vector<64x256xf32>
      %cst_40 = arith.constant 0.000000e+00 : f32
      %71 = vector.broadcast %cst_40 : f32 to vector<64x256xf32>
      %72 = arith.cmpf oge, %70, %71 : vector<64x256xf32>
      %73 = vector.broadcast %64 : f32 to vector<64x256xf32>
      %74 = arith.mulf %73, %70 : vector<64x256xf32>
      %75 = arith.select %72, %70, %74 : vector<64x256xi1>, vector<64x256xf32>
      %cst_41 = arith.constant dense<0.000000e+00> : vector<64xf32>
      %76 = vector.multi_reduction <add>, %75, %cst_41 [1] : vector<64x256xf32> to vector<64xf32>
      %77 = vector.shape_cast %76 : vector<64xf32> to vector<64x1xf32>
      %78 = arith.mulf %75, %75 : vector<64x256xf32>
      %cst_42 = arith.constant dense<0.000000e+00> : vector<64xf32>
      %79 = vector.multi_reduction <add>, %78, %cst_42 [1] : vector<64x256xf32> to vector<64xf32>
      %80 = vector.shape_cast %79 : vector<64xf32> to vector<64x1xf32>
      %81 = vector.shape_cast %77 : vector<64x1xf32> to vector<1x64x1xf32>
      %cst_43 = arith.constant dense<0.000000e+00> : vector<1xf32>
      %82 = vector.multi_reduction <add>, %81, %cst_43 [1, 2] : vector<1x64x1xf32> to vector<1xf32>
      %83 = vector.shape_cast %82 : vector<1xf32> to vector<1x1x1xf32>
      %84 = vector.extract %83[0, 0, 0] : f32 from vector<1x1x1xf32>
      %cst_44 = arith.constant 6.10351563E-5 : f32
      %85 = arith.mulf %84, %cst_44 : f32
      %86 = vector.shape_cast %80 : vector<64x1xf32> to vector<1x64x1xf32>
      %cst_45 = arith.constant dense<0.000000e+00> : vector<1xf32>
      %87 = vector.multi_reduction <add>, %86, %cst_45 [1, 2] : vector<1x64x1xf32> to vector<1xf32>
      %88 = vector.shape_cast %87 : vector<1xf32> to vector<1x1x1xf32>
      %89 = vector.extract %88[0, 0, 0] : f32 from vector<1x1x1xf32>
      %cst_46 = arith.constant 6.10351563E-5 : f32
      %90 = arith.mulf %89, %cst_46 : f32
      %91 = arith.mulf %85, %85 : f32
      %92 = arith.subf %90, %91 : f32
      %cst_47 = arith.constant 0.000000e+00 : f32
      %93 = arith.maximumf %92, %cst_47 : f32
      %94 = vector.extract_strided_slice %54 {offsets = [0, 0], sizes = [64, 1], strides = [1, 1]} : vector<64x2xf32> to vector<64x1xf32>
      %cst_48 = arith.constant 9.99999993E-9 : f32
      %95 = arith.addf %93, %cst_48 : f32
      %96 = math.rsqrt %95 : f32
      %97 = vector.broadcast %96 : f32 to vector<64x1xf32>
      %98 = arith.mulf %94, %97 : vector<64x1xf32>
      %99 = vector.extract_strided_slice %54 {offsets = [0, 1], sizes = [64, 1], strides = [1, 1]} : vector<64x2xf32> to vector<64x1xf32>
      %100 = vector.broadcast %85 : f32 to vector<64x1xf32>
      %101 = arith.mulf %100, %98 : vector<64x1xf32>
      %102 = arith.subf %99, %101 : vector<64x1xf32>
      %103 = vector.broadcast %98 : vector<64x1xf32> to vector<64x256xf32>
      %104 = arith.mulf %75, %103 : vector<64x256xf32>
      %105 = vector.broadcast %102 : vector<64x1xf32> to vector<64x256xf32>
      %106 = arith.addf %104, %105 : vector<64x256xf32>
      %c0_49 = arith.constant 0 : index
      %c128 = arith.constant 128 : index
      %107 = vector.load %arg13[%c0_49, %c128] : memref<64x386xf32, #tpu.memory_space<vmem>>, vector<64x256xf32>
      tpu.vector_store %arg13[%c0_49, %c128], %106 {strides = array<i32>} : memref<64x386xf32, #tpu.memory_space<vmem>>, vector<64x256xf32>,
      %108 = vector.extract_strided_slice %51 {offsets = [0, 1], sizes = [64, 1], strides = [1, 1]} : vector<64x3xf32> to vector<64x1xf32>
      %109 = vector.broadcast %108 : vector<64x1xf32> to vector<64x256xf32>
      %110 = arith.mulf %109, %106 : vector<64x256xf32>
      %111 = vector.extract_strided_slice %51 {offsets = [0, 0], sizes = [64, 1], strides = [1, 1]} : vector<64x3xf32> to vector<64x1xf32>
      %c0_50 = arith.constant 0 : index
      %c127 = arith.constant 127 : index
      %112 = vector.load %arg13[%c0_50, %c127] : memref<64x386xf32, #tpu.memory_space<vmem>>, vector<64x256xf32>
      %113 = vector.broadcast %111 : vector<64x1xf32> to vector<64x256xf32>
      %114 = arith.mulf %113, %112 : vector<64x256xf32>
      %115 = arith.addf %110, %114 : vector<64x256xf32>
      %116 = vector.extract_strided_slice %51 {offsets = [0, 2], sizes = [64, 1], strides = [1, 1]} : vector<64x3xf32> to vector<64x1xf32>
      %c0_51 = arith.constant 0 : index
      %c129 = arith.constant 129 : index
      %117 = vector.load %arg13[%c0_51, %c129] : memref<64x386xf32, #tpu.memory_space<vmem>>, vector<64x256xf32>
      %118 = vector.broadcast %116 : vector<64x1xf32> to vector<64x256xf32>
      %119 = arith.mulf %118, %117 : vector<64x256xf32>
      %120 = arith.addf %115, %119 : vector<64x256xf32>
      %cst_52 = arith.constant 0.000000e+00 : f32
      %121 = vector.broadcast %cst_52 : f32 to vector<64x256xf32>
      %122 = arith.cmpf oge, %120, %121 : vector<64x256xf32>
      %123 = vector.broadcast %68 : f32 to vector<64x256xf32>
      %124 = arith.mulf %123, %120 : vector<64x256xf32>
      %125 = arith.select %122, %120, %124 : vector<64x256xi1>, vector<64x256xf32>
      %cst_53 = arith.constant dense<0.000000e+00> : vector<64xf32>
      %126 = vector.multi_reduction <add>, %125, %cst_53 [1] : vector<64x256xf32> to vector<64xf32>
      %127 = vector.shape_cast %126 : vector<64xf32> to vector<64x1xf32>
      %128 = arith.mulf %125, %125 : vector<64x256xf32>
      %cst_54 = arith.constant dense<0.000000e+00> : vector<64xf32>
      %129 = vector.multi_reduction <add>, %128, %cst_54 [1] : vector<64x256xf32> to vector<64xf32>
      %130 = vector.shape_cast %129 : vector<64xf32> to vector<64x1xf32>
      %131 = vector.shape_cast %127 : vector<64x1xf32> to vector<1x64x1xf32>
      %cst_55 = arith.constant dense<0.000000e+00> : vector<1xf32>
      %132 = vector.multi_reduction <add>, %131, %cst_55 [1, 2] : vector<1x64x1xf32> to vector<1xf32>
      %133 = vector.shape_cast %132 : vector<1xf32> to vector<1x1x1xf32>
      %134 = vector.extract %133[0, 0, 0] : f32 from vector<1x1x1xf32>
      %cst_56 = arith.constant 6.10351563E-5 : f32
      %135 = arith.mulf %134, %cst_56 : f32
      %136 = vector.shape_cast %130 : vector<64x1xf32> to vector<1x64x1xf32>
      %cst_57 = arith.constant dense<0.000000e+00> : vector<1xf32>
      %137 = vector.multi_reduction <add>, %136, %cst_57 [1, 2] : vector<1x64x1xf32> to vector<1xf32>
      %138 = vector.shape_cast %137 : vector<1xf32> to vector<1x1x1xf32>
      %139 = vector.extract %138[0, 0, 0] : f32 from vector<1x1x1xf32>
      %cst_58 = arith.constant 6.10351563E-5 : f32
      %140 = arith.mulf %139, %cst_58 : f32
      %141 = arith.mulf %135, %135 : f32
      %142 = arith.subf %140, %141 : f32
      %cst_59 = arith.constant 0.000000e+00 : f32
      %143 = arith.maximumf %142, %cst_59 : f32
      %144 = vector.extract_strided_slice %57 {offsets = [0, 0], sizes = [1, 64], strides = [1, 1]} : vector<2x64xf32> to vector<1x64xf32>
      %cst_60 = arith.constant 9.99999993E-9 : f32
      %145 = arith.addf %143, %cst_60 : f32
      %146 = math.rsqrt %145 : f32
      %147 = vector.broadcast %146 : f32 to vector<1x64xf32>
      %148 = arith.mulf %144, %147 : vector<1x64xf32>
      %149 = vector.extract_strided_slice %57 {offsets = [1, 0], sizes = [1, 64], strides = [1, 1]} : vector<2x64xf32> to vector<1x64xf32>
      %150 = vector.broadcast %135 : f32 to vector<1x64xf32>
      %151 = arith.mulf %150, %148 : vector<1x64xf32>
      %152 = arith.subf %149, %151 : vector<1x64xf32>
      %153 = vector.broadcast %148 : vector<1x64xf32> to vector<32x64xf32>
      %154 = arith.mulf %61, %153 : vector<32x64xf32>
      %155 = arith.truncf %154 : vector<32x64xf32> to vector<32x64xbf16>
      %156 = vector.broadcast %152 : vector<1x64xf32> to vector<32x64xf32>
      %157 = arith.mulf %61, %156 : vector<32x64xf32>
      %cst_61 = arith.constant dense<0.000000e+00> : vector<32xf32>
      %158 = vector.multi_reduction <add>, %157, %cst_61 [1] : vector<32x64xf32> to vector<32xf32>
      %159 = vector.shape_cast %158 : vector<32xf32> to vector<32x1xf32>
      %160 = vector.broadcast %159 : vector<32x1xf32> to vector<32x256xf32>
      %161 = arith.addf %arg15, %160 : vector<32x256xf32>
      %162 = arith.truncf %125 : vector<64x256xf32> to vector<64x256xbf16>
      %cst_62 = arith.constant dense<0.000000e+00> : vector<32x256xf32>
      %163 = tpu.matmul %155, %162, %cst_62 {dimension_numbers = #tpu.dot_dimension_numbers<[1], [0], [0], [1], [0, 0, 1, 1], [], []>} : vector<32x64xbf16>, vector<64x256xbf16>, vector<32x256xf32> -> vector<32x256xf32>
      %164 = arith.addf %161, %163 : vector<32x256xf32>
      %c1_i32_63 = arith.constant 1 : i32
      %165 = arith.cmpi eq, %arg14, %c1_i32_63 : i32
      %166 = arith.extui %165 : i1 to i32
      %c0_i32_64 = arith.constant 0 : i32
      %167 = arith.cmpi ne, %166, %c0_i32_64 : i32
      scf.if %167 {
        %c0_108 = arith.constant 0 : index
        %c32 = arith.constant 32 : index
        %c0_109 = arith.constant 0 : index
        %292 = vector.load %arg12[%c0_108, %c32, %c0_109] : memref<1x64x256xf32, #tpu.memory_space<vmem>>, vector<1x32x256xf32>
        %293 = vector.shape_cast %292 : vector<1x32x256xf32> to vector<32x256xf32>
        %294 = vector.shape_cast %164 : vector<32x256xf32> to vector<1x32x256xf32>
        tpu.vector_store %arg12[%c0_108, %c32, %c0_109], %294 {strides = array<i32>} : memref<1x64x256xf32, #tpu.memory_space<vmem>>, vector<1x32x256xf32>,
      } else {
      }
      %c2_i32_65 = arith.constant 2 : i32
      %168 = arith.muli %arg14, %c2_i32_65 : i32
      %c1_i32_66 = arith.constant 1 : i32
      %169 = arith.addi %168, %c1_i32_66 : i32
      %170 = arith.index_cast %169 : i32 to index
      %c0_67 = arith.constant 0 : index
      %c0_68 = arith.constant 0 : index
      %171 = vector.load %arg4[%170, %c0_67, %c0_68] : memref<4x64x32xbf16, #tpu.memory_space<vmem>>, vector<1x64x32xbf16>
      %172 = vector.shape_cast %171 : vector<1x64x32xbf16> to vector<64x32xbf16>
      %173 = arith.index_cast %169 : i32 to index
      %c0_69 = arith.constant 0 : index
      %c0_70 = arith.constant 0 : index
      %174 = vector.load %arg5[%173, %c0_69, %c0_70] : memref<4x64x3xf32, #tpu.memory_space<vmem>>, vector<1x64x3xf32>
      %175 = vector.shape_cast %174 : vector<1x64x3xf32> to vector<64x3xf32>
      %176 = arith.index_cast %169 : i32 to index
      %c0_71 = arith.constant 0 : index
      %c0_72 = arith.constant 0 : index
      %177 = vector.load %arg6[%176, %c0_71, %c0_72] : memref<4x64x2xf32, #tpu.memory_space<vmem>>, vector<1x64x2xf32>
      %178 = vector.shape_cast %177 : vector<1x64x2xf32> to vector<64x2xf32>
      %179 = arith.index_cast %169 : i32 to index
      %c0_73 = arith.constant 0 : index
      %c0_74 = arith.constant 0 : index
      %180 = vector.load %arg7[%179, %c0_73, %c0_74] : memref<4x2x64xf32, #tpu.memory_space<vmem>>, vector<1x2x64xf32>
      %181 = vector.shape_cast %180 : vector<1x2x64xf32> to vector<2x64xf32>
      %182 = arith.index_cast %169 : i32 to index
      %c0_75 = arith.constant 0 : index
      %c0_76 = arith.constant 0 : index
      %183 = vector.load %arg8[%182, %c0_75, %c0_76] : memref<4x32x64xbf16, #tpu.memory_space<vmem>>, vector<1x32x64xbf16>
      %184 = vector.shape_cast %183 : vector<1x32x64xbf16> to vector<32x64xbf16>
      %185 = arith.extf %184 : vector<32x64xbf16> to vector<32x64xf32>
      %c2_i32_77 = arith.constant 2 : i32
      %186 = arith.muli %c2_i32_77, %169 : i32
      %187 = arith.index_cast %186 : i32 to index
      %188 = memref.load %arg10[%187] : memref<8xf32, #tpu.memory_space<smem>>
      %c2_i32_78 = arith.constant 2 : i32
      %189 = arith.muli %c2_i32_78, %169 : i32
      %c1_i32_79 = arith.constant 1 : i32
      %190 = arith.addi %189, %c1_i32_79 : i32
      %191 = arith.index_cast %190 : i32 to index
      %192 = memref.load %arg10[%191] : memref<8xf32, #tpu.memory_space<smem>>
      %193 = arith.truncf %164 : vector<32x256xf32> to vector<32x256xbf16>
      %cst_80 = arith.constant dense<0.000000e+00> : vector<64x256xf32>
      %194 = tpu.matmul %172, %193, %cst_80 {dimension_numbers = #tpu.dot_dimension_numbers<[1], [0], [0], [1], [0, 0, 1, 1], [], []>} : vector<64x32xbf16>, vector<32x256xbf16>, vector<64x256xf32> -> vector<64x256xf32>
      %cst_81 = arith.constant 0.000000e+00 : f32
      %195 = vector.broadcast %cst_81 : f32 to vector<64x256xf32>
      %196 = arith.cmpf oge, %194, %195 : vector<64x256xf32>
      %197 = vector.broadcast %188 : f32 to vector<64x256xf32>
      %198 = arith.mulf %197, %194 : vector<64x256xf32>
      %199 = arith.select %196, %194, %198 : vector<64x256xi1>, vector<64x256xf32>
      %cst_82 = arith.constant dense<0.000000e+00> : vector<64xf32>
      %200 = vector.multi_reduction <add>, %199, %cst_82 [1] : vector<64x256xf32> to vector<64xf32>
      %201 = vector.shape_cast %200 : vector<64xf32> to vector<64x1xf32>
      %202 = arith.mulf %199, %199 : vector<64x256xf32>
      %cst_83 = arith.constant dense<0.000000e+00> : vector<64xf32>
      %203 = vector.multi_reduction <add>, %202, %cst_83 [1] : vector<64x256xf32> to vector<64xf32>
      %204 = vector.shape_cast %203 : vector<64xf32> to vector<64x1xf32>
      %205 = vector.shape_cast %201 : vector<64x1xf32> to vector<1x64x1xf32>
      %cst_84 = arith.constant dense<0.000000e+00> : vector<1xf32>
      %206 = vector.multi_reduction <add>, %205, %cst_84 [1, 2] : vector<1x64x1xf32> to vector<1xf32>
      %207 = vector.shape_cast %206 : vector<1xf32> to vector<1x1x1xf32>
      %208 = vector.extract %207[0, 0, 0] : f32 from vector<1x1x1xf32>
      %cst_85 = arith.constant 6.10351563E-5 : f32
      %209 = arith.mulf %208, %cst_85 : f32
      %210 = vector.shape_cast %204 : vector<64x1xf32> to vector<1x64x1xf32>
      %cst_86 = arith.constant dense<0.000000e+00> : vector<1xf32>
      %211 = vector.multi_reduction <add>, %210, %cst_86 [1, 2] : vector<1x64x1xf32> to vector<1xf32>
      %212 = vector.shape_cast %211 : vector<1xf32> to vector<1x1x1xf32>
      %213 = vector.extract %212[0, 0, 0] : f32 from vector<1x1x1xf32>
      %cst_87 = arith.constant 6.10351563E-5 : f32
      %214 = arith.mulf %213, %cst_87 : f32
      %215 = arith.mulf %209, %209 : f32
      %216 = arith.subf %214, %215 : f32
      %cst_88 = arith.constant 0.000000e+00 : f32
      %217 = arith.maximumf %216, %cst_88 : f32
      %218 = vector.extract_strided_slice %178 {offsets = [0, 0], sizes = [64, 1], strides = [1, 1]} : vector<64x2xf32> to vector<64x1xf32>
      %cst_89 = arith.constant 9.99999993E-9 : f32
      %219 = arith.addf %217, %cst_89 : f32
      %220 = math.rsqrt %219 : f32
      %221 = vector.broadcast %220 : f32 to vector<64x1xf32>
      %222 = arith.mulf %218, %221 : vector<64x1xf32>
      %223 = vector.extract_strided_slice %178 {offsets = [0, 1], sizes = [64, 1], strides = [1, 1]} : vector<64x2xf32> to vector<64x1xf32>
      %224 = vector.broadcast %209 : f32 to vector<64x1xf32>
      %225 = arith.mulf %224, %222 : vector<64x1xf32>
      %226 = arith.subf %223, %225 : vector<64x1xf32>
      %227 = vector.broadcast %222 : vector<64x1xf32> to vector<64x256xf32>
      %228 = arith.mulf %199, %227 : vector<64x256xf32>
      %229 = vector.broadcast %226 : vector<64x1xf32> to vector<64x256xf32>
      %230 = arith.addf %228, %229 : vector<64x256xf32>
      %c0_90 = arith.constant 0 : index
      %c128_91 = arith.constant 128 : index
      %231 = vector.load %arg13[%c0_90, %c128_91] : memref<64x386xf32, #tpu.memory_space<vmem>>, vector<64x256xf32>
      tpu.vector_store %arg13[%c0_90, %c128_91], %230 {strides = array<i32>} : memref<64x386xf32, #tpu.memory_space<vmem>>, vector<64x256xf32>,
      %232 = vector.extract_strided_slice %175 {offsets = [0, 1], sizes = [64, 1], strides = [1, 1]} : vector<64x3xf32> to vector<64x1xf32>
      %233 = vector.broadcast %232 : vector<64x1xf32> to vector<64x256xf32>
      %234 = arith.mulf %233, %230 : vector<64x256xf32>
      %235 = vector.extract_strided_slice %175 {offsets = [0, 0], sizes = [64, 1], strides = [1, 1]} : vector<64x3xf32> to vector<64x1xf32>
      %c0_92 = arith.constant 0 : index
      %c126_93 = arith.constant 126 : index
      %236 = vector.load %arg13[%c0_92, %c126_93] : memref<64x386xf32, #tpu.memory_space<vmem>>, vector<64x256xf32>
      %237 = vector.broadcast %235 : vector<64x1xf32> to vector<64x256xf32>
      %238 = arith.mulf %237, %236 : vector<64x256xf32>
      %239 = arith.addf %234, %238 : vector<64x256xf32>
      %240 = vector.extract_strided_slice %175 {offsets = [0, 2], sizes = [64, 1], strides = [1, 1]} : vector<64x3xf32> to vector<64x1xf32>
      %c0_94 = arith.constant 0 : index
      %c130 = arith.constant 130 : index
      %241 = vector.load %arg13[%c0_94, %c130] : memref<64x386xf32, #tpu.memory_space<vmem>>, vector<64x256xf32>
      %242 = vector.broadcast %240 : vector<64x1xf32> to vector<64x256xf32>
      %243 = arith.mulf %242, %241 : vector<64x256xf32>
      %244 = arith.addf %239, %243 : vector<64x256xf32>
      %cst_95 = arith.constant 0.000000e+00 : f32
      %245 = vector.broadcast %cst_95 : f32 to vector<64x256xf32>
      %246 = arith.cmpf oge, %244, %245 : vector<64x256xf32>
      %247 = vector.broadcast %192 : f32 to vector<64x256xf32>
      %248 = arith.mulf %247, %244 : vector<64x256xf32>
      %249 = arith.select %246, %244, %248 : vector<64x256xi1>, vector<64x256xf32>
      %cst_96 = arith.constant dense<0.000000e+00> : vector<64xf32>
      %250 = vector.multi_reduction <add>, %249, %cst_96 [1] : vector<64x256xf32> to vector<64xf32>
      %251 = vector.shape_cast %250 : vector<64xf32> to vector<64x1xf32>
      %252 = arith.mulf %249, %249 : vector<64x256xf32>
      %cst_97 = arith.constant dense<0.000000e+00> : vector<64xf32>
      %253 = vector.multi_reduction <add>, %252, %cst_97 [1] : vector<64x256xf32> to vector<64xf32>
      %254 = vector.shape_cast %253 : vector<64xf32> to vector<64x1xf32>
      %255 = vector.shape_cast %251 : vector<64x1xf32> to vector<1x64x1xf32>
      %cst_98 = arith.constant dense<0.000000e+00> : vector<1xf32>
      %256 = vector.multi_reduction <add>, %255, %cst_98 [1, 2] : vector<1x64x1xf32> to vector<1xf32>
      %257 = vector.shape_cast %256 : vector<1xf32> to vector<1x1x1xf32>
      %258 = vector.extract %257[0, 0, 0] : f32 from vector<1x1x1xf32>
      %cst_99 = arith.constant 6.10351563E-5 : f32
      %259 = arith.mulf %258, %cst_99 : f32
      %260 = vector.shape_cast %254 : vector<64x1xf32> to vector<1x64x1xf32>
      %cst_100 = arith.constant dense<0.000000e+00> : vector<1xf32>
      %261 = vector.multi_reduction <add>, %260, %cst_100 [1, 2] : vector<1x64x1xf32> to vector<1xf32>
      %262 = vector.shape_cast %261 : vector<1xf32> to vector<1x1x1xf32>
      %263 = vector.extract %262[0, 0, 0] : f32 from vector<1x1x1xf32>
      %cst_101 = arith.constant 6.10351563E-5 : f32
      %264 = arith.mulf %263, %cst_101 : f32
      %265 = arith.mulf %259, %259 : f32
      %266 = arith.subf %264, %265 : f32
      %cst_102 = arith.constant 0.000000e+00 : f32
      %267 = arith.maximumf %266, %cst_102 : f32
      %268 = vector.extract_strided_slice %181 {offsets = [0, 0], sizes = [1, 64], strides = [1, 1]} : vector<2x64xf32> to vector<1x64xf32>
      %cst_103 = arith.constant 9.99999993E-9 : f32
      %269 = arith.addf %267, %cst_103 : f32
      %270 = math.rsqrt %269 : f32
      %271 = vector.broadcast %270 : f32 to vector<1x64xf32>
      %272 = arith.mulf %268, %271 : vector<1x64xf32>
      %273 = vector.extract_strided_slice %181 {offsets = [1, 0], sizes = [1, 64], strides = [1, 1]} : vector<2x64xf32> to vector<1x64xf32>
      %274 = vector.broadcast %259 : f32 to vector<1x64xf32>
      %275 = arith.mulf %274, %272 : vector<1x64xf32>
      %276 = arith.subf %273, %275 : vector<1x64xf32>
      %277 = vector.broadcast %272 : vector<1x64xf32> to vector<32x64xf32>
      %278 = arith.mulf %185, %277 : vector<32x64xf32>
      %279 = arith.truncf %278 : vector<32x64xf32> to vector<32x64xbf16>
      %280 = vector.broadcast %276 : vector<1x64xf32> to vector<32x64xf32>
      %281 = arith.mulf %185, %280 : vector<32x64xf32>
      %cst_104 = arith.constant dense<0.000000e+00> : vector<32xf32>
      %282 = vector.multi_reduction <add>, %281, %cst_104 [1] : vector<32x64xf32> to vector<32xf32>
      %283 = vector.shape_cast %282 : vector<32xf32> to vector<32x1xf32>
      %284 = vector.broadcast %283 : vector<32x1xf32> to vector<32x256xf32>
      %285 = arith.addf %164, %284 : vector<32x256xf32>
      %286 = arith.truncf %249 : vector<64x256xf32> to vector<64x256xbf16>
      %cst_105 = arith.constant dense<0.000000e+00> : vector<32x256xf32>
      %287 = tpu.matmul %279, %286, %cst_105 {dimension_numbers = #tpu.dot_dimension_numbers<[1], [0], [0], [1], [0, 0, 1, 1], [], []>} : vector<32x64xbf16>, vector<64x256xbf16>, vector<32x256xf32> -> vector<32x256xf32>
      %288 = arith.addf %285, %287 : vector<32x256xf32>
      %c0_i32_106 = arith.constant 0 : i32
      %289 = arith.cmpi eq, %arg14, %c0_i32_106 : i32
      %290 = arith.extui %289 : i1 to i32
      %c0_i32_107 = arith.constant 0 : i32
      %291 = arith.cmpi ne, %290, %c0_i32_107 : i32
      scf.if %291 {
        %c0_108 = arith.constant 0 : index
        %c0_109 = arith.constant 0 : index
        %c0_110 = arith.constant 0 : index
        %292 = vector.load %arg12[%c0_108, %c0_109, %c0_110] : memref<1x64x256xf32, #tpu.memory_space<vmem>>, vector<1x32x256xf32>
        %293 = vector.shape_cast %292 : vector<1x32x256xf32> to vector<32x256xf32>
        %294 = vector.shape_cast %288 : vector<32x256xf32> to vector<1x32x256xf32>
        tpu.vector_store %arg12[%c0_108, %c0_109, %c0_110], %294 {strides = array<i32>} : memref<1x64x256xf32, #tpu.memory_space<vmem>>, vector<1x32x256xf32>,
      } else {
      }
      scf.yield %288 : vector<32x256xf32>
    }
    %c2_i32_16 = arith.constant 2 : i32
    %c0_17 = arith.constant 0 : index
    %c0_18 = arith.constant 0 : index
    %36 = vector.load %arg9[%c0_17, %c0_18] : memref<32x32xbf16, #tpu.memory_space<vmem>>, vector<32x32xbf16>
    %37 = arith.truncf %35 : vector<32x256xf32> to vector<32x256xbf16>
    %cst_19 = arith.constant dense<0.000000e+00> : vector<32x256xf32>
    %38 = tpu.matmul %36, %37, %cst_19 {dimension_numbers = #tpu.dot_dimension_numbers<[1], [0], [0], [1], [0, 0, 1, 1], [], []>} : vector<32x32xbf16>, vector<32x256xbf16>, vector<32x256xf32> -> vector<32x256xf32>
    %cst_20 = arith.constant 0.000000e+00 : f32
    %39 = vector.broadcast %cst_20 : f32 to vector<32x256xf32>
    %40 = arith.maximumf %38, %39 : vector<32x256xf32>
    %c0_21 = arith.constant 0 : index
    %c0_22 = arith.constant 0 : index
    %c0_23 = arith.constant 0 : index
    %41 = vector.load %arg11[%c0_21, %c0_22, %c0_23] : memref<1x32x256xf32, #tpu.memory_space<vmem>>, vector<1x32x256xf32>
    %42 = vector.shape_cast %41 : vector<1x32x256xf32> to vector<32x256xf32>
    %43 = vector.shape_cast %40 : vector<32x256xf32> to vector<1x32x256xf32>
    tpu.vector_store %arg11[%c0_21, %c0_22, %c0_23], %43 {strides = array<i32>} : memref<1x32x256xf32, #tpu.memory_space<vmem>>, vector<1x32x256xf32>,
    return
  }
  func.func @transform_0(%arg0: i32) -> (i32, i32, i32) {
    %c0_i32 = arith.constant 0 : i32
    %c0_i32_0 = arith.constant 0 : i32
    %c0_i32_1 = arith.constant 0 : i32
    return %arg0, %c0_i32, %c0_i32_0 : i32, i32, i32
  }
  func.func @transform_1(%arg0: i32) -> (i32, i32) {
    %c0_i32 = arith.constant 0 : i32
    %c0_i32_0 = arith.constant 0 : i32
    %c0_i32_1 = arith.constant 0 : i32
    return %c0_i32, %c0_i32_0 : i32, i32
  }
  func.func @transform_2(%arg0: i32) -> (i32, i32) {
    %c0_i32 = arith.constant 0 : i32
    %c0_i32_0 = arith.constant 0 : i32
    %c0_i32_1 = arith.constant 0 : i32
    return %c0_i32, %c0_i32_0 : i32, i32
  }
  func.func @transform_3(%arg0: i32) -> (i32, i32, i32) {
    %c0_i32 = arith.constant 0 : i32
    %c0_i32_0 = arith.constant 0 : i32
    %c0_i32_1 = arith.constant 0 : i32
    %c0_i32_2 = arith.constant 0 : i32
    return %c0_i32, %c0_i32_0, %c0_i32_1 : i32, i32, i32
  }
  func.func @transform_4(%arg0: i32) -> (i32, i32, i32) {
    %c0_i32 = arith.constant 0 : i32
    %c0_i32_0 = arith.constant 0 : i32
    %c0_i32_1 = arith.constant 0 : i32
    %c0_i32_2 = arith.constant 0 : i32
    return %c0_i32, %c0_i32_0, %c0_i32_1 : i32, i32, i32
  }
  func.func @transform_5(%arg0: i32) -> (i32, i32, i32) {
    %c0_i32 = arith.constant 0 : i32
    %c0_i32_0 = arith.constant 0 : i32
    %c0_i32_1 = arith.constant 0 : i32
    %c0_i32_2 = arith.constant 0 : i32
    return %c0_i32, %c0_i32_0, %c0_i32_1 : i32, i32, i32
  }
  func.func @transform_6(%arg0: i32) -> (i32, i32, i32) {
    %c0_i32 = arith.constant 0 : i32
    %c0_i32_0 = arith.constant 0 : i32
    %c0_i32_1 = arith.constant 0 : i32
    %c0_i32_2 = arith.constant 0 : i32
    return %c0_i32, %c0_i32_0, %c0_i32_1 : i32, i32, i32
  }
  func.func @transform_7(%arg0: i32) -> (i32, i32, i32) {
    %c0_i32 = arith.constant 0 : i32
    %c0_i32_0 = arith.constant 0 : i32
    %c0_i32_1 = arith.constant 0 : i32
    %c0_i32_2 = arith.constant 0 : i32
    return %c0_i32, %c0_i32_0, %c0_i32_1 : i32, i32, i32
  }
  func.func @transform_8(%arg0: i32) -> (i32, i32) {
    %c0_i32 = arith.constant 0 : i32
    %c0_i32_0 = arith.constant 0 : i32
    %c0_i32_1 = arith.constant 0 : i32
    return %c0_i32, %c0_i32_0 : i32, i32
  }
  func.func @transform_9(%arg0: i32) -> i32 {
    %c0_i32 = arith.constant 0 : i32
    %c0_i32_0 = arith.constant 0 : i32
    return %c0_i32 : i32
  }
  func.func @transform_10(%arg0: i32) -> (i32, i32, i32) {
    %c0_i32 = arith.constant 0 : i32
    %c0_i32_0 = arith.constant 0 : i32
    %c0_i32_1 = arith.constant 0 : i32
    return %arg0, %c0_i32, %c0_i32_0 : i32, i32, i32
  }
  func.func @transform_11(%arg0: i32) -> (i32, i32, i32) {
    %c0_i32 = arith.constant 0 : i32
    %c0_i32_0 = arith.constant 0 : i32
    %c0_i32_1 = arith.constant 0 : i32
    return %arg0, %c0_i32, %c0_i32_0 : i32, i32, i32
  }
}

module attributes {stable_mosaic.version = 11 : i64} {
  func.func @kernel(%arg0: i32, %arg1: memref<1x16x256xf32, #tpu.memory_space<vmem>>, %arg2: memref<16x2xf32, #tpu.memory_space<vmem>>, %arg3: memref<32x16xbf16, #tpu.memory_space<vmem>>, %arg4: memref<4x64x32xbf16, #tpu.memory_space<vmem>>, %arg5: memref<4x64x3xf32, #tpu.memory_space<vmem>>, %arg6: memref<4x64x2xf32, #tpu.memory_space<vmem>>, %arg7: memref<4x2x64xf32, #tpu.memory_space<vmem>>, %arg8: memref<4x32x64xbf16, #tpu.memory_space<vmem>>, %arg9: memref<32x32xbf16, #tpu.memory_space<vmem>>, %arg10: memref<8xf32, #tpu.memory_space<smem>>, %arg11: memref<1x32x256xf32, #tpu.memory_space<vmem>>, %arg12: memref<1x64x256xf32, #tpu.memory_space<vmem>>, %arg13: memref<64x386xf32, #tpu.memory_space<vmem>>) attributes {dimension_semantics = [#tpu.dimension_semantics<parallel>], iteration_bounds = array<i64: 2>, scalar_prefetch = 0 : i64, scratch_operands = 1 : i64, tpu.core_type = #tpu.core_type<tc>, window_params = [{transform_indices = @transform_0, window_bounds = array<i64: 1, 16, 256>}, {pipeline_mode = #tpu.pipeline_mode<synchronous>, transform_indices = @transform_1, window_bounds = array<i64: 16, 2>}, {pipeline_mode = #tpu.pipeline_mode<synchronous>, transform_indices = @transform_2, window_bounds = array<i64: 32, 16>}, {pipeline_mode = #tpu.pipeline_mode<synchronous>, transform_indices = @transform_3, window_bounds = array<i64: 4, 64, 32>}, {pipeline_mode = #tpu.pipeline_mode<synchronous>, transform_indices = @transform_4, window_bounds = array<i64: 4, 64, 3>}, {pipeline_mode = #tpu.pipeline_mode<synchronous>, transform_indices = @transform_5, window_bounds = array<i64: 4, 64, 2>}, {pipeline_mode = #tpu.pipeline_mode<synchronous>, transform_indices = @transform_6, window_bounds = array<i64: 4, 2, 64>}, {pipeline_mode = #tpu.pipeline_mode<synchronous>, transform_indices = @transform_7, window_bounds = array<i64: 4, 32, 64>}, {pipeline_mode = #tpu.pipeline_mode<synchronous>, transform_indices = @transform_8, window_bounds = array<i64: 32, 32>}, {transform_indices = @transform_9, window_bounds = array<i64: 8>}, {transform_indices = @transform_10, window_bounds = array<i64: 1, 32, 256>}, {transform_indices = @transform_11, window_bounds = array<i64: 1, 64, 256>}]} {
    %cst = arith.constant 0.000000e+00 : f32
    %0 = vector.broadcast %cst : f32 to vector<64x2xf32>
    %c0 = arith.constant 0 : index
    %c126 = arith.constant 126 : index
    %1 = vector.load %arg13[%c0, %c126] : memref<64x386xf32, #tpu.memory_space<vmem>>, vector<64x2xf32>
    tpu.vector_store %arg13[%c0, %c126], %0 {strides = array<i32>} : memref<64x386xf32, #tpu.memory_space<vmem>>, vector<64x2xf32>,
    %c0_0 = arith.constant 0 : index
    %c384 = arith.constant 384 : index
    %2 = vector.load %arg13[%c0_0, %c384] : memref<64x386xf32, #tpu.memory_space<vmem>>, vector<64x2xf32>
    tpu.vector_store %arg13[%c0_0, %c384], %0 {strides = array<i32>} : memref<64x386xf32, #tpu.memory_space<vmem>>, vector<64x2xf32>,
    %c0_1 = arith.constant 0 : index
    %c0_2 = arith.constant 0 : index
    %c0_3 = arith.constant 0 : index
    %3 = vector.load %arg1[%c0_1, %c0_2, %c0_3] : memref<1x16x256xf32, #tpu.memory_space<vmem>>, vector<1x16x256xf32>
    %4 = vector.shape_cast %3 : vector<1x16x256xf32> to vector<16x256xf32>
    %cst_4 = arith.constant dense<0.000000e+00> : vector<256xf32>
    %5 = vector.multi_reduction <add>, %4, %cst_4 [0] : vector<16x256xf32> to vector<256xf32>
    %6 = vector.shape_cast %5 : vector<256xf32> to vector<1x256xf32>
    %cst_5 = arith.constant 1.600000e+01 : f32
    %7 = vector.broadcast %cst_5 : f32 to vector<1x256xf32>
    %8 = arith.divf %6, %7 : vector<1x256xf32>
    %9 = arith.mulf %4, %4 : vector<16x256xf32>
    %cst_6 = arith.constant dense<0.000000e+00> : vector<256xf32>
    %10 = vector.multi_reduction <add>, %9, %cst_6 [0] : vector<16x256xf32> to vector<256xf32>
    %11 = vector.shape_cast %10 : vector<256xf32> to vector<1x256xf32>
    %cst_7 = arith.constant 1.600000e+01 : f32
    %12 = vector.broadcast %cst_7 : f32 to vector<1x256xf32>
    %13 = arith.divf %11, %12 : vector<1x256xf32>
    %14 = arith.mulf %8, %8 : vector<1x256xf32>
    %15 = arith.subf %13, %14 : vector<1x256xf32>
    %cst_8 = arith.constant 0.000000e+00 : f32
    %16 = vector.broadcast %cst_8 : f32 to vector<1x256xf32>
    %17 = arith.maximumf %15, %16 : vector<1x256xf32>
    %cst_9 = arith.constant 9.99999993E-9 : f32
    %18 = vector.broadcast %cst_9 : f32 to vector<1x256xf32>
    %19 = arith.addf %17, %18 : vector<1x256xf32>
    %20 = math.rsqrt %19 : vector<1x256xf32>
    %c0_10 = arith.constant 0 : index
    %c0_11 = arith.constant 0 : index
    %21 = vector.load %arg2[%c0_10, %c0_11] : memref<16x2xf32, #tpu.memory_space<vmem>>, vector<16x1xf32>
    %22 = vector.broadcast %8 : vector<1x256xf32> to vector<16x256xf32>
    %23 = arith.subf %4, %22 : vector<16x256xf32>
    %24 = vector.broadcast %20 : vector<1x256xf32> to vector<16x256xf32>
    %25 = arith.mulf %23, %24 : vector<16x256xf32>
    %26 = vector.broadcast %21 : vector<16x1xf32> to vector<16x256xf32>
    %27 = arith.mulf %26, %25 : vector<16x256xf32>
    %c0_12 = arith.constant 0 : index
    %c1 = arith.constant 1 : index
    %28 = vector.load %arg2[%c0_12, %c1] : memref<16x2xf32, #tpu.memory_space<vmem>>, vector<16x1xf32>
    %29 = vector.broadcast %28 : vector<16x1xf32> to vector<16x256xf32>
    %30 = arith.addf %27, %29 : vector<16x256xf32>
    %c0_13 = arith.constant 0 : index
    %c0_14 = arith.constant 0 : index
    %31 = vector.load %arg3[%c0_13, %c0_14] : memref<32x16xbf16, #tpu.memory_space<vmem>>, vector<32x16xbf16>
    %32 = arith.truncf %30 : vector<16x256xf32> to vector<16x256xbf16>
    %cst_15 = arith.constant dense<0.000000e+00> : vector<32x256xf32>
    %33 = tpu.matmul %31, %32, %cst_15 {dimension_numbers = #tpu.dot_dimension_numbers<[1], [0], [0], [1], [0, 0, 1, 1], [], []>} : vector<32x16xbf16>, vector<16x256xbf16>, vector<32x256xf32> -> vector<32x256xf32>
    %c0_i32 = arith.constant 0 : i32
    %c2_i32 = arith.constant 2 : i32
    %34 = arith.addi %c0_i32, %c2_i32 : i32
    %c1_i32 = arith.constant 1 : i32
    %35 = scf.for %arg14 = %c0_i32 to %34 step %c1_i32 iter_args(%arg15 = %33) -> (vector<32x256xf32>)  : i32 {
      %c2_i32_24 = arith.constant 2 : i32
      %44 = arith.muli %arg14, %c2_i32_24 : i32
      %c0_i32_25 = arith.constant 0 : i32
      %45 = arith.addi %44, %c0_i32_25 : i32
      %46 = arith.index_cast %45 : i32 to index
      %c0_26 = arith.constant 0 : index
      %c0_27 = arith.constant 0 : index
      %47 = vector.load %arg4[%46, %c0_26, %c0_27] : memref<4x64x32xbf16, #tpu.memory_space<vmem>>, vector<1x64x32xbf16>
      %48 = vector.shape_cast %47 : vector<1x64x32xbf16> to vector<64x32xbf16>
      %49 = arith.index_cast %45 : i32 to index
      %c0_28 = arith.constant 0 : index
      %c0_29 = arith.constant 0 : index
      %50 = vector.load %arg5[%49, %c0_28, %c0_29] : memref<4x64x3xf32, #tpu.memory_space<vmem>>, vector<1x64x3xf32>
      %51 = vector.shape_cast %50 : vector<1x64x3xf32> to vector<64x3xf32>
      %52 = arith.index_cast %45 : i32 to index
      %c0_30 = arith.constant 0 : index
      %c0_31 = arith.constant 0 : index
      %53 = vector.load %arg6[%52, %c0_30, %c0_31] : memref<4x64x2xf32, #tpu.memory_space<vmem>>, vector<1x64x2xf32>
      %54 = vector.shape_cast %53 : vector<1x64x2xf32> to vector<64x2xf32>
      %55 = arith.index_cast %45 : i32 to index
      %c0_32 = arith.constant 0 : index
      %c0_33 = arith.constant 0 : index
      %56 = vector.load %arg7[%55, %c0_32, %c0_33] : memref<4x2x64xf32, #tpu.memory_space<vmem>>, vector<1x2x64xf32>
      %57 = vector.shape_cast %56 : vector<1x2x64xf32> to vector<2x64xf32>
      %58 = arith.index_cast %45 : i32 to index
      %c0_34 = arith.constant 0 : index
      %c0_35 = arith.constant 0 : index
      %59 = vector.load %arg8[%58, %c0_34, %c0_35] : memref<4x32x64xbf16, #tpu.memory_space<vmem>>, vector<1x32x64xbf16>
      %60 = vector.shape_cast %59 : vector<1x32x64xbf16> to vector<32x64xbf16>
      %61 = arith.extf %60 : vector<32x64xbf16> to vector<32x64xf32>
      %c2_i32_36 = arith.constant 2 : i32
      %62 = arith.muli %c2_i32_36, %45 : i32
      %63 = arith.index_cast %62 : i32 to index
      %64 = memref.load %arg10[%63] : memref<8xf32, #tpu.memory_space<smem>>
      %c2_i32_37 = arith.constant 2 : i32
      %65 = arith.muli %c2_i32_37, %45 : i32
      %c1_i32_38 = arith.constant 1 : i32
      %66 = arith.addi %65, %c1_i32_38 : i32
      %67 = arith.index_cast %66 : i32 to index
      %68 = memref.load %arg10[%67] : memref<8xf32, #tpu.memory_space<smem>>
      %69 = arith.truncf %arg15 : vector<32x256xf32> to vector<32x256xbf16>
      %cst_39 = arith.constant dense<0.000000e+00> : vector<64x256xf32>
      %70 = tpu.matmul %48, %69, %cst_39 {dimension_numbers = #tpu.dot_dimension_numbers<[1], [0], [0], [1], [0, 0, 1, 1], [], []>} : vector<64x32xbf16>, vector<32x256xbf16>, vector<64x256xf32> -> vector<64x256xf32>
      %cst_40 = arith.constant 0.000000e+00 : f32
      %71 = vector.broadcast %cst_40 : f32 to vector<64x256xf32>
      %72 = arith.cmpf oge, %70, %71 : vector<64x256xf32>
      %73 = vector.broadcast %64 : f32 to vector<64x256xf32>
      %74 = arith.mulf %73, %70 : vector<64x256xf32>
      %75 = arith.select %72, %70, %74 : vector<64x256xi1>, vector<64x256xf32>
      %cst_41 = arith.constant dense<0.000000e+00> : vector<64xf32>
      %76 = vector.multi_reduction <add>, %75, %cst_41 [1] : vector<64x256xf32> to vector<64xf32>
      %77 = vector.shape_cast %76 : vector<64xf32> to vector<64x1xf32>
      %78 = arith.mulf %75, %75 : vector<64x256xf32>
      %cst_42 = arith.constant dense<0.000000e+00> : vector<64xf32>
      %79 = vector.multi_reduction <add>, %78, %cst_42 [1] : vector<64x256xf32> to vector<64xf32>
      %80 = vector.shape_cast %79 : vector<64xf32> to vector<64x1xf32>
      %81 = vector.shape_cast %77 : vector<64x1xf32> to vector<1x64x1xf32>
      %cst_43 = arith.constant dense<0.000000e+00> : vector<1xf32>
      %82 = vector.multi_reduction <add>, %81, %cst_43 [1, 2] : vector<1x64x1xf32> to vector<1xf32>
      %83 = vector.shape_cast %82 : vector<1xf32> to vector<1x1x1xf32>
      %84 = vector.extract %83[0, 0, 0] : f32 from vector<1x1x1xf32>
      %cst_44 = arith.constant 6.10351563E-5 : f32
      %85 = arith.mulf %84, %cst_44 : f32
      %86 = vector.shape_cast %80 : vector<64x1xf32> to vector<1x64x1xf32>
      %cst_45 = arith.constant dense<0.000000e+00> : vector<1xf32>
      %87 = vector.multi_reduction <add>, %86, %cst_45 [1, 2] : vector<1x64x1xf32> to vector<1xf32>
      %88 = vector.shape_cast %87 : vector<1xf32> to vector<1x1x1xf32>
      %89 = vector.extract %88[0, 0, 0] : f32 from vector<1x1x1xf32>
      %cst_46 = arith.constant 6.10351563E-5 : f32
      %90 = arith.mulf %89, %cst_46 : f32
      %91 = arith.mulf %85, %85 : f32
      %92 = arith.subf %90, %91 : f32
      %cst_47 = arith.constant 0.000000e+00 : f32
      %93 = arith.maximumf %92, %cst_47 : f32
      %94 = vector.extract_strided_slice %54 {offsets = [0, 0], sizes = [64, 1], strides = [1, 1]} : vector<64x2xf32> to vector<64x1xf32>
      %cst_48 = arith.constant 9.99999993E-9 : f32
      %95 = arith.addf %93, %cst_48 : f32
      %96 = math.rsqrt %95 : f32
      %97 = vector.broadcast %96 : f32 to vector<64x1xf32>
      %98 = arith.mulf %94, %97 : vector<64x1xf32>
      %99 = vector.extract_strided_slice %54 {offsets = [0, 1], sizes = [64, 1], strides = [1, 1]} : vector<64x2xf32> to vector<64x1xf32>
      %100 = vector.broadcast %85 : f32 to vector<64x1xf32>
      %101 = arith.mulf %100, %98 : vector<64x1xf32>
      %102 = arith.subf %99, %101 : vector<64x1xf32>
      %103 = vector.broadcast %98 : vector<64x1xf32> to vector<64x256xf32>
      %104 = arith.mulf %75, %103 : vector<64x256xf32>
      %105 = vector.broadcast %102 : vector<64x1xf32> to vector<64x256xf32>
      %106 = arith.addf %104, %105 : vector<64x256xf32>
      %c0_49 = arith.constant 0 : index
      %c128 = arith.constant 128 : index
      %107 = vector.load %arg13[%c0_49, %c128] : memref<64x386xf32, #tpu.memory_space<vmem>>, vector<64x256xf32>
      tpu.vector_store %arg13[%c0_49, %c128], %106 {strides = array<i32>} : memref<64x386xf32, #tpu.memory_space<vmem>>, vector<64x256xf32>,
      %108 = vector.extract_strided_slice %51 {offsets = [0, 1], sizes = [64, 1], strides = [1, 1]} : vector<64x3xf32> to vector<64x1xf32>
      %109 = vector.broadcast %108 : vector<64x1xf32> to vector<64x256xf32>
      %110 = arith.mulf %109, %106 : vector<64x256xf32>
      %111 = vector.extract_strided_slice %51 {offsets = [0, 0], sizes = [64, 1], strides = [1, 1]} : vector<64x3xf32> to vector<64x1xf32>
      %c0_50 = arith.constant 0 : index
      %c127 = arith.constant 127 : index
      %112 = vector.load %arg13[%c0_50, %c127] : memref<64x386xf32, #tpu.memory_space<vmem>>, vector<64x256xf32>
      %113 = vector.broadcast %111 : vector<64x1xf32> to vector<64x256xf32>
      %114 = arith.mulf %113, %112 : vector<64x256xf32>
      %115 = arith.addf %110, %114 : vector<64x256xf32>
      %116 = vector.extract_strided_slice %51 {offsets = [0, 2], sizes = [64, 1], strides = [1, 1]} : vector<64x3xf32> to vector<64x1xf32>
      %c0_51 = arith.constant 0 : index
      %c129 = arith.constant 129 : index
      %117 = vector.load %arg13[%c0_51, %c129] : memref<64x386xf32, #tpu.memory_space<vmem>>, vector<64x256xf32>
      %118 = vector.broadcast %116 : vector<64x1xf32> to vector<64x256xf32>
      %119 = arith.mulf %118, %117 : vector<64x256xf32>
      %120 = arith.addf %115, %119 : vector<64x256xf32>
      %cst_52 = arith.constant 0.000000e+00 : f32
      %121 = vector.broadcast %cst_52 : f32 to vector<64x256xf32>
      %122 = arith.cmpf oge, %120, %121 : vector<64x256xf32>
      %123 = vector.broadcast %68 : f32 to vector<64x256xf32>
      %124 = arith.mulf %123, %120 : vector<64x256xf32>
      %125 = arith.select %122, %120, %124 : vector<64x256xi1>, vector<64x256xf32>
      %cst_53 = arith.constant dense<0.000000e+00> : vector<64xf32>
      %126 = vector.multi_reduction <add>, %125, %cst_53 [1] : vector<64x256xf32> to vector<64xf32>
      %127 = vector.shape_cast %126 : vector<64xf32> to vector<64x1xf32>
      %128 = arith.mulf %125, %125 : vector<64x256xf32>
      %cst_54 = arith.constant dense<0.000000e+00> : vector<64xf32>
      %129 = vector.multi_reduction <add>, %128, %cst_54 [1] : vector<64x256xf32> to vector<64xf32>
      %130 = vector.shape_cast %129 : vector<64xf32> to vector<64x1xf32>
      %131 = vector.shape_cast %127 : vector<64x1xf32> to vector<1x64x1xf32>
      %cst_55 = arith.constant dense<0.000000e+00> : vector<1xf32>
      %132 = vector.multi_reduction <add>, %131, %cst_55 [1, 2] : vector<1x64x1xf32> to vector<1xf32>
      %133 = vector.shape_cast %132 : vector<1xf32> to vector<1x1x1xf32>
      %134 = vector.extract %133[0, 0, 0] : f32 from vector<1x1x1xf32>
      %cst_56 = arith.constant 6.10351563E-5 : f32
      %135 = arith.mulf %134, %cst_56 : f32
      %136 = vector.shape_cast %130 : vector<64x1xf32> to vector<1x64x1xf32>
      %cst_57 = arith.constant dense<0.000000e+00> : vector<1xf32>
      %137 = vector.multi_reduction <add>, %136, %cst_57 [1, 2] : vector<1x64x1xf32> to vector<1xf32>
      %138 = vector.shape_cast %137 : vector<1xf32> to vector<1x1x1xf32>
      %139 = vector.extract %138[0, 0, 0] : f32 from vector<1x1x1xf32>
      %cst_58 = arith.constant 6.10351563E-5 : f32
      %140 = arith.mulf %139, %cst_58 : f32
      %141 = arith.mulf %135, %135 : f32
      %142 = arith.subf %140, %141 : f32
      %cst_59 = arith.constant 0.000000e+00 : f32
      %143 = arith.maximumf %142, %cst_59 : f32
      %144 = vector.extract_strided_slice %57 {offsets = [0, 0], sizes = [1, 64], strides = [1, 1]} : vector<2x64xf32> to vector<1x64xf32>
      %cst_60 = arith.constant 9.99999993E-9 : f32
      %145 = arith.addf %143, %cst_60 : f32
      %146 = math.rsqrt %145 : f32
      %147 = vector.broadcast %146 : f32 to vector<1x64xf32>
      %148 = arith.mulf %144, %147 : vector<1x64xf32>
      %149 = vector.extract_strided_slice %57 {offsets = [1, 0], sizes = [1, 64], strides = [1, 1]} : vector<2x64xf32> to vector<1x64xf32>
      %150 = vector.broadcast %135 : f32 to vector<1x64xf32>
      %151 = arith.mulf %150, %148 : vector<1x64xf32>
      %152 = arith.subf %149, %151 : vector<1x64xf32>
      %153 = vector.broadcast %148 : vector<1x64xf32> to vector<32x64xf32>
      %154 = arith.mulf %61, %153 : vector<32x64xf32>
      %155 = arith.truncf %154 : vector<32x64xf32> to vector<32x64xbf16>
      %156 = vector.broadcast %152 : vector<1x64xf32> to vector<32x64xf32>
      %157 = arith.mulf %61, %156 : vector<32x64xf32>
      %cst_61 = arith.constant dense<0.000000e+00> : vector<32xf32>
      %158 = vector.multi_reduction <add>, %157, %cst_61 [1] : vector<32x64xf32> to vector<32xf32>
      %159 = vector.shape_cast %158 : vector<32xf32> to vector<32x1xf32>
      %160 = vector.broadcast %159 : vector<32x1xf32> to vector<32x256xf32>
      %161 = arith.addf %arg15, %160 : vector<32x256xf32>
      %162 = arith.truncf %125 : vector<64x256xf32> to vector<64x256xbf16>
      %cst_62 = arith.constant dense<0.000000e+00> : vector<32x256xf32>
      %163 = tpu.matmul %155, %162, %cst_62 {dimension_numbers = #tpu.dot_dimension_numbers<[1], [0], [0], [1], [0, 0, 1, 1], [], []>} : vector<32x64xbf16>, vector<64x256xbf16>, vector<32x256xf32> -> vector<32x256xf32>
      %164 = arith.addf %161, %163 : vector<32x256xf32>
      %c1_i32_63 = arith.constant 1 : i32
      %165 = arith.cmpi eq, %arg14, %c1_i32_63 : i32
      %166 = arith.extui %165 : i1 to i32
      %c0_i32_64 = arith.constant 0 : i32
      %167 = arith.cmpi ne, %166, %c0_i32_64 : i32
      scf.if %167 {
        %c0_108 = arith.constant 0 : index
        %c32 = arith.constant 32 : index
        %c0_109 = arith.constant 0 : index
        %292 = vector.load %arg12[%c0_108, %c32, %c0_109] : memref<1x64x256xf32, #tpu.memory_space<vmem>>, vector<1x32x256xf32>
        %293 = vector.shape_cast %292 : vector<1x32x256xf32> to vector<32x256xf32>
        %294 = vector.shape_cast %164 : vector<32x256xf32> to vector<1x32x256xf32>
        tpu.vector_store %arg12[%c0_108, %c32, %c0_109], %294 {strides = array<i32>} : memref<1x64x256xf32, #tpu.memory_space<vmem>>, vector<1x32x256xf32>,
      } else {
      }
      %c2_i32_65 = arith.constant 2 : i32
      %168 = arith.muli %arg14, %c2_i32_65 : i32
      %c1_i32_66 = arith.constant 1 : i32
      %169 = arith.addi %168, %c1_i32_66 : i32
      %170 = arith.index_cast %169 : i32 to index
      %c0_67 = arith.constant 0 : index
      %c0_68 = arith.constant 0 : index
      %171 = vector.load %arg4[%170, %c0_67, %c0_68] : memref<4x64x32xbf16, #tpu.memory_space<vmem>>, vector<1x64x32xbf16>
      %172 = vector.shape_cast %171 : vector<1x64x32xbf16> to vector<64x32xbf16>
      %173 = arith.index_cast %169 : i32 to index
      %c0_69 = arith.constant 0 : index
      %c0_70 = arith.constant 0 : index
      %174 = vector.load %arg5[%173, %c0_69, %c0_70] : memref<4x64x3xf32, #tpu.memory_space<vmem>>, vector<1x64x3xf32>
      %175 = vector.shape_cast %174 : vector<1x64x3xf32> to vector<64x3xf32>
      %176 = arith.index_cast %169 : i32 to index
      %c0_71 = arith.constant 0 : index
      %c0_72 = arith.constant 0 : index
      %177 = vector.load %arg6[%176, %c0_71, %c0_72] : memref<4x64x2xf32, #tpu.memory_space<vmem>>, vector<1x64x2xf32>
      %178 = vector.shape_cast %177 : vector<1x64x2xf32> to vector<64x2xf32>
      %179 = arith.index_cast %169 : i32 to index
      %c0_73 = arith.constant 0 : index
      %c0_74 = arith.constant 0 : index
      %180 = vector.load %arg7[%179, %c0_73, %c0_74] : memref<4x2x64xf32, #tpu.memory_space<vmem>>, vector<1x2x64xf32>
      %181 = vector.shape_cast %180 : vector<1x2x64xf32> to vector<2x64xf32>
      %182 = arith.index_cast %169 : i32 to index
      %c0_75 = arith.constant 0 : index
      %c0_76 = arith.constant 0 : index
      %183 = vector.load %arg8[%182, %c0_75, %c0_76] : memref<4x32x64xbf16, #tpu.memory_space<vmem>>, vector<1x32x64xbf16>
      %184 = vector.shape_cast %183 : vector<1x32x64xbf16> to vector<32x64xbf16>
      %185 = arith.extf %184 : vector<32x64xbf16> to vector<32x64xf32>
      %c2_i32_77 = arith.constant 2 : i32
      %186 = arith.muli %c2_i32_77, %169 : i32
      %187 = arith.index_cast %186 : i32 to index
      %188 = memref.load %arg10[%187] : memref<8xf32, #tpu.memory_space<smem>>
      %c2_i32_78 = arith.constant 2 : i32
      %189 = arith.muli %c2_i32_78, %169 : i32
      %c1_i32_79 = arith.constant 1 : i32
      %190 = arith.addi %189, %c1_i32_79 : i32
      %191 = arith.index_cast %190 : i32 to index
      %192 = memref.load %arg10[%191] : memref<8xf32, #tpu.memory_space<smem>>
      %193 = arith.truncf %164 : vector<32x256xf32> to vector<32x256xbf16>
      %cst_80 = arith.constant dense<0.000000e+00> : vector<64x256xf32>
      %194 = tpu.matmul %172, %193, %cst_80 {dimension_numbers = #tpu.dot_dimension_numbers<[1], [0], [0], [1], [0, 0, 1, 1], [], []>} : vector<64x32xbf16>, vector<32x256xbf16>, vector<64x256xf32> -> vector<64x256xf32>
      %cst_81 = arith.constant 0.000000e+00 : f32
      %195 = vector.broadcast %cst_81 : f32 to vector<64x256xf32>
      %196 = arith.cmpf oge, %194, %195 : vector<64x256xf32>
      %197 = vector.broadcast %188 : f32 to vector<64x256xf32>
      %198 = arith.mulf %197, %194 : vector<64x256xf32>
      %199 = arith.select %196, %194, %198 : vector<64x256xi1>, vector<64x256xf32>
      %cst_82 = arith.constant dense<0.000000e+00> : vector<64xf32>
      %200 = vector.multi_reduction <add>, %199, %cst_82 [1] : vector<64x256xf32> to vector<64xf32>
      %201 = vector.shape_cast %200 : vector<64xf32> to vector<64x1xf32>
      %202 = arith.mulf %199, %199 : vector<64x256xf32>
      %cst_83 = arith.constant dense<0.000000e+00> : vector<64xf32>
      %203 = vector.multi_reduction <add>, %202, %cst_83 [1] : vector<64x256xf32> to vector<64xf32>
      %204 = vector.shape_cast %203 : vector<64xf32> to vector<64x1xf32>
      %205 = vector.shape_cast %201 : vector<64x1xf32> to vector<1x64x1xf32>
      %cst_84 = arith.constant dense<0.000000e+00> : vector<1xf32>
      %206 = vector.multi_reduction <add>, %205, %cst_84 [1, 2] : vector<1x64x1xf32> to vector<1xf32>
      %207 = vector.shape_cast %206 : vector<1xf32> to vector<1x1x1xf32>
      %208 = vector.extract %207[0, 0, 0] : f32 from vector<1x1x1xf32>
      %cst_85 = arith.constant 6.10351563E-5 : f32
      %209 = arith.mulf %208, %cst_85 : f32
      %210 = vector.shape_cast %204 : vector<64x1xf32> to vector<1x64x1xf32>
      %cst_86 = arith.constant dense<0.000000e+00> : vector<1xf32>
      %211 = vector.multi_reduction <add>, %210, %cst_86 [1, 2] : vector<1x64x1xf32> to vector<1xf32>
      %212 = vector.shape_cast %211 : vector<1xf32> to vector<1x1x1xf32>
      %213 = vector.extract %212[0, 0, 0] : f32 from vector<1x1x1xf32>
      %cst_87 = arith.constant 6.10351563E-5 : f32
      %214 = arith.mulf %213, %cst_87 : f32
      %215 = arith.mulf %209, %209 : f32
      %216 = arith.subf %214, %215 : f32
      %cst_88 = arith.constant 0.000000e+00 : f32
      %217 = arith.maximumf %216, %cst_88 : f32
      %218 = vector.extract_strided_slice %178 {offsets = [0, 0], sizes = [64, 1], strides = [1, 1]} : vector<64x2xf32> to vector<64x1xf32>
      %cst_89 = arith.constant 9.99999993E-9 : f32
      %219 = arith.addf %217, %cst_89 : f32
      %220 = math.rsqrt %219 : f32
      %221 = vector.broadcast %220 : f32 to vector<64x1xf32>
      %222 = arith.mulf %218, %221 : vector<64x1xf32>
      %223 = vector.extract_strided_slice %178 {offsets = [0, 1], sizes = [64, 1], strides = [1, 1]} : vector<64x2xf32> to vector<64x1xf32>
      %224 = vector.broadcast %209 : f32 to vector<64x1xf32>
      %225 = arith.mulf %224, %222 : vector<64x1xf32>
      %226 = arith.subf %223, %225 : vector<64x1xf32>
      %227 = vector.broadcast %222 : vector<64x1xf32> to vector<64x256xf32>
      %228 = arith.mulf %199, %227 : vector<64x256xf32>
      %229 = vector.broadcast %226 : vector<64x1xf32> to vector<64x256xf32>
      %230 = arith.addf %228, %229 : vector<64x256xf32>
      %c0_90 = arith.constant 0 : index
      %c128_91 = arith.constant 128 : index
      %231 = vector.load %arg13[%c0_90, %c128_91] : memref<64x386xf32, #tpu.memory_space<vmem>>, vector<64x256xf32>
      tpu.vector_store %arg13[%c0_90, %c128_91], %230 {strides = array<i32>} : memref<64x386xf32, #tpu.memory_space<vmem>>, vector<64x256xf32>,
      %232 = vector.extract_strided_slice %175 {offsets = [0, 1], sizes = [64, 1], strides = [1, 1]} : vector<64x3xf32> to vector<64x1xf32>
      %233 = vector.broadcast %232 : vector<64x1xf32> to vector<64x256xf32>
      %234 = arith.mulf %233, %230 : vector<64x256xf32>
      %235 = vector.extract_strided_slice %175 {offsets = [0, 0], sizes = [64, 1], strides = [1, 1]} : vector<64x3xf32> to vector<64x1xf32>
      %c0_92 = arith.constant 0 : index
      %c126_93 = arith.constant 126 : index
      %236 = vector.load %arg13[%c0_92, %c126_93] : memref<64x386xf32, #tpu.memory_space<vmem>>, vector<64x256xf32>
      %237 = vector.broadcast %235 : vector<64x1xf32> to vector<64x256xf32>
      %238 = arith.mulf %237, %236 : vector<64x256xf32>
      %239 = arith.addf %234, %238 : vector<64x256xf32>
      %240 = vector.extract_strided_slice %175 {offsets = [0, 2], sizes = [64, 1], strides = [1, 1]} : vector<64x3xf32> to vector<64x1xf32>
      %c0_94 = arith.constant 0 : index
      %c130 = arith.constant 130 : index
      %241 = vector.load %arg13[%c0_94, %c130] : memref<64x386xf32, #tpu.memory_space<vmem>>, vector<64x256xf32>
      %242 = vector.broadcast %240 : vector<64x1xf32> to vector<64x256xf32>
      %243 = arith.mulf %242, %241 : vector<64x256xf32>
      %244 = arith.addf %239, %243 : vector<64x256xf32>
      %cst_95 = arith.constant 0.000000e+00 : f32
      %245 = vector.broadcast %cst_95 : f32 to vector<64x256xf32>
      %246 = arith.cmpf oge, %244, %245 : vector<64x256xf32>
      %247 = vector.broadcast %192 : f32 to vector<64x256xf32>
      %248 = arith.mulf %247, %244 : vector<64x256xf32>
      %249 = arith.select %246, %244, %248 : vector<64x256xi1>, vector<64x256xf32>
      %cst_96 = arith.constant dense<0.000000e+00> : vector<64xf32>
      %250 = vector.multi_reduction <add>, %249, %cst_96 [1] : vector<64x256xf32> to vector<64xf32>
      %251 = vector.shape_cast %250 : vector<64xf32> to vector<64x1xf32>
      %252 = arith.mulf %249, %249 : vector<64x256xf32>
      %cst_97 = arith.constant dense<0.000000e+00> : vector<64xf32>
      %253 = vector.multi_reduction <add>, %252, %cst_97 [1] : vector<64x256xf32> to vector<64xf32>
      %254 = vector.shape_cast %253 : vector<64xf32> to vector<64x1xf32>
      %255 = vector.shape_cast %251 : vector<64x1xf32> to vector<1x64x1xf32>
      %cst_98 = arith.constant dense<0.000000e+00> : vector<1xf32>
      %256 = vector.multi_reduction <add>, %255, %cst_98 [1, 2] : vector<1x64x1xf32> to vector<1xf32>
      %257 = vector.shape_cast %256 : vector<1xf32> to vector<1x1x1xf32>
      %258 = vector.extract %257[0, 0, 0] : f32 from vector<1x1x1xf32>
      %cst_99 = arith.constant 6.10351563E-5 : f32
      %259 = arith.mulf %258, %cst_99 : f32
      %260 = vector.shape_cast %254 : vector<64x1xf32> to vector<1x64x1xf32>
      %cst_100 = arith.constant dense<0.000000e+00> : vector<1xf32>
      %261 = vector.multi_reduction <add>, %260, %cst_100 [1, 2] : vector<1x64x1xf32> to vector<1xf32>
      %262 = vector.shape_cast %261 : vector<1xf32> to vector<1x1x1xf32>
      %263 = vector.extract %262[0, 0, 0] : f32 from vector<1x1x1xf32>
      %cst_101 = arith.constant 6.10351563E-5 : f32
      %264 = arith.mulf %263, %cst_101 : f32
      %265 = arith.mulf %259, %259 : f32
      %266 = arith.subf %264, %265 : f32
      %cst_102 = arith.constant 0.000000e+00 : f32
      %267 = arith.maximumf %266, %cst_102 : f32
      %268 = vector.extract_strided_slice %181 {offsets = [0, 0], sizes = [1, 64], strides = [1, 1]} : vector<2x64xf32> to vector<1x64xf32>
      %cst_103 = arith.constant 9.99999993E-9 : f32
      %269 = arith.addf %267, %cst_103 : f32
      %270 = math.rsqrt %269 : f32
      %271 = vector.broadcast %270 : f32 to vector<1x64xf32>
      %272 = arith.mulf %268, %271 : vector<1x64xf32>
      %273 = vector.extract_strided_slice %181 {offsets = [1, 0], sizes = [1, 64], strides = [1, 1]} : vector<2x64xf32> to vector<1x64xf32>
      %274 = vector.broadcast %259 : f32 to vector<1x64xf32>
      %275 = arith.mulf %274, %272 : vector<1x64xf32>
      %276 = arith.subf %273, %275 : vector<1x64xf32>
      %277 = vector.broadcast %272 : vector<1x64xf32> to vector<32x64xf32>
      %278 = arith.mulf %185, %277 : vector<32x64xf32>
      %279 = arith.truncf %278 : vector<32x64xf32> to vector<32x64xbf16>
      %280 = vector.broadcast %276 : vector<1x64xf32> to vector<32x64xf32>
      %281 = arith.mulf %185, %280 : vector<32x64xf32>
      %cst_104 = arith.constant dense<0.000000e+00> : vector<32xf32>
      %282 = vector.multi_reduction <add>, %281, %cst_104 [1] : vector<32x64xf32> to vector<32xf32>
      %283 = vector.shape_cast %282 : vector<32xf32> to vector<32x1xf32>
      %284 = vector.broadcast %283 : vector<32x1xf32> to vector<32x256xf32>
      %285 = arith.addf %164, %284 : vector<32x256xf32>
      %286 = arith.truncf %249 : vector<64x256xf32> to vector<64x256xbf16>
      %cst_105 = arith.constant dense<0.000000e+00> : vector<32x256xf32>
      %287 = tpu.matmul %279, %286, %cst_105 {dimension_numbers = #tpu.dot_dimension_numbers<[1], [0], [0], [1], [0, 0, 1, 1], [], []>} : vector<32x64xbf16>, vector<64x256xbf16>, vector<32x256xf32> -> vector<32x256xf32>
      %288 = arith.addf %285, %287 : vector<32x256xf32>
      %c0_i32_106 = arith.constant 0 : i32
      %289 = arith.cmpi eq, %arg14, %c0_i32_106 : i32
      %290 = arith.extui %289 : i1 to i32
      %c0_i32_107 = arith.constant 0 : i32
      %291 = arith.cmpi ne, %290, %c0_i32_107 : i32
      scf.if %291 {
        %c0_108 = arith.constant 0 : index
        %c0_109 = arith.constant 0 : index
        %c0_110 = arith.constant 0 : index
        %292 = vector.load %arg12[%c0_108, %c0_109, %c0_110] : memref<1x64x256xf32, #tpu.memory_space<vmem>>, vector<1x32x256xf32>
        %293 = vector.shape_cast %292 : vector<1x32x256xf32> to vector<32x256xf32>
        %294 = vector.shape_cast %288 : vector<32x256xf32> to vector<1x32x256xf32>
        tpu.vector_store %arg12[%c0_108, %c0_109, %c0_110], %294 {strides = array<i32>} : memref<1x64x256xf32, #tpu.memory_space<vmem>>, vector<1x32x256xf32>,
      } else {
      }
      scf.yield %288 : vector<32x256xf32>
    }
    %c2_i32_16 = arith.constant 2 : i32
    %c0_17 = arith.constant 0 : index
    %c0_18 = arith.constant 0 : index
    %36 = vector.load %arg9[%c0_17, %c0_18] : memref<32x32xbf16, #tpu.memory_space<vmem>>, vector<32x32xbf16>
    %37 = arith.truncf %35 : vector<32x256xf32> to vector<32x256xbf16>
    %cst_19 = arith.constant dense<0.000000e+00> : vector<32x256xf32>
    %38 = tpu.matmul %36, %37, %cst_19 {dimension_numbers = #tpu.dot_dimension_numbers<[1], [0], [0], [1], [0, 0, 1, 1], [], []>} : vector<32x32xbf16>, vector<32x256xbf16>, vector<32x256xf32> -> vector<32x256xf32>
    %cst_20 = arith.constant 0.000000e+00 : f32
    %39 = vector.broadcast %cst_20 : f32 to vector<32x256xf32>
    %40 = arith.maximumf %38, %39 : vector<32x256xf32>
    %c0_21 = arith.constant 0 : index
    %c0_22 = arith.constant 0 : index
    %c0_23 = arith.constant 0 : index
    %41 = vector.load %arg11[%c0_21, %c0_22, %c0_23] : memref<1x32x256xf32, #tpu.memory_space<vmem>>, vector<1x32x256xf32>
    %42 = vector.shape_cast %41 : vector<1x32x256xf32> to vector<32x256xf32>
    %43 = vector.shape_cast %40 : vector<32x256xf32> to vector<1x32x256xf32>
    tpu.vector_store %arg11[%c0_21, %c0_22, %c0_23], %43 {strides = array<i32>} : memref<1x32x256xf32, #tpu.memory_space<vmem>>, vector<1x32x256xf32>,
    return
  }
  func.func @transform_0(%arg0: i32) -> (i32, i32, i32) {
    %c0_i32 = arith.constant 0 : i32
    %c0_i32_0 = arith.constant 0 : i32
    %c0_i32_1 = arith.constant 0 : i32
    return %arg0, %c0_i32, %c0_i32_0 : i32, i32, i32
  }
  func.func @transform_1(%arg0: i32) -> (i32, i32) {
    %c0_i32 = arith.constant 0 : i32
    %c0_i32_0 = arith.constant 0 : i32
    %c0_i32_1 = arith.constant 0 : i32
    return %c0_i32, %c0_i32_0 : i32, i32
  }
  func.func @transform_2(%arg0: i32) -> (i32, i32) {
    %c0_i32 = arith.constant 0 : i32
    %c0_i32_0 = arith.constant 0 : i32
    %c0_i32_1 = arith.constant 0 : i32
    return %c0_i32, %c0_i32_0 : i32, i32
  }
  func.func @transform_3(%arg0: i32) -> (i32, i32, i32) {
    %c0_i32 = arith.constant 0 : i32
    %c0_i32_0 = arith.constant 0 : i32
    %c0_i32_1 = arith.constant 0 : i32
    %c0_i32_2 = arith.constant 0 : i32
    return %c0_i32, %c0_i32_0, %c0_i32_1 : i32, i32, i32
  }
  func.func @transform_4(%arg0: i32) -> (i32, i32, i32) {
    %c0_i32 = arith.constant 0 : i32
    %c0_i32_0 = arith.constant 0 : i32
    %c0_i32_1 = arith.constant 0 : i32
    %c0_i32_2 = arith.constant 0 : i32
    return %c0_i32, %c0_i32_0, %c0_i32_1 : i32, i32, i32
  }
  func.func @transform_5(%arg0: i32) -> (i32, i32, i32) {
    %c0_i32 = arith.constant 0 : i32
    %c0_i32_0 = arith.constant 0 : i32
    %c0_i32_1 = arith.constant 0 : i32
    %c0_i32_2 = arith.constant 0 : i32
    return %c0_i32, %c0_i32_0, %c0_i32_1 : i32, i32, i32
  }
  func.func @transform_6(%arg0: i32) -> (i32, i32, i32) {
    %c0_i32 = arith.constant 0 : i32
    %c0_i32_0 = arith.constant 0 : i32
    %c0_i32_1 = arith.constant 0 : i32
    %c0_i32_2 = arith.constant 0 : i32
    return %c0_i32, %c0_i32_0, %c0_i32_1 : i32, i32, i32
  }
  func.func @transform_7(%arg0: i32) -> (i32, i32, i32) {
    %c0_i32 = arith.constant 0 : i32
    %c0_i32_0 = arith.constant 0 : i32
    %c0_i32_1 = arith.constant 0 : i32
    %c0_i32_2 = arith.constant 0 : i32
    return %c0_i32, %c0_i32_0, %c0_i32_1 : i32, i32, i32
  }
  func.func @transform_8(%arg0: i32) -> (i32, i32) {
    %c0_i32 = arith.constant 0 : i32
    %c0_i32_0 = arith.constant 0 : i32
    %c0_i32_1 = arith.constant 0 : i32
    return %c0_i32, %c0_i32_0 : i32, i32
  }
  func.func @transform_9(%arg0: i32) -> i32 {
    %c0_i32 = arith.constant 0 : i32
    %c0_i32_0 = arith.constant 0 : i32
    return %c0_i32 : i32
  }
  func.func @transform_10(%arg0: i32) -> (i32, i32, i32) {
    %c0_i32 = arith.constant 0 : i32
    %c0_i32_0 = arith.constant 0 : i32
    %c0_i32_1 = arith.constant 0 : i32
    return %arg0, %c0_i32, %c0_i32_0 : i32, i32, i32
  }
  func.func @transform_11(%arg0: i32) -> (i32, i32, i32) {
    %c0_i32 = arith.constant 0 : i32
    %c0_i32_0 = arith.constant 0 : i32
    %c0_i32_1 = arith.constant 0 : i32
    return %arg0, %c0_i32, %c0_i32_0 : i32, i32, i32
  }
}

</mosaic_0001>

<llo_original>
// kernel: tpu_custom_call.1
$region0: #{tpu_custom_call.1}
  #allocation0 [shape = 'u32[]', space=smem, size = 0x4, offset = 0x4, fixed_abs, tag = 'smem constant byte address 0x4 - core index']
  #allocation1 [shape = 'u32[144,128]{1,0:T(1,128)}', space=vmem, size = 0x12000, scoped, tag = 'internal scratch']
  #allocation2 [shape = 'f32[64,386]{1,0:T(8,128)}', space=vmem, size = 0x20000, scoped, tag = 'scratch operand']
  %s0 = inlined_call_operand.vmem [shape: f32[2,16,256], index: 0, kind: input, shape index: {}]
  %s1 = inlined_call_operand.vmem [shape: f32[16,2], index: 1, kind: input, shape index: {}]
  %s2 = inlined_call_operand.vmem [shape: bf16[32,16], index: 2, kind: input, shape index: {}]
  %s3 = inlined_call_operand.vmem [shape: bf16[4,64,32], index: 3, kind: input, shape index: {}]
  %s4 = inlined_call_operand.vmem [shape: f32[4,64,3], index: 4, kind: input, shape index: {}]
  %s5 = inlined_call_operand.vmem [shape: f32[4,64,2], index: 5, kind: input, shape index: {}]
  %s6 = inlined_call_operand.vmem [shape: f32[4,2,64], index: 6, kind: input, shape index: {}]
  %s7 = inlined_call_operand.vmem [shape: bf16[4,32,64], index: 7, kind: input, shape index: {}]
  %s8 = inlined_call_operand.vmem [shape: bf16[32,32], index: 8, kind: input, shape index: {}]
  %s9 = inlined_call_operand.vmem [shape: f32[8], index: 9, kind: input, shape index: {}]
  %s10 = inlined_call_operand.hbm [shape: f32[2,32,256], index: 10, kind: output, shape index: {0}]
  %s11 = inlined_call_operand.hbm [shape: f32[2,64,256], index: 11, kind: output, shape index: {1}]
  %12 = xla_tuple %s10, %s11
  %s13 = sld [smem:[#allocation0]]
  $region100: #{tpu_custom_call.1} parent=0
    _
  %s15 = ssub.s32 1, %s13
  %s16 = scalar_select 0, %s15, %s13
  $region1: #{tpu_custom_call.1} parent=0
    #allocation3 [shape = 'u8[512]{0}', space=smem, size = 0x200, scoped, tag = 'input window, operand 9, single buffered']
    #allocation4 [shape = 's32[2]{0}', space=sflag, size = 0x8, scoped, tag = 'scoped memory for tpu_custom_call.1']
    #allocation5 [shape = 's32[2]{0}', space=sflag, size = 0x8, scoped, tag = 'scoped memory for tpu_custom_call.1']
    #allocation6 [shape = 'u8[65536]{0}', space=vmem, size = 0x10000, scoped, tag = 'output window, operand 0']
    #allocation7 [shape = 'u8[131072]{0}', space=vmem, size = 0x20000, scoped, tag = 'output window, operand 1']
    #allocation8 [shape = 's32[2]{0}', space=sflag, size = 0x8, scoped, tag = 'scoped memory for tpu_custom_call.1']
    %17 = vsyncpa [#allocation5], 0
    %18 = vsyncpa [#allocation4], 0
    %s19 = scalar_lea.sflag [#allocation4], 1
    %20 = vsyncpa %s19, 0
    %21 = vsyncpa [#allocation8], 0
    %s22 = scalar_lea.sflag [#allocation8], 1
    %23 = vsyncpa %s22, 0
    loop: start=0, step=1, limit=4
    $region2: #{tpu_custom_call.1} parent=1 // loop_pre_header
      _
    $region3: #{tpu_custom_call.1} parent=1 // loop_header
      %s25 = sphi 0, %s29
      %p26 = scmp.ge.s32.totalorder %s25, 4
      %s35 = sphi 0, %s37
      %s38 = sphi 0, %s35
      %s39 = sphi 0, %s38
      %s55 = sphi 0, %s39
      %s59 = sphi 0, %s59
      %s61 = sphi 0, %s59
      %s62 = sphi 0, %s61
      %s76 = sphi 0, %s62
      %s80 = sphi 0, %s80
      %s82 = sphi 0, %s80
      %s83 = sphi 0, %s82
      %s97 = sphi 0, %s83
      %s101 = sphi 0, %s101
      %s103 = sphi 0, %s101
      %s104 = sphi 0, %s103
      %s118 = sphi 0, %s104
      %s122 = sphi 0, %s122
      %s124 = sphi 0, %s122
      %s125 = sphi 0, %s124
      %s139 = sphi 0, %s125
      %s143 = sphi 0, %s143
      %s145 = sphi 0, %s143
      %s146 = sphi 0, %s145
      %s160 = sphi 0, %s146
      %s164 = sphi 0, %s164
      %s166 = sphi 0, %s164
      %s167 = sphi 0, %s166
      %s181 = sphi 0, %s167
      %s185 = sphi 0, %s185
      %s187 = sphi 0, %s185
      %s188 = sphi 0, %s187
      %s202 = sphi 0, %s188
      %s206 = sphi 0, %s206
      %s208 = sphi 0, %s206
      %s209 = sphi 0, %s208
      %s223 = sphi 0, %s209
      %s227 = sphi 0, %s227
      %s229 = sphi 0, %s227
      %s230 = sphi 0, %s229
      %s244 = sphi 0, %s230
      %s250 = sphi 0, %s252
      %s253 = sphi 0, %s250
      %s254 = sphi 0, %s253
      %s270 = sphi 0, %s254
      %s276 = sphi 0, %s278
      %s279 = sphi 0, %s276
      %s280 = sphi 0, %s279
      %s296 = sphi 0, %s280
    $region4: #{tpu_custom_call.1} parent=1 // loop_header_branch
      %28 = sbr.rel (%p26) target = $region8
    $region5: #{tpu_custom_call.1} parent=1 // loop_body
      %s30 = ssub.s32 %s25, 1
      %s31 = ssub.s32 %s25, 2
      %s32 = sadd.s32 %s25, 1
      %s33 = ssub.s32 %s25, %s32
      %p34 = scmp.eq.s32.totalorder %s33, 0
      %s36 = sadd.s32 %s35, 1
      %s37 = scalar_select %p34, %s35, %s36
      %p40 = pneg %p34
      %p41 = scmp.eq.s32.totalorder %s25, 1
      %p42 = por %p40, %p41
      %p43 = scmp.ne.s32.totalorder %s35, %s38
      %p44 = scmp.eq.s32.totalorder %s25, 0
      %p45 = por %p43, %p44
      %p46 = scmp.ne.s32.totalorder %s35, %s38
      %p47 = scmp.eq.s32.totalorder %s30, 1
      %p48 = por %p46, %p47
      %p49 = scmp.ne.s32.totalorder %s38, %s39
      %p50 = scmp.eq.s32.totalorder %s30, 0
      %p51 = por %p49, %p50
      %p52 = scmp.ne.s32.totalorder %s38, %s39
      %p53 = scmp.eq.s32.totalorder %s31, 1
      %p54 = por %p52, %p53
      %p56 = scmp.ne.s32.totalorder %s39, %s55
      %p57 = scmp.eq.s32.totalorder %s31, 0
      %p58 = por %p56, %p57
      %s60 = sadd.s32 %s59, 1
      %p63 = scmp.eq.s32.totalorder %s25, 1
      %p64 = scmp.ne.s32.totalorder %s59, %s61
      %p65 = scmp.eq.s32.totalorder %s25, 0
      %p66 = por %p64, %p65
      %p67 = scmp.ne.s32.totalorder %s59, %s61
      %p68 = scmp.eq.s32.totalorder %s30, 1
      %p69 = por %p67, %p68
      %p70 = scmp.ne.s32.totalorder %s61, %s62
      %p71 = scmp.eq.s32.totalorder %s30, 0
      %p72 = por %p70, %p71
      %p73 = scmp.ne.s32.totalorder %s61, %s62
      %p74 = scmp.eq.s32.totalorder %s31, 1
      %p75 = por %p73, %p74
      %p77 = scmp.ne.s32.totalorder %s62, %s76
      %p78 = scmp.eq.s32.totalorder %s31, 0
      %p79 = por %p77, %p78
      %s81 = sadd.s32 %s80, 1
      %p84 = scmp.eq.s32.totalorder %s25, 1
      %p85 = scmp.ne.s32.totalorder %s80, %s82
      %p86 = scmp.eq.s32.totalorder %s25, 0
      %p87 = por %p85, %p86
      %p88 = scmp.ne.s32.totalorder %s80, %s82
      %p89 = scmp.eq.s32.totalorder %s30, 1
      %p90 = por %p88, %p89
      %p91 = scmp.ne.s32.totalorder %s82, %s83
      %p92 = scmp.eq.s32.totalorder %s30, 0
      %p93 = por %p91, %p92
      %p94 = scmp.ne.s32.totalorder %s82, %s83
      %p95 = scmp.eq.s32.totalorder %s31, 1
      %p96 = por %p94, %p95
      %p98 = scmp.ne.s32.totalorder %s83, %s97
      %p99 = scmp.eq.s32.totalorder %s31, 0
      %p100 = por %p98, %p99
      %s102 = sadd.s32 %s101, 1
      %p105 = scmp.eq.s32.totalorder %s25, 1
      %p106 = scmp.ne.s32.totalorder %s101, %s103
      %p107 = scmp.eq.s32.totalorder %s25, 0
      %p108 = por %p106, %p107
      %p109 = scmp.ne.s32.totalorder %s101, %s103
      %p110 = scmp.eq.s32.totalorder %s30, 1
      %p111 = por %p109, %p110
      %p112 = scmp.ne.s32.totalorder %s103, %s104
      %p113 = scmp.eq.s32.totalorder %s30, 0
      %p114 = por %p112, %p113
      %p115 = scmp.ne.s32.totalorder %s103, %s104
      %p116 = scmp.eq.s32.totalorder %s31, 1
      %p117 = por %p115, %p116
      %p119 = scmp.ne.s32.totalorder %s104, %s118
      %p120 = scmp.eq.s32.totalorder %s31, 0
      %p121 = por %p119, %p120
      %s123 = sadd.s32 %s122, 1
      %p126 = scmp.eq.s32.totalorder %s25, 1
      %p127 = scmp.ne.s32.totalorder %s122, %s124
      %p128 = scmp.eq.s32.totalorder %s25, 0
      %p129 = por %p127, %p128
      %p130 = scmp.ne.s32.totalorder %s122, %s124
      %p131 = scmp.eq.s32.totalorder %s30, 1
      %p132 = por %p130, %p131
      %p133 = scmp.ne.s32.totalorder %s124, %s125
      %p134 = scmp.eq.s32.totalorder %s30, 0
      %p135 = por %p133, %p134
      %p136 = scmp.ne.s32.totalorder %s124, %s125
      %p137 = scmp.eq.s32.totalorder %s31, 1
      %p138 = por %p136, %p137
      %p140 = scmp.ne.s32.totalorder %s125, %s139
      %p141 = scmp.eq.s32.totalorder %s31, 0
      %p142 = por %p140, %p141
      %s144 = sadd.s32 %s143, 1
      %p147 = scmp.eq.s32.totalorder %s25, 1
      %p148 = scmp.ne.s32.totalorder %s143, %s145
      %p149 = scmp.eq.s32.totalorder %s25, 0
      %p150 = por %p148, %p149
      %p151 = scmp.ne.s32.totalorder %s143, %s145
      %p152 = scmp.eq.s32.totalorder %s30, 1
      %p153 = por %p151, %p152
      %p154 = scmp.ne.s32.totalorder %s145, %s146
      %p155 = scmp.eq.s32.totalorder %s30, 0
      %p156 = por %p154, %p155
      %p157 = scmp.ne.s32.totalorder %s145, %s146
      %p158 = scmp.eq.s32.totalorder %s31, 1
      %p159 = por %p157, %p158
      %p161 = scmp.ne.s32.totalorder %s146, %s160
      %p162 = scmp.eq.s32.totalorder %s31, 0
      %p163 = por %p161, %p162
      %s165 = sadd.s32 %s164, 1
      %p168 = scmp.eq.s32.totalorder %s25, 1
      %p169 = scmp.ne.s32.totalorder %s164, %s166
      %p170 = scmp.eq.s32.totalorder %s25, 0
      %p171 = por %p169, %p170
      %p172 = scmp.ne.s32.totalorder %s164, %s166
      %p173 = scmp.eq.s32.totalorder %s30, 1
      %p174 = por %p172, %p173
      %p175 = scmp.ne.s32.totalorder %s166, %s167
      %p176 = scmp.eq.s32.totalorder %s30, 0
      %p177 = por %p175, %p176
      %p178 = scmp.ne.s32.totalorder %s166, %s167
      %p179 = scmp.eq.s32.totalorder %s31, 1
      %p180 = por %p178, %p179
      %p182 = scmp.ne.s32.totalorder %s167, %s181
      %p183 = scmp.eq.s32.totalorder %s31, 0
      %p184 = por %p182, %p183
      %s186 = sadd.s32 %s185, 1
      %p189 = scmp.eq.s32.totalorder %s25, 1
      %p190 = scmp.ne.s32.totalorder %s185, %s187
      %p191 = scmp.eq.s32.totalorder %s25, 0
      %p192 = por %p190, %p191
      %p193 = scmp.ne.s32.totalorder %s185, %s187
      %p194 = scmp.eq.s32.totalorder %s30, 1
      %p195 = por %p193, %p194
      %p196 = scmp.ne.s32.totalorder %s187, %s188
      %p197 = scmp.eq.s32.totalorder %s30, 0
      %p198 = por %p196, %p197
      %p199 = scmp.ne.s32.totalorder %s187, %s188
      %p200 = scmp.eq.s32.totalorder %s31, 1
      %p201 = por %p199, %p200
      %p203 = scmp.ne.s32.totalorder %s188, %s202
      %p204 = scmp.eq.s32.totalorder %s31, 0
      %p205 = por %p203, %p204
      %s207 = sadd.s32 %s206, 1
      %p210 = scmp.eq.s32.totalorder %s25, 1
      %p211 = scmp.ne.s32.totalorder %s206, %s208
      %p212 = scmp.eq.s32.totalorder %s25, 0
      %p213 = por %p211, %p212
      %p214 = scmp.ne.s32.totalorder %s206, %s208
      %p215 = scmp.eq.s32.totalorder %s30, 1
      %p216 = por %p214, %p215
      %p217 = scmp.ne.s32.totalorder %s208, %s209
      %p218 = scmp.eq.s32.totalorder %s30, 0
      %p219 = por %p217, %p218
      %p220 = scmp.ne.s32.totalorder %s208, %s209
      %p221 = scmp.eq.s32.totalorder %s31, 1
      %p222 = por %p220, %p221
      %p224 = scmp.ne.s32.totalorder %s209, %s223
      %p225 = scmp.eq.s32.totalorder %s31, 0
      %p226 = por %p224, %p225
      %s228 = sadd.s32 %s227, 1
      %p231 = scmp.eq.s32.totalorder %s25, 1
      %p232 = scmp.ne.s32.totalorder %s227, %s229
      %p233 = scmp.eq.s32.totalorder %s25, 0
      %p234 = por %p232, %p233
      %p235 = scmp.ne.s32.totalorder %s227, %s229
      %p236 = scmp.eq.s32.totalorder %s30, 1
      %p237 = por %p235, %p236
      %p238 = scmp.ne.s32.totalorder %s229, %s230
      %p239 = scmp.eq.s32.totalorder %s30, 0
      %p240 = por %p238, %p239
      %p241 = scmp.ne.s32.totalorder %s229, %s230
      %p242 = scmp.eq.s32.totalorder %s31, 1
      %p243 = por %p241, %p242
      %p245 = scmp.ne.s32.totalorder %s230, %s244
      %p246 = scmp.eq.s32.totalorder %s31, 0
      %p247 = por %p245, %p246
      %s248 = ssub.s32 %s25, %s32
      %p249 = scmp.eq.s32.totalorder %s248, 0
      %s251 = sadd.s32 %s250, 1
      %s252 = scalar_select %p249, %s250, %s251
      %p255 = pneg %p249
      %p256 = scmp.eq.s32.totalorder %s25, 1
      %p257 = por %p255, %p256
      %p258 = scmp.ne.s32.totalorder %s250, %s253
      %p259 = scmp.eq.s32.totalorder %s25, 0
      %p260 = por %p258, %p259
      %p261 = scmp.ne.s32.totalorder %s250, %s253
      %p262 = scmp.eq.s32.totalorder %s30, 1
      %p263 = por %p261, %p262
      %p264 = scmp.ne.s32.totalorder %s253, %s254
      %p265 = scmp.eq.s32.totalorder %s30, 0
      %p266 = por %p264, %p265
      %p267 = scmp.ne.s32.totalorder %s253, %s254
      %p268 = scmp.eq.s32.totalorder %s31, 1
      %p269 = por %p267, %p268
      %p271 = scmp.ne.s32.totalorder %s254, %s270
      %p272 = scmp.eq.s32.totalorder %s31, 0
      %p273 = por %p271, %p272
      %s274 = ssub.s32 %s25, %s32
      %p275 = scmp.eq.s32.totalorder %s274, 0
      %s277 = sadd.s32 %s276, 1
      %s278 = scalar_select %p275, %s276, %s277
      %p281 = pneg %p275
      %p282 = scmp.eq.s32.totalorder %s25, 1
      %p283 = por %p281, %p282
      %p284 = scmp.ne.s32.totalorder %s276, %s279
      %p285 = scmp.eq.s32.totalorder %s25, 0
      %p286 = por %p284, %p285
      %p287 = scmp.ne.s32.totalorder %s276, %s279
      %p288 = scmp.eq.s32.totalorder %s30, 1
      %p289 = por %p287, %p288
      %p290 = scmp.ne.s32.totalorder %s279, %s280
      %p291 = scmp.eq.s32.totalorder %s30, 0
      %p292 = por %p290, %p291
      %p293 = scmp.ne.s32.totalorder %s279, %s280
      %p294 = scmp.eq.s32.totalorder %s31, 1
      %p295 = por %p293, %p294
      %p297 = scmp.ne.s32.totalorder %s280, %s296
      %p298 = scmp.eq.s32.totalorder %s31, 0
      %p299 = por %p297, %p298
      %p300 = scmp.le.s32.totalorder 1, %s25
      %p301 = scmp.lt.s32.totalorder %s25, 3
      %p302 = pnand %p300, %p301
      %p303 = pneg %p302
      // Predicated region
      $region9: #{tpu_custom_call.1} parent=5 // pred_check
        _
      $region10: #{tpu_custom_call.1} parent=5 // pred_check_branch
        %305 = sbr.rel (%p302) target = $region12
      $region11: #{tpu_custom_call.1} parent=5 // pred_region
        %s306 = ssub.s32 %s25, 1
        // Predicated region
        $region13: #{tpu_custom_call.1} parent=11 // pred_check
          %p307 = pneg %p72
        $region14: #{tpu_custom_call.1} parent=11 // pred_check_branch
          %309 = sbr.rel (%p307) target = $region16
        $region15: #{tpu_custom_call.1} parent=11 // pred_region
          _
        $region16: #{tpu_custom_call.1} parent=11 // pred_fallthru
          _
        // Predicated region
        $region17: #{tpu_custom_call.1} parent=11 // pred_check
          %p310 = pneg %p93
        $region18: #{tpu_custom_call.1} parent=11 // pred_check_branch
          %312 = sbr.rel (%p310) target = $region20
        $region19: #{tpu_custom_call.1} parent=11 // pred_region
          _
        $region20: #{tpu_custom_call.1} parent=11 // pred_fallthru
          _
        // Predicated region
        $region21: #{tpu_custom_call.1} parent=11 // pred_check
          %p313 = pneg %p114
        $region22: #{tpu_custom_call.1} parent=11 // pred_check_branch
          %315 = sbr.rel (%p313) target = $region24
        $region23: #{tpu_custom_call.1} parent=11 // pred_region
          _
        $region24: #{tpu_custom_call.1} parent=11 // pred_fallthru
          _
        // Predicated region
        $region25: #{tpu_custom_call.1} parent=11 // pred_check
          %p316 = pneg %p135
        $region26: #{tpu_custom_call.1} parent=11 // pred_check_branch
          %318 = sbr.rel (%p316) target = $region28
        $region27: #{tpu_custom_call.1} parent=11 // pred_region
          _
        $region28: #{tpu_custom_call.1} parent=11 // pred_fallthru
          _
        // Predicated region
        $region29: #{tpu_custom_call.1} parent=11 // pred_check
          %p319 = pneg %p156
        $region30: #{tpu_custom_call.1} parent=11 // pred_check_branch
          %321 = sbr.rel (%p319) target = $region32
        $region31: #{tpu_custom_call.1} parent=11 // pred_region
          _
        $region32: #{tpu_custom_call.1} parent=11 // pred_fallthru
          _
        // Predicated region
        $region33: #{tpu_custom_call.1} parent=11 // pred_check
          %p322 = pneg %p177
        $region34: #{tpu_custom_call.1} parent=11 // pred_check_branch
          %324 = sbr.rel (%p322) target = $region36
        $region35: #{tpu_custom_call.1} parent=11 // pred_region
          _
        $region36: #{tpu_custom_call.1} parent=11 // pred_fallthru
          _
        // Predicated region
        $region37: #{tpu_custom_call.1} parent=11 // pred_check
          %p325 = pneg %p198
        $region38: #{tpu_custom_call.1} parent=11 // pred_check_branch
          %327 = sbr.rel (%p325) target = $region40
        $region39: #{tpu_custom_call.1} parent=11 // pred_region
          _
        $region40: #{tpu_custom_call.1} parent=11 // pred_fallthru
          _
        // Predicated region
        $region41: #{tpu_custom_call.1} parent=11 // pred_check
          %p328 = pneg %p219
        $region42: #{tpu_custom_call.1} parent=11 // pred_check_branch
          %330 = sbr.rel (%p328) target = $region44
        $region43: #{tpu_custom_call.1} parent=11 // pred_region
          _
        $region44: #{tpu_custom_call.1} parent=11 // pred_fallthru
          _
        // Predicated region
        $region45: #{tpu_custom_call.1} parent=11 // pred_check
          %p331 = pneg %p240
        $region46: #{tpu_custom_call.1} parent=11 // pred_check_branch
          %333 = sbr.rel (%p331) target = $region48
        $region47: #{tpu_custom_call.1} parent=11 // pred_region
          %s335 = ssub.s32 16, 16
          %336 = vsyncadd [#allocation5], %s335
          %s338 = sshll.u32 %s9, 4
          %s339 = int_to_ptr.vmem [resolvable:$true] %s338
          %341 = dma.vmem_to_smem %s339, 16, [#allocation3], [#allocation5]
        $region48: #{tpu_custom_call.1} parent=11 // pred_fallthru
          _
      $region12: #{tpu_custom_call.1} parent=5 // pred_fallthru
        _
      %p342 = scmp.lt.s32.totalorder %s25, 2
      // Predicated region
      $region49: #{tpu_custom_call.1} parent=5 // pred_check
        %p343 = pneg %p342
      $region50: #{tpu_custom_call.1} parent=5 // pred_check_branch
        %345 = sbr.rel (%p343) target = $region52
      $region51: #{tpu_custom_call.1} parent=5 // pred_region
        // Predicated region
        $region53: #{tpu_custom_call.1} parent=51 // pred_check
          %p346 = pneg %p45
        $region54: #{tpu_custom_call.1} parent=51 // pred_check_branch
          %348 = sbr.rel (%p346) target = $region56
        $region55: #{tpu_custom_call.1} parent=51 // pred_region
          %p349 = scmp.lt.s32.totalorder %s25, 1
          %s350 = scalar_select %p349, %s25, 1
          %s351 = smul.addr %s350, 4
          %s352 = smul.addr %s351, 8
          %s353 = scalar_lea.vmem %s0, %s352
        $region56: #{tpu_custom_call.1} parent=51 // pred_fallthru
          _
      $region52: #{tpu_custom_call.1} parent=5 // pred_fallthru
        _
      %p354 = scmp.le.s32.totalorder 1, %s25
      %p355 = scmp.lt.s32.totalorder %s25, 3
      %p356 = pnand %p354, %p355
      %p357 = pneg %p356
      // Predicated region
      $region57: #{tpu_custom_call.1} parent=5 // pred_check
        _
      $region58: #{tpu_custom_call.1} parent=5 // pred_check_branch
        %359 = sbr.rel (%p356) target = $region60
      $region59: #{tpu_custom_call.1} parent=5 // pred_region
        %s360 = ssub.s32 %s25, 1
        // Predicated region
        $region61: #{tpu_custom_call.1} parent=59 // pred_check
          %p361 = pneg %p240
        $region62: #{tpu_custom_call.1} parent=59 // pred_check_branch
          %363 = sbr.rel (%p361) target = $region64
        $region63: #{tpu_custom_call.1} parent=59 // pred_region
          %364 = dma.done [#allocation5], 16
        $region64: #{tpu_custom_call.1} parent=59 // pred_fallthru
          _
        %365 = sfence
        %p366 = scmp.lt.s32.totalorder %s30, 1
        %s367 = scalar_select %p366, %s30, 1
        %s368 = smul.addr %s367, 4
        %s369 = smul.addr %s368, 8
        %s370 = scalar_lea.vmem %s0, %s369
        %p371 = pneg %p51
        %p372 = pneg %p48
        %p373 = pneg %p72
        %p374 = pneg %p69
        %p375 = pneg %p93
        %p376 = pneg %p90
        %p377 = pneg %p114
        %p378 = pneg %p111
        %p379 = pneg %p135
        %p380 = pneg %p132
        %p381 = pneg %p156
        %p382 = pneg %p153
        %p383 = pneg %p177
        %p384 = pneg %p174
        %p385 = pneg %p198
        %p386 = pneg %p195
        %p387 = pneg %p219
        %p388 = pneg %p216
        %p389 = pneg %p240
        %p390 = pneg %p237
        %p391 = pneg %p266
        %p392 = pneg %p263
        %s393 = sand.u32 %s253, 1
        %s394 = scalar_lea.sflag [#allocation4], %s393
        %s395 = sand.u32 %s253, 1
        %s396 = smul.addr %s395, 64
        %s397 = scalar_lea.vmem [#allocation6], %s396
        %p398 = pneg %p292
        %p399 = pneg %p289
        %s400 = sand.u32 %s279, 1
        %s401 = scalar_lea.sflag [#allocation8], %s400
        %s402 = sand.u32 %s279, 1
        %s403 = smul.addr %s402, 128
        %s404 = scalar_lea.vmem [#allocation7], %s403
        %p405 = scmp.lt.s32.totalorder %s30, 1
        %s406 = scalar_select %p405, %s30, 1
        %s407 = smul.addr %s406, 4
        %s408 = smul.addr %s407, 8
        %s409 = scalar_lea.vmem %s0, %s408
        %vm411 = vcmask 1048560
        %412 = vst.msk [vmem:[#allocation2] sm:$0xff] %vm411, 0.0
        %413 = vst.msk [vmem:[#allocation2 + $0x20] sm:$0xff] %vm411, 0.0
        %414 = vst.msk [vmem:[#allocation2 + $0x40] sm:$0xff] %vm411, 0.0
        %415 = vst.msk [vmem:[#allocation2 + $0x60] sm:$0xff] %vm411, 0.0
        %416 = vst.msk [vmem:[#allocation2 + $0x80] sm:$0xff] %vm411, 0.0
        %417 = vst.msk [vmem:[#allocation2 + $0xa0] sm:$0xff] %vm411, 0.0
        %418 = vst.msk [vmem:[#allocation2 + $0xc0] sm:$0xff] %vm411, 0.0
        %419 = vst.msk [vmem:[#allocation2 + $0xe0] sm:$0xff] %vm411, 0.0
        %vm420 = vcmask 15360
        %421 = vst.msk [vmem:[#allocation2 + $0x18] sm:$0xff] %vm420, 0.0
        %422 = vst.msk [vmem:[#allocation2 + $0x38] sm:$0xff] %vm420, 0.0
        %423 = vst.msk [vmem:[#allocation2 + $0x58] sm:$0xff] %vm420, 0.0
        %424 = vst.msk [vmem:[#allocation2 + $0x78] sm:$0xff] %vm420, 0.0
        %425 = vst.msk [vmem:[#allocation2 + $0x98] sm:$0xff] %vm420, 0.0
        %426 = vst.msk [vmem:[#allocation2 + $0xb8] sm:$0xff] %vm420, 0.0
        %427 = vst.msk [vmem:[#allocation2 + $0xd8] sm:$0xff] %vm420, 0.0
        %428 = vst.msk [vmem:[#allocation2 + $0xf8] sm:$0xff] %vm420, 0.0
        %v429 = vld [vmem:[%s409] sm:$0xff]
        %v430 = vld [vmem:[%s409 + $0x8] sm:$0xff]
        %v431 = vld [vmem:[%s409 + $0x10] sm:$0xff]
        %v432 = vld [vmem:[%s409 + $0x18] sm:$0xff]
        %v433 = vadd.f32 %v429, %v431
        %v434 = vrot.slane %v433, 4
        %v435 = vadd.f32 %v433, %v434
        %v436 = vrot.slane %v435, 2
        %v437 = vadd.f32 %v435, %v436
        %v438 = vrot.slane %v437, 1
        %v439 = vadd.f32 %v437, %v438
        %v440 = vadd.f32 %v430, %v432
        %v441 = vrot.slane %v440, 4
        %v442 = vadd.f32 %v440, %v441
        %v443 = vrot.slane %v442, 2
        %v444 = vadd.f32 %v442, %v443
        %v445 = vrot.slane %v444, 1
        %v446 = vadd.f32 %v444, %v445
        %v447 = vrcp.pop 16.0
        %v448 = vmul.f32 %v439, %v447
        %v449 = vmul.f32 %v446, %v447
        %v450 = vmul.f32 %v429, %v429
        %v451 = vmul.f32 %v430, %v430
        %v452 = vmul.f32 %v431, %v431
        %v453 = vmul.f32 %v432, %v432
        %v454 = vadd.f32 %v450, %v452
        %v455 = vrot.slane %v454, 4
        %v456 = vadd.f32 %v454, %v455
        %v457 = vrot.slane %v456, 2
        %v458 = vadd.f32 %v456, %v457
        %v459 = vrot.slane %v458, 1
        %v460 = vadd.f32 %v458, %v459
        %v461 = vadd.f32 %v451, %v453
        %v462 = vrot.slane %v461, 4
        %v463 = vadd.f32 %v461, %v462
        %v464 = vrot.slane %v463, 2
        %v465 = vadd.f32 %v463, %v464
        %v466 = vrot.slane %v465, 1
        %v467 = vadd.f32 %v465, %v466
        %v468 = vmul.f32 %v460, %v447
        %v469 = vmul.f32 %v467, %v447
        %v470 = vmul.f32 %v448, %v448
        %v471 = vmul.f32 %v449, %v449
        %v472 = vsub.f32 %v468, %v470
        %v473 = vsub.f32 %v469, %v471
        %v474 = vmax.f32 %v472, 0.0
        %v475 = vmax.f32 %v473, 0.0
        %v476 = vadd.f32 %v474, 1e-08
        %v477 = vadd.f32 %v475, 1e-08
        %v478 = vrsqrt.pop %v476
        %v479 = vrsqrt.pop %v477
        %v480 = vld [vmem:[%s1] sm:$0xff]
        %v481 = vld [vmem:[%s1 + $0x8] sm:$0xff]
        %v482 = vsub.f32 %v429, %v448
        %v483 = vsub.f32 %v430, %v449
        %v484 = vsub.f32 %v431, %v448
        %v485 = vsub.f32 %v432, %v449
        %v486 = vmul.f32 %v482, %v478
        %v487 = vmul.f32 %v483, %v479
        %v488 = vmul.f32 %v484, %v478
        %v489 = vmul.f32 %v485, %v479
        %491 = vset.pattern.permute.xlu0 0
        %492 = vperm.xlu0 %491, %v480
        %v493 = vpop.permute.xlu0 %492
        %496 = vset.pattern.permute.xlu0 0
        %497 = vperm.xlu0 %496, %v481
        %v498 = vpop.permute.xlu0 %497
        %v500 = vmul.f32 %v493, %v486
        %v501 = vmul.f32 %v493, %v487
        %v502 = vmul.f32 %v498, %v488
        %v503 = vmul.f32 %v498, %v489
        %504 = vset.pattern.permute.xlu0 1
        %505 = vperm.xlu0 %504, %v480
        %v506 = vpop.permute.xlu0 %505
        %508 = vset.pattern.permute.xlu0 1
        %509 = vperm.xlu0 %508, %v481
        %v510 = vpop.permute.xlu0 %509
        %v512 = vadd.f32 %v500, %v506
        %v513 = vadd.f32 %v501, %v506
        %v514 = vadd.f32 %v502, %v510
        %v515 = vadd.f32 %v503, %v510
        %v516 = vld [vmem:[%s2] sm:$0xf]
        %v517 = vld [vmem:[%s2 + $0x4] sm:$0xf]
        %v518 = vld [vmem:[%s2 + $0x8] sm:$0xf]
        %v519 = vld [vmem:[%s2 + $0xc] sm:$0xf]
        %v520 = vpack.c.bf16 %v514, %v512
        %v521 = vpack.c.bf16 %v515, %v513
        %v526 = vunpack.c.l.b16 %v516
        %v527 = vunpack.c.l.b16 %v517
        %v528 = vunpack.c.l.b16 %v518
        %v529 = vunpack.c.l.b16 %v519
        %v530 = vpack.c.b16 %v527, %v526
        %v531 = vpack.c.b16 %v529, %v528
        %vm532 = vcmask 130048
        %v534 = vsel %vm532, %v530, 0
        %v537 = vsel %vm532, %v531, 0
        %539 = vmatprep.subr.bf16.mxu0 %v521
        %540 = vmatpush1.bf16.msra.mxu0 %v520
        %541 = vmatprep.subr.bf16.mxu0 0
        %542 = vmatpush1.bf16.msra.mxu0 0
        %543 = vmatprep.subr.bf16.mxu0 0
        %544 = vmatpush1.bf16.msra.mxu0 0
        %545 = vmatprep.subr.bf16.mxu0 0
        %546 = vmatpush1.bf16.msra.mxu0 0
        %547 = vmatprep.subr.bf16.mxu0 0
        %548 = vmatpush1.bf16.msra.mxu0 0
        %549 = vmatprep.subr.bf16.mxu0 0
        %550 = vmatpush1.bf16.msra.mxu0 0
        %551 = vmatprep.subr.bf16.mxu0 0
        %552 = vmatpush1.bf16.msra.mxu0 0
        %553 = vmatprep.subr.bf16.mxu0 0
        %554 = vmatpush1.bf16.msra.mxu0 0
        %555 = vmatprep.subr.bf16.mxu0 0
        %556 = vmatpush1.bf16.msra.mxu0 0
        %557 = vmatprep.subr.bf16.mxu0 0
        %558 = vmatpush1.bf16.msra.mxu0 0
        %559 = vmatprep.subr.bf16.mxu0 0
        %560 = vmatpush1.bf16.msra.mxu0 0
        %561 = vmatprep.subr.bf16.mxu0 0
        %562 = vmatpush1.bf16.msra.mxu0 0
        %563 = vmatprep.subr.bf16.mxu0 0
        %564 = vmatpush1.bf16.msra.mxu0 0
        %565 = vmatprep.subr.bf16.mxu0 0
        %566 = vmatpush1.bf16.msra.mxu0 0
        %567 = vmatprep.subr.bf16.mxu0 0
        %568 = vmatpush1.bf16.msra.mxu0 0
        %569 = vmatprep.subr.bf16.mxu0 0
        %570 = vmatpush1.bf16.msra.mxu0 0
        %571 = vmatprep.mubr.bf16.mxu0 0
        %572 = vmatmul.mubr.bf16.gmra.mrb[0].mxu0 %v534
        %v573 = vpop.f32.mrb[0].mxu0
        %v574 = vadd.f32 0.0, %v573
        %v575 = vpop.f32.mrb[0].mxu0
        %v576 = vadd.f32 0.0, %v575
        %v577 = vpop.f32.mrb[0].mxu0
        %v578 = vadd.f32 0.0, %v577
        %v579 = vpop.f32.mrb[0].mxu0
        %v580 = vadd.f32 0.0, %v579
        %581 = vmatprep.mubr.bf16.mxu0 0
        %582 = vmatmul.mubr.bf16.gmra.mrb[0].mxu0 %v537
        %v583 = vpop.f32.mrb[0].mxu0
        %v584 = vadd.f32 0.0, %v583
        %v585 = vpop.f32.mrb[0].mxu0
        %v586 = vadd.f32 0.0, %v585
        %v587 = vpop.f32.mrb[0].mxu0
        %v588 = vadd.f32 0.0, %v587
        %v589 = vpop.f32.mrb[0].mxu0
        %v590 = vadd.f32 0.0, %v589
        %591 = vdwg.mxu0
        loop: start=0, step=1, limit=2
        $region65: #{tpu_custom_call.1} parent=59 // loop_pre_header
          _
        $region66: #{tpu_custom_call.1} parent=59 // loop_header
          %s593 = sphi 0, %s597
          %p594 = scmp.ge.s32.totalorder %s593, 2
          %v598 = vphi %v574, %v3136
          %v599 = vphi %v576, %v3137
          %v600 = vphi %v578, %v3138
          %v601 = vphi %v580, %v3139
          %v602 = vphi %v584, %v3140
          %v603 = vphi %v586, %v3141
          %v604 = vphi %v588, %v3142
          %v605 = vphi %v590, %v3143
        $region67: #{tpu_custom_call.1} parent=59 // loop_header_branch
          %596 = sbr.rel (%p594) target = $region71
        $region68: #{tpu_custom_call.1} parent=59 // loop_body
          %s606 = smul.u32 %s593, 2
          %s607 = smul.u32 %s606, 8
          %s608 = smul.addr %s607, 4
          %s609 = scalar_lea.vmem %s3, %s608
          %v610 = vld [vmem:[%s609] sm:$0xf]
          %v611 = vld [vmem:[%s609 + $0x4] sm:$0xf]
          %v612 = vld [vmem:[%s609 + $0x8] sm:$0xf]
          %v613 = vld [vmem:[%s609 + $0xc] sm:$0xf]
          %v614 = vld [vmem:[%s609 + $0x10] sm:$0xf]
          %v615 = vld [vmem:[%s609 + $0x14] sm:$0xf]
          %v616 = vld [vmem:[%s609 + $0x18] sm:$0xf]
          %v617 = vld [vmem:[%s609 + $0x1c] sm:$0xf]
          %s618 = smul.u32 %s606, 64
          %s619 = scalar_lea.vmem %s4, %s618
          %v620 = vld [vmem:[%s619] sm:$0xff]
          %v621 = vld [vmem:[%s619 + $0x8] sm:$0xff]
          %v622 = vld [vmem:[%s619 + $0x10] sm:$0xff]
          %v623 = vld [vmem:[%s619 + $0x18] sm:$0xff]
          %v624 = vld [vmem:[%s619 + $0x20] sm:$0xff]
          %v625 = vld [vmem:[%s619 + $0x28] sm:$0xff]
          %v626 = vld [vmem:[%s619 + $0x30] sm:$0xff]
          %v627 = vld [vmem:[%s619 + $0x38] sm:$0xff]
          %s628 = scalar_lea.vmem %s5, %s618
          %v629 = vld [vmem:[%s628] sm:$0xff]
          %v630 = vld [vmem:[%s628 + $0x8] sm:$0xff]
          %v631 = vld [vmem:[%s628 + $0x10] sm:$0xff]
          %v632 = vld [vmem:[%s628 + $0x18] sm:$0xff]
          %v633 = vld [vmem:[%s628 + $0x20] sm:$0xff]
          %v634 = vld [vmem:[%s628 + $0x28] sm:$0xff]
          %v635 = vld [vmem:[%s628 + $0x30] sm:$0xff]
          %v636 = vld [vmem:[%s628 + $0x38] sm:$0xff]
          %s637 = smul.u32 %s606, 2
          %s638 = scalar_lea.vmem %s6, %s637
          %v639 = vld [vmem:[%s638] sm:$0x3]
          %s640 = smul.u32 %s606, 4
          %s641 = smul.addr %s640, 4
          %s642 = scalar_lea.vmem %s7, %s641
          %v643 = vld [vmem:[%s642] sm:$0xf]
          %v644 = vld [vmem:[%s642 + $0x4] sm:$0xf]
          %v645 = vld [vmem:[%s642 + $0x8] sm:$0xf]
          %v646 = vld [vmem:[%s642 + $0xc] sm:$0xf]
          %v647 = vunpack.c.l.bf16 %v643
          %v648 = vunpack.c.l.bf16 %v644
          %v649 = vunpack.c.l.bf16 %v645
          %v650 = vunpack.c.l.bf16 %v646
          %s651 = smul.u32 %s593, 4
          %s652 = sld [smem:[#allocation3 + %s651]]
          %s653 = sadd.s32 %s651, 1
          %s654 = sld [smem:[#allocation3 + %s653]]
          %v655 = vpack.c.bf16 %v600, %v598
          %v656 = vpack.c.bf16 %v601, %v599
          %v657 = vpack.c.bf16 %v604, %v602
          %v658 = vpack.c.bf16 %v605, %v603
          %v667 = vunpack.c.l.b16 %v610
          %v668 = vunpack.c.l.b16 %v611
          %v669 = vunpack.c.l.b16 %v612
          %v670 = vunpack.c.l.b16 %v613
          %v671 = vunpack.c.l.b16 %v614
          %v672 = vunpack.c.l.b16 %v615
          %v673 = vunpack.c.l.b16 %v616
          %v674 = vunpack.c.l.b16 %v617
          %v675 = vpack.c.b16 %v668, %v667
          %v676 = vpack.c.b16 %v670, %v669
          %v677 = vpack.c.b16 %v672, %v671
          %v678 = vpack.c.b16 %v674, %v673
          %vm679 = vcmask 261120
          %v681 = vsel %vm679, %v675, 0
          %v684 = vsel %vm679, %v676, 0
          %v687 = vsel %vm679, %v677, 0
          %v690 = vsel %vm679, %v678, 0
          %692 = vmatprep.subr.bf16.mxu0 %v656
          %693 = vmatpush1.bf16.msra.mxu0 %v655
          %694 = vmatprep.subr.bf16.mxu0 %v658
          %695 = vmatpush1.bf16.msra.mxu0 %v657
          %696 = vmatprep.subr.bf16.mxu0 0
          %697 = vmatpush1.bf16.msra.mxu0 0
          %698 = vmatprep.subr.bf16.mxu0 0
          %699 = vmatpush1.bf16.msra.mxu0 0
          %700 = vmatprep.subr.bf16.mxu0 0
          %701 = vmatpush1.bf16.msra.mxu0 0
          %702 = vmatprep.subr.bf16.mxu0 0
          %703 = vmatpush1.bf16.msra.mxu0 0
          %704 = vmatprep.subr.bf16.mxu0 0
          %705 = vmatpush1.bf16.msra.mxu0 0
          %706 = vmatprep.subr.bf16.mxu0 0
          %707 = vmatpush1.bf16.msra.mxu0 0
          %708 = vmatprep.subr.bf16.mxu0 0
          %709 = vmatpush1.bf16.msra.mxu0 0
          %710 = vmatprep.subr.bf16.mxu0 0
          %711 = vmatpush1.bf16.msra.mxu0 0
          %712 = vmatprep.subr.bf16.mxu0 0
          %713 = vmatpush1.bf16.msra.mxu0 0
          %714 = vmatprep.subr.bf16.mxu0 0
          %715 = vmatpush1.bf16.msra.mxu0 0
          %716 = vmatprep.subr.bf16.mxu0 0
          %717 = vmatpush1.bf16.msra.mxu0 0
          %718 = vmatprep.subr.bf16.mxu0 0
          %719 = vmatpush1.bf16.msra.mxu0 0
          %720 = vmatprep.subr.bf16.mxu0 0
          %721 = vmatpush1.bf16.msra.mxu0 0
          %722 = vmatprep.subr.bf16.mxu0 0
          %723 = vmatpush1.bf16.msra.mxu0 0
          %724 = vmatprep.mubr.bf16.mxu0 0
          %725 = vmatmul.mubr.bf16.gmra.mrb[0].mxu0 %v681
          %v726 = vpop.f32.mrb[0].mxu0
          %v727 = vadd.f32 0.0, %v726
          %v728 = vpop.f32.mrb[0].mxu0
          %v729 = vadd.f32 0.0, %v728
          %v730 = vpop.f32.mrb[0].mxu0
          %v731 = vadd.f32 0.0, %v730
          %v732 = vpop.f32.mrb[0].mxu0
          %v733 = vadd.f32 0.0, %v732
          %734 = vmatprep.mubr.bf16.mxu0 0
          %735 = vmatmul.mubr.bf16.gmra.mrb[0].mxu0 %v684
          %v736 = vpop.f32.mrb[0].mxu0
          %v737 = vadd.f32 0.0, %v736
          %v738 = vpop.f32.mrb[0].mxu0
          %v739 = vadd.f32 0.0, %v738
          %v740 = vpop.f32.mrb[0].mxu0
          %v741 = vadd.f32 0.0, %v740
          %v742 = vpop.f32.mrb[0].mxu0
          %v743 = vadd.f32 0.0, %v742
          %744 = vmatprep.mubr.bf16.mxu0 0
          %745 = vmatmul.mubr.bf16.gmra.mrb[0].mxu0 %v687
          %v746 = vpop.f32.mrb[0].mxu0
          %v747 = vadd.f32 0.0, %v746
          %v748 = vpop.f32.mrb[0].mxu0
          %v749 = vadd.f32 0.0, %v748
          %v750 = vpop.f32.mrb[0].mxu0
          %v751 = vadd.f32 0.0, %v750
          %v752 = vpop.f32.mrb[0].mxu0
          %v753 = vadd.f32 0.0, %v752
          %754 = vmatprep.mubr.bf16.mxu0 0
          %755 = vmatmul.mubr.bf16.gmra.mrb[0].mxu0 %v690
          %v756 = vpop.f32.mrb[0].mxu0
          %v757 = vadd.f32 0.0, %v756
          %v758 = vpop.f32.mrb[0].mxu0
          %v759 = vadd.f32 0.0, %v758
          %v760 = vpop.f32.mrb[0].mxu0
          %v761 = vadd.f32 0.0, %v760
          %v762 = vpop.f32.mrb[0].mxu0
          %v763 = vadd.f32 0.0, %v762
          %764 = vdwg.mxu0
          %vm765 = vcmp.ge.f32.partialorder %v727, 0.0
          %vm766 = vcmp.ge.f32.partialorder %v729, 0.0
          %vm767 = vcmp.ge.f32.partialorder %v731, 0.0
          %vm768 = vcmp.ge.f32.partialorder %v733, 0.0
          %vm769 = vcmp.ge.f32.partialorder %v737, 0.0
          %vm770 = vcmp.ge.f32.partialorder %v739, 0.0
          %vm771 = vcmp.ge.f32.partialorder %v741, 0.0
          %vm772 = vcmp.ge.f32.partialorder %v743, 0.0
          %vm773 = vcmp.ge.f32.partialorder %v747, 0.0
          %vm774 = vcmp.ge.f32.partialorder %v749, 0.0
          %vm775 = vcmp.ge.f32.partialorder %v751, 0.0
          %vm776 = vcmp.ge.f32.partialorder %v753, 0.0
          %vm777 = vcmp.ge.f32.partialorder %v757, 0.0
          %vm778 = vcmp.ge.f32.partialorder %v759, 0.0
          %vm779 = vcmp.ge.f32.partialorder %v761, 0.0
          %vm780 = vcmp.ge.f32.partialorder %v763, 0.0
          %v781 = vstv %s652
          %v782 = vmul.f32 %v781, %v727
          %v783 = vmul.f32 %v781, %v729
          %v784 = vmul.f32 %v781, %v731
          %v785 = vmul.f32 %v781, %v733
          %v786 = vmul.f32 %v781, %v737
          %v787 = vmul.f32 %v781, %v739
          %v788 = vmul.f32 %v781, %v741
          %v789 = vmul.f32 %v781, %v743
          %v790 = vmul.f32 %v781, %v747
          %v791 = vmul.f32 %v781, %v749
          %v792 = vmul.f32 %v781, %v751
          %v793 = vmul.f32 %v781, %v753
          %v794 = vmul.f32 %v781, %v757
          %v795 = vmul.f32 %v781, %v759
          %v796 = vmul.f32 %v781, %v761
          %v797 = vmul.f32 %v781, %v763
          %v798 = vsel %vm765, %v727, %v782
          %v799 = vsel %vm766, %v729, %v783
          %v800 = vsel %vm767, %v731, %v784
          %v801 = vsel %vm768, %v733, %v785
          %v802 = vsel %vm769, %v737, %v786
          %v803 = vsel %vm770, %v739, %v787
          %v804 = vsel %vm771, %v741, %v788
          %v805 = vsel %vm772, %v743, %v789
          %v806 = vsel %vm773, %v747, %v790
          %v807 = vsel %vm774, %v749, %v791
          %v808 = vsel %vm775, %v751, %v792
          %v809 = vsel %vm776, %v753, %v793
          %v810 = vsel %vm777, %v757, %v794
          %v811 = vsel %vm778, %v759, %v795
          %v812 = vsel %vm779, %v761, %v796
          %v813 = vsel %vm780, %v763, %v797
          %v814 = vadd.f32 %v798, %v799
          %815 = vadd.xlane.f32.xlu0 %v814
          %v816 = vpop.xlane.xlu0 %815
          %v817 = vadd.f32 %v800, %v801
          %818 = vadd.xlane.f32.xlu0 %v817
          %v819 = vpop.xlane.xlu0 %818
          %v820 = vadd.f32 %v802, %v803
          %821 = vadd.xlane.f32.xlu0 %v820
          %v822 = vpop.xlane.xlu0 %821
          %v823 = vadd.f32 %v804, %v805
          %824 = vadd.xlane.f32.xlu0 %v823
          %v825 = vpop.xlane.xlu0 %824
          %v826 = vadd.f32 %v806, %v807
          %827 = vadd.xlane.f32.xlu0 %v826
          %v828 = vpop.xlane.xlu0 %827
          %v829 = vadd.f32 %v808, %v809
          %830 = vadd.xlane.f32.xlu0 %v829
          %v831 = vpop.xlane.xlu0 %830
          %v832 = vadd.f32 %v810, %v811
          %833 = vadd.xlane.f32.xlu0 %v832
          %v834 = vpop.xlane.xlu0 %833
          %v835 = vadd.f32 %v812, %v813
          %836 = vadd.xlane.f32.xlu0 %v835
          %v837 = vpop.xlane.xlu0 %836
          %v838 = vmul.f32 %v798, %v798
          %v839 = vmul.f32 %v799, %v799
          %v840 = vmul.f32 %v800, %v800
          %v841 = vmul.f32 %v801, %v801
          %v842 = vmul.f32 %v802, %v802
          %v843 = vmul.f32 %v803, %v803
          %v844 = vmul.f32 %v804, %v804
          %v845 = vmul.f32 %v805, %v805
          %v846 = vmul.f32 %v806, %v806
          %v847 = vmul.f32 %v807, %v807
          %v848 = vmul.f32 %v808, %v808
          %v849 = vmul.f32 %v809, %v809
          %v850 = vmul.f32 %v810, %v810
          %v851 = vmul.f32 %v811, %v811
          %v852 = vmul.f32 %v812, %v812
          %v853 = vmul.f32 %v813, %v813
          %v854 = vadd.f32 %v838, %v839
          %855 = vadd.xlane.f32.xlu0 %v854
          %v856 = vpop.xlane.xlu0 %855
          %v857 = vadd.f32 %v840, %v841
          %858 = vadd.xlane.f32.xlu0 %v857
          %v859 = vpop.xlane.xlu0 %858
          %v860 = vadd.f32 %v842, %v843
          %861 = vadd.xlane.f32.xlu0 %v860
          %v862 = vpop.xlane.xlu0 %861
          %v863 = vadd.f32 %v844, %v845
          %864 = vadd.xlane.f32.xlu0 %v863
          %v865 = vpop.xlane.xlu0 %864
          %v866 = vadd.f32 %v846, %v847
          %867 = vadd.xlane.f32.xlu0 %v866
          %v868 = vpop.xlane.xlu0 %867
          %v869 = vadd.f32 %v848, %v849
          %870 = vadd.xlane.f32.xlu0 %v869
          %v871 = vpop.xlane.xlu0 %870
          %v872 = vadd.f32 %v850, %v851
          %873 = vadd.xlane.f32.xlu0 %v872
          %v874 = vpop.xlane.xlu0 %873
          %v875 = vadd.f32 %v852, %v853
          %876 = vadd.xlane.f32.xlu0 %v875
          %v877 = vpop.xlane.xlu0 %876
          %vm878 = vcmask 7168
          %v879 = vsel %vm878, %v816, 0.0
          %v880 = vsel %vm878, %v819, 0.0
          %v881 = vadd.f32 %v879, %v880
          %v882 = vsel %vm878, %v822, 0.0
          %v883 = vadd.f32 %v881, %v882
          %v884 = vsel %vm878, %v825, 0.0
          %v885 = vadd.f32 %v883, %v884
          %v886 = vsel %vm878, %v828, 0.0
          %v887 = vadd.f32 %v885, %v886
          %v888 = vsel %vm878, %v831, 0.0
          %v889 = vadd.f32 %v887, %v888
          %v890 = vsel %vm878, %v834, 0.0
          %v891 = vadd.f32 %v889, %v890
          %v892 = vsel %vm878, %v837, 0.0
          %v893 = vadd.f32 %v891, %v892
          %894 = vadd.xlane.f32.xlu0 %v893
          %v895 = vpop.xlane.xlu0 %894
          %v896 = vrot.slane %v895, 4
          %v897 = vadd.f32 %v895, %v896
          %v898 = vrot.slane %v897, 2
          %v899 = vadd.f32 %v897, %v898
          %v900 = vrot.slane %v899, 1
          %v901 = vadd.f32 %v899, %v900
          %s902 = vtos %v901
          %s903 = smul.f32 %s902, 6.1035156e-05
          %v904 = vsel %vm878, %v856, 0.0
          %v905 = vsel %vm878, %v859, 0.0
          %v906 = vadd.f32 %v904, %v905
          %v907 = vsel %vm878, %v862, 0.0
          %v908 = vadd.f32 %v906, %v907
          %v909 = vsel %vm878, %v865, 0.0
          %v910 = vadd.f32 %v908, %v909
          %v911 = vsel %vm878, %v868, 0.0
          %v912 = vadd.f32 %v910, %v911
          %v913 = vsel %vm878, %v871, 0.0
          %v914 = vadd.f32 %v912, %v913
          %v915 = vsel %vm878, %v874, 0.0
          %v916 = vadd.f32 %v914, %v915
          %v917 = vsel %vm878, %v877, 0.0
          %v918 = vadd.f32 %v916, %v917
          %919 = vadd.xlane.f32.xlu0 %v918
          %v920 = vpop.xlane.xlu0 %919
          %v921 = vrot.slane %v920, 4
          %v922 = vadd.f32 %v920, %v921
          %v923 = vrot.slane %v922, 2
          %v924 = vadd.f32 %v922, %v923
          %v925 = vrot.slane %v924, 1
          %v926 = vadd.f32 %v924, %v925
          %s927 = vtos %v926
          %s928 = smul.f32 %s927, 6.1035156e-05
          %s929 = smul.f32 %s903, %s903
          %s930 = ssub.f32 %s928, %s929
          %s931 = smax.f32 %s930, 0.0
          %s932 = sadd.f32 %s931, 1e-08
          %v933 = vstv %s932
          %v934 = vrsqrt.pop %v933
          %s935 = vtos %v934
          %v936 = vstv %s935
          %v937 = vmul.f32 %v629, %v936
          %v938 = vmul.f32 %v630, %v936
          %v939 = vmul.f32 %v631, %v936
          %v940 = vmul.f32 %v632, %v936
          %v941 = vmul.f32 %v633, %v936
          %v942 = vmul.f32 %v634, %v936
          %v943 = vmul.f32 %v635, %v936
          %v944 = vmul.f32 %v636, %v936
          %v945 = vstv %s903
          %v946 = vmul.f32 %v945, %v937
          %v947 = vmul.f32 %v945, %v938
          %v948 = vmul.f32 %v945, %v939
          %v949 = vmul.f32 %v945, %v940
          %v950 = vmul.f32 %v945, %v941
          %v951 = vmul.f32 %v945, %v942
          %v952 = vmul.f32 %v945, %v943
          %v953 = vmul.f32 %v945, %v944
          %962 = vrot.lane.b32.xlu0 %v946, 1
          %v963 = vpop.permute.xlu0 %962
          %964 = vrot.lane.b32.xlu0 %v947, 1
          %v965 = vpop.permute.xlu0 %964
          %966 = vrot.lane.b32.xlu0 %v948, 1
          %v967 = vpop.permute.xlu0 %966
          %968 = vrot.lane.b32.xlu0 %v949, 1
          %v969 = vpop.permute.xlu0 %968
          %970 = vrot.lane.b32.xlu0 %v950, 1
          %v971 = vpop.permute.xlu0 %970
          %972 = vrot.lane.b32.xlu0 %v951, 1
          %v973 = vpop.permute.xlu0 %972
          %974 = vrot.lane.b32.xlu0 %v952, 1
          %v975 = vpop.permute.xlu0 %974
          %976 = vrot.lane.b32.xlu0 %v953, 1
          %v977 = vpop.permute.xlu0 %976
          %v986 = vsub.f32 %v629, %v963
          %v987 = vsub.f32 %v630, %v965
          %v988 = vsub.f32 %v631, %v967
          %v989 = vsub.f32 %v632, %v969
          %v990 = vsub.f32 %v633, %v971
          %v991 = vsub.f32 %v634, %v973
          %v992 = vsub.f32 %v635, %v975
          %v993 = vsub.f32 %v636, %v977
          %995 = vset.pattern.permute.xlu0 0
          %996 = vperm.xlu0 %995, %v937
          %v997 = vpop.permute.xlu0 %996
          %1000 = vset.pattern.permute.xlu0 0
          %1001 = vperm.xlu0 %1000, %v938
          %v1002 = vpop.permute.xlu0 %1001
          %1005 = vset.pattern.permute.xlu0 0
          %1006 = vperm.xlu0 %1005, %v939
          %v1007 = vpop.permute.xlu0 %1006
          %1010 = vset.pattern.permute.xlu0 0
          %1011 = vperm.xlu0 %1010, %v940
          %v1012 = vpop.permute.xlu0 %1011
          %1015 = vset.pattern.permute.xlu0 0
          %1016 = vperm.xlu0 %1015, %v941
          %v1017 = vpop.permute.xlu0 %1016
          %1020 = vset.pattern.permute.xlu0 0
          %1021 = vperm.xlu0 %1020, %v942
          %v1022 = vpop.permute.xlu0 %1021
          %1025 = vset.pattern.permute.xlu0 0
          %1026 = vperm.xlu0 %1025, %v943
          %v1027 = vpop.permute.xlu0 %1026
          %1030 = vset.pattern.permute.xlu0 0
          %1031 = vperm.xlu0 %1030, %v944
          %v1032 = vpop.permute.xlu0 %1031
          %v1034 = vmul.f32 %v798, %v997
          %v1035 = vmul.f32 %v799, %v997
          %v1036 = vmul.f32 %v800, %v1002
          %v1037 = vmul.f32 %v801, %v1002
          %v1038 = vmul.f32 %v802, %v1007
          %v1039 = vmul.f32 %v803, %v1007
          %v1040 = vmul.f32 %v804, %v1012
          %v1041 = vmul.f32 %v805, %v1012
          %v1042 = vmul.f32 %v806, %v1017
          %v1043 = vmul.f32 %v807, %v1017
          %v1044 = vmul.f32 %v808, %v1022
          %v1045 = vmul.f32 %v809, %v1022
          %v1046 = vmul.f32 %v810, %v1027
          %v1047 = vmul.f32 %v811, %v1027
          %v1048 = vmul.f32 %v812, %v1032
          %v1049 = vmul.f32 %v813, %v1032
          %1051 = vset.pattern.permute.xlu0 1
          %1052 = vperm.xlu0 %1051, %v986
          %v1053 = vpop.permute.xlu0 %1052
          %1056 = vset.pattern.permute.xlu0 1
          %1057 = vperm.xlu0 %1056, %v987
          %v1058 = vpop.permute.xlu0 %1057
          %1061 = vset.pattern.permute.xlu0 1
          %1062 = vperm.xlu0 %1061, %v988
          %v1063 = vpop.permute.xlu0 %1062
          %1066 = vset.pattern.permute.xlu0 1
          %1067 = vperm.xlu0 %1066, %v989
          %v1068 = vpop.permute.xlu0 %1067
          %1071 = vset.pattern.permute.xlu0 1
          %1072 = vperm.xlu0 %1071, %v990
          %v1073 = vpop.permute.xlu0 %1072
          %1076 = vset.pattern.permute.xlu0 1
          %1077 = vperm.xlu0 %1076, %v991
          %v1078 = vpop.permute.xlu0 %1077
          %1081 = vset.pattern.permute.xlu0 1
          %1082 = vperm.xlu0 %1081, %v992
          %v1083 = vpop.permute.xlu0 %1082
          %1086 = vset.pattern.permute.xlu0 1
          %1087 = vperm.xlu0 %1086, %v993
          %v1088 = vpop.permute.xlu0 %1087
          %v1090 = vadd.f32 %v1034, %v1053
          %v1091 = vadd.f32 %v1035, %v1053
          %v1092 = vadd.f32 %v1036, %v1058
          %v1093 = vadd.f32 %v1037, %v1058
          %v1094 = vadd.f32 %v1038, %v1063
          %v1095 = vadd.f32 %v1039, %v1063
          %v1096 = vadd.f32 %v1040, %v1068
          %v1097 = vadd.f32 %v1041, %v1068
          %v1098 = vadd.f32 %v1042, %v1073
          %v1099 = vadd.f32 %v1043, %v1073
          %v1100 = vadd.f32 %v1044, %v1078
          %v1101 = vadd.f32 %v1045, %v1078
          %v1102 = vadd.f32 %v1046, %v1083
          %v1103 = vadd.f32 %v1047, %v1083
          %v1104 = vadd.f32 %v1048, %v1088
          %v1105 = vadd.f32 %v1049, %v1088
          %1106 = vst [vmem:[#allocation2 + $0x8] sm:$0xff] %v1090
          %1107 = vst [vmem:[#allocation2 + $0x10] sm:$0xff] %v1091
          %1108 = vst [vmem:[#allocation2 + $0x28] sm:$0xff] %v1092
          %1109 = vst [vmem:[#allocation2 + $0x30] sm:$0xff] %v1093
          %1110 = vst [vmem:[#allocation2 + $0x48] sm:$0xff] %v1094
          %1111 = vst [vmem:[#allocation2 + $0x50] sm:$0xff] %v1095
          %1112 = vst [vmem:[#allocation2 + $0x68] sm:$0xff] %v1096
          %1113 = vst [vmem:[#allocation2 + $0x70] sm:$0xff] %v1097
          %1114 = vst [vmem:[#allocation2 + $0x88] sm:$0xff] %v1098
          %1115 = vst [vmem:[#allocation2 + $0x90] sm:$0xff] %v1099
          %1116 = vst [vmem:[#allocation2 + $0xa8] sm:$0xff] %v1100
          %1117 = vst [vmem:[#allocation2 + $0xb0] sm:$0xff] %v1101
          %1118 = vst [vmem:[#allocation2 + $0xc8] sm:$0xff] %v1102
          %1119 = vst [vmem:[#allocation2 + $0xd0] sm:$0xff] %v1103
          %1120 = vst [vmem:[#allocation2 + $0xe8] sm:$0xff] %v1104
          %1121 = vst [vmem:[#allocation2 + $0xf0] sm:$0xff] %v1105
          %1123 = vset.pattern.permute.xlu0 1
          %1124 = vperm.xlu0 %1123, %v620
          %v1125 = vpop.permute.xlu0 %1124
          %1128 = vset.pattern.permute.xlu0 1
          %1129 = vperm.xlu0 %1128, %v621
          %v1130 = vpop.permute.xlu0 %1129
          %1133 = vset.pattern.permute.xlu0 1
          %1134 = vperm.xlu0 %1133, %v622
          %v1135 = vpop.permute.xlu0 %1134
          %1138 = vset.pattern.permute.xlu0 1
          %1139 = vperm.xlu0 %1138, %v623
          %v1140 = vpop.permute.xlu0 %1139
          %1143 = vset.pattern.permute.xlu0 1
          %1144 = vperm.xlu0 %1143, %v624
          %v1145 = vpop.permute.xlu0 %1144
          %1148 = vset.pattern.permute.xlu0 1
          %1149 = vperm.xlu0 %1148, %v625
          %v1150 = vpop.permute.xlu0 %1149
          %1153 = vset.pattern.permute.xlu0 1
          %1154 = vperm.xlu0 %1153, %v626
          %v1155 = vpop.permute.xlu0 %1154
          %1158 = vset.pattern.permute.xlu0 1
          %1159 = vperm.xlu0 %1158, %v627
          %v1160 = vpop.permute.xlu0 %1159
          %v1162 = vmul.f32 %v1125, %v1090
          %v1163 = vmul.f32 %v1125, %v1091
          %v1164 = vmul.f32 %v1130, %v1092
          %v1165 = vmul.f32 %v1130, %v1093
          %v1166 = vmul.f32 %v1135, %v1094
          %v1167 = vmul.f32 %v1135, %v1095
          %v1168 = vmul.f32 %v1140, %v1096
          %v1169 = vmul.f32 %v1140, %v1097
          %v1170 = vmul.f32 %v1145, %v1098
          %v1171 = vmul.f32 %v1145, %v1099
          %v1172 = vmul.f32 %v1150, %v1100
          %v1173 = vmul.f32 %v1150, %v1101
          %v1174 = vmul.f32 %v1155, %v1102
          %v1175 = vmul.f32 %v1155, %v1103
          %v1176 = vmul.f32 %v1160, %v1104
          %v1177 = vmul.f32 %v1160, %v1105
          %v1178 = vld [vmem:[#allocation2] sm:$0xff]
          %v1179 = vld [vmem:[#allocation2 + $0x8] sm:$0xff]
          %v1180 = vld [vmem:[#allocation2 + $0x10] sm:$0xff]
          %v1181 = vld [vmem:[#allocation2 + $0x20] sm:$0xff]
          %v1182 = vld [vmem:[#allocation2 + $0x28] sm:$0xff]
          %v1183 = vld [vmem:[#allocation2 + $0x30] sm:$0xff]
          %v1184 = vld [vmem:[#allocation2 + $0x40] sm:$0xff]
          %v1185 = vld [vmem:[#allocation2 + $0x48] sm:$0xff]
          %v1186 = vld [vmem:[#allocation2 + $0x50] sm:$0xff]
          %v1187 = vld [vmem:[#allocation2 + $0x60] sm:$0xff]
          %v1188 = vld [vmem:[#allocation2 + $0x68] sm:$0xff]
          %v1189 = vld [vmem:[#allocation2 + $0x70] sm:$0xff]
          %v1190 = vld [vmem:[#allocation2 + $0x80] sm:$0xff]
          %v1191 = vld [vmem:[#allocation2 + $0x88] sm:$0xff]
          %v1192 = vld [vmem:[#allocation2 + $0x90] sm:$0xff]
          %v1193 = vld [vmem:[#allocation2 + $0xa0] sm:$0xff]
          %v1194 = vld [vmem:[#allocation2 + $0xa8] sm:$0xff]
          %v1195 = vld [vmem:[#allocation2 + $0xb0] sm:$0xff]
          %v1196 = vld [vmem:[#allocation2 + $0xc0] sm:$0xff]
          %v1197 = vld [vmem:[#allocation2 + $0xc8] sm:$0xff]
          %v1198 = vld [vmem:[#allocation2 + $0xd0] sm:$0xff]
          %v1199 = vld [vmem:[#allocation2 + $0xe0] sm:$0xff]
          %v1200 = vld [vmem:[#allocation2 + $0xe8] sm:$0xff]
          %v1201 = vld [vmem:[#allocation2 + $0xf0] sm:$0xff]
          %1202 = vset.pattern.permute.xlu0 0
          %1203 = vperm.xlu0 %1202, %v620
          %v1204 = vpop.permute.xlu0 %1203
          %1206 = vset.pattern.permute.xlu0 0
          %1207 = vperm.xlu0 %1206, %v621
          %v1208 = vpop.permute.xlu0 %1207
          %1210 = vset.pattern.permute.xlu0 0
          %1211 = vperm.xlu0 %1210, %v622
          %v1212 = vpop.permute.xlu0 %1211
          %1214 = vset.pattern.permute.xlu0 0
          %1215 = vperm.xlu0 %1214, %v623
          %v1216 = vpop.permute.xlu0 %1215
          %1218 = vset.pattern.permute.xlu0 0
          %1219 = vperm.xlu0 %1218, %v624
          %v1220 = vpop.permute.xlu0 %1219
          %1222 = vset.pattern.permute.xlu0 0
          %1223 = vperm.xlu0 %1222, %v625
          %v1224 = vpop.permute.xlu0 %1223
          %1226 = vset.pattern.permute.xlu0 0
          %1227 = vperm.xlu0 %1226, %v626
          %v1228 = vpop.permute.xlu0 %1227
          %1230 = vset.pattern.permute.xlu0 0
          %1231 = vperm.xlu0 %1230, %v627
          %v1232 = vpop.permute.xlu0 %1231
          %v1234 = vmul.f32 %v1204, %v1178
          %v1235 = vmul.f32 %v1204, %v1179
          %v1236 = vmul.f32 %v1204, %v1180
          %v1237 = vmul.f32 %v1208, %v1181
          %v1238 = vmul.f32 %v1208, %v1182
          %v1239 = vmul.f32 %v1208, %v1183
          %v1240 = vmul.f32 %v1212, %v1184
          %v1241 = vmul.f32 %v1212, %v1185
          %v1242 = vmul.f32 %v1212, %v1186
          %v1243 = vmul.f32 %v1216, %v1187
          %v1244 = vmul.f32 %v1216, %v1188
          %v1245 = vmul.f32 %v1216, %v1189
          %v1246 = vmul.f32 %v1220, %v1190
          %v1247 = vmul.f32 %v1220, %v1191
          %v1248 = vmul.f32 %v1220, %v1192
          %v1249 = vmul.f32 %v1224, %v1193
          %v1250 = vmul.f32 %v1224, %v1194
          %v1251 = vmul.f32 %v1224, %v1195
          %v1252 = vmul.f32 %v1228, %v1196
          %v1253 = vmul.f32 %v1228, %v1197
          %v1254 = vmul.f32 %v1228, %v1198
          %v1255 = vmul.f32 %v1232, %v1199
          %v1256 = vmul.f32 %v1232, %v1200
          %v1257 = vmul.f32 %v1232, %v1201
          %1282 = vrot.lane.b32.xlu0 %v1234, 1
          %v1283 = vpop.permute.xlu0 %1282
          %1284 = vrot.lane.b32.xlu0 %v1235, 1
          %v1285 = vpop.permute.xlu0 %1284
          %1286 = vrot.lane.b32.xlu0 %v1236, 1
          %v1287 = vpop.permute.xlu0 %1286
          %1288 = vrot.lane.b32.xlu0 %v1237, 1
          %v1289 = vpop.permute.xlu0 %1288
          %1290 = vrot.lane.b32.xlu0 %v1238, 1
          %v1291 = vpop.permute.xlu0 %1290
          %1292 = vrot.lane.b32.xlu0 %v1239, 1
          %v1293 = vpop.permute.xlu0 %1292
          %1294 = vrot.lane.b32.xlu0 %v1240, 1
          %v1295 = vpop.permute.xlu0 %1294
          %1296 = vrot.lane.b32.xlu0 %v1241, 1
          %v1297 = vpop.permute.xlu0 %1296
          %1298 = vrot.lane.b32.xlu0 %v1242, 1
          %v1299 = vpop.permute.xlu0 %1298
          %1300 = vrot.lane.b32.xlu0 %v1243, 1
          %v1301 = vpop.permute.xlu0 %1300
          %1302 = vrot.lane.b32.xlu0 %v1244, 1
          %v1303 = vpop.permute.xlu0 %1302
          %1304 = vrot.lane.b32.xlu0 %v1245, 1
          %v1305 = vpop.permute.xlu0 %1304
          %1306 = vrot.lane.b32.xlu0 %v1246, 1
          %v1307 = vpop.permute.xlu0 %1306
          %1308 = vrot.lane.b32.xlu0 %v1247, 1
          %v1309 = vpop.permute.xlu0 %1308
          %1310 = vrot.lane.b32.xlu0 %v1248, 1
          %v1311 = vpop.permute.xlu0 %1310
          %1312 = vrot.lane.b32.xlu0 %v1249, 1
          %v1313 = vpop.permute.xlu0 %1312
          %1314 = vrot.lane.b32.xlu0 %v1250, 1
          %v1315 = vpop.permute.xlu0 %1314
          %1316 = vrot.lane.b32.xlu0 %v1251, 1
          %v1317 = vpop.permute.xlu0 %1316
          %1318 = vrot.lane.b32.xlu0 %v1252, 1
          %v1319 = vpop.permute.xlu0 %1318
          %1320 = vrot.lane.b32.xlu0 %v1253, 1
          %v1321 = vpop.permute.xlu0 %1320
          %1322 = vrot.lane.b32.xlu0 %v1254, 1
          %v1323 = vpop.permute.xlu0 %1322
          %1324 = vrot.lane.b32.xlu0 %v1255, 1
          %v1325 = vpop.permute.xlu0 %1324
          %1326 = vrot.lane.b32.xlu0 %v1256, 1
          %v1327 = vpop.permute.xlu0 %1326
          %1328 = vrot.lane.b32.xlu0 %v1257, 1
          %v1329 = vpop.permute.xlu0 %1328
          %v1330 = vsel %vm878, %v1283, %v1285
          %v1331 = vsel %vm878, %v1285, %v1287
          %v1332 = vsel %vm878, %v1289, %v1291
          %v1333 = vsel %vm878, %v1291, %v1293
          %v1334 = vsel %vm878, %v1295, %v1297
          %v1335 = vsel %vm878, %v1297, %v1299
          %v1336 = vsel %vm878, %v1301, %v1303
          %v1337 = vsel %vm878, %v1303, %v1305
          %v1338 = vsel %vm878, %v1307, %v1309
          %v1339 = vsel %vm878, %v1309, %v1311
          %v1340 = vsel %vm878, %v1313, %v1315
          %v1341 = vsel %vm878, %v1315, %v1317
          %v1342 = vsel %vm878, %v1319, %v1321
          %v1343 = vsel %vm878, %v1321, %v1323
          %v1344 = vsel %vm878, %v1325, %v1327
          %v1345 = vsel %vm878, %v1327, %v1329
          %v1362 = vadd.f32 %v1162, %v1330
          %v1363 = vadd.f32 %v1163, %v1331
          %v1364 = vadd.f32 %v1164, %v1332
          %v1365 = vadd.f32 %v1165, %v1333
          %v1366 = vadd.f32 %v1166, %v1334
          %v1367 = vadd.f32 %v1167, %v1335
          %v1368 = vadd.f32 %v1168, %v1336
          %v1369 = vadd.f32 %v1169, %v1337
          %v1370 = vadd.f32 %v1170, %v1338
          %v1371 = vadd.f32 %v1171, %v1339
          %v1372 = vadd.f32 %v1172, %v1340
          %v1373 = vadd.f32 %v1173, %v1341
          %v1374 = vadd.f32 %v1174, %v1342
          %v1375 = vadd.f32 %v1175, %v1343
          %v1376 = vadd.f32 %v1176, %v1344
          %v1377 = vadd.f32 %v1177, %v1345
          %v1378 = vld [vmem:[#allocation2 + $0x8] sm:$0xff]
          %v1379 = vld [vmem:[#allocation2 + $0x10] sm:$0xff]
          %v1380 = vld [vmem:[#allocation2 + $0x18] sm:$0xff]
          %v1381 = vld [vmem:[#allocation2 + $0x28] sm:$0xff]
          %v1382 = vld [vmem:[#allocation2 + $0x30] sm:$0xff]
          %v1383 = vld [vmem:[#allocation2 + $0x38] sm:$0xff]
          %v1384 = vld [vmem:[#allocation2 + $0x48] sm:$0xff]
          %v1385 = vld [vmem:[#allocation2 + $0x50] sm:$0xff]
          %v1386 = vld [vmem:[#allocation2 + $0x58] sm:$0xff]
          %v1387 = vld [vmem:[#allocation2 + $0x68] sm:$0xff]
          %v1388 = vld [vmem:[#allocation2 + $0x70] sm:$0xff]
          %v1389 = vld [vmem:[#allocation2 + $0x78] sm:$0xff]
          %v1390 = vld [vmem:[#allocation2 + $0x88] sm:$0xff]
          %v1391 = vld [vmem:[#allocation2 + $0x90] sm:$0xff]
          %v1392 = vld [vmem:[#allocation2 + $0x98] sm:$0xff]
          %v1393 = vld [vmem:[#allocation2 + $0xa8] sm:$0xff]
          %v1394 = vld [vmem:[#allocation2 + $0xb0] sm:$0xff]
          %v1395 = vld [vmem:[#allocation2 + $0xb8] sm:$0xff]
          %v1396 = vld [vmem:[#allocation2 + $0xc8] sm:$0xff]
          %v1397 = vld [vmem:[#allocation2 + $0xd0] sm:$0xff]
          %v1398 = vld [vmem:[#allocation2 + $0xd8] sm:$0xff]
          %v1399 = vld [vmem:[#allocation2 + $0xe8] sm:$0xff]
          %v1400 = vld [vmem:[#allocation2 + $0xf0] sm:$0xff]
          %v1401 = vld [vmem:[#allocation2 + $0xf8] sm:$0xff]
          %1402 = vset.pattern.permute.xlu0 2
          %1403 = vperm.xlu0 %1402, %v620
          %v1404 = vpop.permute.xlu0 %1403
          %1406 = vset.pattern.permute.xlu0 2
          %1407 = vperm.xlu0 %1406, %v621
          %v1408 = vpop.permute.xlu0 %1407
          %1410 = vset.pattern.permute.xlu0 2
          %1411 = vperm.xlu0 %1410, %v622
          %v1412 = vpop.permute.xlu0 %1411
          %1414 = vset.pattern.permute.xlu0 2
          %1415 = vperm.xlu0 %1414, %v623
          %v1416 = vpop.permute.xlu0 %1415
          %1418 = vset.pattern.permute.xlu0 2
          %1419 = vperm.xlu0 %1418, %v624
          %v1420 = vpop.permute.xlu0 %1419
          %1422 = vset.pattern.permute.xlu0 2
          %1423 = vperm.xlu0 %1422, %v625
          %v1424 = vpop.permute.xlu0 %1423
          %1426 = vset.pattern.permute.xlu0 2
          %1427 = vperm.xlu0 %1426, %v626
          %v1428 = vpop.permute.xlu0 %1427
          %1430 = vset.pattern.permute.xlu0 2
          %1431 = vperm.xlu0 %1430, %v627
          %v1432 = vpop.permute.xlu0 %1431
          %v1434 = vmul.f32 %v1404, %v1378
          %v1435 = vmul.f32 %v1404, %v1379
          %v1436 = vmul.f32 %v1404, %v1380
          %v1437 = vmul.f32 %v1408, %v1381
          %v1438 = vmul.f32 %v1408, %v1382
          %v1439 = vmul.f32 %v1408, %v1383
          %v1440 = vmul.f32 %v1412, %v1384
          %v1441 = vmul.f32 %v1412, %v1385
          %v1442 = vmul.f32 %v1412, %v1386
          %v1443 = vmul.f32 %v1416, %v1387
          %v1444 = vmul.f32 %v1416, %v1388
          %v1445 = vmul.f32 %v1416, %v1389
          %v1446 = vmul.f32 %v1420, %v1390
          %v1447 = vmul.f32 %v1420, %v1391
          %v1448 = vmul.f32 %v1420, %v1392
          %v1449 = vmul.f32 %v1424, %v1393
          %v1450 = vmul.f32 %v1424, %v1394
          %v1451 = vmul.f32 %v1424, %v1395
          %v1452 = vmul.f32 %v1428, %v1396
          %v1453 = vmul.f32 %v1428, %v1397
          %v1454 = vmul.f32 %v1428, %v1398
          %v1455 = vmul.f32 %v1432, %v1399
          %v1456 = vmul.f32 %v1432, %v1400
          %v1457 = vmul.f32 %v1432, %v1401
          %1482 = vrot.lane.b32.xlu0 %v1434, 127
          %v1483 = vpop.permute.xlu0 %1482
          %1484 = vrot.lane.b32.xlu0 %v1435, 127
          %v1485 = vpop.permute.xlu0 %1484
          %1486 = vrot.lane.b32.xlu0 %v1436, 127
          %v1487 = vpop.permute.xlu0 %1486
          %1488 = vrot.lane.b32.xlu0 %v1437, 127
          %v1489 = vpop.permute.xlu0 %1488
          %1490 = vrot.lane.b32.xlu0 %v1438, 127
          %v1491 = vpop.permute.xlu0 %1490
          %1492 = vrot.lane.b32.xlu0 %v1439, 127
          %v1493 = vpop.permute.xlu0 %1492
          %1494 = vrot.lane.b32.xlu0 %v1440, 127
          %v1495 = vpop.permute.xlu0 %1494
          %1496 = vrot.lane.b32.xlu0 %v1441, 127
          %v1497 = vpop.permute.xlu0 %1496
          %1498 = vrot.lane.b32.xlu0 %v1442, 127
          %v1499 = vpop.permute.xlu0 %1498
          %1500 = vrot.lane.b32.xlu0 %v1443, 127
          %v1501 = vpop.permute.xlu0 %1500
          %1502 = vrot.lane.b32.xlu0 %v1444, 127
          %v1503 = vpop.permute.xlu0 %1502
          %1504 = vrot.lane.b32.xlu0 %v1445, 127
          %v1505 = vpop.permute.xlu0 %1504
          %1506 = vrot.lane.b32.xlu0 %v1446, 127
          %v1507 = vpop.permute.xlu0 %1506
          %1508 = vrot.lane.b32.xlu0 %v1447, 127
          %v1509 = vpop.permute.xlu0 %1508
          %1510 = vrot.lane.b32.xlu0 %v1448, 127
          %v1511 = vpop.permute.xlu0 %1510
          %1512 = vrot.lane.b32.xlu0 %v1449, 127
          %v1513 = vpop.permute.xlu0 %1512
          %1514 = vrot.lane.b32.xlu0 %v1450, 127
          %v1515 = vpop.permute.xlu0 %1514
          %1516 = vrot.lane.b32.xlu0 %v1451, 127
          %v1517 = vpop.permute.xlu0 %1516
          %1518 = vrot.lane.b32.xlu0 %v1452, 127
          %v1519 = vpop.permute.xlu0 %1518
          %1520 = vrot.lane.b32.xlu0 %v1453, 127
          %v1521 = vpop.permute.xlu0 %1520
          %1522 = vrot.lane.b32.xlu0 %v1454, 127
          %v1523 = vpop.permute.xlu0 %1522
          %1524 = vrot.lane.b32.xlu0 %v1455, 127
          %v1525 = vpop.permute.xlu0 %1524
          %1526 = vrot.lane.b32.xlu0 %v1456, 127
          %v1527 = vpop.permute.xlu0 %1526
          %1528 = vrot.lane.b32.xlu0 %v1457, 127
          %v1529 = vpop.permute.xlu0 %1528
          %vm1530 = vcmask 1039360
          %v1531 = vsel %vm1530, %v1483, %v1485
          %v1532 = vsel %vm1530, %v1485, %v1487
          %v1533 = vsel %vm1530, %v1489, %v1491
          %v1534 = vsel %vm1530, %v1491, %v1493
          %v1535 = vsel %vm1530, %v1495, %v1497
          %v1536 = vsel %vm1530, %v1497, %v1499
          %v1537 = vsel %vm1530, %v1501, %v1503
          %v1538 = vsel %vm1530, %v1503, %v1505
          %v1539 = vsel %vm1530, %v1507, %v1509
          %v1540 = vsel %vm1530, %v1509, %v1511
          %v1541 = vsel %vm1530, %v1513, %v1515
          %v1542 = vsel %vm1530, %v1515, %v1517
          %v1543 = vsel %vm1530, %v1519, %v1521
          %v1544 = vsel %vm1530, %v1521, %v1523
          %v1545 = vsel %vm1530, %v1525, %v1527
          %v1546 = vsel %vm1530, %v1527, %v1529
          %v1563 = vadd.f32 %v1362, %v1531
          %v1564 = vadd.f32 %v1363, %v1532
          %v1565 = vadd.f32 %v1364, %v1533
          %v1566 = vadd.f32 %v1365, %v1534
          %v1567 = vadd.f32 %v1366, %v1535
          %v1568 = vadd.f32 %v1367, %v1536
          %v1569 = vadd.f32 %v1368, %v1537
          %v1570 = vadd.f32 %v1369, %v1538
          %v1571 = vadd.f32 %v1370, %v1539
          %v1572 = vadd.f32 %v1371, %v1540
          %v1573 = vadd.f32 %v1372, %v1541
          %v1574 = vadd.f32 %v1373, %v1542
          %v1575 = vadd.f32 %v1374, %v1543
          %v1576 = vadd.f32 %v1375, %v1544
          %v1577 = vadd.f32 %v1376, %v1545
          %v1578 = vadd.f32 %v1377, %v1546
          %vm1579 = vcmp.ge.f32.partialorder %v1563, 0.0
          %vm1580 = vcmp.ge.f32.partialorder %v1564, 0.0
          %vm1581 = vcmp.ge.f32.partialorder %v1565, 0.0
          %vm1582 = vcmp.ge.f32.partialorder %v1566, 0.0
          %vm1583 = vcmp.ge.f32.partialorder %v1567, 0.0
          %vm1584 = vcmp.ge.f32.partialorder %v1568, 0.0
          %vm1585 = vcmp.ge.f32.partialorder %v1569, 0.0
          %vm1586 = vcmp.ge.f32.partialorder %v1570, 0.0
          %vm1587 = vcmp.ge.f32.partialorder %v1571, 0.0
          %vm1588 = vcmp.ge.f32.partialorder %v1572, 0.0
          %vm1589 = vcmp.ge.f32.partialorder %v1573, 0.0
          %vm1590 = vcmp.ge.f32.partialorder %v1574, 0.0
          %vm1591 = vcmp.ge.f32.partialorder %v1575, 0.0
          %vm1592 = vcmp.ge.f32.partialorder %v1576, 0.0
          %vm1593 = vcmp.ge.f32.partialorder %v1577, 0.0
          %vm1594 = vcmp.ge.f32.partialorder %v1578, 0.0
          %v1595 = vstv %s654
          %v1596 = vmul.f32 %v1595, %v1563
          %v1597 = vmul.f32 %v1595, %v1564
          %v1598 = vmul.f32 %v1595, %v1565
          %v1599 = vmul.f32 %v1595, %v1566
          %v1600 = vmul.f32 %v1595, %v1567
          %v1601 = vmul.f32 %v1595, %v1568
          %v1602 = vmul.f32 %v1595, %v1569
          %v1603 = vmul.f32 %v1595, %v1570
          %v1604 = vmul.f32 %v1595, %v1571
          %v1605 = vmul.f32 %v1595, %v1572
          %v1606 = vmul.f32 %v1595, %v1573
          %v1607 = vmul.f32 %v1595, %v1574
          %v1608 = vmul.f32 %v1595, %v1575
          %v1609 = vmul.f32 %v1595, %v1576
          %v1610 = vmul.f32 %v1595, %v1577
          %v1611 = vmul.f32 %v1595, %v1578
          %v1612 = vsel %vm1579, %v1563, %v1596
          %v1613 = vsel %vm1580, %v1564, %v1597
          %v1614 = vsel %vm1581, %v1565, %v1598
          %v1615 = vsel %vm1582, %v1566, %v1599
          %v1616 = vsel %vm1583, %v1567, %v1600
          %v1617 = vsel %vm1584, %v1568, %v1601
          %v1618 = vsel %vm1585, %v1569, %v1602
          %v1619 = vsel %vm1586, %v1570, %v1603
          %v1620 = vsel %vm1587, %v1571, %v1604
          %v1621 = vsel %vm1588, %v1572, %v1605
          %v1622 = vsel %vm1589, %v1573, %v1606
          %v1623 = vsel %vm1590, %v1574, %v1607
          %v1624 = vsel %vm1591, %v1575, %v1608
          %v1625 = vsel %vm1592, %v1576, %v1609
          %v1626 = vsel %vm1593, %v1577, %v1610
          %v1627 = vsel %vm1594, %v1578, %v1611
          %v1628 = vadd.f32 %v1612, %v1613
          %1629 = vadd.xlane.f32.xlu0 %v1628
          %v1630 = vpop.xlane.xlu0 %1629
          %v1631 = vadd.f32 %v1614, %v1615
          %1632 = vadd.xlane.f32.xlu0 %v1631
          %v1633 = vpop.xlane.xlu0 %1632
          %v1634 = vadd.f32 %v1616, %v1617
          %1635 = vadd.xlane.f32.xlu0 %v1634
          %v1636 = vpop.xlane.xlu0 %1635
          %v1637 = vadd.f32 %v1618, %v1619
          %1638 = vadd.xlane.f32.xlu0 %v1637
          %v1639 = vpop.xlane.xlu0 %1638
          %v1640 = vadd.f32 %v1620, %v1621
          %1641 = vadd.xlane.f32.xlu0 %v1640
          %v1642 = vpop.xlane.xlu0 %1641
          %v1643 = vadd.f32 %v1622, %v1623
          %1644 = vadd.xlane.f32.xlu0 %v1643
          %v1645 = vpop.xlane.xlu0 %1644
          %v1646 = vadd.f32 %v1624, %v1625
          %1647 = vadd.xlane.f32.xlu0 %v1646
          %v1648 = vpop.xlane.xlu0 %1647
          %v1649 = vadd.f32 %v1626, %v1627
          %1650 = vadd.xlane.f32.xlu0 %v1649
          %v1651 = vpop.xlane.xlu0 %1650
          %v1652 = vmul.f32 %v1612, %v1612
          %v1653 = vmul.f32 %v1613, %v1613
          %v1654 = vmul.f32 %v1614, %v1614
          %v1655 = vmul.f32 %v1615, %v1615
          %v1656 = vmul.f32 %v1616, %v1616
          %v1657 = vmul.f32 %v1617, %v1617
          %v1658 = vmul.f32 %v1618, %v1618
          %v1659 = vmul.f32 %v1619, %v1619
          %v1660 = vmul.f32 %v1620, %v1620
          %v1661 = vmul.f32 %v1621, %v1621
          %v1662 = vmul.f32 %v1622, %v1622
          %v1663 = vmul.f32 %v1623, %v1623
          %v1664 = vmul.f32 %v1624, %v1624
          %v1665 = vmul.f32 %v1625, %v1625
          %v1666 = vmul.f32 %v1626, %v1626
          %v1667 = vmul.f32 %v1627, %v1627
          %v1668 = vadd.f32 %v1652, %v1653
          %1669 = vadd.xlane.f32.xlu0 %v1668
          %v1670 = vpop.xlane.xlu0 %1669
          %v1671 = vadd.f32 %v1654, %v1655
          %1672 = vadd.xlane.f32.xlu0 %v1671
          %v1673 = vpop.xlane.xlu0 %1672
          %v1674 = vadd.f32 %v1656, %v1657
          %1675 = vadd.xlane.f32.xlu0 %v1674
          %v1676 = vpop.xlane.xlu0 %1675
          %v1677 = vadd.f32 %v1658, %v1659
          %1678 = vadd.xlane.f32.xlu0 %v1677
          %v1679 = vpop.xlane.xlu0 %1678
          %v1680 = vadd.f32 %v1660, %v1661
          %1681 = vadd.xlane.f32.xlu0 %v1680
          %v1682 = vpop.xlane.xlu0 %1681
          %v1683 = vadd.f32 %v1662, %v1663
          %1684 = vadd.xlane.f32.xlu0 %v1683
          %v1685 = vpop.xlane.xlu0 %1684
          %v1686 = vadd.f32 %v1664, %v1665
          %1687 = vadd.xlane.f32.xlu0 %v1686
          %v1688 = vpop.xlane.xlu0 %1687
          %v1689 = vadd.f32 %v1666, %v1667
          %1690 = vadd.xlane.f32.xlu0 %v1689
          %v1691 = vpop.xlane.xlu0 %1690
          %v1692 = vsel %vm878, %v1630, 0.0
          %v1693 = vsel %vm878, %v1633, 0.0
          %v1694 = vadd.f32 %v1692, %v1693
          %v1695 = vsel %vm878, %v1636, 0.0
          %v1696 = vadd.f32 %v1694, %v1695
          %v1697 = vsel %vm878, %v1639, 0.0
          %v1698 = vadd.f32 %v1696, %v1697
          %v1699 = vsel %vm878, %v1642, 0.0
          %v1700 = vadd.f32 %v1698, %v1699
          %v1701 = vsel %vm878, %v1645, 0.0
          %v1702 = vadd.f32 %v1700, %v1701
          %v1703 = vsel %vm878, %v1648, 0.0
          %v1704 = vadd.f32 %v1702, %v1703
          %v1705 = vsel %vm878, %v1651, 0.0
          %v1706 = vadd.f32 %v1704, %v1705
          %1707 = vadd.xlane.f32.xlu0 %v1706
          %v1708 = vpop.xlane.xlu0 %1707
          %v1709 = vrot.slane %v1708, 4
          %v1710 = vadd.f32 %v1708, %v1709
          %v1711 = vrot.slane %v1710, 2
          %v1712 = vadd.f32 %v1710, %v1711
          %v1713 = vrot.slane %v1712, 1
          %v1714 = vadd.f32 %v1712, %v1713
          %s1715 = vtos %v1714
          %s1716 = smul.f32 %s1715, 6.1035156e-05
          %v1717 = vsel %vm878, %v1670, 0.0
          %v1718 = vsel %vm878, %v1673, 0.0
          %v1719 = vadd.f32 %v1717, %v1718
          %v1720 = vsel %vm878, %v1676, 0.0
          %v1721 = vadd.f32 %v1719, %v1720
          %v1722 = vsel %vm878, %v1679, 0.0
          %v1723 = vadd.f32 %v1721, %v1722
          %v1724 = vsel %vm878, %v1682, 0.0
          %v1725 = vadd.f32 %v1723, %v1724
          %v1726 = vsel %vm878, %v1685, 0.0
          %v1727 = vadd.f32 %v1725, %v1726
          %v1728 = vsel %vm878, %v1688, 0.0
          %v1729 = vadd.f32 %v1727, %v1728
          %v1730 = vsel %vm878, %v1691, 0.0
          %v1731 = vadd.f32 %v1729, %v1730
          %1732 = vadd.xlane.f32.xlu0 %v1731
          %v1733 = vpop.xlane.xlu0 %1732
          %v1734 = vrot.slane %v1733, 4
          %v1735 = vadd.f32 %v1733, %v1734
          %v1736 = vrot.slane %v1735, 2
          %v1737 = vadd.f32 %v1735, %v1736
          %v1738 = vrot.slane %v1737, 1
          %v1739 = vadd.f32 %v1737, %v1738
          %s1740 = vtos %v1739
          %s1741 = smul.f32 %s1740, 6.1035156e-05
          %s1742 = smul.f32 %s1716, %s1716
          %s1743 = ssub.f32 %s1741, %s1742
          %s1744 = smax.f32 %s1743, 0.0
          %s1745 = sadd.f32 %s1744, 1e-08
          %v1746 = vstv %s1745
          %v1747 = vrsqrt.pop %v1746
          %s1748 = vtos %v1747
          %v1749 = vstv %s1748
          %v1750 = vmul.f32 %v639, %v1749
          %v1751 = vstv %s1716
          %v1752 = vmul.f32 %v1751, %v1750
          %v1754 = vrot.slane %v1752, 7
          %v1756 = vsub.f32 %v639, %v1754
          %v1757 = vlaneseq
          %v1758 = vshrl.u32 %v1757, 7
          %v1759 = vsub.s32 0, %v1758
          %v1760 = vrot.slane %v1750, %v1759
          %v1761 = vmul.f32 %v647, %v1760
          %v1762 = vmul.f32 %v648, %v1760
          %v1763 = vmul.f32 %v649, %v1760
          %v1764 = vmul.f32 %v650, %v1760
          %v1765 = vpack.c.bf16 %v1762, %v1761
          %v1766 = vpack.c.bf16 %v1764, %v1763
          %v1767 = vlaneseq
          %v1768 = vshrl.u32 %v1767, 7
          %v1769 = vsub.s32 1, %v1768
          %v1770 = vrot.slane %v1756, %v1769
          %v1771 = vmul.f32 %v647, %v1770
          %v1772 = vmul.f32 %v648, %v1770
          %v1773 = vmul.f32 %v649, %v1770
          %v1774 = vmul.f32 %v650, %v1770
          %vm1775 = vcmask 523264
          %v1776 = vsel %vm1775, %v1771, 0.0
          %1777 = vadd.xlane.f32.xlu0 %v1776
          %v1778 = vpop.xlane.xlu0 %1777
          %v1779 = vsel %vm1775, %v1772, 0.0
          %1780 = vadd.xlane.f32.xlu0 %v1779
          %v1781 = vpop.xlane.xlu0 %1780
          %v1782 = vsel %vm1775, %v1773, 0.0
          %1783 = vadd.xlane.f32.xlu0 %v1782
          %v1784 = vpop.xlane.xlu0 %1783
          %v1785 = vsel %vm1775, %v1774, 0.0
          %1786 = vadd.xlane.f32.xlu0 %v1785
          %v1787 = vpop.xlane.xlu0 %1786
          %v1788 = vadd.f32 %v598, %v1778
          %v1789 = vadd.f32 %v599, %v1778
          %v1790 = vadd.f32 %v600, %v1781
          %v1791 = vadd.f32 %v601, %v1781
          %v1792 = vadd.f32 %v602, %v1784
          %v1793 = vadd.f32 %v603, %v1784
          %v1794 = vadd.f32 %v604, %v1787
          %v1795 = vadd.f32 %v605, %v1787
          %v1796 = vpack.c.bf16 %v1614, %v1612
          %v1797 = vpack.c.bf16 %v1615, %v1613
          %v1798 = vpack.c.bf16 %v1618, %v1616
          %v1799 = vpack.c.bf16 %v1619, %v1617
          %v1800 = vpack.c.bf16 %v1622, %v1620
          %v1801 = vpack.c.bf16 %v1623, %v1621
          %v1802 = vpack.c.bf16 %v1626, %v1624
          %v1803 = vpack.c.bf16 %v1627, %v1625
          %v1805 = vsel %vm1775, %v1765, 0
          %v1808 = vsel %vm1775, %v1766, 0
          %1810 = vmatprep.subr.bf16.mxu0 %v1797
          %1811 = vmatpush1.bf16.msra.mxu0 %v1796
          %1812 = vmatprep.subr.bf16.mxu0 %v1799
          %1813 = vmatpush1.bf16.msra.mxu0 %v1798
          %1814 = vmatprep.subr.bf16.mxu0 %v1801
          %1815 = vmatpush1.bf16.msra.mxu0 %v1800
          %1816 = vmatprep.subr.bf16.mxu0 %v1803
          %1817 = vmatpush1.bf16.msra.mxu0 %v1802
          %1818 = vmatprep.subr.bf16.mxu0 0
          %1819 = vmatpush1.bf16.msra.mxu0 0
          %1820 = vmatprep.subr.bf16.mxu0 0
          %1821 = vmatpush1.bf16.msra.mxu0 0
          %1822 = vmatprep.subr.bf16.mxu0 0
          %1823 = vmatpush1.bf16.msra.mxu0 0
          %1824 = vmatprep.subr.bf16.mxu0 0
          %1825 = vmatpush1.bf16.msra.mxu0 0
          %1826 = vmatprep.subr.bf16.mxu0 0
          %1827 = vmatpush1.bf16.msra.mxu0 0
          %1828 = vmatprep.subr.bf16.mxu0 0
          %1829 = vmatpush1.bf16.msra.mxu0 0
          %1830 = vmatprep.subr.bf16.mxu0 0
          %1831 = vmatpush1.bf16.msra.mxu0 0
          %1832 = vmatprep.subr.bf16.mxu0 0
          %1833 = vmatpush1.bf16.msra.mxu0 0
          %1834 = vmatprep.subr.bf16.mxu0 0
          %1835 = vmatpush1.bf16.msra.mxu0 0
          %1836 = vmatprep.subr.bf16.mxu0 0
          %1837 = vmatpush1.bf16.msra.mxu0 0
          %1838 = vmatprep.subr.bf16.mxu0 0
          %1839 = vmatpush1.bf16.msra.mxu0 0
          %1840 = vmatprep.subr.bf16.mxu0 0
          %1841 = vmatpush1.bf16.msra.mxu0 0
          %1842 = vmatprep.mubr.bf16.mxu0 0
          %1843 = vmatmul.mubr.bf16.gmra.mrb[0].mxu0 %v1805
          %v1844 = vpop.f32.mrb[0].mxu0
          %v1845 = vadd.f32 0.0, %v1844
          %v1846 = vpop.f32.mrb[0].mxu0
          %v1847 = vadd.f32 0.0, %v1846
          %v1848 = vpop.f32.mrb[0].mxu0
          %v1849 = vadd.f32 0.0, %v1848
          %v1850 = vpop.f32.mrb[0].mxu0
          %v1851 = vadd.f32 0.0, %v1850
          %1852 = vmatprep.mubr.bf16.mxu0 0
          %1853 = vmatmul.mubr.bf16.gmra.mrb[0].mxu0 %v1808
          %v1854 = vpop.f32.mrb[0].mxu0
          %v1855 = vadd.f32 0.0, %v1854
          %v1856 = vpop.f32.mrb[0].mxu0
          %v1857 = vadd.f32 0.0, %v1856
          %v1858 = vpop.f32.mrb[0].mxu0
          %v1859 = vadd.f32 0.0, %v1858
          %v1860 = vpop.f32.mrb[0].mxu0
          %v1861 = vadd.f32 0.0, %v1860
          %1862 = vdwg.mxu0
          %v1863 = vadd.f32 %v1788, %v1845
          %v1864 = vadd.f32 %v1789, %v1847
          %v1865 = vadd.f32 %v1790, %v1849
          %v1866 = vadd.f32 %v1791, %v1851
          %v1867 = vadd.f32 %v1792, %v1855
          %v1868 = vadd.f32 %v1793, %v1857
          %v1869 = vadd.f32 %v1794, %v1859
          %v1870 = vadd.f32 %v1795, %v1861
          %p1871 = scmp.eq.s32.totalorder %s593, 1
          // Predicated region
          $region72: #{tpu_custom_call.1} parent=68 // pred_check
            %p1872 = pneg %p1871
          $region73: #{tpu_custom_call.1} parent=68 // pred_check_branch
            %1874 = sbr.rel (%p1872) target = $region75
          $region74: #{tpu_custom_call.1} parent=68 // pred_region
            %1875 = vst [vmem:[%s404 + $0x40] sm:$0xff] %v1863
            %1876 = vst [vmem:[%s404 + $0x48] sm:$0xff] %v1864
            %1877 = vst [vmem:[%s404 + $0x50] sm:$0xff] %v1865
            %1878 = vst [vmem:[%s404 + $0x58] sm:$0xff] %v1866
            %1879 = vst [vmem:[%s404 + $0x60] sm:$0xff] %v1867
            %1880 = vst [vmem:[%s404 + $0x68] sm:$0xff] %v1868
            %1881 = vst [vmem:[%s404 + $0x70] sm:$0xff] %v1869
            %1882 = vst [vmem:[%s404 + $0x78] sm:$0xff] %v1870
          $region75: #{tpu_custom_call.1} parent=68 // pred_fallthru
            _
          %s1883 = sadd.s32 %s606, 1
          %s1884 = smul.u32 %s1883, 8
          %s1885 = smul.addr %s1884, 4
          %s1886 = scalar_lea.vmem %s3, %s1885
          %v1887 = vld [vmem:[%s1886] sm:$0xf]
          %v1888 = vld [vmem:[%s1886 + $0x4] sm:$0xf]
          %v1889 = vld [vmem:[%s1886 + $0x8] sm:$0xf]
          %v1890 = vld [vmem:[%s1886 + $0xc] sm:$0xf]
          %v1891 = vld [vmem:[%s1886 + $0x10] sm:$0xf]
          %v1892 = vld [vmem:[%s1886 + $0x14] sm:$0xf]
          %v1893 = vld [vmem:[%s1886 + $0x18] sm:$0xf]
          %v1894 = vld [vmem:[%s1886 + $0x1c] sm:$0xf]
          %s1895 = smul.u32 %s1883, 64
          %s1896 = scalar_lea.vmem %s4, %s1895
          %v1897 = vld [vmem:[%s1896] sm:$0xff]
          %v1898 = vld [vmem:[%s1896 + $0x8] sm:$0xff]
          %v1899 = vld [vmem:[%s1896 + $0x10] sm:$0xff]
          %v1900 = vld [vmem:[%s1896 + $0x18] sm:$0xff]
          %v1901 = vld [vmem:[%s1896 + $0x20] sm:$0xff]
          %v1902 = vld [vmem:[%s1896 + $0x28] sm:$0xff]
          %v1903 = vld [vmem:[%s1896 + $0x30] sm:$0xff]
          %v1904 = vld [vmem:[%s1896 + $0x38] sm:$0xff]
          %s1905 = scalar_lea.vmem %s5, %s1895
          %v1906 = vld [vmem:[%s1905] sm:$0xff]
          %v1907 = vld [vmem:[%s1905 + $0x8] sm:$0xff]
          %v1908 = vld [vmem:[%s1905 + $0x10] sm:$0xff]
          %v1909 = vld [vmem:[%s1905 + $0x18] sm:$0xff]
          %v1910 = vld [vmem:[%s1905 + $0x20] sm:$0xff]
          %v1911 = vld [vmem:[%s1905 + $0x28] sm:$0xff]
          %v1912 = vld [vmem:[%s1905 + $0x30] sm:$0xff]
          %v1913 = vld [vmem:[%s1905 + $0x38] sm:$0xff]
          %s1914 = smul.u32 %s1883, 2
          %s1915 = scalar_lea.vmem %s6, %s1914
          %v1916 = vld [vmem:[%s1915] sm:$0x3]
          %s1917 = smul.u32 %s1883, 4
          %s1918 = smul.addr %s1917, 4
          %s1919 = scalar_lea.vmem %s7, %s1918
          %v1920 = vld [vmem:[%s1919] sm:$0xf]
          %v1921 = vld [vmem:[%s1919 + $0x4] sm:$0xf]
          %v1922 = vld [vmem:[%s1919 + $0x8] sm:$0xf]
          %v1923 = vld [vmem:[%s1919 + $0xc] sm:$0xf]
          %v1924 = vunpack.c.l.bf16 %v1920
          %v1925 = vunpack.c.l.bf16 %v1921
          %v1926 = vunpack.c.l.bf16 %v1922
          %v1927 = vunpack.c.l.bf16 %v1923
          %s1928 = sld [smem:[#allocation3 + %s1914]]
          %s1929 = sadd.s32 %s1914, 1
          %s1930 = sld [smem:[#allocation3 + %s1929]]
          %v1931 = vpack.c.bf16 %v1865, %v1863
          %v1932 = vpack.c.bf16 %v1866, %v1864
          %v1933 = vpack.c.bf16 %v1869, %v1867
          %v1934 = vpack.c.bf16 %v1870, %v1868
          %v1943 = vunpack.c.l.b16 %v1887
          %v1944 = vunpack.c.l.b16 %v1888
          %v1945 = vunpack.c.l.b16 %v1889
          %v1946 = vunpack.c.l.b16 %v1890
          %v1947 = vunpack.c.l.b16 %v1891
          %v1948 = vunpack.c.l.b16 %v1892
          %v1949 = vunpack.c.l.b16 %v1893
          %v1950 = vunpack.c.l.b16 %v1894
          %v1951 = vpack.c.b16 %v1944, %v1943
          %v1952 = vpack.c.b16 %v1946, %v1945
          %v1953 = vpack.c.b16 %v1948, %v1947
          %v1954 = vpack.c.b16 %v1950, %v1949
          %v1956 = vsel %vm679, %v1951, 0
          %v1959 = vsel %vm679, %v1952, 0
          %v1962 = vsel %vm679, %v1953, 0
          %v1965 = vsel %vm679, %v1954, 0
          %1967 = vmatprep.subr.bf16.mxu0 %v1932
          %1968 = vmatpush1.bf16.msra.mxu0 %v1931
          %1969 = vmatprep.subr.bf16.mxu0 %v1934
          %1970 = vmatpush1.bf16.msra.mxu0 %v1933
          %1971 = vmatprep.subr.bf16.mxu0 0
          %1972 = vmatpush1.bf16.msra.mxu0 0
          %1973 = vmatprep.subr.bf16.mxu0 0
          %1974 = vmatpush1.bf16.msra.mxu0 0
          %1975 = vmatprep.subr.bf16.mxu0 0
          %1976 = vmatpush1.bf16.msra.mxu0 0
          %1977 = vmatprep.subr.bf16.mxu0 0
          %1978 = vmatpush1.bf16.msra.mxu0 0
          %1979 = vmatprep.subr.bf16.mxu0 0
          %1980 = vmatpush1.bf16.msra.mxu0 0
          %1981 = vmatprep.subr.bf16.mxu0 0
          %1982 = vmatpush1.bf16.msra.mxu0 0
          %1983 = vmatprep.subr.bf16.mxu0 0
          %1984 = vmatpush1.bf16.msra.mxu0 0
          %1985 = vmatprep.subr.bf16.mxu0 0
          %1986 = vmatpush1.bf16.msra.mxu0 0
          %1987 = vmatprep.subr.bf16.mxu0 0
          %1988 = vmatpush1.bf16.msra.mxu0 0
          %1989 = vmatprep.subr.bf16.mxu0 0
          %1990 = vmatpush1.bf16.msra.mxu0 0
          %1991 = vmatprep.subr.bf16.mxu0 0
          %1992 = vmatpush1.bf16.msra.mxu0 0
          %1993 = vmatprep.subr.bf16.mxu0 0
          %1994 = vmatpush1.bf16.msra.mxu0 0
          %1995 = vmatprep.subr.bf16.mxu0 0
          %1996 = vmatpush1.bf16.msra.mxu0 0
          %1997 = vmatprep.subr.bf16.mxu0 0
          %1998 = vmatpush1.bf16.msra.mxu0 0
          %1999 = vmatprep.mubr.bf16.mxu0 0
          %2000 = vmatmul.mubr.bf16.gmra.mrb[0].mxu0 %v1956
          %v2001 = vpop.f32.mrb[0].mxu0
          %v2002 = vadd.f32 0.0, %v2001
          %v2003 = vpop.f32.mrb[0].mxu0
          %v2004 = vadd.f32 0.0, %v2003
          %v2005 = vpop.f32.mrb[0].mxu0
          %v2006 = vadd.f32 0.0, %v2005
          %v2007 = vpop.f32.mrb[0].mxu0
          %v2008 = vadd.f32 0.0, %v2007
          %2009 = vmatprep.mubr.bf16.mxu0 0
          %2010 = vmatmul.mubr.bf16.gmra.mrb[0].mxu0 %v1959
          %v2011 = vpop.f32.mrb[0].mxu0
          %v2012 = vadd.f32 0.0, %v2011
          %v2013 = vpop.f32.mrb[0].mxu0
          %v2014 = vadd.f32 0.0, %v2013
          %v2015 = vpop.f32.mrb[0].mxu0
          %v2016 = vadd.f32 0.0, %v2015
          %v2017 = vpop.f32.mrb[0].mxu0
          %v2018 = vadd.f32 0.0, %v2017
          %2019 = vmatprep.mubr.bf16.mxu0 0
          %2020 = vmatmul.mubr.bf16.gmra.mrb[0].mxu0 %v1962
          %v2021 = vpop.f32.mrb[0].mxu0
          %v2022 = vadd.f32 0.0, %v2021
          %v2023 = vpop.f32.mrb[0].mxu0
          %v2024 = vadd.f32 0.0, %v2023
          %v2025 = vpop.f32.mrb[0].mxu0
          %v2026 = vadd.f32 0.0, %v2025
          %v2027 = vpop.f32.mrb[0].mxu0
          %v2028 = vadd.f32 0.0, %v2027
          %2029 = vmatprep.mubr.bf16.mxu0 0
          %2030 = vmatmul.mubr.bf16.gmra.mrb[0].mxu0 %v1965
          %v2031 = vpop.f32.mrb[0].mxu0
          %v2032 = vadd.f32 0.0, %v2031
          %v2033 = vpop.f32.mrb[0].mxu0
          %v2034 = vadd.f32 0.0, %v2033
          %v2035 = vpop.f32.mrb[0].mxu0
          %v2036 = vadd.f32 0.0, %v2035
          %v2037 = vpop.f32.mrb[0].mxu0
          %v2038 = vadd.f32 0.0, %v2037
          %2039 = vdwg.mxu0
          %vm2040 = vcmp.ge.f32.partialorder %v2002, 0.0
          %vm2041 = vcmp.ge.f32.partialorder %v2004, 0.0
          %vm2042 = vcmp.ge.f32.partialorder %v2006, 0.0
          %vm2043 = vcmp.ge.f32.partialorder %v2008, 0.0
          %vm2044 = vcmp.ge.f32.partialorder %v2012, 0.0
          %vm2045 = vcmp.ge.f32.partialorder %v2014, 0.0
          %vm2046 = vcmp.ge.f32.partialorder %v2016, 0.0
          %vm2047 = vcmp.ge.f32.partialorder %v2018, 0.0
          %vm2048 = vcmp.ge.f32.partialorder %v2022, 0.0
          %vm2049 = vcmp.ge.f32.partialorder %v2024, 0.0
          %vm2050 = vcmp.ge.f32.partialorder %v2026, 0.0
          %vm2051 = vcmp.ge.f32.partialorder %v2028, 0.0
          %vm2052 = vcmp.ge.f32.partialorder %v2032, 0.0
          %vm2053 = vcmp.ge.f32.partialorder %v2034, 0.0
          %vm2054 = vcmp.ge.f32.partialorder %v2036, 0.0
          %vm2055 = vcmp.ge.f32.partialorder %v2038, 0.0
          %v2056 = vstv %s1928
          %v2057 = vmul.f32 %v2056, %v2002
          %v2058 = vmul.f32 %v2056, %v2004
          %v2059 = vmul.f32 %v2056, %v2006
          %v2060 = vmul.f32 %v2056, %v2008
          %v2061 = vmul.f32 %v2056, %v2012
          %v2062 = vmul.f32 %v2056, %v2014
          %v2063 = vmul.f32 %v2056, %v2016
          %v2064 = vmul.f32 %v2056, %v2018
          %v2065 = vmul.f32 %v2056, %v2022
          %v2066 = vmul.f32 %v2056, %v2024
          %v2067 = vmul.f32 %v2056, %v2026
          %v2068 = vmul.f32 %v2056, %v2028
          %v2069 = vmul.f32 %v2056, %v2032
          %v2070 = vmul.f32 %v2056, %v2034
          %v2071 = vmul.f32 %v2056, %v2036
          %v2072 = vmul.f32 %v2056, %v2038
          %v2073 = vsel %vm2040, %v2002, %v2057
          %v2074 = vsel %vm2041, %v2004, %v2058
          %v2075 = vsel %vm2042, %v2006, %v2059
          %v2076 = vsel %vm2043, %v2008, %v2060
          %v2077 = vsel %vm2044, %v2012, %v2061
          %v2078 = vsel %vm2045, %v2014, %v2062
          %v2079 = vsel %vm2046, %v2016, %v2063
          %v2080 = vsel %vm2047, %v2018, %v2064
          %v2081 = vsel %vm2048, %v2022, %v2065
          %v2082 = vsel %vm2049, %v2024, %v2066
          %v2083 = vsel %vm2050, %v2026, %v2067
          %v2084 = vsel %vm2051, %v2028, %v2068
          %v2085 = vsel %vm2052, %v2032, %v2069
          %v2086 = vsel %vm2053, %v2034, %v2070
          %v2087 = vsel %vm2054, %v2036, %v2071
          %v2088 = vsel %vm2055, %v2038, %v2072
          %v2089 = vadd.f32 %v2073, %v2074
          %2090 = vadd.xlane.f32.xlu0 %v2089
          %v2091 = vpop.xlane.xlu0 %2090
          %v2092 = vadd.f32 %v2075, %v2076
          %2093 = vadd.xlane.f32.xlu0 %v2092
          %v2094 = vpop.xlane.xlu0 %2093
          %v2095 = vadd.f32 %v2077, %v2078
          %2096 = vadd.xlane.f32.xlu0 %v2095
          %v2097 = vpop.xlane.xlu0 %2096
          %v2098 = vadd.f32 %v2079, %v2080
          %2099 = vadd.xlane.f32.xlu0 %v2098
          %v2100 = vpop.xlane.xlu0 %2099
          %v2101 = vadd.f32 %v2081, %v2082
          %2102 = vadd.xlane.f32.xlu0 %v2101
          %v2103 = vpop.xlane.xlu0 %2102
          %v2104 = vadd.f32 %v2083, %v2084
          %2105 = vadd.xlane.f32.xlu0 %v2104
          %v2106 = vpop.xlane.xlu0 %2105
          %v2107 = vadd.f32 %v2085, %v2086
          %2108 = vadd.xlane.f32.xlu0 %v2107
          %v2109 = vpop.xlane.xlu0 %2108
          %v2110 = vadd.f32 %v2087, %v2088
          %2111 = vadd.xlane.f32.xlu0 %v2110
          %v2112 = vpop.xlane.xlu0 %2111
          %v2113 = vmul.f32 %v2073, %v2073
          %v2114 = vmul.f32 %v2074, %v2074
          %v2115 = vmul.f32 %v2075, %v2075
          %v2116 = vmul.f32 %v2076, %v2076
          %v2117 = vmul.f32 %v2077, %v2077
          %v2118 = vmul.f32 %v2078, %v2078
          %v2119 = vmul.f32 %v2079, %v2079
          %v2120 = vmul.f32 %v2080, %v2080
          %v2121 = vmul.f32 %v2081, %v2081
          %v2122 = vmul.f32 %v2082, %v2082
          %v2123 = vmul.f32 %v2083, %v2083
          %v2124 = vmul.f32 %v2084, %v2084
          %v2125 = vmul.f32 %v2085, %v2085
          %v2126 = vmul.f32 %v2086, %v2086
          %v2127 = vmul.f32 %v2087, %v2087
          %v2128 = vmul.f32 %v2088, %v2088
          %v2129 = vadd.f32 %v2113, %v2114
          %2130 = vadd.xlane.f32.xlu0 %v2129
          %v2131 = vpop.xlane.xlu0 %2130
          %v2132 = vadd.f32 %v2115, %v2116
          %2133 = vadd.xlane.f32.xlu0 %v2132
          %v2134 = vpop.xlane.xlu0 %2133
          %v2135 = vadd.f32 %v2117, %v2118
          %2136 = vadd.xlane.f32.xlu0 %v2135
          %v2137 = vpop.xlane.xlu0 %2136
          %v2138 = vadd.f32 %v2119, %v2120
          %2139 = vadd.xlane.f32.xlu0 %v2138
          %v2140 = vpop.xlane.xlu0 %2139
          %v2141 = vadd.f32 %v2121, %v2122
          %2142 = vadd.xlane.f32.xlu0 %v2141
          %v2143 = vpop.xlane.xlu0 %2142
          %v2144 = vadd.f32 %v2123, %v2124
          %2145 = vadd.xlane.f32.xlu0 %v2144
          %v2146 = vpop.xlane.xlu0 %2145
          %v2147 = vadd.f32 %v2125, %v2126
          %2148 = vadd.xlane.f32.xlu0 %v2147
          %v2149 = vpop.xlane.xlu0 %2148
          %v2150 = vadd.f32 %v2127, %v2128
          %2151 = vadd.xlane.f32.xlu0 %v2150
          %v2152 = vpop.xlane.xlu0 %2151
          %v2153 = vsel %vm878, %v2091, 0.0
          %v2154 = vsel %vm878, %v2094, 0.0
          %v2155 = vadd.f32 %v2153, %v2154
          %v2156 = vsel %vm878, %v2097, 0.0
          %v2157 = vadd.f32 %v2155, %v2156
          %v2158 = vsel %vm878, %v2100, 0.0
          %v2159 = vadd.f32 %v2157, %v2158
          %v2160 = vsel %vm878, %v2103, 0.0
          %v2161 = vadd.f32 %v2159, %v2160
          %v2162 = vsel %vm878, %v2106, 0.0
          %v2163 = vadd.f32 %v2161, %v2162
          %v2164 = vsel %vm878, %v2109, 0.0
          %v2165 = vadd.f32 %v2163, %v2164
          %v2166 = vsel %vm878, %v2112, 0.0
          %v2167 = vadd.f32 %v2165, %v2166
          %2168 = vadd.xlane.f32.xlu0 %v2167
          %v2169 = vpop.xlane.xlu0 %2168
          %v2170 = vrot.slane %v2169, 4
          %v2171 = vadd.f32 %v2169, %v2170
          %v2172 = vrot.slane %v2171, 2
          %v2173 = vadd.f32 %v2171, %v2172
          %v2174 = vrot.slane %v2173, 1
          %v2175 = vadd.f32 %v2173, %v2174
          %s2176 = vtos %v2175
          %s2177 = smul.f32 %s2176, 6.1035156e-05
          %v2178 = vsel %vm878, %v2131, 0.0
          %v2179 = vsel %vm878, %v2134, 0.0
          %v2180 = vadd.f32 %v2178, %v2179
          %v2181 = vsel %vm878, %v2137, 0.0
          %v2182 = vadd.f32 %v2180, %v2181
          %v2183 = vsel %vm878, %v2140, 0.0
          %v2184 = vadd.f32 %v2182, %v2183
          %v2185 = vsel %vm878, %v2143, 0.0
          %v2186 = vadd.f32 %v2184, %v2185
          %v2187 = vsel %vm878, %v2146, 0.0
          %v2188 = vadd.f32 %v2186, %v2187
          %v2189 = vsel %vm878, %v2149, 0.0
          %v2190 = vadd.f32 %v2188, %v2189
          %v2191 = vsel %vm878, %v2152, 0.0
          %v2192 = vadd.f32 %v2190, %v2191
          %2193 = vadd.xlane.f32.xlu0 %v2192
          %v2194 = vpop.xlane.xlu0 %2193
          %v2195 = vrot.slane %v2194, 4
          %v2196 = vadd.f32 %v2194, %v2195
          %v2197 = vrot.slane %v2196, 2
          %v2198 = vadd.f32 %v2196, %v2197
          %v2199 = vrot.slane %v2198, 1
          %v2200 = vadd.f32 %v2198, %v2199
          %s2201 = vtos %v2200
          %s2202 = smul.f32 %s2201, 6.1035156e-05
          %s2203 = smul.f32 %s2177, %s2177
          %s2204 = ssub.f32 %s2202, %s2203
          %s2205 = smax.f32 %s2204, 0.0
          %s2206 = sadd.f32 %s2205, 1e-08
          %v2207 = vstv %s2206
          %v2208 = vrsqrt.pop %v2207
          %s2209 = vtos %v2208
          %v2210 = vstv %s2209
          %v2211 = vmul.f32 %v1906, %v2210
          %v2212 = vmul.f32 %v1907, %v2210
          %v2213 = vmul.f32 %v1908, %v2210
          %v2214 = vmul.f32 %v1909, %v2210
          %v2215 = vmul.f32 %v1910, %v2210
          %v2216 = vmul.f32 %v1911, %v2210
          %v2217 = vmul.f32 %v1912, %v2210
          %v2218 = vmul.f32 %v1913, %v2210
          %v2219 = vstv %s2177
          %v2220 = vmul.f32 %v2219, %v2211
          %v2221 = vmul.f32 %v2219, %v2212
          %v2222 = vmul.f32 %v2219, %v2213
          %v2223 = vmul.f32 %v2219, %v2214
          %v2224 = vmul.f32 %v2219, %v2215
          %v2225 = vmul.f32 %v2219, %v2216
          %v2226 = vmul.f32 %v2219, %v2217
          %v2227 = vmul.f32 %v2219, %v2218
          %2236 = vrot.lane.b32.xlu0 %v2220, 1
          %v2237 = vpop.permute.xlu0 %2236
          %2238 = vrot.lane.b32.xlu0 %v2221, 1
          %v2239 = vpop.permute.xlu0 %2238
          %2240 = vrot.lane.b32.xlu0 %v2222, 1
          %v2241 = vpop.permute.xlu0 %2240
          %2242 = vrot.lane.b32.xlu0 %v2223, 1
          %v2243 = vpop.permute.xlu0 %2242
          %2244 = vrot.lane.b32.xlu0 %v2224, 1
          %v2245 = vpop.permute.xlu0 %2244
          %2246 = vrot.lane.b32.xlu0 %v2225, 1
          %v2247 = vpop.permute.xlu0 %2246
          %2248 = vrot.lane.b32.xlu0 %v2226, 1
          %v2249 = vpop.permute.xlu0 %2248
          %2250 = vrot.lane.b32.xlu0 %v2227, 1
          %v2251 = vpop.permute.xlu0 %2250
          %v2260 = vsub.f32 %v1906, %v2237
          %v2261 = vsub.f32 %v1907, %v2239
          %v2262 = vsub.f32 %v1908, %v2241
          %v2263 = vsub.f32 %v1909, %v2243
          %v2264 = vsub.f32 %v1910, %v2245
          %v2265 = vsub.f32 %v1911, %v2247
          %v2266 = vsub.f32 %v1912, %v2249
          %v2267 = vsub.f32 %v1913, %v2251
          %2269 = vset.pattern.permute.xlu0 0
          %2270 = vperm.xlu0 %2269, %v2211
          %v2271 = vpop.permute.xlu0 %2270
          %2274 = vset.pattern.permute.xlu0 0
          %2275 = vperm.xlu0 %2274, %v2212
          %v2276 = vpop.permute.xlu0 %2275
          %2279 = vset.pattern.permute.xlu0 0
          %2280 = vperm.xlu0 %2279, %v2213
          %v2281 = vpop.permute.xlu0 %2280
          %2284 = vset.pattern.permute.xlu0 0
          %2285 = vperm.xlu0 %2284, %v2214
          %v2286 = vpop.permute.xlu0 %2285
          %2289 = vset.pattern.permute.xlu0 0
          %2290 = vperm.xlu0 %2289, %v2215
          %v2291 = vpop.permute.xlu0 %2290
          %2294 = vset.pattern.permute.xlu0 0
          %2295 = vperm.xlu0 %2294, %v2216
          %v2296 = vpop.permute.xlu0 %2295
          %2299 = vset.pattern.permute.xlu0 0
          %2300 = vperm.xlu0 %2299, %v2217
          %v2301 = vpop.permute.xlu0 %2300
          %2304 = vset.pattern.permute.xlu0 0
          %2305 = vperm.xlu0 %2304, %v2218
          %v2306 = vpop.permute.xlu0 %2305
          %v2308 = vmul.f32 %v2073, %v2271
          %v2309 = vmul.f32 %v2074, %v2271
          %v2310 = vmul.f32 %v2075, %v2276
          %v2311 = vmul.f32 %v2076, %v2276
          %v2312 = vmul.f32 %v2077, %v2281
          %v2313 = vmul.f32 %v2078, %v2281
          %v2314 = vmul.f32 %v2079, %v2286
          %v2315 = vmul.f32 %v2080, %v2286
          %v2316 = vmul.f32 %v2081, %v2291
          %v2317 = vmul.f32 %v2082, %v2291
          %v2318 = vmul.f32 %v2083, %v2296
          %v2319 = vmul.f32 %v2084, %v2296
          %v2320 = vmul.f32 %v2085, %v2301
          %v2321 = vmul.f32 %v2086, %v2301
          %v2322 = vmul.f32 %v2087, %v2306
          %v2323 = vmul.f32 %v2088, %v2306
          %2325 = vset.pattern.permute.xlu0 1
          %2326 = vperm.xlu0 %2325, %v2260
          %v2327 = vpop.permute.xlu0 %2326
          %2330 = vset.pattern.permute.xlu0 1
          %2331 = vperm.xlu0 %2330, %v2261
          %v2332 = vpop.permute.xlu0 %2331
          %2335 = vset.pattern.permute.xlu0 1
          %2336 = vperm.xlu0 %2335, %v2262
          %v2337 = vpop.permute.xlu0 %2336
          %2340 = vset.pattern.permute.xlu0 1
          %2341 = vperm.xlu0 %2340, %v2263
          %v2342 = vpop.permute.xlu0 %2341
          %2345 = vset.pattern.permute.xlu0 1
          %2346 = vperm.xlu0 %2345, %v2264
          %v2347 = vpop.permute.xlu0 %2346
          %2350 = vset.pattern.permute.xlu0 1
          %2351 = vperm.xlu0 %2350, %v2265
          %v2352 = vpop.permute.xlu0 %2351
          %2355 = vset.pattern.permute.xlu0 1
          %2356 = vperm.xlu0 %2355, %v2266
          %v2357 = vpop.permute.xlu0 %2356
          %2360 = vset.pattern.permute.xlu0 1
          %2361 = vperm.xlu0 %2360, %v2267
          %v2362 = vpop.permute.xlu0 %2361
          %v2364 = vadd.f32 %v2308, %v2327
          %v2365 = vadd.f32 %v2309, %v2327
          %v2366 = vadd.f32 %v2310, %v2332
          %v2367 = vadd.f32 %v2311, %v2332
          %v2368 = vadd.f32 %v2312, %v2337
          %v2369 = vadd.f32 %v2313, %v2337
          %v2370 = vadd.f32 %v2314, %v2342
          %v2371 = vadd.f32 %v2315, %v2342
          %v2372 = vadd.f32 %v2316, %v2347
          %v2373 = vadd.f32 %v2317, %v2347
          %v2374 = vadd.f32 %v2318, %v2352
          %v2375 = vadd.f32 %v2319, %v2352
          %v2376 = vadd.f32 %v2320, %v2357
          %v2377 = vadd.f32 %v2321, %v2357
          %v2378 = vadd.f32 %v2322, %v2362
          %v2379 = vadd.f32 %v2323, %v2362
          %2380 = vst [vmem:[#allocation2 + $0x8] sm:$0xff] %v2364
          %2381 = vst [vmem:[#allocation2 + $0x10] sm:$0xff] %v2365
          %2382 = vst [vmem:[#allocation2 + $0x28] sm:$0xff] %v2366
          %2383 = vst [vmem:[#allocation2 + $0x30] sm:$0xff] %v2367
          %2384 = vst [vmem:[#allocation2 + $0x48] sm:$0xff] %v2368
          %2385 = vst [vmem:[#allocation2 + $0x50] sm:$0xff] %v2369
          %2386 = vst [vmem:[#allocation2 + $0x68] sm:$0xff] %v2370
          %2387 = vst [vmem:[#allocation2 + $0x70] sm:$0xff] %v2371
          %2388 = vst [vmem:[#allocation2 + $0x88] sm:$0xff] %v2372
          %2389 = vst [vmem:[#allocation2 + $0x90] sm:$0xff] %v2373
          %2390 = vst [vmem:[#allocation2 + $0xa8] sm:$0xff] %v2374
          %2391 = vst [vmem:[#allocation2 + $0xb0] sm:$0xff] %v2375
          %2392 = vst [vmem:[#allocation2 + $0xc8] sm:$0xff] %v2376
          %2393 = vst [vmem:[#allocation2 + $0xd0] sm:$0xff] %v2377
          %2394 = vst [vmem:[#allocation2 + $0xe8] sm:$0xff] %v2378
          %2395 = vst [vmem:[#allocation2 + $0xf0] sm:$0xff] %v2379
          %2397 = vset.pattern.permute.xlu0 1
          %2398 = vperm.xlu0 %2397, %v1897
          %v2399 = vpop.permute.xlu0 %2398
          %2402 = vset.pattern.permute.xlu0 1
          %2403 = vperm.xlu0 %2402, %v1898
          %v2404 = vpop.permute.xlu0 %2403
          %2407 = vset.pattern.permute.xlu0 1
          %2408 = vperm.xlu0 %2407, %v1899
          %v2409 = vpop.permute.xlu0 %2408
          %2412 = vset.pattern.permute.xlu0 1
          %2413 = vperm.xlu0 %2412, %v1900
          %v2414 = vpop.permute.xlu0 %2413
          %2417 = vset.pattern.permute.xlu0 1
          %2418 = vperm.xlu0 %2417, %v1901
          %v2419 = vpop.permute.xlu0 %2418
          %2422 = vset.pattern.permute.xlu0 1
          %2423 = vperm.xlu0 %2422, %v1902
          %v2424 = vpop.permute.xlu0 %2423
          %2427 = vset.pattern.permute.xlu0 1
          %2428 = vperm.xlu0 %2427, %v1903
          %v2429 = vpop.permute.xlu0 %2428
          %2432 = vset.pattern.permute.xlu0 1
          %2433 = vperm.xlu0 %2432, %v1904
          %v2434 = vpop.permute.xlu0 %2433
          %v2436 = vmul.f32 %v2399, %v2364
          %v2437 = vmul.f32 %v2399, %v2365
          %v2438 = vmul.f32 %v2404, %v2366
          %v2439 = vmul.f32 %v2404, %v2367
          %v2440 = vmul.f32 %v2409, %v2368
          %v2441 = vmul.f32 %v2409, %v2369
          %v2442 = vmul.f32 %v2414, %v2370
          %v2443 = vmul.f32 %v2414, %v2371
          %v2444 = vmul.f32 %v2419, %v2372
          %v2445 = vmul.f32 %v2419, %v2373
          %v2446 = vmul.f32 %v2424, %v2374
          %v2447 = vmul.f32 %v2424, %v2375
          %v2448 = vmul.f32 %v2429, %v2376
          %v2449 = vmul.f32 %v2429, %v2377
          %v2450 = vmul.f32 %v2434, %v2378
          %v2451 = vmul.f32 %v2434, %v2379
          %v2452 = vld [vmem:[#allocation2] sm:$0xff]
          %v2453 = vld [vmem:[#allocation2 + $0x8] sm:$0xff]
          %v2454 = vld [vmem:[#allocation2 + $0x10] sm:$0xff]
          %v2455 = vld [vmem:[#allocation2 + $0x20] sm:$0xff]
          %v2456 = vld [vmem:[#allocation2 + $0x28] sm:$0xff]
          %v2457 = vld [vmem:[#allocation2 + $0x30] sm:$0xff]
          %v2458 = vld [vmem:[#allocation2 + $0x40] sm:$0xff]
          %v2459 = vld [vmem:[#allocation2 + $0x48] sm:$0xff]
          %v2460 = vld [vmem:[#allocation2 + $0x50] sm:$0xff]
          %v2461 = vld [vmem:[#allocation2 + $0x60] sm:$0xff]
          %v2462 = vld [vmem:[#allocation2 + $0x68] sm:$0xff]
          %v2463 = vld [vmem:[#allocation2 + $0x70] sm:$0xff]
          %v2464 = vld [vmem:[#allocation2 + $0x80] sm:$0xff]
          %v2465 = vld [vmem:[#allocation2 + $0x88] sm:$0xff]
          %v2466 = vld [vmem:[#allocation2 + $0x90] sm:$0xff]
          %v2467 = vld [vmem:[#allocation2 + $0xa0] sm:$0xff]
          %v2468 = vld [vmem:[#allocation2 + $0xa8] sm:$0xff]
          %v2469 = vld [vmem:[#allocation2 + $0xb0] sm:$0xff]
          %v2470 = vld [vmem:[#allocation2 + $0xc0] sm:$0xff]
          %v2471 = vld [vmem:[#allocation2 + $0xc8] sm:$0xff]
          %v2472 = vld [vmem:[#allocation2 + $0xd0] sm:$0xff]
          %v2473 = vld [vmem:[#allocation2 + $0xe0] sm:$0xff]
          %v2474 = vld [vmem:[#allocation2 + $0xe8] sm:$0xff]
          %v2475 = vld [vmem:[#allocation2 + $0xf0] sm:$0xff]
          %2476 = vset.pattern.permute.xlu0 0
          %2477 = vperm.xlu0 %2476, %v1897
          %v2478 = vpop.permute.xlu0 %2477
          %2480 = vset.pattern.permute.xlu0 0
          %2481 = vperm.xlu0 %2480, %v1898
          %v2482 = vpop.permute.xlu0 %2481
          %2484 = vset.pattern.permute.xlu0 0
          %2485 = vperm.xlu0 %2484, %v1899
          %v2486 = vpop.permute.xlu0 %2485
          %2488 = vset.pattern.permute.xlu0 0
          %2489 = vperm.xlu0 %2488, %v1900
          %v2490 = vpop.permute.xlu0 %2489
          %2492 = vset.pattern.permute.xlu0 0
          %2493 = vperm.xlu0 %2492, %v1901
          %v2494 = vpop.permute.xlu0 %2493
          %2496 = vset.pattern.permute.xlu0 0
          %2497 = vperm.xlu0 %2496, %v1902
          %v2498 = vpop.permute.xlu0 %2497
          %2500 = vset.pattern.permute.xlu0 0
          %2501 = vperm.xlu0 %2500, %v1903
          %v2502 = vpop.permute.xlu0 %2501
          %2504 = vset.pattern.permute.xlu0 0
          %2505 = vperm.xlu0 %2504, %v1904
          %v2506 = vpop.permute.xlu0 %2505
          %v2508 = vmul.f32 %v2478, %v2452
          %v2509 = vmul.f32 %v2478, %v2453
          %v2510 = vmul.f32 %v2478, %v2454
          %v2511 = vmul.f32 %v2482, %v2455
          %v2512 = vmul.f32 %v2482, %v2456
          %v2513 = vmul.f32 %v2482, %v2457
          %v2514 = vmul.f32 %v2486, %v2458
          %v2515 = vmul.f32 %v2486, %v2459
          %v2516 = vmul.f32 %v2486, %v2460
          %v2517 = vmul.f32 %v2490, %v2461
          %v2518 = vmul.f32 %v2490, %v2462
          %v2519 = vmul.f32 %v2490, %v2463
          %v2520 = vmul.f32 %v2494, %v2464
          %v2521 = vmul.f32 %v2494, %v2465
          %v2522 = vmul.f32 %v2494, %v2466
          %v2523 = vmul.f32 %v2498, %v2467
          %v2524 = vmul.f32 %v2498, %v2468
          %v2525 = vmul.f32 %v2498, %v2469
          %v2526 = vmul.f32 %v2502, %v2470
          %v2527 = vmul.f32 %v2502, %v2471
          %v2528 = vmul.f32 %v2502, %v2472
          %v2529 = vmul.f32 %v2506, %v2473
          %v2530 = vmul.f32 %v2506, %v2474
          %v2531 = vmul.f32 %v2506, %v2475
          %2556 = vrot.lane.b32.xlu0 %v2508, 2
          %v2557 = vpop.permute.xlu0 %2556
          %2558 = vrot.lane.b32.xlu0 %v2509, 2
          %v2559 = vpop.permute.xlu0 %2558
          %2560 = vrot.lane.b32.xlu0 %v2510, 2
          %v2561 = vpop.permute.xlu0 %2560
          %2562 = vrot.lane.b32.xlu0 %v2511, 2
          %v2563 = vpop.permute.xlu0 %2562
          %2564 = vrot.lane.b32.xlu0 %v2512, 2
          %v2565 = vpop.permute.xlu0 %2564
          %2566 = vrot.lane.b32.xlu0 %v2513, 2
          %v2567 = vpop.permute.xlu0 %2566
          %2568 = vrot.lane.b32.xlu0 %v2514, 2
          %v2569 = vpop.permute.xlu0 %2568
          %2570 = vrot.lane.b32.xlu0 %v2515, 2
          %v2571 = vpop.permute.xlu0 %2570
          %2572 = vrot.lane.b32.xlu0 %v2516, 2
          %v2573 = vpop.permute.xlu0 %2572
          %2574 = vrot.lane.b32.xlu0 %v2517, 2
          %v2575 = vpop.permute.xlu0 %2574
          %2576 = vrot.lane.b32.xlu0 %v2518, 2
          %v2577 = vpop.permute.xlu0 %2576
          %2578 = vrot.lane.b32.xlu0 %v2519, 2
          %v2579 = vpop.permute.xlu0 %2578
          %2580 = vrot.lane.b32.xlu0 %v2520, 2
          %v2581 = vpop.permute.xlu0 %2580
          %2582 = vrot.lane.b32.xlu0 %v2521, 2
          %v2583 = vpop.permute.xlu0 %2582
          %2584 = vrot.lane.b32.xlu0 %v2522, 2
          %v2585 = vpop.permute.xlu0 %2584
          %2586 = vrot.lane.b32.xlu0 %v2523, 2
          %v2587 = vpop.permute.xlu0 %2586
          %2588 = vrot.lane.b32.xlu0 %v2524, 2
          %v2589 = vpop.permute.xlu0 %2588
          %2590 = vrot.lane.b32.xlu0 %v2525, 2
          %v2591 = vpop.permute.xlu0 %2590
          %2592 = vrot.lane.b32.xlu0 %v2526, 2
          %v2593 = vpop.permute.xlu0 %2592
          %2594 = vrot.lane.b32.xlu0 %v2527, 2
          %v2595 = vpop.permute.xlu0 %2594
          %2596 = vrot.lane.b32.xlu0 %v2528, 2
          %v2597 = vpop.permute.xlu0 %2596
          %2598 = vrot.lane.b32.xlu0 %v2529, 2
          %v2599 = vpop.permute.xlu0 %2598
          %2600 = vrot.lane.b32.xlu0 %v2530, 2
          %v2601 = vpop.permute.xlu0 %2600
          %2602 = vrot.lane.b32.xlu0 %v2531, 2
          %v2603 = vpop.permute.xlu0 %2602
          %v2604 = vsel %vm420, %v2557, %v2559
          %v2605 = vsel %vm420, %v2559, %v2561
          %v2606 = vsel %vm420, %v2563, %v2565
          %v2607 = vsel %vm420, %v2565, %v2567
          %v2608 = vsel %vm420, %v2569, %v2571
          %v2609 = vsel %vm420, %v2571, %v2573
          %v2610 = vsel %vm420, %v2575, %v2577
          %v2611 = vsel %vm420, %v2577, %v2579
          %v2612 = vsel %vm420, %v2581, %v2583
          %v2613 = vsel %vm420, %v2583, %v2585
          %v2614 = vsel %vm420, %v2587, %v2589
          %v2615 = vsel %vm420, %v2589, %v2591
          %v2616 = vsel %vm420, %v2593, %v2595
          %v2617 = vsel %vm420, %v2595, %v2597
          %v2618 = vsel %vm420, %v2599, %v2601
          %v2619 = vsel %vm420, %v2601, %v2603
          %v2636 = vadd.f32 %v2436, %v2604
          %v2637 = vadd.f32 %v2437, %v2605
          %v2638 = vadd.f32 %v2438, %v2606
          %v2639 = vadd.f32 %v2439, %v2607
          %v2640 = vadd.f32 %v2440, %v2608
          %v2641 = vadd.f32 %v2441, %v2609
          %v2642 = vadd.f32 %v2442, %v2610
          %v2643 = vadd.f32 %v2443, %v2611
          %v2644 = vadd.f32 %v2444, %v2612
          %v2645 = vadd.f32 %v2445, %v2613
          %v2646 = vadd.f32 %v2446, %v2614
          %v2647 = vadd.f32 %v2447, %v2615
          %v2648 = vadd.f32 %v2448, %v2616
          %v2649 = vadd.f32 %v2449, %v2617
          %v2650 = vadd.f32 %v2450, %v2618
          %v2651 = vadd.f32 %v2451, %v2619
          %v2652 = vld [vmem:[#allocation2 + $0x8] sm:$0xff]
          %v2653 = vld [vmem:[#allocation2 + $0x10] sm:$0xff]
          %v2654 = vld [vmem:[#allocation2 + $0x18] sm:$0xff]
          %v2655 = vld [vmem:[#allocation2 + $0x28] sm:$0xff]
          %v2656 = vld [vmem:[#allocation2 + $0x30] sm:$0xff]
          %v2657 = vld [vmem:[#allocation2 + $0x38] sm:$0xff]
          %v2658 = vld [vmem:[#allocation2 + $0x48] sm:$0xff]
          %v2659 = vld [vmem:[#allocation2 + $0x50] sm:$0xff]
          %v2660 = vld [vmem:[#allocation2 + $0x58] sm:$0xff]
          %v2661 = vld [vmem:[#allocation2 + $0x68] sm:$0xff]
          %v2662 = vld [vmem:[#allocation2 + $0x70] sm:$0xff]
          %v2663 = vld [vmem:[#allocation2 + $0x78] sm:$0xff]
          %v2664 = vld [vmem:[#allocation2 + $0x88] sm:$0xff]
          %v2665 = vld [vmem:[#allocation2 + $0x90] sm:$0xff]
          %v2666 = vld [vmem:[#allocation2 + $0x98] sm:$0xff]
          %v2667 = vld [vmem:[#allocation2 + $0xa8] sm:$0xff]
          %v2668 = vld [vmem:[#allocation2 + $0xb0] sm:$0xff]
          %v2669 = vld [vmem:[#allocation2 + $0xb8] sm:$0xff]
          %v2670 = vld [vmem:[#allocation2 + $0xc8] sm:$0xff]
          %v2671 = vld [vmem:[#allocation2 + $0xd0] sm:$0xff]
          %v2672 = vld [vmem:[#allocation2 + $0xd8] sm:$0xff]
          %v2673 = vld [vmem:[#allocation2 + $0xe8] sm:$0xff]
          %v2674 = vld [vmem:[#allocation2 + $0xf0] sm:$0xff]
          %v2675 = vld [vmem:[#allocation2 + $0xf8] sm:$0xff]
          %2676 = vset.pattern.permute.xlu0 2
          %2677 = vperm.xlu0 %2676, %v1897
          %v2678 = vpop.permute.xlu0 %2677
          %2680 = vset.pattern.permute.xlu0 2
          %2681 = vperm.xlu0 %2680, %v1898
          %v2682 = vpop.permute.xlu0 %2681
          %2684 = vset.pattern.permute.xlu0 2
          %2685 = vperm.xlu0 %2684, %v1899
          %v2686 = vpop.permute.xlu0 %2685
          %2688 = vset.pattern.permute.xlu0 2
          %2689 = vperm.xlu0 %2688, %v1900
          %v2690 = vpop.permute.xlu0 %2689
          %2692 = vset.pattern.permute.xlu0 2
          %2693 = vperm.xlu0 %2692, %v1901
          %v2694 = vpop.permute.xlu0 %2693
          %2696 = vset.pattern.permute.xlu0 2
          %2697 = vperm.xlu0 %2696, %v1902
          %v2698 = vpop.permute.xlu0 %2697
          %2700 = vset.pattern.permute.xlu0 2
          %2701 = vperm.xlu0 %2700, %v1903
          %v2702 = vpop.permute.xlu0 %2701
          %2704 = vset.pattern.permute.xlu0 2
          %2705 = vperm.xlu0 %2704, %v1904
          %v2706 = vpop.permute.xlu0 %2705
          %v2708 = vmul.f32 %v2678, %v2652
          %v2709 = vmul.f32 %v2678, %v2653
          %v2710 = vmul.f32 %v2678, %v2654
          %v2711 = vmul.f32 %v2682, %v2655
          %v2712 = vmul.f32 %v2682, %v2656
          %v2713 = vmul.f32 %v2682, %v2657
          %v2714 = vmul.f32 %v2686, %v2658
          %v2715 = vmul.f32 %v2686, %v2659
          %v2716 = vmul.f32 %v2686, %v2660
          %v2717 = vmul.f32 %v2690, %v2661
          %v2718 = vmul.f32 %v2690, %v2662
          %v2719 = vmul.f32 %v2690, %v2663
          %v2720 = vmul.f32 %v2694, %v2664
          %v2721 = vmul.f32 %v2694, %v2665
          %v2722 = vmul.f32 %v2694, %v2666
          %v2723 = vmul.f32 %v2698, %v2667
          %v2724 = vmul.f32 %v2698, %v2668
          %v2725 = vmul.f32 %v2698, %v2669
          %v2726 = vmul.f32 %v2702, %v2670
          %v2727 = vmul.f32 %v2702, %v2671
          %v2728 = vmul.f32 %v2702, %v2672
          %v2729 = vmul.f32 %v2706, %v2673
          %v2730 = vmul.f32 %v2706, %v2674
          %v2731 = vmul.f32 %v2706, %v2675
          %2756 = vrot.lane.b32.xlu0 %v2708, 126
          %v2757 = vpop.permute.xlu0 %2756
          %2758 = vrot.lane.b32.xlu0 %v2709, 126
          %v2759 = vpop.permute.xlu0 %2758
          %2760 = vrot.lane.b32.xlu0 %v2710, 126
          %v2761 = vpop.permute.xlu0 %2760
          %2762 = vrot.lane.b32.xlu0 %v2711, 126
          %v2763 = vpop.permute.xlu0 %2762
          %2764 = vrot.lane.b32.xlu0 %v2712, 126
          %v2765 = vpop.permute.xlu0 %2764
          %2766 = vrot.lane.b32.xlu0 %v2713, 126
          %v2767 = vpop.permute.xlu0 %2766
          %2768 = vrot.lane.b32.xlu0 %v2714, 126
          %v2769 = vpop.permute.xlu0 %2768
          %2770 = vrot.lane.b32.xlu0 %v2715, 126
          %v2771 = vpop.permute.xlu0 %2770
          %2772 = vrot.lane.b32.xlu0 %v2716, 126
          %v2773 = vpop.permute.xlu0 %2772
          %2774 = vrot.lane.b32.xlu0 %v2717, 126
          %v2775 = vpop.permute.xlu0 %2774
          %2776 = vrot.lane.b32.xlu0 %v2718, 126
          %v2777 = vpop.permute.xlu0 %2776
          %2778 = vrot.lane.b32.xlu0 %v2719, 126
          %v2779 = vpop.permute.xlu0 %2778
          %2780 = vrot.lane.b32.xlu0 %v2720, 126
          %v2781 = vpop.permute.xlu0 %2780
          %2782 = vrot.lane.b32.xlu0 %v2721, 126
          %v2783 = vpop.permute.xlu0 %2782
          %2784 = vrot.lane.b32.xlu0 %v2722, 126
          %v2785 = vpop.permute.xlu0 %2784
          %2786 = vrot.lane.b32.xlu0 %v2723, 126
          %v2787 = vpop.permute.xlu0 %2786
          %2788 = vrot.lane.b32.xlu0 %v2724, 126
          %v2789 = vpop.permute.xlu0 %2788
          %2790 = vrot.lane.b32.xlu0 %v2725, 126
          %v2791 = vpop.permute.xlu0 %2790
          %2792 = vrot.lane.b32.xlu0 %v2726, 126
          %v2793 = vpop.permute.xlu0 %2792
          %2794 = vrot.lane.b32.xlu0 %v2727, 126
          %v2795 = vpop.permute.xlu0 %2794
          %2796 = vrot.lane.b32.xlu0 %v2728, 126
          %v2797 = vpop.permute.xlu0 %2796
          %2798 = vrot.lane.b32.xlu0 %v2729, 126
          %v2799 = vpop.permute.xlu0 %2798
          %2800 = vrot.lane.b32.xlu0 %v2730, 126
          %v2801 = vpop.permute.xlu0 %2800
          %2802 = vrot.lane.b32.xlu0 %v2731, 126
          %v2803 = vpop.permute.xlu0 %2802
          %vm2804 = vcmask 1031168
          %v2805 = vsel %vm2804, %v2757, %v2759
          %v2806 = vsel %vm2804, %v2759, %v2761
          %v2807 = vsel %vm2804, %v2763, %v2765
          %v2808 = vsel %vm2804, %v2765, %v2767
          %v2809 = vsel %vm2804, %v2769, %v2771
          %v2810 = vsel %vm2804, %v2771, %v2773
          %v2811 = vsel %vm2804, %v2775, %v2777
          %v2812 = vsel %vm2804, %v2777, %v2779
          %v2813 = vsel %vm2804, %v2781, %v2783
          %v2814 = vsel %vm2804, %v2783, %v2785
          %v2815 = vsel %vm2804, %v2787, %v2789
          %v2816 = vsel %vm2804, %v2789, %v2791
          %v2817 = vsel %vm2804, %v2793, %v2795
          %v2818 = vsel %vm2804, %v2795, %v2797
          %v2819 = vsel %vm2804, %v2799, %v2801
          %v2820 = vsel %vm2804, %v2801, %v2803
          %v2837 = vadd.f32 %v2636, %v2805
          %v2838 = vadd.f32 %v2637, %v2806
          %v2839 = vadd.f32 %v2638, %v2807
          %v2840 = vadd.f32 %v2639, %v2808
          %v2841 = vadd.f32 %v2640, %v2809
          %v2842 = vadd.f32 %v2641, %v2810
          %v2843 = vadd.f32 %v2642, %v2811
          %v2844 = vadd.f32 %v2643, %v2812
          %v2845 = vadd.f32 %v2644, %v2813
          %v2846 = vadd.f32 %v2645, %v2814
          %v2847 = vadd.f32 %v2646, %v2815
          %v2848 = vadd.f32 %v2647, %v2816
          %v2849 = vadd.f32 %v2648, %v2817
          %v2850 = vadd.f32 %v2649, %v2818
          %v2851 = vadd.f32 %v2650, %v2819
          %v2852 = vadd.f32 %v2651, %v2820
          %vm2853 = vcmp.ge.f32.partialorder %v2837, 0.0
          %vm2854 = vcmp.ge.f32.partialorder %v2838, 0.0
          %vm2855 = vcmp.ge.f32.partialorder %v2839, 0.0
          %vm2856 = vcmp.ge.f32.partialorder %v2840, 0.0
          %vm2857 = vcmp.ge.f32.partialorder %v2841, 0.0
          %vm2858 = vcmp.ge.f32.partialorder %v2842, 0.0
          %vm2859 = vcmp.ge.f32.partialorder %v2843, 0.0
          %vm2860 = vcmp.ge.f32.partialorder %v2844, 0.0
          %vm2861 = vcmp.ge.f32.partialorder %v2845, 0.0
          %vm2862 = vcmp.ge.f32.partialorder %v2846, 0.0
          %vm2863 = vcmp.ge.f32.partialorder %v2847, 0.0
          %vm2864 = vcmp.ge.f32.partialorder %v2848, 0.0
          %vm2865 = vcmp.ge.f32.partialorder %v2849, 0.0
          %vm2866 = vcmp.ge.f32.partialorder %v2850, 0.0
          %vm2867 = vcmp.ge.f32.partialorder %v2851, 0.0
          %vm2868 = vcmp.ge.f32.partialorder %v2852, 0.0
          %v2869 = vstv %s1930
          %v2870 = vmul.f32 %v2869, %v2837
          %v2871 = vmul.f32 %v2869, %v2838
          %v2872 = vmul.f32 %v2869, %v2839
          %v2873 = vmul.f32 %v2869, %v2840
          %v2874 = vmul.f32 %v2869, %v2841
          %v2875 = vmul.f32 %v2869, %v2842
          %v2876 = vmul.f32 %v2869, %v2843
          %v2877 = vmul.f32 %v2869, %v2844
          %v2878 = vmul.f32 %v2869, %v2845
          %v2879 = vmul.f32 %v2869, %v2846
          %v2880 = vmul.f32 %v2869, %v2847
          %v2881 = vmul.f32 %v2869, %v2848
          %v2882 = vmul.f32 %v2869, %v2849
          %v2883 = vmul.f32 %v2869, %v2850
          %v2884 = vmul.f32 %v2869, %v2851
          %v2885 = vmul.f32 %v2869, %v2852
          %v2886 = vsel %vm2853, %v2837, %v2870
          %v2887 = vsel %vm2854, %v2838, %v2871
          %v2888 = vsel %vm2855, %v2839, %v2872
          %v2889 = vsel %vm2856, %v2840, %v2873
          %v2890 = vsel %vm2857, %v2841, %v2874
          %v2891 = vsel %vm2858, %v2842, %v2875
          %v2892 = vsel %vm2859, %v2843, %v2876
          %v2893 = vsel %vm2860, %v2844, %v2877
          %v2894 = vsel %vm2861, %v2845, %v2878
          %v2895 = vsel %vm2862, %v2846, %v2879
          %v2896 = vsel %vm2863, %v2847, %v2880
          %v2897 = vsel %vm2864, %v2848, %v2881
          %v2898 = vsel %vm2865, %v2849, %v2882
          %v2899 = vsel %vm2866, %v2850, %v2883
          %v2900 = vsel %vm2867, %v2851, %v2884
          %v2901 = vsel %vm2868, %v2852, %v2885
          %v2902 = vadd.f32 %v2886, %v2887
          %2903 = vadd.xlane.f32.xlu0 %v2902
          %v2904 = vpop.xlane.xlu0 %2903
          %v2905 = vadd.f32 %v2888, %v2889
          %2906 = vadd.xlane.f32.xlu0 %v2905
          %v2907 = vpop.xlane.xlu0 %2906
          %v2908 = vadd.f32 %v2890, %v2891
          %2909 = vadd.xlane.f32.xlu0 %v2908
          %v2910 = vpop.xlane.xlu0 %2909
          %v2911 = vadd.f32 %v2892, %v2893
          %2912 = vadd.xlane.f32.xlu0 %v2911
          %v2913 = vpop.xlane.xlu0 %2912
          %v2914 = vadd.f32 %v2894, %v2895
          %2915 = vadd.xlane.f32.xlu0 %v2914
          %v2916 = vpop.xlane.xlu0 %2915
          %v2917 = vadd.f32 %v2896, %v2897
          %2918 = vadd.xlane.f32.xlu0 %v2917
          %v2919 = vpop.xlane.xlu0 %2918
          %v2920 = vadd.f32 %v2898, %v2899
          %2921 = vadd.xlane.f32.xlu0 %v2920
          %v2922 = vpop.xlane.xlu0 %2921
          %v2923 = vadd.f32 %v2900, %v2901
          %2924 = vadd.xlane.f32.xlu0 %v2923
          %v2925 = vpop.xlane.xlu0 %2924
          %v2926 = vmul.f32 %v2886, %v2886
          %v2927 = vmul.f32 %v2887, %v2887
          %v2928 = vmul.f32 %v2888, %v2888
          %v2929 = vmul.f32 %v2889, %v2889
          %v2930 = vmul.f32 %v2890, %v2890
          %v2931 = vmul.f32 %v2891, %v2891
          %v2932 = vmul.f32 %v2892, %v2892
          %v2933 = vmul.f32 %v2893, %v2893
          %v2934 = vmul.f32 %v2894, %v2894
          %v2935 = vmul.f32 %v2895, %v2895
          %v2936 = vmul.f32 %v2896, %v2896
          %v2937 = vmul.f32 %v2897, %v2897
          %v2938 = vmul.f32 %v2898, %v2898
          %v2939 = vmul.f32 %v2899, %v2899
          %v2940 = vmul.f32 %v2900, %v2900
          %v2941 = vmul.f32 %v2901, %v2901
          %v2942 = vadd.f32 %v2926, %v2927
          %2943 = vadd.xlane.f32.xlu0 %v2942
          %v2944 = vpop.xlane.xlu0 %2943
          %v2945 = vadd.f32 %v2928, %v2929
          %2946 = vadd.xlane.f32.xlu0 %v2945
          %v2947 = vpop.xlane.xlu0 %2946
          %v2948 = vadd.f32 %v2930, %v2931
          %2949 = vadd.xlane.f32.xlu0 %v2948
          %v2950 = vpop.xlane.xlu0 %2949
          %v2951 = vadd.f32 %v2932, %v2933
          %2952 = vadd.xlane.f32.xlu0 %v2951
          %v2953 = vpop.xlane.xlu0 %2952
          %v2954 = vadd.f32 %v2934, %v2935
          %2955 = vadd.xlane.f32.xlu0 %v2954
          %v2956 = vpop.xlane.xlu0 %2955
          %v2957 = vadd.f32 %v2936, %v2937
          %2958 = vadd.xlane.f32.xlu0 %v2957
          %v2959 = vpop.xlane.xlu0 %2958
          %v2960 = vadd.f32 %v2938, %v2939
          %2961 = vadd.xlane.f32.xlu0 %v2960
          %v2962 = vpop.xlane.xlu0 %2961
          %v2963 = vadd.f32 %v2940, %v2941
          %2964 = vadd.xlane.f32.xlu0 %v2963
          %v2965 = vpop.xlane.xlu0 %2964
          %v2966 = vsel %vm878, %v2904, 0.0
          %v2967 = vsel %vm878, %v2907, 0.0
          %v2968 = vadd.f32 %v2966, %v2967
          %v2969 = vsel %vm878, %v2910, 0.0
          %v2970 = vadd.f32 %v2968, %v2969
          %v2971 = vsel %vm878, %v2913, 0.0
          %v2972 = vadd.f32 %v2970, %v2971
          %v2973 = vsel %vm878, %v2916, 0.0
          %v2974 = vadd.f32 %v2972, %v2973
          %v2975 = vsel %vm878, %v2919, 0.0
          %v2976 = vadd.f32 %v2974, %v2975
          %v2977 = vsel %vm878, %v2922, 0.0
          %v2978 = vadd.f32 %v2976, %v2977
          %v2979 = vsel %vm878, %v2925, 0.0
          %v2980 = vadd.f32 %v2978, %v2979
          %2981 = vadd.xlane.f32.xlu0 %v2980
          %v2982 = vpop.xlane.xlu0 %2981
          %v2983 = vrot.slane %v2982, 4
          %v2984 = vadd.f32 %v2982, %v2983
          %v2985 = vrot.slane %v2984, 2
          %v2986 = vadd.f32 %v2984, %v2985
          %v2987 = vrot.slane %v2986, 1
          %v2988 = vadd.f32 %v2986, %v2987
          %s2989 = vtos %v2988
          %s2990 = smul.f32 %s2989, 6.1035156e-05
          %v2991 = vsel %vm878, %v2944, 0.0
          %v2992 = vsel %vm878, %v2947, 0.0
          %v2993 = vadd.f32 %v2991, %v2992
          %v2994 = vsel %vm878, %v2950, 0.0
          %v2995 = vadd.f32 %v2993, %v2994
          %v2996 = vsel %vm878, %v2953, 0.0
          %v2997 = vadd.f32 %v2995, %v2996
          %v2998 = vsel %vm878, %v2956, 0.0
          %v2999 = vadd.f32 %v2997, %v2998
          %v3000 = vsel %vm878, %v2959, 0.0
          %v3001 = vadd.f32 %v2999, %v3000
          %v3002 = vsel %vm878, %v2962, 0.0
          %v3003 = vadd.f32 %v3001, %v3002
          %v3004 = vsel %vm878, %v2965, 0.0
          %v3005 = vadd.f32 %v3003, %v3004
          %3006 = vadd.xlane.f32.xlu0 %v3005
          %v3007 = vpop.xlane.xlu0 %3006
          %v3008 = vrot.slane %v3007, 4
          %v3009 = vadd.f32 %v3007, %v3008
          %v3010 = vrot.slane %v3009, 2
          %v3011 = vadd.f32 %v3009, %v3010
          %v3012 = vrot.slane %v3011, 1
          %v3013 = vadd.f32 %v3011, %v3012
          %s3014 = vtos %v3013
          %s3015 = smul.f32 %s3014, 6.1035156e-05
          %s3016 = smul.f32 %s2990, %s2990
          %s3017 = ssub.f32 %s3015, %s3016
          %s3018 = smax.f32 %s3017, 0.0
          %s3019 = sadd.f32 %s3018, 1e-08
          %v3020 = vstv %s3019
          %v3021 = vrsqrt.pop %v3020
          %s3022 = vtos %v3021
          %v3023 = vstv %s3022
          %v3024 = vmul.f32 %v1916, %v3023
          %v3025 = vstv %s2990
          %v3026 = vmul.f32 %v3025, %v3024
          %v3028 = vrot.slane %v3026, 7
          %v3030 = vsub.f32 %v1916, %v3028
          %v3031 = vlaneseq
          %v3032 = vshrl.u32 %v3031, 7
          %v3033 = vsub.s32 0, %v3032
          %v3034 = vrot.slane %v3024, %v3033
          %v3035 = vmul.f32 %v1924, %v3034
          %v3036 = vmul.f32 %v1925, %v3034
          %v3037 = vmul.f32 %v1926, %v3034
          %v3038 = vmul.f32 %v1927, %v3034
          %v3039 = vpack.c.bf16 %v3036, %v3035
          %v3040 = vpack.c.bf16 %v3038, %v3037
          %v3041 = vlaneseq
          %v3042 = vshrl.u32 %v3041, 7
          %v3043 = vsub.s32 1, %v3042
          %v3044 = vrot.slane %v3030, %v3043
          %v3045 = vmul.f32 %v1924, %v3044
          %v3046 = vmul.f32 %v1925, %v3044
          %v3047 = vmul.f32 %v1926, %v3044
          %v3048 = vmul.f32 %v1927, %v3044
          %v3049 = vsel %vm1775, %v3045, 0.0
          %3050 = vadd.xlane.f32.xlu0 %v3049
          %v3051 = vpop.xlane.xlu0 %3050
          %v3052 = vsel %vm1775, %v3046, 0.0
          %3053 = vadd.xlane.f32.xlu0 %v3052
          %v3054 = vpop.xlane.xlu0 %3053
          %v3055 = vsel %vm1775, %v3047, 0.0
          %3056 = vadd.xlane.f32.xlu0 %v3055
          %v3057 = vpop.xlane.xlu0 %3056
          %v3058 = vsel %vm1775, %v3048, 0.0
          %3059 = vadd.xlane.f32.xlu0 %v3058
          %v3060 = vpop.xlane.xlu0 %3059
          %v3061 = vadd.f32 %v1863, %v3051
          %v3062 = vadd.f32 %v1864, %v3051
          %v3063 = vadd.f32 %v1865, %v3054
          %v3064 = vadd.f32 %v1866, %v3054
          %v3065 = vadd.f32 %v1867, %v3057
          %v3066 = vadd.f32 %v1868, %v3057
          %v3067 = vadd.f32 %v1869, %v3060
          %v3068 = vadd.f32 %v1870, %v3060
          %v3069 = vpack.c.bf16 %v2888, %v2886
          %v3070 = vpack.c.bf16 %v2889, %v2887
          %v3071 = vpack.c.bf16 %v2892, %v2890
          %v3072 = vpack.c.bf16 %v2893, %v2891
          %v3073 = vpack.c.bf16 %v2896, %v2894
          %v3074 = vpack.c.bf16 %v2897, %v2895
          %v3075 = vpack.c.bf16 %v2900, %v2898
          %v3076 = vpack.c.bf16 %v2901, %v2899
          %v3078 = vsel %vm1775, %v3039, 0
          %v3081 = vsel %vm1775, %v3040, 0
          %3083 = vmatprep.subr.bf16.mxu0 %v3070
          %3084 = vmatpush1.bf16.msra.mxu0 %v3069
          %3085 = vmatprep.subr.bf16.mxu0 %v3072
          %3086 = vmatpush1.bf16.msra.mxu0 %v3071
          %3087 = vmatprep.subr.bf16.mxu0 %v3074
          %3088 = vmatpush1.bf16.msra.mxu0 %v3073
          %3089 = vmatprep.subr.bf16.mxu0 %v3076
          %3090 = vmatpush1.bf16.msra.mxu0 %v3075
          %3091 = vmatprep.subr.bf16.mxu0 0
          %3092 = vmatpush1.bf16.msra.mxu0 0
          %3093 = vmatprep.subr.bf16.mxu0 0
          %3094 = vmatpush1.bf16.msra.mxu0 0
          %3095 = vmatprep.subr.bf16.mxu0 0
          %3096 = vmatpush1.bf16.msra.mxu0 0
          %3097 = vmatprep.subr.bf16.mxu0 0
          %3098 = vmatpush1.bf16.msra.mxu0 0
          %3099 = vmatprep.subr.bf16.mxu0 0
          %3100 = vmatpush1.bf16.msra.mxu0 0
          %3101 = vmatprep.subr.bf16.mxu0 0
          %3102 = vmatpush1.bf16.msra.mxu0 0
          %3103 = vmatprep.subr.bf16.mxu0 0
          %3104 = vmatpush1.bf16.msra.mxu0 0
          %3105 = vmatprep.subr.bf16.mxu0 0
          %3106 = vmatpush1.bf16.msra.mxu0 0
          %3107 = vmatprep.subr.bf16.mxu0 0
          %3108 = vmatpush1.bf16.msra.mxu0 0
          %3109 = vmatprep.subr.bf16.mxu0 0
          %3110 = vmatpush1.bf16.msra.mxu0 0
          %3111 = vmatprep.subr.bf16.mxu0 0
          %3112 = vmatpush1.bf16.msra.mxu0 0
          %3113 = vmatprep.subr.bf16.mxu0 0
          %3114 = vmatpush1.bf16.msra.mxu0 0
          %3115 = vmatprep.mubr.bf16.mxu0 0
          %3116 = vmatmul.mubr.bf16.gmra.mrb[0].mxu0 %v3078
          %v3117 = vpop.f32.mrb[0].mxu0
          %v3118 = vadd.f32 0.0, %v3117
          %v3119 = vpop.f32.mrb[0].mxu0
          %v3120 = vadd.f32 0.0, %v3119
          %v3121 = vpop.f32.mrb[0].mxu0
          %v3122 = vadd.f32 0.0, %v3121
          %v3123 = vpop.f32.mrb[0].mxu0
          %v3124 = vadd.f32 0.0, %v3123
          %3125 = vmatprep.mubr.bf16.mxu0 0
          %3126 = vmatmul.mubr.bf16.gmra.mrb[0].mxu0 %v3081
          %v3127 = vpop.f32.mrb[0].mxu0
          %v3128 = vadd.f32 0.0, %v3127
          %v3129 = vpop.f32.mrb[0].mxu0
          %v3130 = vadd.f32 0.0, %v3129
          %v3131 = vpop.f32.mrb[0].mxu0
          %v3132 = vadd.f32 0.0, %v3131
          %v3133 = vpop.f32.mrb[0].mxu0
          %v3134 = vadd.f32 0.0, %v3133
          %3135 = vdwg.mxu0
          %v3136 = vadd.f32 %v3061, %v3118
          %v3137 = vadd.f32 %v3062, %v3120
          %v3138 = vadd.f32 %v3063, %v3122
          %v3139 = vadd.f32 %v3064, %v3124
          %v3140 = vadd.f32 %v3065, %v3128
          %v3141 = vadd.f32 %v3066, %v3130
          %v3142 = vadd.f32 %v3067, %v3132
          %v3143 = vadd.f32 %v3068, %v3134
          %p3144 = scmp.eq.s32.totalorder %s593, 0
          // Predicated region
          $region76: #{tpu_custom_call.1} parent=68 // pred_check
            %p3145 = pneg %p3144
          $region77: #{tpu_custom_call.1} parent=68 // pred_check_branch
            %3147 = sbr.rel (%p3145) target = $region79
          $region78: #{tpu_custom_call.1} parent=68 // pred_region
            %3148 = vst [vmem:[%s404] sm:$0xff] %v3136
            %3149 = vst [vmem:[%s404 + $0x8] sm:$0xff] %v3137
            %3150 = vst [vmem:[%s404 + $0x10] sm:$0xff] %v3138
            %3151 = vst [vmem:[%s404 + $0x18] sm:$0xff] %v3139
            %3152 = vst [vmem:[%s404 + $0x20] sm:$0xff] %v3140
            %3153 = vst [vmem:[%s404 + $0x28] sm:$0xff] %v3141
            %3154 = vst [vmem:[%s404 + $0x30] sm:$0xff] %v3142
            %3155 = vst [vmem:[%s404 + $0x38] sm:$0xff] %v3143
          $region79: #{tpu_custom_call.1} parent=68 // pred_fallthru
            _
        $region69: #{tpu_custom_call.1} parent=59 // loop_footer
          %s597 = sadd.s32 1, %s593
        $region70: #{tpu_custom_call.1} parent=59 // loop_footer_branch
          %592 = sbr.rel target = $region66
        $region71: #{tpu_custom_call.1} parent=59 // loop_exit
          _
        %v3156 = vld [vmem:[%s8] sm:$0xf]
        %v3157 = vld [vmem:[%s8 + $0x4] sm:$0xf]
        %v3158 = vld [vmem:[%s8 + $0x8] sm:$0xf]
        %v3159 = vld [vmem:[%s8 + $0xc] sm:$0xf]
        %v3160 = vpack.c.bf16 %v600, %v598
        %v3161 = vpack.c.bf16 %v601, %v599
        %v3162 = vpack.c.bf16 %v604, %v602
        %v3163 = vpack.c.bf16 %v605, %v603
        %v3168 = vunpack.c.l.b16 %v3156
        %v3169 = vunpack.c.l.b16 %v3157
        %v3170 = vunpack.c.l.b16 %v3158
        %v3171 = vunpack.c.l.b16 %v3159
        %v3172 = vpack.c.b16 %v3169, %v3168
        %v3173 = vpack.c.b16 %v3171, %v3170
        %vm3174 = vcmask 261120
        %v3176 = vsel %vm3174, %v3172, 0
        %v3179 = vsel %vm3174, %v3173, 0
        %3181 = vmatprep.subr.bf16.mxu0 %v3161
        %3182 = vmatpush1.bf16.msra.mxu0 %v3160
        %3183 = vmatprep.subr.bf16.mxu0 %v3163
        %3184 = vmatpush1.bf16.msra.mxu0 %v3162
        %3185 = vmatprep.subr.bf16.mxu0 0
        %3186 = vmatpush1.bf16.msra.mxu0 0
        %3187 = vmatprep.subr.bf16.mxu0 0
        %3188 = vmatpush1.bf16.msra.mxu0 0
        %3189 = vmatprep.subr.bf16.mxu0 0
        %3190 = vmatpush1.bf16.msra.mxu0 0
        %3191 = vmatprep.subr.bf16.mxu0 0
        %3192 = vmatpush1.bf16.msra.mxu0 0
        %3193 = vmatprep.subr.bf16.mxu0 0
        %3194 = vmatpush1.bf16.msra.mxu0 0
        %3195 = vmatprep.subr.bf16.mxu0 0
        %3196 = vmatpush1.bf16.msra.mxu0 0
        %3197 = vmatprep.subr.bf16.mxu0 0
        %3198 = vmatpush1.bf16.msra.mxu0 0
        %3199 = vmatprep.subr.bf16.mxu0 0
        %3200 = vmatpush1.bf16.msra.mxu0 0
        %3201 = vmatprep.subr.bf16.mxu0 0
        %3202 = vmatpush1.bf16.msra.mxu0 0
        %3203 = vmatprep.subr.bf16.mxu0 0
        %3204 = vmatpush1.bf16.msra.mxu0 0
        %3205 = vmatprep.subr.bf16.mxu0 0
        %3206 = vmatpush1.bf16.msra.mxu0 0
        %3207 = vmatprep.subr.bf16.mxu0 0
        %3208 = vmatpush1.bf16.msra.mxu0 0
        %3209 = vmatprep.subr.bf16.mxu0 0
        %3210 = vmatpush1.bf16.msra.mxu0 0
        %3211 = vmatprep.subr.bf16.mxu0 0
        %3212 = vmatpush1.bf16.msra.mxu0 0
        %3213 = vmatprep.mubr.bf16.mxu0 0
        %3214 = vmatmul.mubr.bf16.gmra.mrb[0].mxu0 %v3176
        %v3215 = vpop.f32.mrb[0].mxu0
        %v3216 = vadd.f32 0.0, %v3215
        %v3217 = vpop.f32.mrb[0].mxu0
        %v3218 = vadd.f32 0.0, %v3217
        %v3219 = vpop.f32.mrb[0].mxu0
        %v3220 = vadd.f32 0.0, %v3219
        %v3221 = vpop.f32.mrb[0].mxu0
        %v3222 = vadd.f32 0.0, %v3221
        %3223 = vmatprep.mubr.bf16.mxu0 0
        %3224 = vmatmul.mubr.bf16.gmra.mrb[0].mxu0 %v3179
        %v3225 = vpop.f32.mrb[0].mxu0
        %v3226 = vadd.f32 0.0, %v3225
        %v3227 = vpop.f32.mrb[0].mxu0
        %v3228 = vadd.f32 0.0, %v3227
        %v3229 = vpop.f32.mrb[0].mxu0
        %v3230 = vadd.f32 0.0, %v3229
        %v3231 = vpop.f32.mrb[0].mxu0
        %v3232 = vadd.f32 0.0, %v3231
        %3233 = vdwg.mxu0
        %v3234 = vmax.f32 %v3216, 0.0
        %v3235 = vmax.f32 %v3218, 0.0
        %v3236 = vmax.f32 %v3220, 0.0
        %v3237 = vmax.f32 %v3222, 0.0
        %v3238 = vmax.f32 %v3226, 0.0
        %v3239 = vmax.f32 %v3228, 0.0
        %v3240 = vmax.f32 %v3230, 0.0
        %v3241 = vmax.f32 %v3232, 0.0
        %3242 = vst [vmem:[%s397] sm:$0xff] %v3234
        %3243 = vst [vmem:[%s397 + $0x8] sm:$0xff] %v3235
        %3244 = vst [vmem:[%s397 + $0x10] sm:$0xff] %v3236
        %3245 = vst [vmem:[%s397 + $0x18] sm:$0xff] %v3237
        %3246 = vst [vmem:[%s397 + $0x20] sm:$0xff] %v3238
        %3247 = vst [vmem:[%s397 + $0x28] sm:$0xff] %v3239
        %3248 = vst [vmem:[%s397 + $0x30] sm:$0xff] %v3240
        %3249 = vst [vmem:[%s397 + $0x38] sm:$0xff] %v3241
        %s3250 = sand.u32 %s253, 1
        %s3251 = scalar_lea.sflag [#allocation4], %s3250
        %s3252 = sand.u32 %s253, 1
        %s3253 = smul.addr %s3252, 64
        %s3254 = scalar_lea.vmem [#allocation6], %s3253
        %s3255 = sand.u32 %s279, 1
        %s3256 = scalar_lea.sflag [#allocation8], %s3255
        %s3257 = sand.u32 %s279, 1
        %s3258 = smul.addr %s3257, 128
        %s3259 = scalar_lea.vmem [#allocation7], %s3258
        // Predicated region
        $region80: #{tpu_custom_call.1} parent=59 // pred_check
          %p3260 = pneg %p263
        $region81: #{tpu_custom_call.1} parent=59 // pred_check_branch
          %3262 = sbr.rel (%p3260) target = $region83
        $region82: #{tpu_custom_call.1} parent=59 // pred_region
          %s3264 = ssub.s32 1024, 1024
          %3265 = vsyncadd %s3251, %s3264
          %s3266 = smul.addr %s30, 8
          %s3267 = smul.addr %s3266, 128
          %s3268 = scalar_lea.hbm %s10, %s3267
          %s3269 = sshll.u32 %s3254, 4
          %s3270 = int_to_ptr.vmem [resolvable:$true] %s3269
          %3275 = dma.vmem_to_hbm [thread:$0]  %s3270, 1024, %s3268, %s3251, 256, 256, 16
        $region83: #{tpu_custom_call.1} parent=59 // pred_fallthru
          _
        // Predicated region
        $region84: #{tpu_custom_call.1} parent=59 // pred_check
          %p3276 = pneg %p289
        $region85: #{tpu_custom_call.1} parent=59 // pred_check_branch
          %3278 = sbr.rel (%p3276) target = $region87
        $region86: #{tpu_custom_call.1} parent=59 // pred_region
          %s3280 = ssub.s32 2048, 2048
          %3281 = vsyncadd %s3256, %s3280
          %s3282 = smul.addr %s30, 16
          %s3283 = smul.addr %s3282, 128
          %s3284 = scalar_lea.hbm %s11, %s3283
          %s3285 = sshll.u32 %s3259, 4
          %s3286 = int_to_ptr.vmem [resolvable:$true] %s3285
          %3291 = dma.vmem_to_hbm [thread:$0]  %s3286, 2048, %s3284, %s3256, 256, 256, 16
        $region87: #{tpu_custom_call.1} parent=59 // pred_fallthru
          _
      $region60: #{tpu_custom_call.1} parent=5 // pred_fallthru
        _
      %p3292 = scmp.le.s32.totalorder 2, %s25
      // Predicated region
      $region88: #{tpu_custom_call.1} parent=5 // pred_check
        %p3293 = pneg %p3292
      $region89: #{tpu_custom_call.1} parent=5 // pred_check_branch
        %3295 = sbr.rel (%p3293) target = $region91
      $region90: #{tpu_custom_call.1} parent=5 // pred_region
        %s3296 = ssub.s32 %s25, 2
        // Predicated region
        $region92: #{tpu_custom_call.1} parent=90 // pred_check
          %p3297 = pneg %p269
        $region93: #{tpu_custom_call.1} parent=90 // pred_check_branch
          %3299 = sbr.rel (%p3297) target = $region95
        $region94: #{tpu_custom_call.1} parent=90 // pred_region
          %s3300 = sand.u32 %s254, 1
          %s3301 = scalar_lea.sflag [#allocation4], %s3300
          %s3302 = sand.u32 %s254, 1
          %s3303 = smul.addr %s3302, 64
          %s3304 = scalar_lea.vmem [#allocation6], %s3303
          %3305 = dma.done %s3301, 1024
        $region95: #{tpu_custom_call.1} parent=90 // pred_fallthru
          _
        // Predicated region
        $region96: #{tpu_custom_call.1} parent=90 // pred_check
          %p3306 = pneg %p295
        $region97: #{tpu_custom_call.1} parent=90 // pred_check_branch
          %3308 = sbr.rel (%p3306) target = $region99
        $region98: #{tpu_custom_call.1} parent=90 // pred_region
          %s3309 = sand.u32 %s280, 1
          %s3310 = scalar_lea.sflag [#allocation8], %s3309
          %s3311 = sand.u32 %s280, 1
          %s3312 = smul.addr %s3311, 128
          %s3313 = scalar_lea.vmem [#allocation7], %s3312
          %3314 = dma.done %s3310, 2048
        $region99: #{tpu_custom_call.1} parent=90 // pred_fallthru
          _
      $region91: #{tpu_custom_call.1} parent=5 // pred_fallthru
        _
    $region6: #{tpu_custom_call.1} parent=1 // loop_footer
      %s29 = sadd.s32 1, %s25
    $region7: #{tpu_custom_call.1} parent=1 // loop_footer_branch
      %24 = sbr.rel target = $region3
    $region8: #{tpu_custom_call.1} parent=1 // loop_exit
      _
    %3315 = vsyncpa [#allocation4], 1
    %s3316 = scalar_lea.sflag [#allocation4], 1
    %3317 = vsyncpa %s3316, 1
    %3318 = vsyncpa [#allocation8], 1
    %s3319 = scalar_lea.sflag [#allocation8], 1
    %3320 = vsyncpa %s3319, 1
    %3321 = vsyncpa [#allocation5], 1
    %s3322 = scalar_lea.sflag [#allocation5], 1
    %3323 = vsyncpa %s3322, 1

// kernel: tpu_custom_call.1
$region0: #{tpu_custom_call.1}
  #allocation0 [shape = 'u32[]', space=smem, size = 0x4, offset = 0x4, fixed_abs, tag = 'smem constant byte address 0x4 - core index']
  #allocation1 [shape = 'u32[144,128]{1,0:T(1,128)}', space=vmem, size = 0x12000, scoped, tag = 'internal scratch']
  #allocation2 [shape = 'f32[64,386]{1,0:T(8,128)}', space=vmem, size = 0x20000, scoped, tag = 'scratch operand']
  %s0 = inlined_call_operand.vmem [shape: f32[2,16,256], index: 0, kind: input, shape index: {}]
  %s1 = inlined_call_operand.vmem [shape: f32[16,2], index: 1, kind: input, shape index: {}]
  %s2 = inlined_call_operand.vmem [shape: bf16[32,16], index: 2, kind: input, shape index: {}]
  %s3 = inlined_call_operand.vmem [shape: bf16[4,64,32], index: 3, kind: input, shape index: {}]
  %s4 = inlined_call_operand.vmem [shape: f32[4,64,3], index: 4, kind: input, shape index: {}]
  %s5 = inlined_call_operand.vmem [shape: f32[4,64,2], index: 5, kind: input, shape index: {}]
  %s6 = inlined_call_operand.vmem [shape: f32[4,2,64], index: 6, kind: input, shape index: {}]
  %s7 = inlined_call_operand.vmem [shape: bf16[4,32,64], index: 7, kind: input, shape index: {}]
  %s8 = inlined_call_operand.vmem [shape: bf16[32,32], index: 8, kind: input, shape index: {}]
  %s9 = inlined_call_operand.vmem [shape: f32[8], index: 9, kind: input, shape index: {}]
  %s10 = inlined_call_operand.hbm [shape: f32[2,32,256], index: 10, kind: output, shape index: {0}]
  %s11 = inlined_call_operand.hbm [shape: f32[2,64,256], index: 11, kind: output, shape index: {1}]
  %12 = xla_tuple %s10, %s11
  %s13 = sld [smem:[#allocation0]]
  $region100: #{tpu_custom_call.1} parent=0
    _
  %s15 = ssub.s32 1, %s13
  %s16 = scalar_select 0, %s15, %s13
  $region1: #{tpu_custom_call.1} parent=0
    #allocation3 [shape = 'u8[512]{0}', space=smem, size = 0x200, scoped, tag = 'input window, operand 9, single buffered']
    #allocation4 [shape = 's32[2]{0}', space=sflag, size = 0x8, scoped, tag = 'scoped memory for tpu_custom_call.1']
    #allocation5 [shape = 's32[2]{0}', space=sflag, size = 0x8, scoped, tag = 'scoped memory for tpu_custom_call.1']
    #allocation6 [shape = 'u8[65536]{0}', space=vmem, size = 0x10000, scoped, tag = 'output window, operand 0']
    #allocation7 [shape = 'u8[131072]{0}', space=vmem, size = 0x20000, scoped, tag = 'output window, operand 1']
    #allocation8 [shape = 's32[2]{0}', space=sflag, size = 0x8, scoped, tag = 'scoped memory for tpu_custom_call.1']
    %17 = vsyncpa [#allocation5], 0
    %18 = vsyncpa [#allocation4], 0
    %s19 = scalar_lea.sflag [#allocation4], 1
    %20 = vsyncpa %s19, 0
    %21 = vsyncpa [#allocation8], 0
    %s22 = scalar_lea.sflag [#allocation8], 1
    %23 = vsyncpa %s22, 0
    loop: start=0, step=1, limit=4
    $region2: #{tpu_custom_call.1} parent=1 // loop_pre_header
      _
    $region3: #{tpu_custom_call.1} parent=1 // loop_header
      %s25 = sphi 0, %s29
      %p26 = scmp.ge.s32.totalorder %s25, 4
      %s35 = sphi 0, %s37
      %s38 = sphi 0, %s35
      %s39 = sphi 0, %s38
      %s55 = sphi 0, %s39
      %s59 = sphi 0, %s59
      %s61 = sphi 0, %s59
      %s62 = sphi 0, %s61
      %s76 = sphi 0, %s62
      %s80 = sphi 0, %s80
      %s82 = sphi 0, %s80
      %s83 = sphi 0, %s82
      %s97 = sphi 0, %s83
      %s101 = sphi 0, %s101
      %s103 = sphi 0, %s101
      %s104 = sphi 0, %s103
      %s118 = sphi 0, %s104
      %s122 = sphi 0, %s122
      %s124 = sphi 0, %s122
      %s125 = sphi 0, %s124
      %s139 = sphi 0, %s125
      %s143 = sphi 0, %s143
      %s145 = sphi 0, %s143
      %s146 = sphi 0, %s145
      %s160 = sphi 0, %s146
      %s164 = sphi 0, %s164
      %s166 = sphi 0, %s164
      %s167 = sphi 0, %s166
      %s181 = sphi 0, %s167
      %s185 = sphi 0, %s185
      %s187 = sphi 0, %s185
      %s188 = sphi 0, %s187
      %s202 = sphi 0, %s188
      %s206 = sphi 0, %s206
      %s208 = sphi 0, %s206
      %s209 = sphi 0, %s208
      %s223 = sphi 0, %s209
      %s227 = sphi 0, %s227
      %s229 = sphi 0, %s227
      %s230 = sphi 0, %s229
      %s244 = sphi 0, %s230
      %s250 = sphi 0, %s252
      %s253 = sphi 0, %s250
      %s254 = sphi 0, %s253
      %s270 = sphi 0, %s254
      %s276 = sphi 0, %s278
      %s279 = sphi 0, %s276
      %s280 = sphi 0, %s279
      %s296 = sphi 0, %s280
    $region4: #{tpu_custom_call.1} parent=1 // loop_header_branch
      %28 = sbr.rel (%p26) target = $region8
    $region5: #{tpu_custom_call.1} parent=1 // loop_body
      %s30 = ssub.s32 %s25, 1
      %s31 = ssub.s32 %s25, 2
      %s32 = sadd.s32 %s25, 1
      %s33 = ssub.s32 %s25, %s32
      %p34 = scmp.eq.s32.totalorder %s33, 0
      %s36 = sadd.s32 %s35, 1
      %s37 = scalar_select %p34, %s35, %s36
      %p40 = pneg %p34
      %p41 = scmp.eq.s32.totalorder %s25, 1
      %p42 = por %p40, %p41
      %p43 = scmp.ne.s32.totalorder %s35, %s38
      %p44 = scmp.eq.s32.totalorder %s25, 0
      %p45 = por %p43, %p44
      %p46 = scmp.ne.s32.totalorder %s35, %s38
      %p47 = scmp.eq.s32.totalorder %s30, 1
      %p48 = por %p46, %p47
      %p49 = scmp.ne.s32.totalorder %s38, %s39
      %p50 = scmp.eq.s32.totalorder %s30, 0
      %p51 = por %p49, %p50
      %p52 = scmp.ne.s32.totalorder %s38, %s39
      %p53 = scmp.eq.s32.totalorder %s31, 1
      %p54 = por %p52, %p53
      %p56 = scmp.ne.s32.totalorder %s39, %s55
      %p57 = scmp.eq.s32.totalorder %s31, 0
      %p58 = por %p56, %p57
      %s60 = sadd.s32 %s59, 1
      %p63 = scmp.eq.s32.totalorder %s25, 1
      %p64 = scmp.ne.s32.totalorder %s59, %s61
      %p65 = scmp.eq.s32.totalorder %s25, 0
      %p66 = por %p64, %p65
      %p67 = scmp.ne.s32.totalorder %s59, %s61
      %p68 = scmp.eq.s32.totalorder %s30, 1
      %p69 = por %p67, %p68
      %p70 = scmp.ne.s32.totalorder %s61, %s62
      %p71 = scmp.eq.s32.totalorder %s30, 0
      %p72 = por %p70, %p71
      %p73 = scmp.ne.s32.totalorder %s61, %s62
      %p74 = scmp.eq.s32.totalorder %s31, 1
      %p75 = por %p73, %p74
      %p77 = scmp.ne.s32.totalorder %s62, %s76
      %p78 = scmp.eq.s32.totalorder %s31, 0
      %p79 = por %p77, %p78
      %s81 = sadd.s32 %s80, 1
      %p84 = scmp.eq.s32.totalorder %s25, 1
      %p85 = scmp.ne.s32.totalorder %s80, %s82
      %p86 = scmp.eq.s32.totalorder %s25, 0
      %p87 = por %p85, %p86
      %p88 = scmp.ne.s32.totalorder %s80, %s82
      %p89 = scmp.eq.s32.totalorder %s30, 1
      %p90 = por %p88, %p89
      %p91 = scmp.ne.s32.totalorder %s82, %s83
      %p92 = scmp.eq.s32.totalorder %s30, 0
      %p93 = por %p91, %p92
      %p94 = scmp.ne.s32.totalorder %s82, %s83
      %p95 = scmp.eq.s32.totalorder %s31, 1
      %p96 = por %p94, %p95
      %p98 = scmp.ne.s32.totalorder %s83, %s97
      %p99 = scmp.eq.s32.totalorder %s31, 0
      %p100 = por %p98, %p99
      %s102 = sadd.s32 %s101, 1
      %p105 = scmp.eq.s32.totalorder %s25, 1
      %p106 = scmp.ne.s32.totalorder %s101, %s103
      %p107 = scmp.eq.s32.totalorder %s25, 0
      %p108 = por %p106, %p107
      %p109 = scmp.ne.s32.totalorder %s101, %s103
      %p110 = scmp.eq.s32.totalorder %s30, 1
      %p111 = por %p109, %p110
      %p112 = scmp.ne.s32.totalorder %s103, %s104
      %p113 = scmp.eq.s32.totalorder %s30, 0
      %p114 = por %p112, %p113
      %p115 = scmp.ne.s32.totalorder %s103, %s104
      %p116 = scmp.eq.s32.totalorder %s31, 1
      %p117 = por %p115, %p116
      %p119 = scmp.ne.s32.totalorder %s104, %s118
      %p120 = scmp.eq.s32.totalorder %s31, 0
      %p121 = por %p119, %p120
      %s123 = sadd.s32 %s122, 1
      %p126 = scmp.eq.s32.totalorder %s25, 1
      %p127 = scmp.ne.s32.totalorder %s122, %s124
      %p128 = scmp.eq.s32.totalorder %s25, 0
      %p129 = por %p127, %p128
      %p130 = scmp.ne.s32.totalorder %s122, %s124
      %p131 = scmp.eq.s32.totalorder %s30, 1
      %p132 = por %p130, %p131
      %p133 = scmp.ne.s32.totalorder %s124, %s125
      %p134 = scmp.eq.s32.totalorder %s30, 0
      %p135 = por %p133, %p134
      %p136 = scmp.ne.s32.totalorder %s124, %s125
      %p137 = scmp.eq.s32.totalorder %s31, 1
      %p138 = por %p136, %p137
      %p140 = scmp.ne.s32.totalorder %s125, %s139
      %p141 = scmp.eq.s32.totalorder %s31, 0
      %p142 = por %p140, %p141
      %s144 = sadd.s32 %s143, 1
      %p147 = scmp.eq.s32.totalorder %s25, 1
      %p148 = scmp.ne.s32.totalorder %s143, %s145
      %p149 = scmp.eq.s32.totalorder %s25, 0
      %p150 = por %p148, %p149
      %p151 = scmp.ne.s32.totalorder %s143, %s145
      %p152 = scmp.eq.s32.totalorder %s30, 1
      %p153 = por %p151, %p152
      %p154 = scmp.ne.s32.totalorder %s145, %s146
      %p155 = scmp.eq.s32.totalorder %s30, 0
      %p156 = por %p154, %p155
      %p157 = scmp.ne.s32.totalorder %s145, %s146
      %p158 = scmp.eq.s32.totalorder %s31, 1
      %p159 = por %p157, %p158
      %p161 = scmp.ne.s32.totalorder %s146, %s160
      %p162 = scmp.eq.s32.totalorder %s31, 0
      %p163 = por %p161, %p162
      %s165 = sadd.s32 %s164, 1
      %p168 = scmp.eq.s32.totalorder %s25, 1
      %p169 = scmp.ne.s32.totalorder %s164, %s166
      %p170 = scmp.eq.s32.totalorder %s25, 0
      %p171 = por %p169, %p170
      %p172 = scmp.ne.s32.totalorder %s164, %s166
      %p173 = scmp.eq.s32.totalorder %s30, 1
      %p174 = por %p172, %p173
      %p175 = scmp.ne.s32.totalorder %s166, %s167
      %p176 = scmp.eq.s32.totalorder %s30, 0
      %p177 = por %p175, %p176
      %p178 = scmp.ne.s32.totalorder %s166, %s167
      %p179 = scmp.eq.s32.totalorder %s31, 1
      %p180 = por %p178, %p179
      %p182 = scmp.ne.s32.totalorder %s167, %s181
      %p183 = scmp.eq.s32.totalorder %s31, 0
      %p184 = por %p182, %p183
      %s186 = sadd.s32 %s185, 1
      %p189 = scmp.eq.s32.totalorder %s25, 1
      %p190 = scmp.ne.s32.totalorder %s185, %s187
      %p191 = scmp.eq.s32.totalorder %s25, 0
      %p192 = por %p190, %p191
      %p193 = scmp.ne.s32.totalorder %s185, %s187
      %p194 = scmp.eq.s32.totalorder %s30, 1
      %p195 = por %p193, %p194
      %p196 = scmp.ne.s32.totalorder %s187, %s188
      %p197 = scmp.eq.s32.totalorder %s30, 0
      %p198 = por %p196, %p197
      %p199 = scmp.ne.s32.totalorder %s187, %s188
      %p200 = scmp.eq.s32.totalorder %s31, 1
      %p201 = por %p199, %p200
      %p203 = scmp.ne.s32.totalorder %s188, %s202
      %p204 = scmp.eq.s32.totalorder %s31, 0
      %p205 = por %p203, %p204
      %s207 = sadd.s32 %s206, 1
      %p210 = scmp.eq.s32.totalorder %s25, 1
      %p211 = scmp.ne.s32.totalorder %s206, %s208
      %p212 = scmp.eq.s32.totalorder %s25, 0
      %p213 = por %p211, %p212
      %p214 = scmp.ne.s32.totalorder %s206, %s208
      %p215 = scmp.eq.s32.totalorder %s30, 1
      %p216 = por %p214, %p215
      %p217 = scmp.ne.s32.totalorder %s208, %s209
      %p218 = scmp.eq.s32.totalorder %s30, 0
      %p219 = por %p217, %p218
      %p220 = scmp.ne.s32.totalorder %s208, %s209
      %p221 = scmp.eq.s32.totalorder %s31, 1
      %p222 = por %p220, %p221
      %p224 = scmp.ne.s32.totalorder %s209, %s223
      %p225 = scmp.eq.s32.totalorder %s31, 0
      %p226 = por %p224, %p225
      %s228 = sadd.s32 %s227, 1
      %p231 = scmp.eq.s32.totalorder %s25, 1
      %p232 = scmp.ne.s32.totalorder %s227, %s229
      %p233 = scmp.eq.s32.totalorder %s25, 0
      %p234 = por %p232, %p233
      %p235 = scmp.ne.s32.totalorder %s227, %s229
      %p236 = scmp.eq.s32.totalorder %s30, 1
      %p237 = por %p235, %p236
      %p238 = scmp.ne.s32.totalorder %s229, %s230
      %p239 = scmp.eq.s32.totalorder %s30, 0
      %p240 = por %p238, %p239
      %p241 = scmp.ne.s32.totalorder %s229, %s230
      %p242 = scmp.eq.s32.totalorder %s31, 1
      %p243 = por %p241, %p242
      %p245 = scmp.ne.s32.totalorder %s230, %s244
      %p246 = scmp.eq.s32.totalorder %s31, 0
      %p247 = por %p245, %p246
      %s248 = ssub.s32 %s25, %s32
      %p249 = scmp.eq.s32.totalorder %s248, 0
      %s251 = sadd.s32 %s250, 1
      %s252 = scalar_select %p249, %s250, %s251
      %p255 = pneg %p249
      %p256 = scmp.eq.s32.totalorder %s25, 1
      %p257 = por %p255, %p256
      %p258 = scmp.ne.s32.totalorder %s250, %s253
      %p259 = scmp.eq.s32.totalorder %s25, 0
      %p260 = por %p258, %p259
      %p261 = scmp.ne.s32.totalorder %s250, %s253
      %p262 = scmp.eq.s32.totalorder %s30, 1
      %p263 = por %p261, %p262
      %p264 = scmp.ne.s32.totalorder %s253, %s254
      %p265 = scmp.eq.s32.totalorder %s30, 0
      %p266 = por %p264, %p265
      %p267 = scmp.ne.s32.totalorder %s253, %s254
      %p268 = scmp.eq.s32.totalorder %s31, 1
      %p269 = por %p267, %p268
      %p271 = scmp.ne.s32.totalorder %s254, %s270
      %p272 = scmp.eq.s32.totalorder %s31, 0
      %p273 = por %p271, %p272
      %s274 = ssub.s32 %s25, %s32
      %p275 = scmp.eq.s32.totalorder %s274, 0
      %s277 = sadd.s32 %s276, 1
      %s278 = scalar_select %p275, %s276, %s277
      %p281 = pneg %p275
      %p282 = scmp.eq.s32.totalorder %s25, 1
      %p283 = por %p281, %p282
      %p284 = scmp.ne.s32.totalorder %s276, %s279
      %p285 = scmp.eq.s32.totalorder %s25, 0
      %p286 = por %p284, %p285
      %p287 = scmp.ne.s32.totalorder %s276, %s279
      %p288 = scmp.eq.s32.totalorder %s30, 1
      %p289 = por %p287, %p288
      %p290 = scmp.ne.s32.totalorder %s279, %s280
      %p291 = scmp.eq.s32.totalorder %s30, 0
      %p292 = por %p290, %p291
      %p293 = scmp.ne.s32.totalorder %s279, %s280
      %p294 = scmp.eq.s32.totalorder %s31, 1
      %p295 = por %p293, %p294
      %p297 = scmp.ne.s32.totalorder %s280, %s296
      %p298 = scmp.eq.s32.totalorder %s31, 0
      %p299 = por %p297, %p298
      %p300 = scmp.le.s32.totalorder 1, %s25
      %p301 = scmp.lt.s32.totalorder %s25, 3
      %p302 = pnand %p300, %p301
      %p303 = pneg %p302
      // Predicated region
      $region9: #{tpu_custom_call.1} parent=5 // pred_check
        _
      $region10: #{tpu_custom_call.1} parent=5 // pred_check_branch
        %305 = sbr.rel (%p302) target = $region12
      $region11: #{tpu_custom_call.1} parent=5 // pred_region
        %s306 = ssub.s32 %s25, 1
        // Predicated region
        $region13: #{tpu_custom_call.1} parent=11 // pred_check
          %p307 = pneg %p72
        $region14: #{tpu_custom_call.1} parent=11 // pred_check_branch
          %309 = sbr.rel (%p307) target = $region16
        $region15: #{tpu_custom_call.1} parent=11 // pred_region
          _
        $region16: #{tpu_custom_call.1} parent=11 // pred_fallthru
          _
        // Predicated region
        $region17: #{tpu_custom_call.1} parent=11 // pred_check
          %p310 = pneg %p93
        $region18: #{tpu_custom_call.1} parent=11 // pred_check_branch
          %312 = sbr.rel (%p310) target = $region20
        $region19: #{tpu_custom_call.1} parent=11 // pred_region
          _
        $region20: #{tpu_custom_call.1} parent=11 // pred_fallthru
          _
        // Predicated region
        $region21: #{tpu_custom_call.1} parent=11 // pred_check
          %p313 = pneg %p114
        $region22: #{tpu_custom_call.1} parent=11 // pred_check_branch
          %315 = sbr.rel (%p313) target = $region24
        $region23: #{tpu_custom_call.1} parent=11 // pred_region
          _
        $region24: #{tpu_custom_call.1} parent=11 // pred_fallthru
          _
        // Predicated region
        $region25: #{tpu_custom_call.1} parent=11 // pred_check
          %p316 = pneg %p135
        $region26: #{tpu_custom_call.1} parent=11 // pred_check_branch
          %318 = sbr.rel (%p316) target = $region28
        $region27: #{tpu_custom_call.1} parent=11 // pred_region
          _
        $region28: #{tpu_custom_call.1} parent=11 // pred_fallthru
          _
        // Predicated region
        $region29: #{tpu_custom_call.1} parent=11 // pred_check
          %p319 = pneg %p156
        $region30: #{tpu_custom_call.1} parent=11 // pred_check_branch
          %321 = sbr.rel (%p319) target = $region32
        $region31: #{tpu_custom_call.1} parent=11 // pred_region
          _
        $region32: #{tpu_custom_call.1} parent=11 // pred_fallthru
          _
        // Predicated region
        $region33: #{tpu_custom_call.1} parent=11 // pred_check
          %p322 = pneg %p177
        $region34: #{tpu_custom_call.1} parent=11 // pred_check_branch
          %324 = sbr.rel (%p322) target = $region36
        $region35: #{tpu_custom_call.1} parent=11 // pred_region
          _
        $region36: #{tpu_custom_call.1} parent=11 // pred_fallthru
          _
        // Predicated region
        $region37: #{tpu_custom_call.1} parent=11 // pred_check
          %p325 = pneg %p198
        $region38: #{tpu_custom_call.1} parent=11 // pred_check_branch
          %327 = sbr.rel (%p325) target = $region40
        $region39: #{tpu_custom_call.1} parent=11 // pred_region
          _
        $region40: #{tpu_custom_call.1} parent=11 // pred_fallthru
          _
        // Predicated region
        $region41: #{tpu_custom_call.1} parent=11 // pred_check
          %p328 = pneg %p219
        $region42: #{tpu_custom_call.1} parent=11 // pred_check_branch
          %330 = sbr.rel (%p328) target = $region44
        $region43: #{tpu_custom_call.1} parent=11 // pred_region
          _
        $region44: #{tpu_custom_call.1} parent=11 // pred_fallthru
          _
        // Predicated region
        $region45: #{tpu_custom_call.1} parent=11 // pred_check
          %p331 = pneg %p240
        $region46: #{tpu_custom_call.1} parent=11 // pred_check_branch
          %333 = sbr.rel (%p331) target = $region48
        $region47: #{tpu_custom_call.1} parent=11 // pred_region
          %s335 = ssub.s32 16, 16
          %336 = vsyncadd [#allocation5], %s335
          %s338 = sshll.u32 %s9, 4
          %s339 = int_to_ptr.vmem [resolvable:$true] %s338
          %341 = dma.vmem_to_smem %s339, 16, [#allocation3], [#allocation5]
        $region48: #{tpu_custom_call.1} parent=11 // pred_fallthru
          _
      $region12: #{tpu_custom_call.1} parent=5 // pred_fallthru
        _
      %p342 = scmp.lt.s32.totalorder %s25, 2
      // Predicated region
      $region49: #{tpu_custom_call.1} parent=5 // pred_check
        %p343 = pneg %p342
      $region50: #{tpu_custom_call.1} parent=5 // pred_check_branch
        %345 = sbr.rel (%p343) target = $region52
      $region51: #{tpu_custom_call.1} parent=5 // pred_region
        // Predicated region
        $region53: #{tpu_custom_call.1} parent=51 // pred_check
          %p346 = pneg %p45
        $region54: #{tpu_custom_call.1} parent=51 // pred_check_branch
          %348 = sbr.rel (%p346) target = $region56
        $region55: #{tpu_custom_call.1} parent=51 // pred_region
          %p349 = scmp.lt.s32.totalorder %s25, 1
          %s350 = scalar_select %p349, %s25, 1
          %s351 = smul.addr %s350, 4
          %s352 = smul.addr %s351, 8
          %s353 = scalar_lea.vmem %s0, %s352
        $region56: #{tpu_custom_call.1} parent=51 // pred_fallthru
          _
      $region52: #{tpu_custom_call.1} parent=5 // pred_fallthru
        _
      %p354 = scmp.le.s32.totalorder 1, %s25
      %p355 = scmp.lt.s32.totalorder %s25, 3
      %p356 = pnand %p354, %p355
      %p357 = pneg %p356
      // Predicated region
      $region57: #{tpu_custom_call.1} parent=5 // pred_check
        _
      $region58: #{tpu_custom_call.1} parent=5 // pred_check_branch
        %359 = sbr.rel (%p356) target = $region60
      $region59: #{tpu_custom_call.1} parent=5 // pred_region
        %s360 = ssub.s32 %s25, 1
        // Predicated region
        $region61: #{tpu_custom_call.1} parent=59 // pred_check
          %p361 = pneg %p240
        $region62: #{tpu_custom_call.1} parent=59 // pred_check_branch
          %363 = sbr.rel (%p361) target = $region64
        $region63: #{tpu_custom_call.1} parent=59 // pred_region
          %364 = dma.done [#allocation5], 16
        $region64: #{tpu_custom_call.1} parent=59 // pred_fallthru
          _
        %365 = sfence
        %p366 = scmp.lt.s32.totalorder %s30, 1
        %s367 = scalar_select %p366, %s30, 1
        %s368 = smul.addr %s367, 4
        %s369 = smul.addr %s368, 8
        %s370 = scalar_lea.vmem %s0, %s369
        %p371 = pneg %p51
        %p372 = pneg %p48
        %p373 = pneg %p72
        %p374 = pneg %p69
        %p375 = pneg %p93
        %p376 = pneg %p90
        %p377 = pneg %p114
        %p378 = pneg %p111
        %p379 = pneg %p135
        %p380 = pneg %p132
        %p381 = pneg %p156
        %p382 = pneg %p153
        %p383 = pneg %p177
        %p384 = pneg %p174
        %p385 = pneg %p198
        %p386 = pneg %p195
        %p387 = pneg %p219
        %p388 = pneg %p216
        %p389 = pneg %p240
        %p390 = pneg %p237
        %p391 = pneg %p266
        %p392 = pneg %p263
        %s393 = sand.u32 %s253, 1
        %s394 = scalar_lea.sflag [#allocation4], %s393
        %s395 = sand.u32 %s253, 1
        %s396 = smul.addr %s395, 64
        %s397 = scalar_lea.vmem [#allocation6], %s396
        %p398 = pneg %p292
        %p399 = pneg %p289
        %s400 = sand.u32 %s279, 1
        %s401 = scalar_lea.sflag [#allocation8], %s400
        %s402 = sand.u32 %s279, 1
        %s403 = smul.addr %s402, 128
        %s404 = scalar_lea.vmem [#allocation7], %s403
        %p405 = scmp.lt.s32.totalorder %s30, 1
        %s406 = scalar_select %p405, %s30, 1
        %s407 = smul.addr %s406, 4
        %s408 = smul.addr %s407, 8
        %s409 = scalar_lea.vmem %s0, %s408
        %vm411 = vcmask 1048560
        %412 = vst.msk [vmem:[#allocation2] sm:$0xff] %vm411, 0.0
        %413 = vst.msk [vmem:[#allocation2 + $0x20] sm:$0xff] %vm411, 0.0
        %414 = vst.msk [vmem:[#allocation2 + $0x40] sm:$0xff] %vm411, 0.0
        %415 = vst.msk [vmem:[#allocation2 + $0x60] sm:$0xff] %vm411, 0.0
        %416 = vst.msk [vmem:[#allocation2 + $0x80] sm:$0xff] %vm411, 0.0
        %417 = vst.msk [vmem:[#allocation2 + $0xa0] sm:$0xff] %vm411, 0.0
        %418 = vst.msk [vmem:[#allocation2 + $0xc0] sm:$0xff] %vm411, 0.0
        %419 = vst.msk [vmem:[#allocation2 + $0xe0] sm:$0xff] %vm411, 0.0
        %vm420 = vcmask 15360
        %421 = vst.msk [vmem:[#allocation2 + $0x18] sm:$0xff] %vm420, 0.0
        %422 = vst.msk [vmem:[#allocation2 + $0x38] sm:$0xff] %vm420, 0.0
        %423 = vst.msk [vmem:[#allocation2 + $0x58] sm:$0xff] %vm420, 0.0
        %424 = vst.msk [vmem:[#allocation2 + $0x78] sm:$0xff] %vm420, 0.0
        %425 = vst.msk [vmem:[#allocation2 + $0x98] sm:$0xff] %vm420, 0.0
        %426 = vst.msk [vmem:[#allocation2 + $0xb8] sm:$0xff] %vm420, 0.0
        %427 = vst.msk [vmem:[#allocation2 + $0xd8] sm:$0xff] %vm420, 0.0
        %428 = vst.msk [vmem:[#allocation2 + $0xf8] sm:$0xff] %vm420, 0.0
        %v429 = vld [vmem:[%s409] sm:$0xff]
        %v430 = vld [vmem:[%s409 + $0x8] sm:$0xff]
        %v431 = vld [vmem:[%s409 + $0x10] sm:$0xff]
        %v432 = vld [vmem:[%s409 + $0x18] sm:$0xff]
        %v433 = vadd.f32 %v429, %v431
        %v434 = vrot.slane %v433, 4
        %v435 = vadd.f32 %v433, %v434
        %v436 = vrot.slane %v435, 2
        %v437 = vadd.f32 %v435, %v436
        %v438 = vrot.slane %v437, 1
        %v439 = vadd.f32 %v437, %v438
        %v440 = vadd.f32 %v430, %v432
        %v441 = vrot.slane %v440, 4
        %v442 = vadd.f32 %v440, %v441
        %v443 = vrot.slane %v442, 2
        %v444 = vadd.f32 %v442, %v443
        %v445 = vrot.slane %v444, 1
        %v446 = vadd.f32 %v444, %v445
        %v447 = vrcp.pop 16.0
        %v448 = vmul.f32 %v439, %v447
        %v449 = vmul.f32 %v446, %v447
        %v450 = vmul.f32 %v429, %v429
        %v451 = vmul.f32 %v430, %v430
        %v452 = vmul.f32 %v431, %v431
        %v453 = vmul.f32 %v432, %v432
        %v454 = vadd.f32 %v450, %v452
        %v455 = vrot.slane %v454, 4
        %v456 = vadd.f32 %v454, %v455
        %v457 = vrot.slane %v456, 2
        %v458 = vadd.f32 %v456, %v457
        %v459 = vrot.slane %v458, 1
        %v460 = vadd.f32 %v458, %v459
        %v461 = vadd.f32 %v451, %v453
        %v462 = vrot.slane %v461, 4
        %v463 = vadd.f32 %v461, %v462
        %v464 = vrot.slane %v463, 2
        %v465 = vadd.f32 %v463, %v464
        %v466 = vrot.slane %v465, 1
        %v467 = vadd.f32 %v465, %v466
        %v468 = vmul.f32 %v460, %v447
        %v469 = vmul.f32 %v467, %v447
        %v470 = vmul.f32 %v448, %v448
        %v471 = vmul.f32 %v449, %v449
        %v472 = vsub.f32 %v468, %v470
        %v473 = vsub.f32 %v469, %v471
        %v474 = vmax.f32 %v472, 0.0
        %v475 = vmax.f32 %v473, 0.0
        %v476 = vadd.f32 %v474, 1e-08
        %v477 = vadd.f32 %v475, 1e-08
        %v478 = vrsqrt.pop %v476
        %v479 = vrsqrt.pop %v477
        %v480 = vld [vmem:[%s1] sm:$0xff]
        %v481 = vld [vmem:[%s1 + $0x8] sm:$0xff]
        %v482 = vsub.f32 %v429, %v448
        %v483 = vsub.f32 %v430, %v449
        %v484 = vsub.f32 %v431, %v448
        %v485 = vsub.f32 %v432, %v449
        %v486 = vmul.f32 %v482, %v478
        %v487 = vmul.f32 %v483, %v479
        %v488 = vmul.f32 %v484, %v478
        %v489 = vmul.f32 %v485, %v479
        %491 = vset.pattern.permute.xlu0 0
        %492 = vperm.xlu0 %491, %v480
        %v493 = vpop.permute.xlu0 %492
        %496 = vset.pattern.permute.xlu0 0
        %497 = vperm.xlu0 %496, %v481
        %v498 = vpop.permute.xlu0 %497
        %v500 = vmul.f32 %v493, %v486
        %v501 = vmul.f32 %v493, %v487
        %v502 = vmul.f32 %v498, %v488
        %v503 = vmul.f32 %v498, %v489
        %504 = vset.pattern.permute.xlu0 1
        %505 = vperm.xlu0 %504, %v480
        %v506 = vpop.permute.xlu0 %505
        %508 = vset.pattern.permute.xlu0 1
        %509 = vperm.xlu0 %508, %v481
        %v510 = vpop.permute.xlu0 %509
        %v512 = vadd.f32 %v500, %v506
        %v513 = vadd.f32 %v501, %v506
        %v514 = vadd.f32 %v502, %v510
        %v515 = vadd.f32 %v503, %v510
        %v516 = vld [vmem:[%s2] sm:$0xf]
        %v517 = vld [vmem:[%s2 + $0x4] sm:$0xf]
        %v518 = vld [vmem:[%s2 + $0x8] sm:$0xf]
        %v519 = vld [vmem:[%s2 + $0xc] sm:$0xf]
        %v520 = vpack.c.bf16 %v514, %v512
        %v521 = vpack.c.bf16 %v515, %v513
        %v526 = vunpack.c.l.b16 %v516
        %v527 = vunpack.c.l.b16 %v517
        %v528 = vunpack.c.l.b16 %v518
        %v529 = vunpack.c.l.b16 %v519
        %v530 = vpack.c.b16 %v527, %v526
        %v531 = vpack.c.b16 %v529, %v528
        %vm532 = vcmask 130048
        %v534 = vsel %vm532, %v530, 0
        %v537 = vsel %vm532, %v531, 0
        %539 = vmatprep.subr.bf16.mxu0 %v521
        %540 = vmatpush1.bf16.msra.mxu0 %v520
        %541 = vmatprep.subr.bf16.mxu0 0
        %542 = vmatpush1.bf16.msra.mxu0 0
        %543 = vmatprep.subr.bf16.mxu0 0
        %544 = vmatpush1.bf16.msra.mxu0 0
        %545 = vmatprep.subr.bf16.mxu0 0
        %546 = vmatpush1.bf16.msra.mxu0 0
        %547 = vmatprep.subr.bf16.mxu0 0
        %548 = vmatpush1.bf16.msra.mxu0 0
        %549 = vmatprep.subr.bf16.mxu0 0
        %550 = vmatpush1.bf16.msra.mxu0 0
        %551 = vmatprep.subr.bf16.mxu0 0
        %552 = vmatpush1.bf16.msra.mxu0 0
        %553 = vmatprep.subr.bf16.mxu0 0
        %554 = vmatpush1.bf16.msra.mxu0 0
        %555 = vmatprep.subr.bf16.mxu0 0
        %556 = vmatpush1.bf16.msra.mxu0 0
        %557 = vmatprep.subr.bf16.mxu0 0
        %558 = vmatpush1.bf16.msra.mxu0 0
        %559 = vmatprep.subr.bf16.mxu0 0
        %560 = vmatpush1.bf16.msra.mxu0 0
        %561 = vmatprep.subr.bf16.mxu0 0
        %562 = vmatpush1.bf16.msra.mxu0 0
        %563 = vmatprep.subr.bf16.mxu0 0
        %564 = vmatpush1.bf16.msra.mxu0 0
        %565 = vmatprep.subr.bf16.mxu0 0
        %566 = vmatpush1.bf16.msra.mxu0 0
        %567 = vmatprep.subr.bf16.mxu0 0
        %568 = vmatpush1.bf16.msra.mxu0 0
        %569 = vmatprep.subr.bf16.mxu0 0
        %570 = vmatpush1.bf16.msra.mxu0 0
        %571 = vmatprep.mubr.bf16.mxu0 0
        %572 = vmatmul.mubr.bf16.gmra.mrb[0].mxu0 %v534
        %v573 = vpop.f32.mrb[0].mxu0
        %v574 = vadd.f32 0.0, %v573
        %v575 = vpop.f32.mrb[0].mxu0
        %v576 = vadd.f32 0.0, %v575
        %v577 = vpop.f32.mrb[0].mxu0
        %v578 = vadd.f32 0.0, %v577
        %v579 = vpop.f32.mrb[0].mxu0
        %v580 = vadd.f32 0.0, %v579
        %581 = vmatprep.mubr.bf16.mxu0 0
        %582 = vmatmul.mubr.bf16.gmra.mrb[0].mxu0 %v537
        %v583 = vpop.f32.mrb[0].mxu0
        %v584 = vadd.f32 0.0, %v583
        %v585 = vpop.f32.mrb[0].mxu0
        %v586 = vadd.f32 0.0, %v585
        %v587 = vpop.f32.mrb[0].mxu0
        %v588 = vadd.f32 0.0, %v587
        %v589 = vpop.f32.mrb[0].mxu0
        %v590 = vadd.f32 0.0, %v589
        %591 = vdwg.mxu0
        loop: start=0, step=1, limit=2
        $region65: #{tpu_custom_call.1} parent=59 // loop_pre_header
          _
        $region66: #{tpu_custom_call.1} parent=59 // loop_header
          %s593 = sphi 0, %s597
          %p594 = scmp.ge.s32.totalorder %s593, 2
          %v598 = vphi %v574, %v3136
          %v599 = vphi %v576, %v3137
          %v600 = vphi %v578, %v3138
          %v601 = vphi %v580, %v3139
          %v602 = vphi %v584, %v3140
          %v603 = vphi %v586, %v3141
          %v604 = vphi %v588, %v3142
          %v605 = vphi %v590, %v3143
        $region67: #{tpu_custom_call.1} parent=59 // loop_header_branch
          %596 = sbr.rel (%p594) target = $region71
        $region68: #{tpu_custom_call.1} parent=59 // loop_body
          %s606 = smul.u32 %s593, 2
          %s607 = smul.u32 %s606, 8
          %s608 = smul.addr %s607, 4
          %s609 = scalar_lea.vmem %s3, %s608
          %v610 = vld [vmem:[%s609] sm:$0xf]
          %v611 = vld [vmem:[%s609 + $0x4] sm:$0xf]
          %v612 = vld [vmem:[%s609 + $0x8] sm:$0xf]
          %v613 = vld [vmem:[%s609 + $0xc] sm:$0xf]
          %v614 = vld [vmem:[%s609 + $0x10] sm:$0xf]
          %v615 = vld [vmem:[%s609 + $0x14] sm:$0xf]
          %v616 = vld [vmem:[%s609 + $0x18] sm:$0xf]
          %v617 = vld [vmem:[%s609 + $0x1c] sm:$0xf]
          %s618 = smul.u32 %s606, 64
          %s619 = scalar_lea.vmem %s4, %s618
          %v620 = vld [vmem:[%s619] sm:$0xff]
          %v621 = vld [vmem:[%s619 + $0x8] sm:$0xff]
          %v622 = vld [vmem:[%s619 + $0x10] sm:$0xff]
          %v623 = vld [vmem:[%s619 + $0x18] sm:$0xff]
          %v624 = vld [vmem:[%s619 + $0x20] sm:$0xff]
          %v625 = vld [vmem:[%s619 + $0x28] sm:$0xff]
          %v626 = vld [vmem:[%s619 + $0x30] sm:$0xff]
          %v627 = vld [vmem:[%s619 + $0x38] sm:$0xff]
          %s628 = scalar_lea.vmem %s5, %s618
          %v629 = vld [vmem:[%s628] sm:$0xff]
          %v630 = vld [vmem:[%s628 + $0x8] sm:$0xff]
          %v631 = vld [vmem:[%s628 + $0x10] sm:$0xff]
          %v632 = vld [vmem:[%s628 + $0x18] sm:$0xff]
          %v633 = vld [vmem:[%s628 + $0x20] sm:$0xff]
          %v634 = vld [vmem:[%s628 + $0x28] sm:$0xff]
          %v635 = vld [vmem:[%s628 + $0x30] sm:$0xff]
          %v636 = vld [vmem:[%s628 + $0x38] sm:$0xff]
          %s637 = smul.u32 %s606, 2
          %s638 = scalar_lea.vmem %s6, %s637
          %v639 = vld [vmem:[%s638] sm:$0x3]
          %s640 = smul.u32 %s606, 4
          %s641 = smul.addr %s640, 4
          %s642 = scalar_lea.vmem %s7, %s641
          %v643 = vld [vmem:[%s642] sm:$0xf]
          %v644 = vld [vmem:[%s642 + $0x4] sm:$0xf]
          %v645 = vld [vmem:[%s642 + $0x8] sm:$0xf]
          %v646 = vld [vmem:[%s642 + $0xc] sm:$0xf]
          %v647 = vunpack.c.l.bf16 %v643
          %v648 = vunpack.c.l.bf16 %v644
          %v649 = vunpack.c.l.bf16 %v645
          %v650 = vunpack.c.l.bf16 %v646
          %s651 = smul.u32 %s593, 4
          %s652 = sld [smem:[#allocation3 + %s651]]
          %s653 = sadd.s32 %s651, 1
          %s654 = sld [smem:[#allocation3 + %s653]]
          %v655 = vpack.c.bf16 %v600, %v598
          %v656 = vpack.c.bf16 %v601, %v599
          %v657 = vpack.c.bf16 %v604, %v602
          %v658 = vpack.c.bf16 %v605, %v603
          %v667 = vunpack.c.l.b16 %v610
          %v668 = vunpack.c.l.b16 %v611
          %v669 = vunpack.c.l.b16 %v612
          %v670 = vunpack.c.l.b16 %v613
          %v671 = vunpack.c.l.b16 %v614
          %v672 = vunpack.c.l.b16 %v615
          %v673 = vunpack.c.l.b16 %v616
          %v674 = vunpack.c.l.b16 %v617
          %v675 = vpack.c.b16 %v668, %v667
          %v676 = vpack.c.b16 %v670, %v669
          %v677 = vpack.c.b16 %v672, %v671
          %v678 = vpack.c.b16 %v674, %v673
          %vm679 = vcmask 261120
          %v681 = vsel %vm679, %v675, 0
          %v684 = vsel %vm679, %v676, 0
          %v687 = vsel %vm679, %v677, 0
          %v690 = vsel %vm679, %v678, 0
          %692 = vmatprep.subr.bf16.mxu0 %v656
          %693 = vmatpush1.bf16.msra.mxu0 %v655
          %694 = vmatprep.subr.bf16.mxu0 %v658
          %695 = vmatpush1.bf16.msra.mxu0 %v657
          %696 = vmatprep.subr.bf16.mxu0 0
          %697 = vmatpush1.bf16.msra.mxu0 0
          %698 = vmatprep.subr.bf16.mxu0 0
          %699 = vmatpush1.bf16.msra.mxu0 0
          %700 = vmatprep.subr.bf16.mxu0 0
          %701 = vmatpush1.bf16.msra.mxu0 0
          %702 = vmatprep.subr.bf16.mxu0 0
          %703 = vmatpush1.bf16.msra.mxu0 0
          %704 = vmatprep.subr.bf16.mxu0 0
          %705 = vmatpush1.bf16.msra.mxu0 0
          %706 = vmatprep.subr.bf16.mxu0 0
          %707 = vmatpush1.bf16.msra.mxu0 0
          %708 = vmatprep.subr.bf16.mxu0 0
          %709 = vmatpush1.bf16.msra.mxu0 0
          %710 = vmatprep.subr.bf16.mxu0 0
          %711 = vmatpush1.bf16.msra.mxu0 0
          %712 = vmatprep.subr.bf16.mxu0 0
          %713 = vmatpush1.bf16.msra.mxu0 0
          %714 = vmatprep.subr.bf16.mxu0 0
          %715 = vmatpush1.bf16.msra.mxu0 0
          %716 = vmatprep.subr.bf16.mxu0 0
          %717 = vmatpush1.bf16.msra.mxu0 0
          %718 = vmatprep.subr.bf16.mxu0 0
          %719 = vmatpush1.bf16.msra.mxu0 0
          %720 = vmatprep.subr.bf16.mxu0 0
          %721 = vmatpush1.bf16.msra.mxu0 0
          %722 = vmatprep.subr.bf16.mxu0 0
          %723 = vmatpush1.bf16.msra.mxu0 0
          %724 = vmatprep.mubr.bf16.mxu0 0
          %725 = vmatmul.mubr.bf16.gmra.mrb[0].mxu0 %v681
          %v726 = vpop.f32.mrb[0].mxu0
          %v727 = vadd.f32 0.0, %v726
          %v728 = vpop.f32.mrb[0].mxu0
          %v729 = vadd.f32 0.0, %v728
          %v730 = vpop.f32.mrb[0].mxu0
          %v731 = vadd.f32 0.0, %v730
          %v732 = vpop.f32.mrb[0].mxu0
          %v733 = vadd.f32 0.0, %v732
          %734 = vmatprep.mubr.bf16.mxu0 0
          %735 = vmatmul.mubr.bf16.gmra.mrb[0].mxu0 %v684
          %v736 = vpop.f32.mrb[0].mxu0
          %v737 = vadd.f32 0.0, %v736
          %v738 = vpop.f32.mrb[0].mxu0
          %v739 = vadd.f32 0.0, %v738
          %v740 = vpop.f32.mrb[0].mxu0
          %v741 = vadd.f32 0.0, %v740
          %v742 = vpop.f32.mrb[0].mxu0
          %v743 = vadd.f32 0.0, %v742
          %744 = vmatprep.mubr.bf16.mxu0 0
          %745 = vmatmul.mubr.bf16.gmra.mrb[0].mxu0 %v687
          %v746 = vpop.f32.mrb[0].mxu0
          %v747 = vadd.f32 0.0, %v746
          %v748 = vpop.f32.mrb[0].mxu0
          %v749 = vadd.f32 0.0, %v748
          %v750 = vpop.f32.mrb[0].mxu0
          %v751 = vadd.f32 0.0, %v750
          %v752 = vpop.f32.mrb[0].mxu0
          %v753 = vadd.f32 0.0, %v752
          %754 = vmatprep.mubr.bf16.mxu0 0
          %755 = vmatmul.mubr.bf16.gmra.mrb[0].mxu0 %v690
          %v756 = vpop.f32.mrb[0].mxu0
          %v757 = vadd.f32 0.0, %v756
          %v758 = vpop.f32.mrb[0].mxu0
          %v759 = vadd.f32 0.0, %v758
          %v760 = vpop.f32.mrb[0].mxu0
          %v761 = vadd.f32 0.0, %v760
          %v762 = vpop.f32.mrb[0].mxu0
          %v763 = vadd.f32 0.0, %v762
          %764 = vdwg.mxu0
          %vm765 = vcmp.ge.f32.partialorder %v727, 0.0
          %vm766 = vcmp.ge.f32.partialorder %v729, 0.0
          %vm767 = vcmp.ge.f32.partialorder %v731, 0.0
          %vm768 = vcmp.ge.f32.partialorder %v733, 0.0
          %vm769 = vcmp.ge.f32.partialorder %v737, 0.0
          %vm770 = vcmp.ge.f32.partialorder %v739, 0.0
          %vm771 = vcmp.ge.f32.partialorder %v741, 0.0
          %vm772 = vcmp.ge.f32.partialorder %v743, 0.0
          %vm773 = vcmp.ge.f32.partialorder %v747, 0.0
          %vm774 = vcmp.ge.f32.partialorder %v749, 0.0
          %vm775 = vcmp.ge.f32.partialorder %v751, 0.0
          %vm776 = vcmp.ge.f32.partialorder %v753, 0.0
          %vm777 = vcmp.ge.f32.partialorder %v757, 0.0
          %vm778 = vcmp.ge.f32.partialorder %v759, 0.0
          %vm779 = vcmp.ge.f32.partialorder %v761, 0.0
          %vm780 = vcmp.ge.f32.partialorder %v763, 0.0
          %v781 = vstv %s652
          %v782 = vmul.f32 %v781, %v727
          %v783 = vmul.f32 %v781, %v729
          %v784 = vmul.f32 %v781, %v731
          %v785 = vmul.f32 %v781, %v733
          %v786 = vmul.f32 %v781, %v737
          %v787 = vmul.f32 %v781, %v739
          %v788 = vmul.f32 %v781, %v741
          %v789 = vmul.f32 %v781, %v743
          %v790 = vmul.f32 %v781, %v747
          %v791 = vmul.f32 %v781, %v749
          %v792 = vmul.f32 %v781, %v751
          %v793 = vmul.f32 %v781, %v753
          %v794 = vmul.f32 %v781, %v757
          %v795 = vmul.f32 %v781, %v759
          %v796 = vmul.f32 %v781, %v761
          %v797 = vmul.f32 %v781, %v763
          %v798 = vsel %vm765, %v727, %v782
          %v799 = vsel %vm766, %v729, %v783
          %v800 = vsel %vm767, %v731, %v784
          %v801 = vsel %vm768, %v733, %v785
          %v802 = vsel %vm769, %v737, %v786
          %v803 = vsel %vm770, %v739, %v787
          %v804 = vsel %vm771, %v741, %v788
          %v805 = vsel %vm772, %v743, %v789
          %v806 = vsel %vm773, %v747, %v790
          %v807 = vsel %vm774, %v749, %v791
          %v808 = vsel %vm775, %v751, %v792
          %v809 = vsel %vm776, %v753, %v793
          %v810 = vsel %vm777, %v757, %v794
          %v811 = vsel %vm778, %v759, %v795
          %v812 = vsel %vm779, %v761, %v796
          %v813 = vsel %vm780, %v763, %v797
          %v814 = vadd.f32 %v798, %v799
          %815 = vadd.xlane.f32.xlu0 %v814
          %v816 = vpop.xlane.xlu0 %815
          %v817 = vadd.f32 %v800, %v801
          %818 = vadd.xlane.f32.xlu0 %v817
          %v819 = vpop.xlane.xlu0 %818
          %v820 = vadd.f32 %v802, %v803
          %821 = vadd.xlane.f32.xlu0 %v820
          %v822 = vpop.xlane.xlu0 %821
          %v823 = vadd.f32 %v804, %v805
          %824 = vadd.xlane.f32.xlu0 %v823
          %v825 = vpop.xlane.xlu0 %824
          %v826 = vadd.f32 %v806, %v807
          %827 = vadd.xlane.f32.xlu0 %v826
          %v828 = vpop.xlane.xlu0 %827
          %v829 = vadd.f32 %v808, %v809
          %830 = vadd.xlane.f32.xlu0 %v829
          %v831 = vpop.xlane.xlu0 %830
          %v832 = vadd.f32 %v810, %v811
          %833 = vadd.xlane.f32.xlu0 %v832
          %v834 = vpop.xlane.xlu0 %833
          %v835 = vadd.f32 %v812, %v813
          %836 = vadd.xlane.f32.xlu0 %v835
          %v837 = vpop.xlane.xlu0 %836
          %v838 = vmul.f32 %v798, %v798
          %v839 = vmul.f32 %v799, %v799
          %v840 = vmul.f32 %v800, %v800
          %v841 = vmul.f32 %v801, %v801
          %v842 = vmul.f32 %v802, %v802
          %v843 = vmul.f32 %v803, %v803
          %v844 = vmul.f32 %v804, %v804
          %v845 = vmul.f32 %v805, %v805
          %v846 = vmul.f32 %v806, %v806
          %v847 = vmul.f32 %v807, %v807
          %v848 = vmul.f32 %v808, %v808
          %v849 = vmul.f32 %v809, %v809
          %v850 = vmul.f32 %v810, %v810
          %v851 = vmul.f32 %v811, %v811
          %v852 = vmul.f32 %v812, %v812
          %v853 = vmul.f32 %v813, %v813
          %v854 = vadd.f32 %v838, %v839
          %855 = vadd.xlane.f32.xlu0 %v854
          %v856 = vpop.xlane.xlu0 %855
          %v857 = vadd.f32 %v840, %v841
          %858 = vadd.xlane.f32.xlu0 %v857
          %v859 = vpop.xlane.xlu0 %858
          %v860 = vadd.f32 %v842, %v843
          %861 = vadd.xlane.f32.xlu0 %v860
          %v862 = vpop.xlane.xlu0 %861
          %v863 = vadd.f32 %v844, %v845
          %864 = vadd.xlane.f32.xlu0 %v863
          %v865 = vpop.xlane.xlu0 %864
          %v866 = vadd.f32 %v846, %v847
          %867 = vadd.xlane.f32.xlu0 %v866
          %v868 = vpop.xlane.xlu0 %867
          %v869 = vadd.f32 %v848, %v849
          %870 = vadd.xlane.f32.xlu0 %v869
          %v871 = vpop.xlane.xlu0 %870
          %v872 = vadd.f32 %v850, %v851
          %873 = vadd.xlane.f32.xlu0 %v872
          %v874 = vpop.xlane.xlu0 %873
          %v875 = vadd.f32 %v852, %v853
          %876 = vadd.xlane.f32.xlu0 %v875
          %v877 = vpop.xlane.xlu0 %876
          %vm878 = vcmask 7168
          %v879 = vsel %vm878, %v816, 0.0
          %v880 = vsel %vm878, %v819, 0.0
          %v881 = vadd.f32 %v879, %v880
          %v882 = vsel %vm878, %v822, 0.0
          %v883 = vadd.f32 %v881, %v882
          %v884 = vsel %vm878, %v825, 0.0
          %v885 = vadd.f32 %v883, %v884
          %v886 = vsel %vm878, %v828, 0.0
          %v887 = vadd.f32 %v885, %v886
          %v888 = vsel %vm878, %v831, 0.0
          %v889 = vadd.f32 %v887, %v888
          %v890 = vsel %vm878, %v834, 0.0
          %v891 = vadd.f32 %v889, %v890
          %v892 = vsel %vm878, %v837, 0.0
          %v893 = vadd.f32 %v891, %v892
          %894 = vadd.xlane.f32.xlu0 %v893
          %v895 = vpop.xlane.xlu0 %894
          %v896 = vrot.slane %v895, 4
          %v897 = vadd.f32 %v895, %v896
          %v898 = vrot.slane %v897, 2
          %v899 = vadd.f32 %v897, %v898
          %v900 = vrot.slane %v899, 1
          %v901 = vadd.f32 %v899, %v900
          %s902 = vtos %v901
          %s903 = smul.f32 %s902, 6.1035156e-05
          %v904 = vsel %vm878, %v856, 0.0
          %v905 = vsel %vm878, %v859, 0.0
          %v906 = vadd.f32 %v904, %v905
          %v907 = vsel %vm878, %v862, 0.0
          %v908 = vadd.f32 %v906, %v907
          %v909 = vsel %vm878, %v865, 0.0
          %v910 = vadd.f32 %v908, %v909
          %v911 = vsel %vm878, %v868, 0.0
          %v912 = vadd.f32 %v910, %v911
          %v913 = vsel %vm878, %v871, 0.0
          %v914 = vadd.f32 %v912, %v913
          %v915 = vsel %vm878, %v874, 0.0
          %v916 = vadd.f32 %v914, %v915
          %v917 = vsel %vm878, %v877, 0.0
          %v918 = vadd.f32 %v916, %v917
          %919 = vadd.xlane.f32.xlu0 %v918
          %v920 = vpop.xlane.xlu0 %919
          %v921 = vrot.slane %v920, 4
          %v922 = vadd.f32 %v920, %v921
          %v923 = vrot.slane %v922, 2
          %v924 = vadd.f32 %v922, %v923
          %v925 = vrot.slane %v924, 1
          %v926 = vadd.f32 %v924, %v925
          %s927 = vtos %v926
          %s928 = smul.f32 %s927, 6.1035156e-05
          %s929 = smul.f32 %s903, %s903
          %s930 = ssub.f32 %s928, %s929
          %s931 = smax.f32 %s930, 0.0
          %s932 = sadd.f32 %s931, 1e-08
          %v933 = vstv %s932
          %v934 = vrsqrt.pop %v933
          %s935 = vtos %v934
          %v936 = vstv %s935
          %v937 = vmul.f32 %v629, %v936
          %v938 = vmul.f32 %v630, %v936
          %v939 = vmul.f32 %v631, %v936
          %v940 = vmul.f32 %v632, %v936
          %v941 = vmul.f32 %v633, %v936
          %v942 = vmul.f32 %v634, %v936
          %v943 = vmul.f32 %v635, %v936
          %v944 = vmul.f32 %v636, %v936
          %v945 = vstv %s903
          %v946 = vmul.f32 %v945, %v937
          %v947 = vmul.f32 %v945, %v938
          %v948 = vmul.f32 %v945, %v939
          %v949 = vmul.f32 %v945, %v940
          %v950 = vmul.f32 %v945, %v941
          %v951 = vmul.f32 %v945, %v942
          %v952 = vmul.f32 %v945, %v943
          %v953 = vmul.f32 %v945, %v944
          %962 = vrot.lane.b32.xlu0 %v946, 1
          %v963 = vpop.permute.xlu0 %962
          %964 = vrot.lane.b32.xlu0 %v947, 1
          %v965 = vpop.permute.xlu0 %964
          %966 = vrot.lane.b32.xlu0 %v948, 1
          %v967 = vpop.permute.xlu0 %966
          %968 = vrot.lane.b32.xlu0 %v949, 1
          %v969 = vpop.permute.xlu0 %968
          %970 = vrot.lane.b32.xlu0 %v950, 1
          %v971 = vpop.permute.xlu0 %970
          %972 = vrot.lane.b32.xlu0 %v951, 1
          %v973 = vpop.permute.xlu0 %972
          %974 = vrot.lane.b32.xlu0 %v952, 1
          %v975 = vpop.permute.xlu0 %974
          %976 = vrot.lane.b32.xlu0 %v953, 1
          %v977 = vpop.permute.xlu0 %976
          %v986 = vsub.f32 %v629, %v963
          %v987 = vsub.f32 %v630, %v965
          %v988 = vsub.f32 %v631, %v967
          %v989 = vsub.f32 %v632, %v969
          %v990 = vsub.f32 %v633, %v971
          %v991 = vsub.f32 %v634, %v973
          %v992 = vsub.f32 %v635, %v975
          %v993 = vsub.f32 %v636, %v977
          %995 = vset.pattern.permute.xlu0 0
          %996 = vperm.xlu0 %995, %v937
          %v997 = vpop.permute.xlu0 %996
          %1000 = vset.pattern.permute.xlu0 0
          %1001 = vperm.xlu0 %1000, %v938
          %v1002 = vpop.permute.xlu0 %1001
          %1005 = vset.pattern.permute.xlu0 0
          %1006 = vperm.xlu0 %1005, %v939
          %v1007 = vpop.permute.xlu0 %1006
          %1010 = vset.pattern.permute.xlu0 0
          %1011 = vperm.xlu0 %1010, %v940
          %v1012 = vpop.permute.xlu0 %1011
          %1015 = vset.pattern.permute.xlu0 0
          %1016 = vperm.xlu0 %1015, %v941
          %v1017 = vpop.permute.xlu0 %1016
          %1020 = vset.pattern.permute.xlu0 0
          %1021 = vperm.xlu0 %1020, %v942
          %v1022 = vpop.permute.xlu0 %1021
          %1025 = vset.pattern.permute.xlu0 0
          %1026 = vperm.xlu0 %1025, %v943
          %v1027 = vpop.permute.xlu0 %1026
          %1030 = vset.pattern.permute.xlu0 0
          %1031 = vperm.xlu0 %1030, %v944
          %v1032 = vpop.permute.xlu0 %1031
          %v1034 = vmul.f32 %v798, %v997
          %v1035 = vmul.f32 %v799, %v997
          %v1036 = vmul.f32 %v800, %v1002
          %v1037 = vmul.f32 %v801, %v1002
          %v1038 = vmul.f32 %v802, %v1007
          %v1039 = vmul.f32 %v803, %v1007
          %v1040 = vmul.f32 %v804, %v1012
          %v1041 = vmul.f32 %v805, %v1012
          %v1042 = vmul.f32 %v806, %v1017
          %v1043 = vmul.f32 %v807, %v1017
          %v1044 = vmul.f32 %v808, %v1022
          %v1045 = vmul.f32 %v809, %v1022
          %v1046 = vmul.f32 %v810, %v1027
          %v1047 = vmul.f32 %v811, %v1027
          %v1048 = vmul.f32 %v812, %v1032
          %v1049 = vmul.f32 %v813, %v1032
          %1051 = vset.pattern.permute.xlu0 1
          %1052 = vperm.xlu0 %1051, %v986
          %v1053 = vpop.permute.xlu0 %1052
          %1056 = vset.pattern.permute.xlu0 1
          %1057 = vperm.xlu0 %1056, %v987
          %v1058 = vpop.permute.xlu0 %1057
          %1061 = vset.pattern.permute.xlu0 1
          %1062 = vperm.xlu0 %1061, %v988
          %v1063 = vpop.permute.xlu0 %1062
          %1066 = vset.pattern.permute.xlu0 1
          %1067 = vperm.xlu0 %1066, %v989
          %v1068 = vpop.permute.xlu0 %1067
          %1071 = vset.pattern.permute.xlu0 1
          %1072 = vperm.xlu0 %1071, %v990
          %v1073 = vpop.permute.xlu0 %1072
          %1076 = vset.pattern.permute.xlu0 1
          %1077 = vperm.xlu0 %1076, %v991
          %v1078 = vpop.permute.xlu0 %1077
          %1081 = vset.pattern.permute.xlu0 1
          %1082 = vperm.xlu0 %1081, %v992
          %v1083 = vpop.permute.xlu0 %1082
          %1086 = vset.pattern.permute.xlu0 1
          %1087 = vperm.xlu0 %1086, %v993
          %v1088 = vpop.permute.xlu0 %1087
          %v1090 = vadd.f32 %v1034, %v1053
          %v1091 = vadd.f32 %v1035, %v1053
          %v1092 = vadd.f32 %v1036, %v1058
          %v1093 = vadd.f32 %v1037, %v1058
          %v1094 = vadd.f32 %v1038, %v1063
          %v1095 = vadd.f32 %v1039, %v1063
          %v1096 = vadd.f32 %v1040, %v1068
          %v1097 = vadd.f32 %v1041, %v1068
          %v1098 = vadd.f32 %v1042, %v1073
          %v1099 = vadd.f32 %v1043, %v1073
          %v1100 = vadd.f32 %v1044, %v1078
          %v1101 = vadd.f32 %v1045, %v1078
          %v1102 = vadd.f32 %v1046, %v1083
          %v1103 = vadd.f32 %v1047, %v1083
          %v1104 = vadd.f32 %v1048, %v1088
          %v1105 = vadd.f32 %v1049, %v1088
          %1106 = vst [vmem:[#allocation2 + $0x8] sm:$0xff] %v1090
          %1107 = vst [vmem:[#allocation2 + $0x10] sm:$0xff] %v1091
          %1108 = vst [vmem:[#allocation2 + $0x28] sm:$0xff] %v1092
          %1109 = vst [vmem:[#allocation2 + $0x30] sm:$0xff] %v1093
          %1110 = vst [vmem:[#allocation2 + $0x48] sm:$0xff] %v1094
          %1111 = vst [vmem:[#allocation2 + $0x50] sm:$0xff] %v1095
          %1112 = vst [vmem:[#allocation2 + $0x68] sm:$0xff] %v1096
          %1113 = vst [vmem:[#allocation2 + $0x70] sm:$0xff] %v1097
          %1114 = vst [vmem:[#allocation2 + $0x88] sm:$0xff] %v1098
          %1115 = vst [vmem:[#allocation2 + $0x90] sm:$0xff] %v1099
          %1116 = vst [vmem:[#allocation2 + $0xa8] sm:$0xff] %v1100
          %1117 = vst [vmem:[#allocation2 + $0xb0] sm:$0xff] %v1101
          %1118 = vst [vmem:[#allocation2 + $0xc8] sm:$0xff] %v1102
          %1119 = vst [vmem:[#allocation2 + $0xd0] sm:$0xff] %v1103
          %1120 = vst [vmem:[#allocation2 + $0xe8] sm:$0xff] %v1104
          %1121 = vst [vmem:[#allocation2 + $0xf0] sm:$0xff] %v1105
          %1123 = vset.pattern.permute.xlu0 1
          %1124 = vperm.xlu0 %1123, %v620
          %v1125 = vpop.permute.xlu0 %1124
          %1128 = vset.pattern.permute.xlu0 1
          %1129 = vperm.xlu0 %1128, %v621
          %v1130 = vpop.permute.xlu0 %1129
          %1133 = vset.pattern.permute.xlu0 1
          %1134 = vperm.xlu0 %1133, %v622
          %v1135 = vpop.permute.xlu0 %1134
          %1138 = vset.pattern.permute.xlu0 1
          %1139 = vperm.xlu0 %1138, %v623
          %v1140 = vpop.permute.xlu0 %1139
          %1143 = vset.pattern.permute.xlu0 1
          %1144 = vperm.xlu0 %1143, %v624
          %v1145 = vpop.permute.xlu0 %1144
          %1148 = vset.pattern.permute.xlu0 1
          %1149 = vperm.xlu0 %1148, %v625
          %v1150 = vpop.permute.xlu0 %1149
          %1153 = vset.pattern.permute.xlu0 1
          %1154 = vperm.xlu0 %1153, %v626
          %v1155 = vpop.permute.xlu0 %1154
          %1158 = vset.pattern.permute.xlu0 1
          %1159 = vperm.xlu0 %1158, %v627
          %v1160 = vpop.permute.xlu0 %1159
          %v1162 = vmul.f32 %v1125, %v1090
          %v1163 = vmul.f32 %v1125, %v1091
          %v1164 = vmul.f32 %v1130, %v1092
          %v1165 = vmul.f32 %v1130, %v1093
          %v1166 = vmul.f32 %v1135, %v1094
          %v1167 = vmul.f32 %v1135, %v1095
          %v1168 = vmul.f32 %v1140, %v1096
          %v1169 = vmul.f32 %v1140, %v1097
          %v1170 = vmul.f32 %v1145, %v1098
          %v1171 = vmul.f32 %v1145, %v1099
          %v1172 = vmul.f32 %v1150, %v1100
          %v1173 = vmul.f32 %v1150, %v1101
          %v1174 = vmul.f32 %v1155, %v1102
          %v1175 = vmul.f32 %v1155, %v1103
          %v1176 = vmul.f32 %v1160, %v1104
          %v1177 = vmul.f32 %v1160, %v1105
          %v1178 = vld [vmem:[#allocation2] sm:$0xff]
          %v1179 = vld [vmem:[#allocation2 + $0x8] sm:$0xff]
          %v1180 = vld [vmem:[#allocation2 + $0x10] sm:$0xff]
          %v1181 = vld [vmem:[#allocation2 + $0x20] sm:$0xff]
          %v1182 = vld [vmem:[#allocation2 + $0x28] sm:$0xff]
          %v1183 = vld [vmem:[#allocation2 + $0x30] sm:$0xff]
          %v1184 = vld [vmem:[#allocation2 + $0x40] sm:$0xff]
          %v1185 = vld [vmem:[#allocation2 + $0x48] sm:$0xff]
          %v1186 = vld [vmem:[#allocation2 + $0x50] sm:$0xff]
          %v1187 = vld [vmem:[#allocation2 + $0x60] sm:$0xff]
          %v1188 = vld [vmem:[#allocation2 + $0x68] sm:$0xff]
          %v1189 = vld [vmem:[#allocation2 + $0x70] sm:$0xff]
          %v1190 = vld [vmem:[#allocation2 + $0x80] sm:$0xff]
          %v1191 = vld [vmem:[#allocation2 + $0x88] sm:$0xff]
          %v1192 = vld [vmem:[#allocation2 + $0x90] sm:$0xff]
          %v1193 = vld [vmem:[#allocation2 + $0xa0] sm:$0xff]
          %v1194 = vld [vmem:[#allocation2 + $0xa8] sm:$0xff]
          %v1195 = vld [vmem:[#allocation2 + $0xb0] sm:$0xff]
          %v1196 = vld [vmem:[#allocation2 + $0xc0] sm:$0xff]
          %v1197 = vld [vmem:[#allocation2 + $0xc8] sm:$0xff]
          %v1198 = vld [vmem:[#allocation2 + $0xd0] sm:$0xff]
          %v1199 = vld [vmem:[#allocation2 + $0xe0] sm:$0xff]
          %v1200 = vld [vmem:[#allocation2 + $0xe8] sm:$0xff]
          %v1201 = vld [vmem:[#allocation2 + $0xf0] sm:$0xff]
          %1202 = vset.pattern.permute.xlu0 0
          %1203 = vperm.xlu0 %1202, %v620
          %v1204 = vpop.permute.xlu0 %1203
          %1206 = vset.pattern.permute.xlu0 0
          %1207 = vperm.xlu0 %1206, %v621
          %v1208 = vpop.permute.xlu0 %1207
          %1210 = vset.pattern.permute.xlu0 0
          %1211 = vperm.xlu0 %1210, %v622
          %v1212 = vpop.permute.xlu0 %1211
          %1214 = vset.pattern.permute.xlu0 0
          %1215 = vperm.xlu0 %1214, %v623
          %v1216 = vpop.permute.xlu0 %1215
          %1218 = vset.pattern.permute.xlu0 0
          %1219 = vperm.xlu0 %1218, %v624
          %v1220 = vpop.permute.xlu0 %1219
          %1222 = vset.pattern.permute.xlu0 0
          %1223 = vperm.xlu0 %1222, %v625
          %v1224 = vpop.permute.xlu0 %1223
          %1226 = vset.pattern.permute.xlu0 0
          %1227 = vperm.xlu0 %1226, %v626
          %v1228 = vpop.permute.xlu0 %1227
          %1230 = vset.pattern.permute.xlu0 0
          %1231 = vperm.xlu0 %1230, %v627
          %v1232 = vpop.permute.xlu0 %1231
          %v1234 = vmul.f32 %v1204, %v1178
          %v1235 = vmul.f32 %v1204, %v1179
          %v1236 = vmul.f32 %v1204, %v1180
          %v1237 = vmul.f32 %v1208, %v1181
          %v1238 = vmul.f32 %v1208, %v1182
          %v1239 = vmul.f32 %v1208, %v1183
          %v1240 = vmul.f32 %v1212, %v1184
          %v1241 = vmul.f32 %v1212, %v1185
          %v1242 = vmul.f32 %v1212, %v1186
          %v1243 = vmul.f32 %v1216, %v1187
          %v1244 = vmul.f32 %v1216, %v1188
          %v1245 = vmul.f32 %v1216, %v1189
          %v1246 = vmul.f32 %v1220, %v1190
          %v1247 = vmul.f32 %v1220, %v1191
          %v1248 = vmul.f32 %v1220, %v1192
          %v1249 = vmul.f32 %v1224, %v1193
          %v1250 = vmul.f32 %v1224, %v1194
          %v1251 = vmul.f32 %v1224, %v1195
          %v1252 = vmul.f32 %v1228, %v1196
          %v1253 = vmul.f32 %v1228, %v1197
          %v1254 = vmul.f32 %v1228, %v1198
          %v1255 = vmul.f32 %v1232, %v1199
          %v1256 = vmul.f32 %v1232, %v1200
          %v1257 = vmul.f32 %v1232, %v1201
          %1282 = vrot.lane.b32.xlu0 %v1234, 1
          %v1283 = vpop.permute.xlu0 %1282
          %1284 = vrot.lane.b32.xlu0 %v1235, 1
          %v1285 = vpop.permute.xlu0 %1284
          %1286 = vrot.lane.b32.xlu0 %v1236, 1
          %v1287 = vpop.permute.xlu0 %1286
          %1288 = vrot.lane.b32.xlu0 %v1237, 1
          %v1289 = vpop.permute.xlu0 %1288
          %1290 = vrot.lane.b32.xlu0 %v1238, 1
          %v1291 = vpop.permute.xlu0 %1290
          %1292 = vrot.lane.b32.xlu0 %v1239, 1
          %v1293 = vpop.permute.xlu0 %1292
          %1294 = vrot.lane.b32.xlu0 %v1240, 1
          %v1295 = vpop.permute.xlu0 %1294
          %1296 = vrot.lane.b32.xlu0 %v1241, 1
          %v1297 = vpop.permute.xlu0 %1296
          %1298 = vrot.lane.b32.xlu0 %v1242, 1
          %v1299 = vpop.permute.xlu0 %1298
          %1300 = vrot.lane.b32.xlu0 %v1243, 1
          %v1301 = vpop.permute.xlu0 %1300
          %1302 = vrot.lane.b32.xlu0 %v1244, 1
          %v1303 = vpop.permute.xlu0 %1302
          %1304 = vrot.lane.b32.xlu0 %v1245, 1
          %v1305 = vpop.permute.xlu0 %1304
          %1306 = vrot.lane.b32.xlu0 %v1246, 1
          %v1307 = vpop.permute.xlu0 %1306
          %1308 = vrot.lane.b32.xlu0 %v1247, 1
          %v1309 = vpop.permute.xlu0 %1308
          %1310 = vrot.lane.b32.xlu0 %v1248, 1
          %v1311 = vpop.permute.xlu0 %1310
          %1312 = vrot.lane.b32.xlu0 %v1249, 1
          %v1313 = vpop.permute.xlu0 %1312
          %1314 = vrot.lane.b32.xlu0 %v1250, 1
          %v1315 = vpop.permute.xlu0 %1314
          %1316 = vrot.lane.b32.xlu0 %v1251, 1
          %v1317 = vpop.permute.xlu0 %1316
          %1318 = vrot.lane.b32.xlu0 %v1252, 1
          %v1319 = vpop.permute.xlu0 %1318
          %1320 = vrot.lane.b32.xlu0 %v1253, 1
          %v1321 = vpop.permute.xlu0 %1320
          %1322 = vrot.lane.b32.xlu0 %v1254, 1
          %v1323 = vpop.permute.xlu0 %1322
          %1324 = vrot.lane.b32.xlu0 %v1255, 1
          %v1325 = vpop.permute.xlu0 %1324
          %1326 = vrot.lane.b32.xlu0 %v1256, 1
          %v1327 = vpop.permute.xlu0 %1326
          %1328 = vrot.lane.b32.xlu0 %v1257, 1
          %v1329 = vpop.permute.xlu0 %1328
          %v1330 = vsel %vm878, %v1283, %v1285
          %v1331 = vsel %vm878, %v1285, %v1287
          %v1332 = vsel %vm878, %v1289, %v1291
          %v1333 = vsel %vm878, %v1291, %v1293
          %v1334 = vsel %vm878, %v1295, %v1297
          %v1335 = vsel %vm878, %v1297, %v1299
          %v1336 = vsel %vm878, %v1301, %v1303
          %v1337 = vsel %vm878, %v1303, %v1305
          %v1338 = vsel %vm878, %v1307, %v1309
          %v1339 = vsel %vm878, %v1309, %v1311
          %v1340 = vsel %vm878, %v1313, %v1315
          %v1341 = vsel %vm878, %v1315, %v1317
          %v1342 = vsel %vm878, %v1319, %v1321
          %v1343 = vsel %vm878, %v1321, %v1323
          %v1344 = vsel %vm878, %v1325, %v1327
          %v1345 = vsel %vm878, %v1327, %v1329
          %v1362 = vadd.f32 %v1162, %v1330
          %v1363 = vadd.f32 %v1163, %v1331
          %v1364 = vadd.f32 %v1164, %v1332
          %v1365 = vadd.f32 %v1165, %v1333
          %v1366 = vadd.f32 %v1166, %v1334
          %v1367 = vadd.f32 %v1167, %v1335
          %v1368 = vadd.f32 %v1168, %v1336
          %v1369 = vadd.f32 %v1169, %v1337
          %v1370 = vadd.f32 %v1170, %v1338
          %v1371 = vadd.f32 %v1171, %v1339
          %v1372 = vadd.f32 %v1172, %v1340
          %v1373 = vadd.f32 %v1173, %v1341
          %v1374 = vadd.f32 %v1174, %v1342
          %v1375 = vadd.f32 %v1175, %v1343
          %v1376 = vadd.f32 %v1176, %v1344
          %v1377 = vadd.f32 %v1177, %v1345
          %v1378 = vld [vmem:[#allocation2 + $0x8] sm:$0xff]
          %v1379 = vld [vmem:[#allocation2 + $0x10] sm:$0xff]
          %v1380 = vld [vmem:[#allocation2 + $0x18] sm:$0xff]
          %v1381 = vld [vmem:[#allocation2 + $0x28] sm:$0xff]
          %v1382 = vld [vmem:[#allocation2 + $0x30] sm:$0xff]
          %v1383 = vld [vmem:[#allocation2 + $0x38] sm:$0xff]
          %v1384 = vld [vmem:[#allocation2 + $0x48] sm:$0xff]
          %v1385 = vld [vmem:[#allocation2 + $0x50] sm:$0xff]
          %v1386 = vld [vmem:[#allocation2 + $0x58] sm:$0xff]
          %v1387 = vld [vmem:[#allocation2 + $0x68] sm:$0xff]
          %v1388 = vld [vmem:[#allocation2 + $0x70] sm:$0xff]
          %v1389 = vld [vmem:[#allocation2 + $0x78] sm:$0xff]
          %v1390 = vld [vmem:[#allocation2 + $0x88] sm:$0xff]
          %v1391 = vld [vmem:[#allocation2 + $0x90] sm:$0xff]
          %v1392 = vld [vmem:[#allocation2 + $0x98] sm:$0xff]
          %v1393 = vld [vmem:[#allocation2 + $0xa8] sm:$0xff]
          %v1394 = vld [vmem:[#allocation2 + $0xb0] sm:$0xff]
          %v1395 = vld [vmem:[#allocation2 + $0xb8] sm:$0xff]
          %v1396 = vld [vmem:[#allocation2 + $0xc8] sm:$0xff]
          %v1397 = vld [vmem:[#allocation2 + $0xd0] sm:$0xff]
          %v1398 = vld [vmem:[#allocation2 + $0xd8] sm:$0xff]
          %v1399 = vld [vmem:[#allocation2 + $0xe8] sm:$0xff]
          %v1400 = vld [vmem:[#allocation2 + $0xf0] sm:$0xff]
          %v1401 = vld [vmem:[#allocation2 + $0xf8] sm:$0xff]
          %1402 = vset.pattern.permute.xlu0 2
          %1403 = vperm.xlu0 %1402, %v620
          %v1404 = vpop.permute.xlu0 %1403
          %1406 = vset.pattern.permute.xlu0 2
          %1407 = vperm.xlu0 %1406, %v621
          %v1408 = vpop.permute.xlu0 %1407
          %1410 = vset.pattern.permute.xlu0 2
          %1411 = vperm.xlu0 %1410, %v622
          %v1412 = vpop.permute.xlu0 %1411
          %1414 = vset.pattern.permute.xlu0 2
          %1415 = vperm.xlu0 %1414, %v623
          %v1416 = vpop.permute.xlu0 %1415
          %1418 = vset.pattern.permute.xlu0 2
          %1419 = vperm.xlu0 %1418, %v624
          %v1420 = vpop.permute.xlu0 %1419
          %1422 = vset.pattern.permute.xlu0 2
          %1423 = vperm.xlu0 %1422, %v625
          %v1424 = vpop.permute.xlu0 %1423
          %1426 = vset.pattern.permute.xlu0 2
          %1427 = vperm.xlu0 %1426, %v626
          %v1428 = vpop.permute.xlu0 %1427
          %1430 = vset.pattern.permute.xlu0 2
          %1431 = vperm.xlu0 %1430, %v627
          %v1432 = vpop.permute.xlu0 %1431
          %v1434 = vmul.f32 %v1404, %v1378
          %v1435 = vmul.f32 %v1404, %v1379
          %v1436 = vmul.f32 %v1404, %v1380
          %v1437 = vmul.f32 %v1408, %v1381
          %v1438 = vmul.f32 %v1408, %v1382
          %v1439 = vmul.f32 %v1408, %v1383
          %v1440 = vmul.f32 %v1412, %v1384
          %v1441 = vmul.f32 %v1412, %v1385
          %v1442 = vmul.f32 %v1412, %v1386
          %v1443 = vmul.f32 %v1416, %v1387
          %v1444 = vmul.f32 %v1416, %v1388
          %v1445 = vmul.f32 %v1416, %v1389
          %v1446 = vmul.f32 %v1420, %v1390
          %v1447 = vmul.f32 %v1420, %v1391
          %v1448 = vmul.f32 %v1420, %v1392
          %v1449 = vmul.f32 %v1424, %v1393
          %v1450 = vmul.f32 %v1424, %v1394
          %v1451 = vmul.f32 %v1424, %v1395
          %v1452 = vmul.f32 %v1428, %v1396
          %v1453 = vmul.f32 %v1428, %v1397
          %v1454 = vmul.f32 %v1428, %v1398
          %v1455 = vmul.f32 %v1432, %v1399
          %v1456 = vmul.f32 %v1432, %v1400
          %v1457 = vmul.f32 %v1432, %v1401
          %1482 = vrot.lane.b32.xlu0 %v1434, 127
          %v1483 = vpop.permute.xlu0 %1482
          %1484 = vrot.lane.b32.xlu0 %v1435, 127
          %v1485 = vpop.permute.xlu0 %1484
          %1486 = vrot.lane.b32.xlu0 %v1436, 127
          %v1487 = vpop.permute.xlu0 %1486
          %1488 = vrot.lane.b32.xlu0 %v1437, 127
          %v1489 = vpop.permute.xlu0 %1488
          %1490 = vrot.lane.b32.xlu0 %v1438, 127
          %v1491 = vpop.permute.xlu0 %1490
          %1492 = vrot.lane.b32.xlu0 %v1439, 127
          %v1493 = vpop.permute.xlu0 %1492
          %1494 = vrot.lane.b32.xlu0 %v1440, 127
          %v1495 = vpop.permute.xlu0 %1494
          %1496 = vrot.lane.b32.xlu0 %v1441, 127
          %v1497 = vpop.permute.xlu0 %1496
          %1498 = vrot.lane.b32.xlu0 %v1442, 127
          %v1499 = vpop.permute.xlu0 %1498
          %1500 = vrot.lane.b32.xlu0 %v1443, 127
          %v1501 = vpop.permute.xlu0 %1500
          %1502 = vrot.lane.b32.xlu0 %v1444, 127
          %v1503 = vpop.permute.xlu0 %1502
          %1504 = vrot.lane.b32.xlu0 %v1445, 127
          %v1505 = vpop.permute.xlu0 %1504
          %1506 = vrot.lane.b32.xlu0 %v1446, 127
          %v1507 = vpop.permute.xlu0 %1506
          %1508 = vrot.lane.b32.xlu0 %v1447, 127
          %v1509 = vpop.permute.xlu0 %1508
          %1510 = vrot.lane.b32.xlu0 %v1448, 127
          %v1511 = vpop.permute.xlu0 %1510
          %1512 = vrot.lane.b32.xlu0 %v1449, 127
          %v1513 = vpop.permute.xlu0 %1512
          %1514 = vrot.lane.b32.xlu0 %v1450, 127
          %v1515 = vpop.permute.xlu0 %1514
          %1516 = vrot.lane.b32.xlu0 %v1451, 127
          %v1517 = vpop.permute.xlu0 %1516
          %1518 = vrot.lane.b32.xlu0 %v1452, 127
          %v1519 = vpop.permute.xlu0 %1518
          %1520 = vrot.lane.b32.xlu0 %v1453, 127
          %v1521 = vpop.permute.xlu0 %1520
          %1522 = vrot.lane.b32.xlu0 %v1454, 127
          %v1523 = vpop.permute.xlu0 %1522
          %1524 = vrot.lane.b32.xlu0 %v1455, 127
          %v1525 = vpop.permute.xlu0 %1524
          %1526 = vrot.lane.b32.xlu0 %v1456, 127
          %v1527 = vpop.permute.xlu0 %1526
          %1528 = vrot.lane.b32.xlu0 %v1457, 127
          %v1529 = vpop.permute.xlu0 %1528
          %vm1530 = vcmask 1039360
          %v1531 = vsel %vm1530, %v1483, %v1485
          %v1532 = vsel %vm1530, %v1485, %v1487
          %v1533 = vsel %vm1530, %v1489, %v1491
          %v1534 = vsel %vm1530, %v1491, %v1493
          %v1535 = vsel %vm1530, %v1495, %v1497
          %v1536 = vsel %vm1530, %v1497, %v1499
          %v1537 = vsel %vm1530, %v1501, %v1503
          %v1538 = vsel %vm1530, %v1503, %v1505
          %v1539 = vsel %vm1530, %v1507, %v1509
          %v1540 = vsel %vm1530, %v1509, %v1511
          %v1541 = vsel %vm1530, %v1513, %v1515
          %v1542 = vsel %vm1530, %v1515, %v1517
          %v1543 = vsel %vm1530, %v1519, %v1521
          %v1544 = vsel %vm1530, %v1521, %v1523
          %v1545 = vsel %vm1530, %v1525, %v1527
          %v1546 = vsel %vm1530, %v1527, %v1529
          %v1563 = vadd.f32 %v1362, %v1531
          %v1564 = vadd.f32 %v1363, %v1532
          %v1565 = vadd.f32 %v1364, %v1533
          %v1566 = vadd.f32 %v1365, %v1534
          %v1567 = vadd.f32 %v1366, %v1535
          %v1568 = vadd.f32 %v1367, %v1536
          %v1569 = vadd.f32 %v1368, %v1537
          %v1570 = vadd.f32 %v1369, %v1538
          %v1571 = vadd.f32 %v1370, %v1539
          %v1572 = vadd.f32 %v1371, %v1540
          %v1573 = vadd.f32 %v1372, %v1541
          %v1574 = vadd.f32 %v1373, %v1542
          %v1575 = vadd.f32 %v1374, %v1543
          %v1576 = vadd.f32 %v1375, %v1544
          %v1577 = vadd.f32 %v1376, %v1545
          %v1578 = vadd.f32 %v1377, %v1546
          %vm1579 = vcmp.ge.f32.partialorder %v1563, 0.0
          %vm1580 = vcmp.ge.f32.partialorder %v1564, 0.0
          %vm1581 = vcmp.ge.f32.partialorder %v1565, 0.0
          %vm1582 = vcmp.ge.f32.partialorder %v1566, 0.0
          %vm1583 = vcmp.ge.f32.partialorder %v1567, 0.0
          %vm1584 = vcmp.ge.f32.partialorder %v1568, 0.0
          %vm1585 = vcmp.ge.f32.partialorder %v1569, 0.0
          %vm1586 = vcmp.ge.f32.partialorder %v1570, 0.0
          %vm1587 = vcmp.ge.f32.partialorder %v1571, 0.0
          %vm1588 = vcmp.ge.f32.partialorder %v1572, 0.0
          %vm1589 = vcmp.ge.f32.partialorder %v1573, 0.0
          %vm1590 = vcmp.ge.f32.partialorder %v1574, 0.0
          %vm1591 = vcmp.ge.f32.partialorder %v1575, 0.0
          %vm1592 = vcmp.ge.f32.partialorder %v1576, 0.0
          %vm1593 = vcmp.ge.f32.partialorder %v1577, 0.0
          %vm1594 = vcmp.ge.f32.partialorder %v1578, 0.0
          %v1595 = vstv %s654
          %v1596 = vmul.f32 %v1595, %v1563
          %v1597 = vmul.f32 %v1595, %v1564
          %v1598 = vmul.f32 %v1595, %v1565
          %v1599 = vmul.f32 %v1595, %v1566
          %v1600 = vmul.f32 %v1595, %v1567
          %v1601 = vmul.f32 %v1595, %v1568
          %v1602 = vmul.f32 %v1595, %v1569
          %v1603 = vmul.f32 %v1595, %v1570
          %v1604 = vmul.f32 %v1595, %v1571
          %v1605 = vmul.f32 %v1595, %v1572
          %v1606 = vmul.f32 %v1595, %v1573
          %v1607 = vmul.f32 %v1595, %v1574
          %v1608 = vmul.f32 %v1595, %v1575
          %v1609 = vmul.f32 %v1595, %v1576
          %v1610 = vmul.f32 %v1595, %v1577
          %v1611 = vmul.f32 %v1595, %v1578
          %v1612 = vsel %vm1579, %v1563, %v1596
          %v1613 = vsel %vm1580, %v1564, %v1597
          %v1614 = vsel %vm1581, %v1565, %v1598
          %v1615 = vsel %vm1582, %v1566, %v1599
          %v1616 = vsel %vm1583, %v1567, %v1600
          %v1617 = vsel %vm1584, %v1568, %v1601
          %v1618 = vsel %vm1585, %v1569, %v1602
          %v1619 = vsel %vm1586, %v1570, %v1603
          %v1620 = vsel %vm1587, %v1571, %v1604
          %v1621 = vsel %vm1588, %v1572, %v1605
          %v1622 = vsel %vm1589, %v1573, %v1606
          %v1623 = vsel %vm1590, %v1574, %v1607
          %v1624 = vsel %vm1591, %v1575, %v1608
          %v1625 = vsel %vm1592, %v1576, %v1609
          %v1626 = vsel %vm1593, %v1577, %v1610
          %v1627 = vsel %vm1594, %v1578, %v1611
          %v1628 = vadd.f32 %v1612, %v1613
          %1629 = vadd.xlane.f32.xlu0 %v1628
          %v1630 = vpop.xlane.xlu0 %1629
          %v1631 = vadd.f32 %v1614, %v1615
          %1632 = vadd.xlane.f32.xlu0 %v1631
          %v1633 = vpop.xlane.xlu0 %1632
          %v1634 = vadd.f32 %v1616, %v1617
          %1635 = vadd.xlane.f32.xlu0 %v1634
          %v1636 = vpop.xlane.xlu0 %1635
          %v1637 = vadd.f32 %v1618, %v1619
          %1638 = vadd.xlane.f32.xlu0 %v1637
          %v1639 = vpop.xlane.xlu0 %1638
          %v1640 = vadd.f32 %v1620, %v1621
          %1641 = vadd.xlane.f32.xlu0 %v1640
          %v1642 = vpop.xlane.xlu0 %1641
          %v1643 = vadd.f32 %v1622, %v1623
          %1644 = vadd.xlane.f32.xlu0 %v1643
          %v1645 = vpop.xlane.xlu0 %1644
          %v1646 = vadd.f32 %v1624, %v1625
          %1647 = vadd.xlane.f32.xlu0 %v1646
          %v1648 = vpop.xlane.xlu0 %1647
          %v1649 = vadd.f32 %v1626, %v1627
          %1650 = vadd.xlane.f32.xlu0 %v1649
          %v1651 = vpop.xlane.xlu0 %1650
          %v1652 = vmul.f32 %v1612, %v1612
          %v1653 = vmul.f32 %v1613, %v1613
          %v1654 = vmul.f32 %v1614, %v1614
          %v1655 = vmul.f32 %v1615, %v1615
          %v1656 = vmul.f32 %v1616, %v1616
          %v1657 = vmul.f32 %v1617, %v1617
          %v1658 = vmul.f32 %v1618, %v1618
          %v1659 = vmul.f32 %v1619, %v1619
          %v1660 = vmul.f32 %v1620, %v1620
          %v1661 = vmul.f32 %v1621, %v1621
          %v1662 = vmul.f32 %v1622, %v1622
          %v1663 = vmul.f32 %v1623, %v1623
          %v1664 = vmul.f32 %v1624, %v1624
          %v1665 = vmul.f32 %v1625, %v1625
          %v1666 = vmul.f32 %v1626, %v1626
          %v1667 = vmul.f32 %v1627, %v1627
          %v1668 = vadd.f32 %v1652, %v1653
          %1669 = vadd.xlane.f32.xlu0 %v1668
          %v1670 = vpop.xlane.xlu0 %1669
          %v1671 = vadd.f32 %v1654, %v1655
          %1672 = vadd.xlane.f32.xlu0 %v1671
          %v1673 = vpop.xlane.xlu0 %1672
          %v1674 = vadd.f32 %v1656, %v1657
          %1675 = vadd.xlane.f32.xlu0 %v1674
          %v1676 = vpop.xlane.xlu0 %1675
          %v1677 = vadd.f32 %v1658, %v1659
          %1678 = vadd.xlane.f32.xlu0 %v1677
          %v1679 = vpop.xlane.xlu0 %1678
          %v1680 = vadd.f32 %v1660, %v1661
          %1681 = vadd.xlane.f32.xlu0 %v1680
          %v1682 = vpop.xlane.xlu0 %1681
          %v1683 = vadd.f32 %v1662, %v1663
          %1684 = vadd.xlane.f32.xlu0 %v1683
          %v1685 = vpop.xlane.xlu0 %1684
          %v1686 = vadd.f32 %v1664, %v1665
          %1687 = vadd.xlane.f32.xlu0 %v1686
          %v1688 = vpop.xlane.xlu0 %1687
          %v1689 = vadd.f32 %v1666, %v1667
          %1690 = vadd.xlane.f32.xlu0 %v1689
          %v1691 = vpop.xlane.xlu0 %1690
          %v1692 = vsel %vm878, %v1630, 0.0
          %v1693 = vsel %vm878, %v1633, 0.0
          %v1694 = vadd.f32 %v1692, %v1693
          %v1695 = vsel %vm878, %v1636, 0.0
          %v1696 = vadd.f32 %v1694, %v1695
          %v1697 = vsel %vm878, %v1639, 0.0
          %v1698 = vadd.f32 %v1696, %v1697
          %v1699 = vsel %vm878, %v1642, 0.0
          %v1700 = vadd.f32 %v1698, %v1699
          %v1701 = vsel %vm878, %v1645, 0.0
          %v1702 = vadd.f32 %v1700, %v1701
          %v1703 = vsel %vm878, %v1648, 0.0
          %v1704 = vadd.f32 %v1702, %v1703
          %v1705 = vsel %vm878, %v1651, 0.0
          %v1706 = vadd.f32 %v1704, %v1705
          %1707 = vadd.xlane.f32.xlu0 %v1706
          %v1708 = vpop.xlane.xlu0 %1707
          %v1709 = vrot.slane %v1708, 4
          %v1710 = vadd.f32 %v1708, %v1709
          %v1711 = vrot.slane %v1710, 2
          %v1712 = vadd.f32 %v1710, %v1711
          %v1713 = vrot.slane %v1712, 1
          %v1714 = vadd.f32 %v1712, %v1713
          %s1715 = vtos %v1714
          %s1716 = smul.f32 %s1715, 6.1035156e-05
          %v1717 = vsel %vm878, %v1670, 0.0
          %v1718 = vsel %vm878, %v1673, 0.0
          %v1719 = vadd.f32 %v1717, %v1718
          %v1720 = vsel %vm878, %v1676, 0.0
          %v1721 = vadd.f32 %v1719, %v1720
          %v1722 = vsel %vm878, %v1679, 0.0
          %v1723 = vadd.f32 %v1721, %v1722
          %v1724 = vsel %vm878, %v1682, 0.0
          %v1725 = vadd.f32 %v1723, %v1724
          %v1726 = vsel %vm878, %v1685, 0.0
          %v1727 = vadd.f32 %v1725, %v1726
          %v1728 = vsel %vm878, %v1688, 0.0
          %v1729 = vadd.f32 %v1727, %v1728
          %v1730 = vsel %vm878, %v1691, 0.0
          %v1731 = vadd.f32 %v1729, %v1730
          %1732 = vadd.xlane.f32.xlu0 %v1731
          %v1733 = vpop.xlane.xlu0 %1732
          %v1734 = vrot.slane %v1733, 4
          %v1735 = vadd.f32 %v1733, %v1734
          %v1736 = vrot.slane %v1735, 2
          %v1737 = vadd.f32 %v1735, %v1736
          %v1738 = vrot.slane %v1737, 1
          %v1739 = vadd.f32 %v1737, %v1738
          %s1740 = vtos %v1739
          %s1741 = smul.f32 %s1740, 6.1035156e-05
          %s1742 = smul.f32 %s1716, %s1716
          %s1743 = ssub.f32 %s1741, %s1742
          %s1744 = smax.f32 %s1743, 0.0
          %s1745 = sadd.f32 %s1744, 1e-08
          %v1746 = vstv %s1745
          %v1747 = vrsqrt.pop %v1746
          %s1748 = vtos %v1747
          %v1749 = vstv %s1748
          %v1750 = vmul.f32 %v639, %v1749
          %v1751 = vstv %s1716
          %v1752 = vmul.f32 %v1751, %v1750
          %v1754 = vrot.slane %v1752, 7
          %v1756 = vsub.f32 %v639, %v1754
          %v1757 = vlaneseq
          %v1758 = vshrl.u32 %v1757, 7
          %v1759 = vsub.s32 0, %v1758
          %v1760 = vrot.slane %v1750, %v1759
          %v1761 = vmul.f32 %v647, %v1760
          %v1762 = vmul.f32 %v648, %v1760
          %v1763 = vmul.f32 %v649, %v1760
          %v1764 = vmul.f32 %v650, %v1760
          %v1765 = vpack.c.bf16 %v1762, %v1761
          %v1766 = vpack.c.bf16 %v1764, %v1763
          %v1767 = vlaneseq
          %v1768 = vshrl.u32 %v1767, 7
          %v1769 = vsub.s32 1, %v1768
          %v1770 = vrot.slane %v1756, %v1769
          %v1771 = vmul.f32 %v647, %v1770
          %v1772 = vmul.f32 %v648, %v1770
          %v1773 = vmul.f32 %v649, %v1770
          %v1774 = vmul.f32 %v650, %v1770
          %vm1775 = vcmask 523264
          %v1776 = vsel %vm1775, %v1771, 0.0
          %1777 = vadd.xlane.f32.xlu0 %v1776
          %v1778 = vpop.xlane.xlu0 %1777
          %v1779 = vsel %vm1775, %v1772, 0.0
          %1780 = vadd.xlane.f32.xlu0 %v1779
          %v1781 = vpop.xlane.xlu0 %1780
          %v1782 = vsel %vm1775, %v1773, 0.0
          %1783 = vadd.xlane.f32.xlu0 %v1782
          %v1784 = vpop.xlane.xlu0 %1783
          %v1785 = vsel %vm1775, %v1774, 0.0
          %1786 = vadd.xlane.f32.xlu0 %v1785
          %v1787 = vpop.xlane.xlu0 %1786
          %v1788 = vadd.f32 %v598, %v1778
          %v1789 = vadd.f32 %v599, %v1778
          %v1790 = vadd.f32 %v600, %v1781
          %v1791 = vadd.f32 %v601, %v1781
          %v1792 = vadd.f32 %v602, %v1784
          %v1793 = vadd.f32 %v603, %v1784
          %v1794 = vadd.f32 %v604, %v1787
          %v1795 = vadd.f32 %v605, %v1787
          %v1796 = vpack.c.bf16 %v1614, %v1612
          %v1797 = vpack.c.bf16 %v1615, %v1613
          %v1798 = vpack.c.bf16 %v1618, %v1616
          %v1799 = vpack.c.bf16 %v1619, %v1617
          %v1800 = vpack.c.bf16 %v1622, %v1620
          %v1801 = vpack.c.bf16 %v1623, %v1621
          %v1802 = vpack.c.bf16 %v1626, %v1624
          %v1803 = vpack.c.bf16 %v1627, %v1625
          %v1805 = vsel %vm1775, %v1765, 0
          %v1808 = vsel %vm1775, %v1766, 0
          %1810 = vmatprep.subr.bf16.mxu0 %v1797
          %1811 = vmatpush1.bf16.msra.mxu0 %v1796
          %1812 = vmatprep.subr.bf16.mxu0 %v1799
          %1813 = vmatpush1.bf16.msra.mxu0 %v1798
          %1814 = vmatprep.subr.bf16.mxu0 %v1801
          %1815 = vmatpush1.bf16.msra.mxu0 %v1800
          %1816 = vmatprep.subr.bf16.mxu0 %v1803
          %1817 = vmatpush1.bf16.msra.mxu0 %v1802
          %1818 = vmatprep.subr.bf16.mxu0 0
          %1819 = vmatpush1.bf16.msra.mxu0 0
          %1820 = vmatprep.subr.bf16.mxu0 0
          %1821 = vmatpush1.bf16.msra.mxu0 0
          %1822 = vmatprep.subr.bf16.mxu0 0
          %1823 = vmatpush1.bf16.msra.mxu0 0
          %1824 = vmatprep.subr.bf16.mxu0 0
          %1825 = vmatpush1.bf16.msra.mxu0 0
          %1826 = vmatprep.subr.bf16.mxu0 0
          %1827 = vmatpush1.bf16.msra.mxu0 0
          %1828 = vmatprep.subr.bf16.mxu0 0
          %1829 = vmatpush1.bf16.msra.mxu0 0
          %1830 = vmatprep.subr.bf16.mxu0 0
          %1831 = vmatpush1.bf16.msra.mxu0 0
          %1832 = vmatprep.subr.bf16.mxu0 0
          %1833 = vmatpush1.bf16.msra.mxu0 0
          %1834 = vmatprep.subr.bf16.mxu0 0
          %1835 = vmatpush1.bf16.msra.mxu0 0
          %1836 = vmatprep.subr.bf16.mxu0 0
          %1837 = vmatpush1.bf16.msra.mxu0 0
          %1838 = vmatprep.subr.bf16.mxu0 0
          %1839 = vmatpush1.bf16.msra.mxu0 0
          %1840 = vmatprep.subr.bf16.mxu0 0
          %1841 = vmatpush1.bf16.msra.mxu0 0
          %1842 = vmatprep.mubr.bf16.mxu0 0
          %1843 = vmatmul.mubr.bf16.gmra.mrb[0].mxu0 %v1805
          %v1844 = vpop.f32.mrb[0].mxu0
          %v1845 = vadd.f32 0.0, %v1844
          %v1846 = vpop.f32.mrb[0].mxu0
          %v1847 = vadd.f32 0.0, %v1846
          %v1848 = vpop.f32.mrb[0].mxu0
          %v1849 = vadd.f32 0.0, %v1848
          %v1850 = vpop.f32.mrb[0].mxu0
          %v1851 = vadd.f32 0.0, %v1850
          %1852 = vmatprep.mubr.bf16.mxu0 0
          %1853 = vmatmul.mubr.bf16.gmra.mrb[0].mxu0 %v1808
          %v1854 = vpop.f32.mrb[0].mxu0
          %v1855 = vadd.f32 0.0, %v1854
          %v1856 = vpop.f32.mrb[0].mxu0
          %v1857 = vadd.f32 0.0, %v1856
          %v1858 = vpop.f32.mrb[0].mxu0
          %v1859 = vadd.f32 0.0, %v1858
          %v1860 = vpop.f32.mrb[0].mxu0
          %v1861 = vadd.f32 0.0, %v1860
          %1862 = vdwg.mxu0
          %v1863 = vadd.f32 %v1788, %v1845
          %v1864 = vadd.f32 %v1789, %v1847
          %v1865 = vadd.f32 %v1790, %v1849
          %v1866 = vadd.f32 %v1791, %v1851
          %v1867 = vadd.f32 %v1792, %v1855
          %v1868 = vadd.f32 %v1793, %v1857
          %v1869 = vadd.f32 %v1794, %v1859
          %v1870 = vadd.f32 %v1795, %v1861
          %p1871 = scmp.eq.s32.totalorder %s593, 1
          // Predicated region
          $region72: #{tpu_custom_call.1} parent=68 // pred_check
            %p1872 = pneg %p1871
          $region73: #{tpu_custom_call.1} parent=68 // pred_check_branch
            %1874 = sbr.rel (%p1872) target = $region75
          $region74: #{tpu_custom_call.1} parent=68 // pred_region
            %1875 = vst [vmem:[%s404 + $0x40] sm:$0xff] %v1863
            %1876 = vst [vmem:[%s404 + $0x48] sm:$0xff] %v1864
            %1877 = vst [vmem:[%s404 + $0x50] sm:$0xff] %v1865
            %1878 = vst [vmem:[%s404 + $0x58] sm:$0xff] %v1866
            %1879 = vst [vmem:[%s404 + $0x60] sm:$0xff] %v1867
            %1880 = vst [vmem:[%s404 + $0x68] sm:$0xff] %v1868
            %1881 = vst [vmem:[%s404 + $0x70] sm:$0xff] %v1869
            %1882 = vst [vmem:[%s404 + $0x78] sm:$0xff] %v1870
          $region75: #{tpu_custom_call.1} parent=68 // pred_fallthru
            _
          %s1883 = sadd.s32 %s606, 1
          %s1884 = smul.u32 %s1883, 8
          %s1885 = smul.addr %s1884, 4
          %s1886 = scalar_lea.vmem %s3, %s1885
          %v1887 = vld [vmem:[%s1886] sm:$0xf]
          %v1888 = vld [vmem:[%s1886 + $0x4] sm:$0xf]
          %v1889 = vld [vmem:[%s1886 + $0x8] sm:$0xf]
          %v1890 = vld [vmem:[%s1886 + $0xc] sm:$0xf]
          %v1891 = vld [vmem:[%s1886 + $0x10] sm:$0xf]
          %v1892 = vld [vmem:[%s1886 + $0x14] sm:$0xf]
          %v1893 = vld [vmem:[%s1886 + $0x18] sm:$0xf]
          %v1894 = vld [vmem:[%s1886 + $0x1c] sm:$0xf]
          %s1895 = smul.u32 %s1883, 64
          %s1896 = scalar_lea.vmem %s4, %s1895
          %v1897 = vld [vmem:[%s1896] sm:$0xff]
          %v1898 = vld [vmem:[%s1896 + $0x8] sm:$0xff]
          %v1899 = vld [vmem:[%s1896 + $0x10] sm:$0xff]
          %v1900 = vld [vmem:[%s1896 + $0x18] sm:$0xff]
          %v1901 = vld [vmem:[%s1896 + $0x20] sm:$0xff]
          %v1902 = vld [vmem:[%s1896 + $0x28] sm:$0xff]
          %v1903 = vld [vmem:[%s1896 + $0x30] sm:$0xff]
          %v1904 = vld [vmem:[%s1896 + $0x38] sm:$0xff]
          %s1905 = scalar_lea.vmem %s5, %s1895
          %v1906 = vld [vmem:[%s1905] sm:$0xff]
          %v1907 = vld [vmem:[%s1905 + $0x8] sm:$0xff]
          %v1908 = vld [vmem:[%s1905 + $0x10] sm:$0xff]
          %v1909 = vld [vmem:[%s1905 + $0x18] sm:$0xff]
          %v1910 = vld [vmem:[%s1905 + $0x20] sm:$0xff]
          %v1911 = vld [vmem:[%s1905 + $0x28] sm:$0xff]
          %v1912 = vld [vmem:[%s1905 + $0x30] sm:$0xff]
          %v1913 = vld [vmem:[%s1905 + $0x38] sm:$0xff]
          %s1914 = smul.u32 %s1883, 2
          %s1915 = scalar_lea.vmem %s6, %s1914
          %v1916 = vld [vmem:[%s1915] sm:$0x3]
          %s1917 = smul.u32 %s1883, 4
          %s1918 = smul.addr %s1917, 4
          %s1919 = scalar_lea.vmem %s7, %s1918
          %v1920 = vld [vmem:[%s1919] sm:$0xf]
          %v1921 = vld [vmem:[%s1919 + $0x4] sm:$0xf]
          %v1922 = vld [vmem:[%s1919 + $0x8] sm:$0xf]
          %v1923 = vld [vmem:[%s1919 + $0xc] sm:$0xf]
          %v1924 = vunpack.c.l.bf16 %v1920
          %v1925 = vunpack.c.l.bf16 %v1921
          %v1926 = vunpack.c.l.bf16 %v1922
          %v1927 = vunpack.c.l.bf16 %v1923
          %s1928 = sld [smem:[#allocation3 + %s1914]]
          %s1929 = sadd.s32 %s1914, 1
          %s1930 = sld [smem:[#allocation3 + %s1929]]
          %v1931 = vpack.c.bf16 %v1865, %v1863
          %v1932 = vpack.c.bf16 %v1866, %v1864
          %v1933 = vpack.c.bf16 %v1869, %v1867
          %v1934 = vpack.c.bf16 %v1870, %v1868
          %v1943 = vunpack.c.l.b16 %v1887
          %v1944 = vunpack.c.l.b16 %v1888
          %v1945 = vunpack.c.l.b16 %v1889
          %v1946 = vunpack.c.l.b16 %v1890
          %v1947 = vunpack.c.l.b16 %v1891
          %v1948 = vunpack.c.l.b16 %v1892
          %v1949 = vunpack.c.l.b16 %v1893
          %v1950 = vunpack.c.l.b16 %v1894
          %v1951 = vpack.c.b16 %v1944, %v1943
          %v1952 = vpack.c.b16 %v1946, %v1945
          %v1953 = vpack.c.b16 %v1948, %v1947
          %v1954 = vpack.c.b16 %v1950, %v1949
          %v1956 = vsel %vm679, %v1951, 0
          %v1959 = vsel %vm679, %v1952, 0
          %v1962 = vsel %vm679, %v1953, 0
          %v1965 = vsel %vm679, %v1954, 0
          %1967 = vmatprep.subr.bf16.mxu0 %v1932
          %1968 = vmatpush1.bf16.msra.mxu0 %v1931
          %1969 = vmatprep.subr.bf16.mxu0 %v1934
          %1970 = vmatpush1.bf16.msra.mxu0 %v1933
          %1971 = vmatprep.subr.bf16.mxu0 0
          %1972 = vmatpush1.bf16.msra.mxu0 0
          %1973 = vmatprep.subr.bf16.mxu0 0
          %1974 = vmatpush1.bf16.msra.mxu0 0
          %1975 = vmatprep.subr.bf16.mxu0 0
          %1976 = vmatpush1.bf16.msra.mxu0 0
          %1977 = vmatprep.subr.bf16.mxu0 0
          %1978 = vmatpush1.bf16.msra.mxu0 0
          %1979 = vmatprep.subr.bf16.mxu0 0
          %1980 = vmatpush1.bf16.msra.mxu0 0
          %1981 = vmatprep.subr.bf16.mxu0 0
          %1982 = vmatpush1.bf16.msra.mxu0 0
          %1983 = vmatprep.subr.bf16.mxu0 0
          %1984 = vmatpush1.bf16.msra.mxu0 0
          %1985 = vmatprep.subr.bf16.mxu0 0
          %1986 = vmatpush1.bf16.msra.mxu0 0
          %1987 = vmatprep.subr.bf16.mxu0 0
          %1988 = vmatpush1.bf16.msra.mxu0 0
          %1989 = vmatprep.subr.bf16.mxu0 0
          %1990 = vmatpush1.bf16.msra.mxu0 0
          %1991 = vmatprep.subr.bf16.mxu0 0
          %1992 = vmatpush1.bf16.msra.mxu0 0
          %1993 = vmatprep.subr.bf16.mxu0 0
          %1994 = vmatpush1.bf16.msra.mxu0 0
          %1995 = vmatprep.subr.bf16.mxu0 0
          %1996 = vmatpush1.bf16.msra.mxu0 0
          %1997 = vmatprep.subr.bf16.mxu0 0
          %1998 = vmatpush1.bf16.msra.mxu0 0
          %1999 = vmatprep.mubr.bf16.mxu0 0
          %2000 = vmatmul.mubr.bf16.gmra.mrb[0].mxu0 %v1956
          %v2001 = vpop.f32.mrb[0].mxu0
          %v2002 = vadd.f32 0.0, %v2001
          %v2003 = vpop.f32.mrb[0].mxu0
          %v2004 = vadd.f32 0.0, %v2003
          %v2005 = vpop.f32.mrb[0].mxu0
          %v2006 = vadd.f32 0.0, %v2005
          %v2007 = vpop.f32.mrb[0].mxu0
          %v2008 = vadd.f32 0.0, %v2007
          %2009 = vmatprep.mubr.bf16.mxu0 0
          %2010 = vmatmul.mubr.bf16.gmra.mrb[0].mxu0 %v1959
          %v2011 = vpop.f32.mrb[0].mxu0
          %v2012 = vadd.f32 0.0, %v2011
          %v2013 = vpop.f32.mrb[0].mxu0
          %v2014 = vadd.f32 0.0, %v2013
          %v2015 = vpop.f32.mrb[0].mxu0
          %v2016 = vadd.f32 0.0, %v2015
          %v2017 = vpop.f32.mrb[0].mxu0
          %v2018 = vadd.f32 0.0, %v2017
          %2019 = vmatprep.mubr.bf16.mxu0 0
          %2020 = vmatmul.mubr.bf16.gmra.mrb[0].mxu0 %v1962
          %v2021 = vpop.f32.mrb[0].mxu0
          %v2022 = vadd.f32 0.0, %v2021
          %v2023 = vpop.f32.mrb[0].mxu0
          %v2024 = vadd.f32 0.0, %v2023
          %v2025 = vpop.f32.mrb[0].mxu0
          %v2026 = vadd.f32 0.0, %v2025
          %v2027 = vpop.f32.mrb[0].mxu0
          %v2028 = vadd.f32 0.0, %v2027
          %2029 = vmatprep.mubr.bf16.mxu0 0
          %2030 = vmatmul.mubr.bf16.gmra.mrb[0].mxu0 %v1965
          %v2031 = vpop.f32.mrb[0].mxu0
          %v2032 = vadd.f32 0.0, %v2031
          %v2033 = vpop.f32.mrb[0].mxu0
          %v2034 = vadd.f32 0.0, %v2033
          %v2035 = vpop.f32.mrb[0].mxu0
          %v2036 = vadd.f32 0.0, %v2035
          %v2037 = vpop.f32.mrb[0].mxu0
          %v2038 = vadd.f32 0.0, %v2037
          %2039 = vdwg.mxu0
          %vm2040 = vcmp.ge.f32.partialorder %v2002, 0.0
          %vm2041 = vcmp.ge.f32.partialorder %v2004, 0.0
          %vm2042 = vcmp.ge.f32.partialorder %v2006, 0.0
          %vm2043 = vcmp.ge.f32.partialorder %v2008, 0.0
          %vm2044 = vcmp.ge.f32.partialorder %v2012, 0.0
          %vm2045 = vcmp.ge.f32.partialorder %v2014, 0.0
          %vm2046 = vcmp.ge.f32.partialorder %v2016, 0.0
          %vm2047 = vcmp.ge.f32.partialorder %v2018, 0.0
          %vm2048 = vcmp.ge.f32.partialorder %v2022, 0.0
          %vm2049 = vcmp.ge.f32.partialorder %v2024, 0.0
          %vm2050 = vcmp.ge.f32.partialorder %v2026, 0.0
          %vm2051 = vcmp.ge.f32.partialorder %v2028, 0.0
          %vm2052 = vcmp.ge.f32.partialorder %v2032, 0.0
          %vm2053 = vcmp.ge.f32.partialorder %v2034, 0.0
          %vm2054 = vcmp.ge.f32.partialorder %v2036, 0.0
          %vm2055 = vcmp.ge.f32.partialorder %v2038, 0.0
          %v2056 = vstv %s1928
          %v2057 = vmul.f32 %v2056, %v2002
          %v2058 = vmul.f32 %v2056, %v2004
          %v2059 = vmul.f32 %v2056, %v2006
          %v2060 = vmul.f32 %v2056, %v2008
          %v2061 = vmul.f32 %v2056, %v2012
          %v2062 = vmul.f32 %v2056, %v2014
          %v2063 = vmul.f32 %v2056, %v2016
          %v2064 = vmul.f32 %v2056, %v2018
          %v2065 = vmul.f32 %v2056, %v2022
          %v2066 = vmul.f32 %v2056, %v2024
          %v2067 = vmul.f32 %v2056, %v2026
          %v2068 = vmul.f32 %v2056, %v2028
          %v2069 = vmul.f32 %v2056, %v2032
          %v2070 = vmul.f32 %v2056, %v2034
          %v2071 = vmul.f32 %v2056, %v2036
          %v2072 = vmul.f32 %v2056, %v2038
          %v2073 = vsel %vm2040, %v2002, %v2057
          %v2074 = vsel %vm2041, %v2004, %v2058
          %v2075 = vsel %vm2042, %v2006, %v2059
          %v2076 = vsel %vm2043, %v2008, %v2060
          %v2077 = vsel %vm2044, %v2012, %v2061
          %v2078 = vsel %vm2045, %v2014, %v2062
          %v2079 = vsel %vm2046, %v2016, %v2063
          %v2080 = vsel %vm2047, %v2018, %v2064
          %v2081 = vsel %vm2048, %v2022, %v2065
          %v2082 = vsel %vm2049, %v2024, %v2066
          %v2083 = vsel %vm2050, %v2026, %v2067
          %v2084 = vsel %vm2051, %v2028, %v2068
          %v2085 = vsel %vm2052, %v2032, %v2069
          %v2086 = vsel %vm2053, %v2034, %v2070
          %v2087 = vsel %vm2054, %v2036, %v2071
          %v2088 = vsel %vm2055, %v2038, %v2072
          %v2089 = vadd.f32 %v2073, %v2074
          %2090 = vadd.xlane.f32.xlu0 %v2089
          %v2091 = vpop.xlane.xlu0 %2090
          %v2092 = vadd.f32 %v2075, %v2076
          %2093 = vadd.xlane.f32.xlu0 %v2092
          %v2094 = vpop.xlane.xlu0 %2093
          %v2095 = vadd.f32 %v2077, %v2078
          %2096 = vadd.xlane.f32.xlu0 %v2095
          %v2097 = vpop.xlane.xlu0 %2096
          %v2098 = vadd.f32 %v2079, %v2080
          %2099 = vadd.xlane.f32.xlu0 %v2098
          %v2100 = vpop.xlane.xlu0 %2099
          %v2101 = vadd.f32 %v2081, %v2082
          %2102 = vadd.xlane.f32.xlu0 %v2101
          %v2103 = vpop.xlane.xlu0 %2102
          %v2104 = vadd.f32 %v2083, %v2084
          %2105 = vadd.xlane.f32.xlu0 %v2104
          %v2106 = vpop.xlane.xlu0 %2105
          %v2107 = vadd.f32 %v2085, %v2086
          %2108 = vadd.xlane.f32.xlu0 %v2107
          %v2109 = vpop.xlane.xlu0 %2108
          %v2110 = vadd.f32 %v2087, %v2088
          %2111 = vadd.xlane.f32.xlu0 %v2110
          %v2112 = vpop.xlane.xlu0 %2111
          %v2113 = vmul.f32 %v2073, %v2073
          %v2114 = vmul.f32 %v2074, %v2074
          %v2115 = vmul.f32 %v2075, %v2075
          %v2116 = vmul.f32 %v2076, %v2076
          %v2117 = vmul.f32 %v2077, %v2077
          %v2118 = vmul.f32 %v2078, %v2078
          %v2119 = vmul.f32 %v2079, %v2079
          %v2120 = vmul.f32 %v2080, %v2080
          %v2121 = vmul.f32 %v2081, %v2081
          %v2122 = vmul.f32 %v2082, %v2082
          %v2123 = vmul.f32 %v2083, %v2083
          %v2124 = vmul.f32 %v2084, %v2084
          %v2125 = vmul.f32 %v2085, %v2085
          %v2126 = vmul.f32 %v2086, %v2086
          %v2127 = vmul.f32 %v2087, %v2087
          %v2128 = vmul.f32 %v2088, %v2088
          %v2129 = vadd.f32 %v2113, %v2114
          %2130 = vadd.xlane.f32.xlu0 %v2129
          %v2131 = vpop.xlane.xlu0 %2130
          %v2132 = vadd.f32 %v2115, %v2116
          %2133 = vadd.xlane.f32.xlu0 %v2132
          %v2134 = vpop.xlane.xlu0 %2133
          %v2135 = vadd.f32 %v2117, %v2118
          %2136 = vadd.xlane.f32.xlu0 %v2135
          %v2137 = vpop.xlane.xlu0 %2136
          %v2138 = vadd.f32 %v2119, %v2120
          %2139 = vadd.xlane.f32.xlu0 %v2138
          %v2140 = vpop.xlane.xlu0 %2139
          %v2141 = vadd.f32 %v2121, %v2122
          %2142 = vadd.xlane.f32.xlu0 %v2141
          %v2143 = vpop.xlane.xlu0 %2142
          %v2144 = vadd.f32 %v2123, %v2124
          %2145 = vadd.xlane.f32.xlu0 %v2144
          %v2146 = vpop.xlane.xlu0 %2145
          %v2147 = vadd.f32 %v2125, %v2126
          %2148 = vadd.xlane.f32.xlu0 %v2147
          %v2149 = vpop.xlane.xlu0 %2148
          %v2150 = vadd.f32 %v2127, %v2128
          %2151 = vadd.xlane.f32.xlu0 %v2150
          %v2152 = vpop.xlane.xlu0 %2151
          %v2153 = vsel %vm878, %v2091, 0.0
          %v2154 = vsel %vm878, %v2094, 0.0
          %v2155 = vadd.f32 %v2153, %v2154
          %v2156 = vsel %vm878, %v2097, 0.0
          %v2157 = vadd.f32 %v2155, %v2156
          %v2158 = vsel %vm878, %v2100, 0.0
          %v2159 = vadd.f32 %v2157, %v2158
          %v2160 = vsel %vm878, %v2103, 0.0
          %v2161 = vadd.f32 %v2159, %v2160
          %v2162 = vsel %vm878, %v2106, 0.0
          %v2163 = vadd.f32 %v2161, %v2162
          %v2164 = vsel %vm878, %v2109, 0.0
          %v2165 = vadd.f32 %v2163, %v2164
          %v2166 = vsel %vm878, %v2112, 0.0
          %v2167 = vadd.f32 %v2165, %v2166
          %2168 = vadd.xlane.f32.xlu0 %v2167
          %v2169 = vpop.xlane.xlu0 %2168
          %v2170 = vrot.slane %v2169, 4
          %v2171 = vadd.f32 %v2169, %v2170
          %v2172 = vrot.slane %v2171, 2
          %v2173 = vadd.f32 %v2171, %v2172
          %v2174 = vrot.slane %v2173, 1
          %v2175 = vadd.f32 %v2173, %v2174
          %s2176 = vtos %v2175
          %s2177 = smul.f32 %s2176, 6.1035156e-05
          %v2178 = vsel %vm878, %v2131, 0.0
          %v2179 = vsel %vm878, %v2134, 0.0
          %v2180 = vadd.f32 %v2178, %v2179
          %v2181 = vsel %vm878, %v2137, 0.0
          %v2182 = vadd.f32 %v2180, %v2181
          %v2183 = vsel %vm878, %v2140, 0.0
          %v2184 = vadd.f32 %v2182, %v2183
          %v2185 = vsel %vm878, %v2143, 0.0
          %v2186 = vadd.f32 %v2184, %v2185
          %v2187 = vsel %vm878, %v2146, 0.0
          %v2188 = vadd.f32 %v2186, %v2187
          %v2189 = vsel %vm878, %v2149, 0.0
          %v2190 = vadd.f32 %v2188, %v2189
          %v2191 = vsel %vm878, %v2152, 0.0
          %v2192 = vadd.f32 %v2190, %v2191
          %2193 = vadd.xlane.f32.xlu0 %v2192
          %v2194 = vpop.xlane.xlu0 %2193
          %v2195 = vrot.slane %v2194, 4
          %v2196 = vadd.f32 %v2194, %v2195
          %v2197 = vrot.slane %v2196, 2
          %v2198 = vadd.f32 %v2196, %v2197
          %v2199 = vrot.slane %v2198, 1
          %v2200 = vadd.f32 %v2198, %v2199
          %s2201 = vtos %v2200
          %s2202 = smul.f32 %s2201, 6.1035156e-05
          %s2203 = smul.f32 %s2177, %s2177
          %s2204 = ssub.f32 %s2202, %s2203
          %s2205 = smax.f32 %s2204, 0.0
          %s2206 = sadd.f32 %s2205, 1e-08
          %v2207 = vstv %s2206
          %v2208 = vrsqrt.pop %v2207
          %s2209 = vtos %v2208
          %v2210 = vstv %s2209
          %v2211 = vmul.f32 %v1906, %v2210
          %v2212 = vmul.f32 %v1907, %v2210
          %v2213 = vmul.f32 %v1908, %v2210
          %v2214 = vmul.f32 %v1909, %v2210
          %v2215 = vmul.f32 %v1910, %v2210
          %v2216 = vmul.f32 %v1911, %v2210
          %v2217 = vmul.f32 %v1912, %v2210
          %v2218 = vmul.f32 %v1913, %v2210
          %v2219 = vstv %s2177
          %v2220 = vmul.f32 %v2219, %v2211
          %v2221 = vmul.f32 %v2219, %v2212
          %v2222 = vmul.f32 %v2219, %v2213
          %v2223 = vmul.f32 %v2219, %v2214
          %v2224 = vmul.f32 %v2219, %v2215
          %v2225 = vmul.f32 %v2219, %v2216
          %v2226 = vmul.f32 %v2219, %v2217
          %v2227 = vmul.f32 %v2219, %v2218
          %2236 = vrot.lane.b32.xlu0 %v2220, 1
          %v2237 = vpop.permute.xlu0 %2236
          %2238 = vrot.lane.b32.xlu0 %v2221, 1
          %v2239 = vpop.permute.xlu0 %2238
          %2240 = vrot.lane.b32.xlu0 %v2222, 1
          %v2241 = vpop.permute.xlu0 %2240
          %2242 = vrot.lane.b32.xlu0 %v2223, 1
          %v2243 = vpop.permute.xlu0 %2242
          %2244 = vrot.lane.b32.xlu0 %v2224, 1
          %v2245 = vpop.permute.xlu0 %2244
          %2246 = vrot.lane.b32.xlu0 %v2225, 1
          %v2247 = vpop.permute.xlu0 %2246
          %2248 = vrot.lane.b32.xlu0 %v2226, 1
          %v2249 = vpop.permute.xlu0 %2248
          %2250 = vrot.lane.b32.xlu0 %v2227, 1
          %v2251 = vpop.permute.xlu0 %2250
          %v2260 = vsub.f32 %v1906, %v2237
          %v2261 = vsub.f32 %v1907, %v2239
          %v2262 = vsub.f32 %v1908, %v2241
          %v2263 = vsub.f32 %v1909, %v2243
          %v2264 = vsub.f32 %v1910, %v2245
          %v2265 = vsub.f32 %v1911, %v2247
          %v2266 = vsub.f32 %v1912, %v2249
          %v2267 = vsub.f32 %v1913, %v2251
          %2269 = vset.pattern.permute.xlu0 0
          %2270 = vperm.xlu0 %2269, %v2211
          %v2271 = vpop.permute.xlu0 %2270
          %2274 = vset.pattern.permute.xlu0 0
          %2275 = vperm.xlu0 %2274, %v2212
          %v2276 = vpop.permute.xlu0 %2275
          %2279 = vset.pattern.permute.xlu0 0
          %2280 = vperm.xlu0 %2279, %v2213
          %v2281 = vpop.permute.xlu0 %2280
          %2284 = vset.pattern.permute.xlu0 0
          %2285 = vperm.xlu0 %2284, %v2214
          %v2286 = vpop.permute.xlu0 %2285
          %2289 = vset.pattern.permute.xlu0 0
          %2290 = vperm.xlu0 %2289, %v2215
          %v2291 = vpop.permute.xlu0 %2290
          %2294 = vset.pattern.permute.xlu0 0
          %2295 = vperm.xlu0 %2294, %v2216
          %v2296 = vpop.permute.xlu0 %2295
          %2299 = vset.pattern.permute.xlu0 0
          %2300 = vperm.xlu0 %2299, %v2217
          %v2301 = vpop.permute.xlu0 %2300
          %2304 = vset.pattern.permute.xlu0 0
          %2305 = vperm.xlu0 %2304, %v2218
          %v2306 = vpop.permute.xlu0 %2305
          %v2308 = vmul.f32 %v2073, %v2271
          %v2309 = vmul.f32 %v2074, %v2271
          %v2310 = vmul.f32 %v2075, %v2276
          %v2311 = vmul.f32 %v2076, %v2276
          %v2312 = vmul.f32 %v2077, %v2281
          %v2313 = vmul.f32 %v2078, %v2281
          %v2314 = vmul.f32 %v2079, %v2286
          %v2315 = vmul.f32 %v2080, %v2286
          %v2316 = vmul.f32 %v2081, %v2291
          %v2317 = vmul.f32 %v2082, %v2291
          %v2318 = vmul.f32 %v2083, %v2296
          %v2319 = vmul.f32 %v2084, %v2296
          %v2320 = vmul.f32 %v2085, %v2301
          %v2321 = vmul.f32 %v2086, %v2301
          %v2322 = vmul.f32 %v2087, %v2306
          %v2323 = vmul.f32 %v2088, %v2306
          %2325 = vset.pattern.permute.xlu0 1
          %2326 = vperm.xlu0 %2325, %v2260
          %v2327 = vpop.permute.xlu0 %2326
          %2330 = vset.pattern.permute.xlu0 1
          %2331 = vperm.xlu0 %2330, %v2261
          %v2332 = vpop.permute.xlu0 %2331
          %2335 = vset.pattern.permute.xlu0 1
          %2336 = vperm.xlu0 %2335, %v2262
          %v2337 = vpop.permute.xlu0 %2336
          %2340 = vset.pattern.permute.xlu0 1
          %2341 = vperm.xlu0 %2340, %v2263
          %v2342 = vpop.permute.xlu0 %2341
          %2345 = vset.pattern.permute.xlu0 1
          %2346 = vperm.xlu0 %2345, %v2264
          %v2347 = vpop.permute.xlu0 %2346
          %2350 = vset.pattern.permute.xlu0 1
          %2351 = vperm.xlu0 %2350, %v2265
          %v2352 = vpop.permute.xlu0 %2351
          %2355 = vset.pattern.permute.xlu0 1
          %2356 = vperm.xlu0 %2355, %v2266
          %v2357 = vpop.permute.xlu0 %2356
          %2360 = vset.pattern.permute.xlu0 1
          %2361 = vperm.xlu0 %2360, %v2267
          %v2362 = vpop.permute.xlu0 %2361
          %v2364 = vadd.f32 %v2308, %v2327
          %v2365 = vadd.f32 %v2309, %v2327
          %v2366 = vadd.f32 %v2310, %v2332
          %v2367 = vadd.f32 %v2311, %v2332
          %v2368 = vadd.f32 %v2312, %v2337
          %v2369 = vadd.f32 %v2313, %v2337
          %v2370 = vadd.f32 %v2314, %v2342
          %v2371 = vadd.f32 %v2315, %v2342
          %v2372 = vadd.f32 %v2316, %v2347
          %v2373 = vadd.f32 %v2317, %v2347
          %v2374 = vadd.f32 %v2318, %v2352
          %v2375 = vadd.f32 %v2319, %v2352
          %v2376 = vadd.f32 %v2320, %v2357
          %v2377 = vadd.f32 %v2321, %v2357
          %v2378 = vadd.f32 %v2322, %v2362
          %v2379 = vadd.f32 %v2323, %v2362
          %2380 = vst [vmem:[#allocation2 + $0x8] sm:$0xff] %v2364
          %2381 = vst [vmem:[#allocation2 + $0x10] sm:$0xff] %v2365
          %2382 = vst [vmem:[#allocation2 + $0x28] sm:$0xff] %v2366
          %2383 = vst [vmem:[#allocation2 + $0x30] sm:$0xff] %v2367
          %2384 = vst [vmem:[#allocation2 + $0x48] sm:$0xff] %v2368
          %2385 = vst [vmem:[#allocation2 + $0x50] sm:$0xff] %v2369
          %2386 = vst [vmem:[#allocation2 + $0x68] sm:$0xff] %v2370
          %2387 = vst [vmem:[#allocation2 + $0x70] sm:$0xff] %v2371
          %2388 = vst [vmem:[#allocation2 + $0x88] sm:$0xff] %v2372
          %2389 = vst [vmem:[#allocation2 + $0x90] sm:$0xff] %v2373
          %2390 = vst [vmem:[#allocation2 + $0xa8] sm:$0xff] %v2374
          %2391 = vst [vmem:[#allocation2 + $0xb0] sm:$0xff] %v2375
          %2392 = vst [vmem:[#allocation2 + $0xc8] sm:$0xff] %v2376
          %2393 = vst [vmem:[#allocation2 + $0xd0] sm:$0xff] %v2377
          %2394 = vst [vmem:[#allocation2 + $0xe8] sm:$0xff] %v2378
          %2395 = vst [vmem:[#allocation2 + $0xf0] sm:$0xff] %v2379
          %2397 = vset.pattern.permute.xlu0 1
          %2398 = vperm.xlu0 %2397, %v1897
          %v2399 = vpop.permute.xlu0 %2398
          %2402 = vset.pattern.permute.xlu0 1
          %2403 = vperm.xlu0 %2402, %v1898
          %v2404 = vpop.permute.xlu0 %2403
          %2407 = vset.pattern.permute.xlu0 1
          %2408 = vperm.xlu0 %2407, %v1899
          %v2409 = vpop.permute.xlu0 %2408
          %2412 = vset.pattern.permute.xlu0 1
          %2413 = vperm.xlu0 %2412, %v1900
          %v2414 = vpop.permute.xlu0 %2413
          %2417 = vset.pattern.permute.xlu0 1
          %2418 = vperm.xlu0 %2417, %v1901
          %v2419 = vpop.permute.xlu0 %2418
          %2422 = vset.pattern.permute.xlu0 1
          %2423 = vperm.xlu0 %2422, %v1902
          %v2424 = vpop.permute.xlu0 %2423
          %2427 = vset.pattern.permute.xlu0 1
          %2428 = vperm.xlu0 %2427, %v1903
          %v2429 = vpop.permute.xlu0 %2428
          %2432 = vset.pattern.permute.xlu0 1
          %2433 = vperm.xlu0 %2432, %v1904
          %v2434 = vpop.permute.xlu0 %2433
          %v2436 = vmul.f32 %v2399, %v2364
          %v2437 = vmul.f32 %v2399, %v2365
          %v2438 = vmul.f32 %v2404, %v2366
          %v2439 = vmul.f32 %v2404, %v2367
          %v2440 = vmul.f32 %v2409, %v2368
          %v2441 = vmul.f32 %v2409, %v2369
          %v2442 = vmul.f32 %v2414, %v2370
          %v2443 = vmul.f32 %v2414, %v2371
          %v2444 = vmul.f32 %v2419, %v2372
          %v2445 = vmul.f32 %v2419, %v2373
          %v2446 = vmul.f32 %v2424, %v2374
          %v2447 = vmul.f32 %v2424, %v2375
          %v2448 = vmul.f32 %v2429, %v2376
          %v2449 = vmul.f32 %v2429, %v2377
          %v2450 = vmul.f32 %v2434, %v2378
          %v2451 = vmul.f32 %v2434, %v2379
          %v2452 = vld [vmem:[#allocation2] sm:$0xff]
          %v2453 = vld [vmem:[#allocation2 + $0x8] sm:$0xff]
          %v2454 = vld [vmem:[#allocation2 + $0x10] sm:$0xff]
          %v2455 = vld [vmem:[#allocation2 + $0x20] sm:$0xff]
          %v2456 = vld [vmem:[#allocation2 + $0x28] sm:$0xff]
          %v2457 = vld [vmem:[#allocation2 + $0x30] sm:$0xff]
          %v2458 = vld [vmem:[#allocation2 + $0x40] sm:$0xff]
          %v2459 = vld [vmem:[#allocation2 + $0x48] sm:$0xff]
          %v2460 = vld [vmem:[#allocation2 + $0x50] sm:$0xff]
          %v2461 = vld [vmem:[#allocation2 + $0x60] sm:$0xff]
          %v2462 = vld [vmem:[#allocation2 + $0x68] sm:$0xff]
          %v2463 = vld [vmem:[#allocation2 + $0x70] sm:$0xff]
          %v2464 = vld [vmem:[#allocation2 + $0x80] sm:$0xff]
          %v2465 = vld [vmem:[#allocation2 + $0x88] sm:$0xff]
          %v2466 = vld [vmem:[#allocation2 + $0x90] sm:$0xff]
          %v2467 = vld [vmem:[#allocation2 + $0xa0] sm:$0xff]
          %v2468 = vld [vmem:[#allocation2 + $0xa8] sm:$0xff]
          %v2469 = vld [vmem:[#allocation2 + $0xb0] sm:$0xff]
          %v2470 = vld [vmem:[#allocation2 + $0xc0] sm:$0xff]
          %v2471 = vld [vmem:[#allocation2 + $0xc8] sm:$0xff]
          %v2472 = vld [vmem:[#allocation2 + $0xd0] sm:$0xff]
          %v2473 = vld [vmem:[#allocation2 + $0xe0] sm:$0xff]
          %v2474 = vld [vmem:[#allocation2 + $0xe8] sm:$0xff]
          %v2475 = vld [vmem:[#allocation2 + $0xf0] sm:$0xff]
          %2476 = vset.pattern.permute.xlu0 0
          %2477 = vperm.xlu0 %2476, %v1897
          %v2478 = vpop.permute.xlu0 %2477
          %2480 = vset.pattern.permute.xlu0 0
          %2481 = vperm.xlu0 %2480, %v1898
          %v2482 = vpop.permute.xlu0 %2481
          %2484 = vset.pattern.permute.xlu0 0
          %2485 = vperm.xlu0 %2484, %v1899
          %v2486 = vpop.permute.xlu0 %2485
          %2488 = vset.pattern.permute.xlu0 0
          %2489 = vperm.xlu0 %2488, %v1900
          %v2490 = vpop.permute.xlu0 %2489
          %2492 = vset.pattern.permute.xlu0 0
          %2493 = vperm.xlu0 %2492, %v1901
          %v2494 = vpop.permute.xlu0 %2493
          %2496 = vset.pattern.permute.xlu0 0
          %2497 = vperm.xlu0 %2496, %v1902
          %v2498 = vpop.permute.xlu0 %2497
          %2500 = vset.pattern.permute.xlu0 0
          %2501 = vperm.xlu0 %2500, %v1903
          %v2502 = vpop.permute.xlu0 %2501
          %2504 = vset.pattern.permute.xlu0 0
          %2505 = vperm.xlu0 %2504, %v1904
          %v2506 = vpop.permute.xlu0 %2505
          %v2508 = vmul.f32 %v2478, %v2452
          %v2509 = vmul.f32 %v2478, %v2453
          %v2510 = vmul.f32 %v2478, %v2454
          %v2511 = vmul.f32 %v2482, %v2455
          %v2512 = vmul.f32 %v2482, %v2456
          %v2513 = vmul.f32 %v2482, %v2457
          %v2514 = vmul.f32 %v2486, %v2458
          %v2515 = vmul.f32 %v2486, %v2459
          %v2516 = vmul.f32 %v2486, %v2460
          %v2517 = vmul.f32 %v2490, %v2461
          %v2518 = vmul.f32 %v2490, %v2462
          %v2519 = vmul.f32 %v2490, %v2463
          %v2520 = vmul.f32 %v2494, %v2464
          %v2521 = vmul.f32 %v2494, %v2465
          %v2522 = vmul.f32 %v2494, %v2466
          %v2523 = vmul.f32 %v2498, %v2467
          %v2524 = vmul.f32 %v2498, %v2468
          %v2525 = vmul.f32 %v2498, %v2469
          %v2526 = vmul.f32 %v2502, %v2470
          %v2527 = vmul.f32 %v2502, %v2471
          %v2528 = vmul.f32 %v2502, %v2472
          %v2529 = vmul.f32 %v2506, %v2473
          %v2530 = vmul.f32 %v2506, %v2474
          %v2531 = vmul.f32 %v2506, %v2475
          %2556 = vrot.lane.b32.xlu0 %v2508, 2
          %v2557 = vpop.permute.xlu0 %2556
          %2558 = vrot.lane.b32.xlu0 %v2509, 2
          %v2559 = vpop.permute.xlu0 %2558
          %2560 = vrot.lane.b32.xlu0 %v2510, 2
          %v2561 = vpop.permute.xlu0 %2560
          %2562 = vrot.lane.b32.xlu0 %v2511, 2
          %v2563 = vpop.permute.xlu0 %2562
          %2564 = vrot.lane.b32.xlu0 %v2512, 2
          %v2565 = vpop.permute.xlu0 %2564
          %2566 = vrot.lane.b32.xlu0 %v2513, 2
          %v2567 = vpop.permute.xlu0 %2566
          %2568 = vrot.lane.b32.xlu0 %v2514, 2
          %v2569 = vpop.permute.xlu0 %2568
          %2570 = vrot.lane.b32.xlu0 %v2515, 2
          %v2571 = vpop.permute.xlu0 %2570
          %2572 = vrot.lane.b32.xlu0 %v2516, 2
          %v2573 = vpop.permute.xlu0 %2572
          %2574 = vrot.lane.b32.xlu0 %v2517, 2
          %v2575 = vpop.permute.xlu0 %2574
          %2576 = vrot.lane.b32.xlu0 %v2518, 2
          %v2577 = vpop.permute.xlu0 %2576
          %2578 = vrot.lane.b32.xlu0 %v2519, 2
          %v2579 = vpop.permute.xlu0 %2578
          %2580 = vrot.lane.b32.xlu0 %v2520, 2
          %v2581 = vpop.permute.xlu0 %2580
          %2582 = vrot.lane.b32.xlu0 %v2521, 2
          %v2583 = vpop.permute.xlu0 %2582
          %2584 = vrot.lane.b32.xlu0 %v2522, 2
          %v2585 = vpop.permute.xlu0 %2584
          %2586 = vrot.lane.b32.xlu0 %v2523, 2
          %v2587 = vpop.permute.xlu0 %2586
          %2588 = vrot.lane.b32.xlu0 %v2524, 2
          %v2589 = vpop.permute.xlu0 %2588
          %2590 = vrot.lane.b32.xlu0 %v2525, 2
          %v2591 = vpop.permute.xlu0 %2590
          %2592 = vrot.lane.b32.xlu0 %v2526, 2
          %v2593 = vpop.permute.xlu0 %2592
          %2594 = vrot.lane.b32.xlu0 %v2527, 2
          %v2595 = vpop.permute.xlu0 %2594
          %2596 = vrot.lane.b32.xlu0 %v2528, 2
          %v2597 = vpop.permute.xlu0 %2596
          %2598 = vrot.lane.b32.xlu0 %v2529, 2
          %v2599 = vpop.permute.xlu0 %2598
          %2600 = vrot.lane.b32.xlu0 %v2530, 2
          %v2601 = vpop.permute.xlu0 %2600
          %2602 = vrot.lane.b32.xlu0 %v2531, 2
          %v2603 = vpop.permute.xlu0 %2602
          %v2604 = vsel %vm420, %v2557, %v2559
          %v2605 = vsel %vm420, %v2559, %v2561
          %v2606 = vsel %vm420, %v2563, %v2565
          %v2607 = vsel %vm420, %v2565, %v2567
          %v2608 = vsel %vm420, %v2569, %v2571
          %v2609 = vsel %vm420, %v2571, %v2573
          %v2610 = vsel %vm420, %v2575, %v2577
          %v2611 = vsel %vm420, %v2577, %v2579
          %v2612 = vsel %vm420, %v2581, %v2583
          %v2613 = vsel %vm420, %v2583, %v2585
          %v2614 = vsel %vm420, %v2587, %v2589
          %v2615 = vsel %vm420, %v2589, %v2591
          %v2616 = vsel %vm420, %v2593, %v2595
          %v2617 = vsel %vm420, %v2595, %v2597
          %v2618 = vsel %vm420, %v2599, %v2601
          %v2619 = vsel %vm420, %v2601, %v2603
          %v2636 = vadd.f32 %v2436, %v2604
          %v2637 = vadd.f32 %v2437, %v2605
          %v2638 = vadd.f32 %v2438, %v2606
          %v2639 = vadd.f32 %v2439, %v2607
          %v2640 = vadd.f32 %v2440, %v2608
          %v2641 = vadd.f32 %v2441, %v2609
          %v2642 = vadd.f32 %v2442, %v2610
          %v2643 = vadd.f32 %v2443, %v2611
          %v2644 = vadd.f32 %v2444, %v2612
          %v2645 = vadd.f32 %v2445, %v2613
          %v2646 = vadd.f32 %v2446, %v2614
          %v2647 = vadd.f32 %v2447, %v2615
          %v2648 = vadd.f32 %v2448, %v2616
          %v2649 = vadd.f32 %v2449, %v2617
          %v2650 = vadd.f32 %v2450, %v2618
          %v2651 = vadd.f32 %v2451, %v2619
          %v2652 = vld [vmem:[#allocation2 + $0x8] sm:$0xff]
          %v2653 = vld [vmem:[#allocation2 + $0x10] sm:$0xff]
          %v2654 = vld [vmem:[#allocation2 + $0x18] sm:$0xff]
          %v2655 = vld [vmem:[#allocation2 + $0x28] sm:$0xff]
          %v2656 = vld [vmem:[#allocation2 + $0x30] sm:$0xff]
          %v2657 = vld [vmem:[#allocation2 + $0x38] sm:$0xff]
          %v2658 = vld [vmem:[#allocation2 + $0x48] sm:$0xff]
          %v2659 = vld [vmem:[#allocation2 + $0x50] sm:$0xff]
          %v2660 = vld [vmem:[#allocation2 + $0x58] sm:$0xff]
          %v2661 = vld [vmem:[#allocation2 + $0x68] sm:$0xff]
          %v2662 = vld [vmem:[#allocation2 + $0x70] sm:$0xff]
          %v2663 = vld [vmem:[#allocation2 + $0x78] sm:$0xff]
          %v2664 = vld [vmem:[#allocation2 + $0x88] sm:$0xff]
          %v2665 = vld [vmem:[#allocation2 + $0x90] sm:$0xff]
          %v2666 = vld [vmem:[#allocation2 + $0x98] sm:$0xff]
          %v2667 = vld [vmem:[#allocation2 + $0xa8] sm:$0xff]
          %v2668 = vld [vmem:[#allocation2 + $0xb0] sm:$0xff]
          %v2669 = vld [vmem:[#allocation2 + $0xb8] sm:$0xff]
          %v2670 = vld [vmem:[#allocation2 + $0xc8] sm:$0xff]
          %v2671 = vld [vmem:[#allocation2 + $0xd0] sm:$0xff]
          %v2672 = vld [vmem:[#allocation2 + $0xd8] sm:$0xff]
          %v2673 = vld [vmem:[#allocation2 + $0xe8] sm:$0xff]
          %v2674 = vld [vmem:[#allocation2 + $0xf0] sm:$0xff]
          %v2675 = vld [vmem:[#allocation2 + $0xf8] sm:$0xff]
          %2676 = vset.pattern.permute.xlu0 2
          %2677 = vperm.xlu0 %2676, %v1897
          %v2678 = vpop.permute.xlu0 %2677
          %2680 = vset.pattern.permute.xlu0 2
          %2681 = vperm.xlu0 %2680, %v1898
          %v2682 = vpop.permute.xlu0 %2681
          %2684 = vset.pattern.permute.xlu0 2
          %2685 = vperm.xlu0 %2684, %v1899
          %v2686 = vpop.permute.xlu0 %2685
          %2688 = vset.pattern.permute.xlu0 2
          %2689 = vperm.xlu0 %2688, %v1900
          %v2690 = vpop.permute.xlu0 %2689
          %2692 = vset.pattern.permute.xlu0 2
          %2693 = vperm.xlu0 %2692, %v1901
          %v2694 = vpop.permute.xlu0 %2693
          %2696 = vset.pattern.permute.xlu0 2
          %2697 = vperm.xlu0 %2696, %v1902
          %v2698 = vpop.permute.xlu0 %2697
          %2700 = vset.pattern.permute.xlu0 2
          %2701 = vperm.xlu0 %2700, %v1903
          %v2702 = vpop.permute.xlu0 %2701
          %2704 = vset.pattern.permute.xlu0 2
          %2705 = vperm.xlu0 %2704, %v1904
          %v2706 = vpop.permute.xlu0 %2705
          %v2708 = vmul.f32 %v2678, %v2652
          %v2709 = vmul.f32 %v2678, %v2653
          %v2710 = vmul.f32 %v2678, %v2654
          %v2711 = vmul.f32 %v2682, %v2655
          %v2712 = vmul.f32 %v2682, %v2656
          %v2713 = vmul.f32 %v2682, %v2657
          %v2714 = vmul.f32 %v2686, %v2658
          %v2715 = vmul.f32 %v2686, %v2659
          %v2716 = vmul.f32 %v2686, %v2660
          %v2717 = vmul.f32 %v2690, %v2661
          %v2718 = vmul.f32 %v2690, %v2662
          %v2719 = vmul.f32 %v2690, %v2663
          %v2720 = vmul.f32 %v2694, %v2664
          %v2721 = vmul.f32 %v2694, %v2665
          %v2722 = vmul.f32 %v2694, %v2666
          %v2723 = vmul.f32 %v2698, %v2667
          %v2724 = vmul.f32 %v2698, %v2668
          %v2725 = vmul.f32 %v2698, %v2669
          %v2726 = vmul.f32 %v2702, %v2670
          %v2727 = vmul.f32 %v2702, %v2671
          %v2728 = vmul.f32 %v2702, %v2672
          %v2729 = vmul.f32 %v2706, %v2673
          %v2730 = vmul.f32 %v2706, %v2674
          %v2731 = vmul.f32 %v2706, %v2675
          %2756 = vrot.lane.b32.xlu0 %v2708, 126
          %v2757 = vpop.permute.xlu0 %2756
          %2758 = vrot.lane.b32.xlu0 %v2709, 126
          %v2759 = vpop.permute.xlu0 %2758
          %2760 = vrot.lane.b32.xlu0 %v2710, 126
          %v2761 = vpop.permute.xlu0 %2760
          %2762 = vrot.lane.b32.xlu0 %v2711, 126
          %v2763 = vpop.permute.xlu0 %2762
          %2764 = vrot.lane.b32.xlu0 %v2712, 126
          %v2765 = vpop.permute.xlu0 %2764
          %2766 = vrot.lane.b32.xlu0 %v2713, 126
          %v2767 = vpop.permute.xlu0 %2766
          %2768 = vrot.lane.b32.xlu0 %v2714, 126
          %v2769 = vpop.permute.xlu0 %2768
          %2770 = vrot.lane.b32.xlu0 %v2715, 126
          %v2771 = vpop.permute.xlu0 %2770
          %2772 = vrot.lane.b32.xlu0 %v2716, 126
          %v2773 = vpop.permute.xlu0 %2772
          %2774 = vrot.lane.b32.xlu0 %v2717, 126
          %v2775 = vpop.permute.xlu0 %2774
          %2776 = vrot.lane.b32.xlu0 %v2718, 126
          %v2777 = vpop.permute.xlu0 %2776
          %2778 = vrot.lane.b32.xlu0 %v2719, 126
          %v2779 = vpop.permute.xlu0 %2778
          %2780 = vrot.lane.b32.xlu0 %v2720, 126
          %v2781 = vpop.permute.xlu0 %2780
          %2782 = vrot.lane.b32.xlu0 %v2721, 126
          %v2783 = vpop.permute.xlu0 %2782
          %2784 = vrot.lane.b32.xlu0 %v2722, 126
          %v2785 = vpop.permute.xlu0 %2784
          %2786 = vrot.lane.b32.xlu0 %v2723, 126
          %v2787 = vpop.permute.xlu0 %2786
          %2788 = vrot.lane.b32.xlu0 %v2724, 126
          %v2789 = vpop.permute.xlu0 %2788
          %2790 = vrot.lane.b32.xlu0 %v2725, 126
          %v2791 = vpop.permute.xlu0 %2790
          %2792 = vrot.lane.b32.xlu0 %v2726, 126
          %v2793 = vpop.permute.xlu0 %2792
          %2794 = vrot.lane.b32.xlu0 %v2727, 126
          %v2795 = vpop.permute.xlu0 %2794
          %2796 = vrot.lane.b32.xlu0 %v2728, 126
          %v2797 = vpop.permute.xlu0 %2796
          %2798 = vrot.lane.b32.xlu0 %v2729, 126
          %v2799 = vpop.permute.xlu0 %2798
          %2800 = vrot.lane.b32.xlu0 %v2730, 126
          %v2801 = vpop.permute.xlu0 %2800
          %2802 = vrot.lane.b32.xlu0 %v2731, 126
          %v2803 = vpop.permute.xlu0 %2802
          %vm2804 = vcmask 1031168
          %v2805 = vsel %vm2804, %v2757, %v2759
          %v2806 = vsel %vm2804, %v2759, %v2761
          %v2807 = vsel %vm2804, %v2763, %v2765
          %v2808 = vsel %vm2804, %v2765, %v2767
          %v2809 = vsel %vm2804, %v2769, %v2771
          %v2810 = vsel %vm2804, %v2771, %v2773
          %v2811 = vsel %vm2804, %v2775, %v2777
          %v2812 = vsel %vm2804, %v2777, %v2779
          %v2813 = vsel %vm2804, %v2781, %v2783
          %v2814 = vsel %vm2804, %v2783, %v2785
          %v2815 = vsel %vm2804, %v2787, %v2789
          %v2816 = vsel %vm2804, %v2789, %v2791
          %v2817 = vsel %vm2804, %v2793, %v2795
          %v2818 = vsel %vm2804, %v2795, %v2797
          %v2819 = vsel %vm2804, %v2799, %v2801
          %v2820 = vsel %vm2804, %v2801, %v2803
          %v2837 = vadd.f32 %v2636, %v2805
          %v2838 = vadd.f32 %v2637, %v2806
          %v2839 = vadd.f32 %v2638, %v2807
          %v2840 = vadd.f32 %v2639, %v2808
          %v2841 = vadd.f32 %v2640, %v2809
          %v2842 = vadd.f32 %v2641, %v2810
          %v2843 = vadd.f32 %v2642, %v2811
          %v2844 = vadd.f32 %v2643, %v2812
          %v2845 = vadd.f32 %v2644, %v2813
          %v2846 = vadd.f32 %v2645, %v2814
          %v2847 = vadd.f32 %v2646, %v2815
          %v2848 = vadd.f32 %v2647, %v2816
          %v2849 = vadd.f32 %v2648, %v2817
          %v2850 = vadd.f32 %v2649, %v2818
          %v2851 = vadd.f32 %v2650, %v2819
          %v2852 = vadd.f32 %v2651, %v2820
          %vm2853 = vcmp.ge.f32.partialorder %v2837, 0.0
          %vm2854 = vcmp.ge.f32.partialorder %v2838, 0.0
          %vm2855 = vcmp.ge.f32.partialorder %v2839, 0.0
          %vm2856 = vcmp.ge.f32.partialorder %v2840, 0.0
          %vm2857 = vcmp.ge.f32.partialorder %v2841, 0.0
          %vm2858 = vcmp.ge.f32.partialorder %v2842, 0.0
          %vm2859 = vcmp.ge.f32.partialorder %v2843, 0.0
          %vm2860 = vcmp.ge.f32.partialorder %v2844, 0.0
          %vm2861 = vcmp.ge.f32.partialorder %v2845, 0.0
          %vm2862 = vcmp.ge.f32.partialorder %v2846, 0.0
          %vm2863 = vcmp.ge.f32.partialorder %v2847, 0.0
          %vm2864 = vcmp.ge.f32.partialorder %v2848, 0.0
          %vm2865 = vcmp.ge.f32.partialorder %v2849, 0.0
          %vm2866 = vcmp.ge.f32.partialorder %v2850, 0.0
          %vm2867 = vcmp.ge.f32.partialorder %v2851, 0.0
          %vm2868 = vcmp.ge.f32.partialorder %v2852, 0.0
          %v2869 = vstv %s1930
          %v2870 = vmul.f32 %v2869, %v2837
          %v2871 = vmul.f32 %v2869, %v2838
          %v2872 = vmul.f32 %v2869, %v2839
          %v2873 = vmul.f32 %v2869, %v2840
          %v2874 = vmul.f32 %v2869, %v2841
          %v2875 = vmul.f32 %v2869, %v2842
          %v2876 = vmul.f32 %v2869, %v2843
          %v2877 = vmul.f32 %v2869, %v2844
          %v2878 = vmul.f32 %v2869, %v2845
          %v2879 = vmul.f32 %v2869, %v2846
          %v2880 = vmul.f32 %v2869, %v2847
          %v2881 = vmul.f32 %v2869, %v2848
          %v2882 = vmul.f32 %v2869, %v2849
          %v2883 = vmul.f32 %v2869, %v2850
          %v2884 = vmul.f32 %v2869, %v2851
          %v2885 = vmul.f32 %v2869, %v2852
          %v2886 = vsel %vm2853, %v2837, %v2870
          %v2887 = vsel %vm2854, %v2838, %v2871
          %v2888 = vsel %vm2855, %v2839, %v2872
          %v2889 = vsel %vm2856, %v2840, %v2873
          %v2890 = vsel %vm2857, %v2841, %v2874
          %v2891 = vsel %vm2858, %v2842, %v2875
          %v2892 = vsel %vm2859, %v2843, %v2876
          %v2893 = vsel %vm2860, %v2844, %v2877
          %v2894 = vsel %vm2861, %v2845, %v2878
          %v2895 = vsel %vm2862, %v2846, %v2879
          %v2896 = vsel %vm2863, %v2847, %v2880
          %v2897 = vsel %vm2864, %v2848, %v2881
          %v2898 = vsel %vm2865, %v2849, %v2882
          %v2899 = vsel %vm2866, %v2850, %v2883
          %v2900 = vsel %vm2867, %v2851, %v2884
          %v2901 = vsel %vm2868, %v2852, %v2885
          %v2902 = vadd.f32 %v2886, %v2887
          %2903 = vadd.xlane.f32.xlu0 %v2902
          %v2904 = vpop.xlane.xlu0 %2903
          %v2905 = vadd.f32 %v2888, %v2889
          %2906 = vadd.xlane.f32.xlu0 %v2905
          %v2907 = vpop.xlane.xlu0 %2906
          %v2908 = vadd.f32 %v2890, %v2891
          %2909 = vadd.xlane.f32.xlu0 %v2908
          %v2910 = vpop.xlane.xlu0 %2909
          %v2911 = vadd.f32 %v2892, %v2893
          %2912 = vadd.xlane.f32.xlu0 %v2911
          %v2913 = vpop.xlane.xlu0 %2912
          %v2914 = vadd.f32 %v2894, %v2895
          %2915 = vadd.xlane.f32.xlu0 %v2914
          %v2916 = vpop.xlane.xlu0 %2915
          %v2917 = vadd.f32 %v2896, %v2897
          %2918 = vadd.xlane.f32.xlu0 %v2917
          %v2919 = vpop.xlane.xlu0 %2918
          %v2920 = vadd.f32 %v2898, %v2899
          %2921 = vadd.xlane.f32.xlu0 %v2920
          %v2922 = vpop.xlane.xlu0 %2921
          %v2923 = vadd.f32 %v2900, %v2901
          %2924 = vadd.xlane.f32.xlu0 %v2923
          %v2925 = vpop.xlane.xlu0 %2924
          %v2926 = vmul.f32 %v2886, %v2886
          %v2927 = vmul.f32 %v2887, %v2887
          %v2928 = vmul.f32 %v2888, %v2888
          %v2929 = vmul.f32 %v2889, %v2889
          %v2930 = vmul.f32 %v2890, %v2890
          %v2931 = vmul.f32 %v2891, %v2891
          %v2932 = vmul.f32 %v2892, %v2892
          %v2933 = vmul.f32 %v2893, %v2893
          %v2934 = vmul.f32 %v2894, %v2894
          %v2935 = vmul.f32 %v2895, %v2895
          %v2936 = vmul.f32 %v2896, %v2896
          %v2937 = vmul.f32 %v2897, %v2897
          %v2938 = vmul.f32 %v2898, %v2898
          %v2939 = vmul.f32 %v2899, %v2899
          %v2940 = vmul.f32 %v2900, %v2900
          %v2941 = vmul.f32 %v2901, %v2901
          %v2942 = vadd.f32 %v2926, %v2927
          %2943 = vadd.xlane.f32.xlu0 %v2942
          %v2944 = vpop.xlane.xlu0 %2943
          %v2945 = vadd.f32 %v2928, %v2929
          %2946 = vadd.xlane.f32.xlu0 %v2945
          %v2947 = vpop.xlane.xlu0 %2946
          %v2948 = vadd.f32 %v2930, %v2931
          %2949 = vadd.xlane.f32.xlu0 %v2948
          %v2950 = vpop.xlane.xlu0 %2949
          %v2951 = vadd.f32 %v2932, %v2933
          %2952 = vadd.xlane.f32.xlu0 %v2951
          %v2953 = vpop.xlane.xlu0 %2952
          %v2954 = vadd.f32 %v2934, %v2935
          %2955 = vadd.xlane.f32.xlu0 %v2954
          %v2956 = vpop.xlane.xlu0 %2955
          %v2957 = vadd.f32 %v2936, %v2937
          %2958 = vadd.xlane.f32.xlu0 %v2957
          %v2959 = vpop.xlane.xlu0 %2958
          %v2960 = vadd.f32 %v2938, %v2939
          %2961 = vadd.xlane.f32.xlu0 %v2960
          %v2962 = vpop.xlane.xlu0 %2961
          %v2963 = vadd.f32 %v2940, %v2941
          %2964 = vadd.xlane.f32.xlu0 %v2963
          %v2965 = vpop.xlane.xlu0 %2964
          %v2966 = vsel %vm878, %v2904, 0.0
          %v2967 = vsel %vm878, %v2907, 0.0
          %v2968 = vadd.f32 %v2966, %v2967
          %v2969 = vsel %vm878, %v2910, 0.0
          %v2970 = vadd.f32 %v2968, %v2969
          %v2971 = vsel %vm878, %v2913, 0.0
          %v2972 = vadd.f32 %v2970, %v2971
          %v2973 = vsel %vm878, %v2916, 0.0
          %v2974 = vadd.f32 %v2972, %v2973
          %v2975 = vsel %vm878, %v2919, 0.0
          %v2976 = vadd.f32 %v2974, %v2975
          %v2977 = vsel %vm878, %v2922, 0.0
          %v2978 = vadd.f32 %v2976, %v2977
          %v2979 = vsel %vm878, %v2925, 0.0
          %v2980 = vadd.f32 %v2978, %v2979
          %2981 = vadd.xlane.f32.xlu0 %v2980
          %v2982 = vpop.xlane.xlu0 %2981
          %v2983 = vrot.slane %v2982, 4
          %v2984 = vadd.f32 %v2982, %v2983
          %v2985 = vrot.slane %v2984, 2
          %v2986 = vadd.f32 %v2984, %v2985
          %v2987 = vrot.slane %v2986, 1
          %v2988 = vadd.f32 %v2986, %v2987
          %s2989 = vtos %v2988
          %s2990 = smul.f32 %s2989, 6.1035156e-05
          %v2991 = vsel %vm878, %v2944, 0.0
          %v2992 = vsel %vm878, %v2947, 0.0
          %v2993 = vadd.f32 %v2991, %v2992
          %v2994 = vsel %vm878, %v2950, 0.0
          %v2995 = vadd.f32 %v2993, %v2994
          %v2996 = vsel %vm878, %v2953, 0.0
          %v2997 = vadd.f32 %v2995, %v2996
          %v2998 = vsel %vm878, %v2956, 0.0
          %v2999 = vadd.f32 %v2997, %v2998
          %v3000 = vsel %vm878, %v2959, 0.0
          %v3001 = vadd.f32 %v2999, %v3000
          %v3002 = vsel %vm878, %v2962, 0.0
          %v3003 = vadd.f32 %v3001, %v3002
          %v3004 = vsel %vm878, %v2965, 0.0
          %v3005 = vadd.f32 %v3003, %v3004
          %3006 = vadd.xlane.f32.xlu0 %v3005
          %v3007 = vpop.xlane.xlu0 %3006
          %v3008 = vrot.slane %v3007, 4
          %v3009 = vadd.f32 %v3007, %v3008
          %v3010 = vrot.slane %v3009, 2
          %v3011 = vadd.f32 %v3009, %v3010
          %v3012 = vrot.slane %v3011, 1
          %v3013 = vadd.f32 %v3011, %v3012
          %s3014 = vtos %v3013
          %s3015 = smul.f32 %s3014, 6.1035156e-05
          %s3016 = smul.f32 %s2990, %s2990
          %s3017 = ssub.f32 %s3015, %s3016
          %s3018 = smax.f32 %s3017, 0.0
          %s3019 = sadd.f32 %s3018, 1e-08
          %v3020 = vstv %s3019
          %v3021 = vrsqrt.pop %v3020
          %s3022 = vtos %v3021
          %v3023 = vstv %s3022
          %v3024 = vmul.f32 %v1916, %v3023
          %v3025 = vstv %s2990
          %v3026 = vmul.f32 %v3025, %v3024
          %v3028 = vrot.slane %v3026, 7
          %v3030 = vsub.f32 %v1916, %v3028
          %v3031 = vlaneseq
          %v3032 = vshrl.u32 %v3031, 7
          %v3033 = vsub.s32 0, %v3032
          %v3034 = vrot.slane %v3024, %v3033
          %v3035 = vmul.f32 %v1924, %v3034
          %v3036 = vmul.f32 %v1925, %v3034
          %v3037 = vmul.f32 %v1926, %v3034
          %v3038 = vmul.f32 %v1927, %v3034
          %v3039 = vpack.c.bf16 %v3036, %v3035
          %v3040 = vpack.c.bf16 %v3038, %v3037
          %v3041 = vlaneseq
          %v3042 = vshrl.u32 %v3041, 7
          %v3043 = vsub.s32 1, %v3042
          %v3044 = vrot.slane %v3030, %v3043
          %v3045 = vmul.f32 %v1924, %v3044
          %v3046 = vmul.f32 %v1925, %v3044
          %v3047 = vmul.f32 %v1926, %v3044
          %v3048 = vmul.f32 %v1927, %v3044
          %v3049 = vsel %vm1775, %v3045, 0.0
          %3050 = vadd.xlane.f32.xlu0 %v3049
          %v3051 = vpop.xlane.xlu0 %3050
          %v3052 = vsel %vm1775, %v3046, 0.0
          %3053 = vadd.xlane.f32.xlu0 %v3052
          %v3054 = vpop.xlane.xlu0 %3053
          %v3055 = vsel %vm1775, %v3047, 0.0
          %3056 = vadd.xlane.f32.xlu0 %v3055
          %v3057 = vpop.xlane.xlu0 %3056
          %v3058 = vsel %vm1775, %v3048, 0.0
          %3059 = vadd.xlane.f32.xlu0 %v3058
          %v3060 = vpop.xlane.xlu0 %3059
          %v3061 = vadd.f32 %v1863, %v3051
          %v3062 = vadd.f32 %v1864, %v3051
          %v3063 = vadd.f32 %v1865, %v3054
          %v3064 = vadd.f32 %v1866, %v3054
          %v3065 = vadd.f32 %v1867, %v3057
          %v3066 = vadd.f32 %v1868, %v3057
          %v3067 = vadd.f32 %v1869, %v3060
          %v3068 = vadd.f32 %v1870, %v3060
          %v3069 = vpack.c.bf16 %v2888, %v2886
          %v3070 = vpack.c.bf16 %v2889, %v2887
          %v3071 = vpack.c.bf16 %v2892, %v2890
          %v3072 = vpack.c.bf16 %v2893, %v2891
          %v3073 = vpack.c.bf16 %v2896, %v2894
          %v3074 = vpack.c.bf16 %v2897, %v2895
          %v3075 = vpack.c.bf16 %v2900, %v2898
          %v3076 = vpack.c.bf16 %v2901, %v2899
          %v3078 = vsel %vm1775, %v3039, 0
          %v3081 = vsel %vm1775, %v3040, 0
          %3083 = vmatprep.subr.bf16.mxu0 %v3070
          %3084 = vmatpush1.bf16.msra.mxu0 %v3069
          %3085 = vmatprep.subr.bf16.mxu0 %v3072
          %3086 = vmatpush1.bf16.msra.mxu0 %v3071
          %3087 = vmatprep.subr.bf16.mxu0 %v3074
          %3088 = vmatpush1.bf16.msra.mxu0 %v3073
          %3089 = vmatprep.subr.bf16.mxu0 %v3076
          %3090 = vmatpush1.bf16.msra.mxu0 %v3075
          %3091 = vmatprep.subr.bf16.mxu0 0
          %3092 = vmatpush1.bf16.msra.mxu0 0
          %3093 = vmatprep.subr.bf16.mxu0 0
          %3094 = vmatpush1.bf16.msra.mxu0 0
          %3095 = vmatprep.subr.bf16.mxu0 0
          %3096 = vmatpush1.bf16.msra.mxu0 0
          %3097 = vmatprep.subr.bf16.mxu0 0
          %3098 = vmatpush1.bf16.msra.mxu0 0
          %3099 = vmatprep.subr.bf16.mxu0 0
          %3100 = vmatpush1.bf16.msra.mxu0 0
          %3101 = vmatprep.subr.bf16.mxu0 0
          %3102 = vmatpush1.bf16.msra.mxu0 0
          %3103 = vmatprep.subr.bf16.mxu0 0
          %3104 = vmatpush1.bf16.msra.mxu0 0
          %3105 = vmatprep.subr.bf16.mxu0 0
          %3106 = vmatpush1.bf16.msra.mxu0 0
          %3107 = vmatprep.subr.bf16.mxu0 0
          %3108 = vmatpush1.bf16.msra.mxu0 0
          %3109 = vmatprep.subr.bf16.mxu0 0
          %3110 = vmatpush1.bf16.msra.mxu0 0
          %3111 = vmatprep.subr.bf16.mxu0 0
          %3112 = vmatpush1.bf16.msra.mxu0 0
          %3113 = vmatprep.subr.bf16.mxu0 0
          %3114 = vmatpush1.bf16.msra.mxu0 0
          %3115 = vmatprep.mubr.bf16.mxu0 0
          %3116 = vmatmul.mubr.bf16.gmra.mrb[0].mxu0 %v3078
          %v3117 = vpop.f32.mrb[0].mxu0
          %v3118 = vadd.f32 0.0, %v3117
          %v3119 = vpop.f32.mrb[0].mxu0
          %v3120 = vadd.f32 0.0, %v3119
          %v3121 = vpop.f32.mrb[0].mxu0
          %v3122 = vadd.f32 0.0, %v3121
          %v3123 = vpop.f32.mrb[0].mxu0
          %v3124 = vadd.f32 0.0, %v3123
          %3125 = vmatprep.mubr.bf16.mxu0 0
          %3126 = vmatmul.mubr.bf16.gmra.mrb[0].mxu0 %v3081
          %v3127 = vpop.f32.mrb[0].mxu0
          %v3128 = vadd.f32 0.0, %v3127
          %v3129 = vpop.f32.mrb[0].mxu0
          %v3130 = vadd.f32 0.0, %v3129
          %v3131 = vpop.f32.mrb[0].mxu0
          %v3132 = vadd.f32 0.0, %v3131
          %v3133 = vpop.f32.mrb[0].mxu0
          %v3134 = vadd.f32 0.0, %v3133
          %3135 = vdwg.mxu0
          %v3136 = vadd.f32 %v3061, %v3118
          %v3137 = vadd.f32 %v3062, %v3120
          %v3138 = vadd.f32 %v3063, %v3122
          %v3139 = vadd.f32 %v3064, %v3124
          %v3140 = vadd.f32 %v3065, %v3128
          %v3141 = vadd.f32 %v3066, %v3130
          %v3142 = vadd.f32 %v3067, %v3132
          %v3143 = vadd.f32 %v3068, %v3134
          %p3144 = scmp.eq.s32.totalorder %s593, 0
          // Predicated region
          $region76: #{tpu_custom_call.1} parent=68 // pred_check
            %p3145 = pneg %p3144
          $region77: #{tpu_custom_call.1} parent=68 // pred_check_branch
            %3147 = sbr.rel (%p3145) target = $region79
          $region78: #{tpu_custom_call.1} parent=68 // pred_region
            %3148 = vst [vmem:[%s404] sm:$0xff] %v3136
            %3149 = vst [vmem:[%s404 + $0x8] sm:$0xff] %v3137
            %3150 = vst [vmem:[%s404 + $0x10] sm:$0xff] %v3138
            %3151 = vst [vmem:[%s404 + $0x18] sm:$0xff] %v3139
            %3152 = vst [vmem:[%s404 + $0x20] sm:$0xff] %v3140
            %3153 = vst [vmem:[%s404 + $0x28] sm:$0xff] %v3141
            %3154 = vst [vmem:[%s404 + $0x30] sm:$0xff] %v3142
            %3155 = vst [vmem:[%s404 + $0x38] sm:$0xff] %v3143
          $region79: #{tpu_custom_call.1} parent=68 // pred_fallthru
            _
        $region69: #{tpu_custom_call.1} parent=59 // loop_footer
          %s597 = sadd.s32 1, %s593
        $region70: #{tpu_custom_call.1} parent=59 // loop_footer_branch
          %592 = sbr.rel target = $region66
        $region71: #{tpu_custom_call.1} parent=59 // loop_exit
          _
        %v3156 = vld [vmem:[%s8] sm:$0xf]
        %v3157 = vld [vmem:[%s8 + $0x4] sm:$0xf]
        %v3158 = vld [vmem:[%s8 + $0x8] sm:$0xf]
        %v3159 = vld [vmem:[%s8 + $0xc] sm:$0xf]
        %v3160 = vpack.c.bf16 %v600, %v598
        %v3161 = vpack.c.bf16 %v601, %v599
        %v3162 = vpack.c.bf16 %v604, %v602
        %v3163 = vpack.c.bf16 %v605, %v603
        %v3168 = vunpack.c.l.b16 %v3156
        %v3169 = vunpack.c.l.b16 %v3157
        %v3170 = vunpack.c.l.b16 %v3158
        %v3171 = vunpack.c.l.b16 %v3159
        %v3172 = vpack.c.b16 %v3169, %v3168
        %v3173 = vpack.c.b16 %v3171, %v3170
        %vm3174 = vcmask 261120
        %v3176 = vsel %vm3174, %v3172, 0
        %v3179 = vsel %vm3174, %v3173, 0
        %3181 = vmatprep.subr.bf16.mxu0 %v3161
        %3182 = vmatpush1.bf16.msra.mxu0 %v3160
        %3183 = vmatprep.subr.bf16.mxu0 %v3163
        %3184 = vmatpush1.bf16.msra.mxu0 %v3162
        %3185 = vmatprep.subr.bf16.mxu0 0
        %3186 = vmatpush1.bf16.msra.mxu0 0
        %3187 = vmatprep.subr.bf16.mxu0 0
        %3188 = vmatpush1.bf16.msra.mxu0 0
        %3189 = vmatprep.subr.bf16.mxu0 0
        %3190 = vmatpush1.bf16.msra.mxu0 0
        %3191 = vmatprep.subr.bf16.mxu0 0
        %3192 = vmatpush1.bf16.msra.mxu0 0
        %3193 = vmatprep.subr.bf16.mxu0 0
        %3194 = vmatpush1.bf16.msra.mxu0 0
        %3195 = vmatprep.subr.bf16.mxu0 0
        %3196 = vmatpush1.bf16.msra.mxu0 0
        %3197 = vmatprep.subr.bf16.mxu0 0
        %3198 = vmatpush1.bf16.msra.mxu0 0
        %3199 = vmatprep.subr.bf16.mxu0 0
        %3200 = vmatpush1.bf16.msra.mxu0 0
        %3201 = vmatprep.subr.bf16.mxu0 0
        %3202 = vmatpush1.bf16.msra.mxu0 0
        %3203 = vmatprep.subr.bf16.mxu0 0
        %3204 = vmatpush1.bf16.msra.mxu0 0
        %3205 = vmatprep.subr.bf16.mxu0 0
        %3206 = vmatpush1.bf16.msra.mxu0 0
        %3207 = vmatprep.subr.bf16.mxu0 0
        %3208 = vmatpush1.bf16.msra.mxu0 0
        %3209 = vmatprep.subr.bf16.mxu0 0
        %3210 = vmatpush1.bf16.msra.mxu0 0
        %3211 = vmatprep.subr.bf16.mxu0 0
        %3212 = vmatpush1.bf16.msra.mxu0 0
        %3213 = vmatprep.mubr.bf16.mxu0 0
        %3214 = vmatmul.mubr.bf16.gmra.mrb[0].mxu0 %v3176
        %v3215 = vpop.f32.mrb[0].mxu0
        %v3216 = vadd.f32 0.0, %v3215
        %v3217 = vpop.f32.mrb[0].mxu0
        %v3218 = vadd.f32 0.0, %v3217
        %v3219 = vpop.f32.mrb[0].mxu0
        %v3220 = vadd.f32 0.0, %v3219
        %v3221 = vpop.f32.mrb[0].mxu0
        %v3222 = vadd.f32 0.0, %v3221
        %3223 = vmatprep.mubr.bf16.mxu0 0
        %3224 = vmatmul.mubr.bf16.gmra.mrb[0].mxu0 %v3179
        %v3225 = vpop.f32.mrb[0].mxu0
        %v3226 = vadd.f32 0.0, %v3225
        %v3227 = vpop.f32.mrb[0].mxu0
        %v3228 = vadd.f32 0.0, %v3227
        %v3229 = vpop.f32.mrb[0].mxu0
        %v3230 = vadd.f32 0.0, %v3229
        %v3231 = vpop.f32.mrb[0].mxu0
        %v3232 = vadd.f32 0.0, %v3231
        %3233 = vdwg.mxu0
        %v3234 = vmax.f32 %v3216, 0.0
        %v3235 = vmax.f32 %v3218, 0.0
        %v3236 = vmax.f32 %v3220, 0.0
        %v3237 = vmax.f32 %v3222, 0.0
        %v3238 = vmax.f32 %v3226, 0.0
        %v3239 = vmax.f32 %v3228, 0.0
        %v3240 = vmax.f32 %v3230, 0.0
        %v3241 = vmax.f32 %v3232, 0.0
        %3242 = vst [vmem:[%s397] sm:$0xff] %v3234
        %3243 = vst [vmem:[%s397 + $0x8] sm:$0xff] %v3235
        %3244 = vst [vmem:[%s397 + $0x10] sm:$0xff] %v3236
        %3245 = vst [vmem:[%s397 + $0x18] sm:$0xff] %v3237
        %3246 = vst [vmem:[%s397 + $0x20] sm:$0xff] %v3238
        %3247 = vst [vmem:[%s397 + $0x28] sm:$0xff] %v3239
        %3248 = vst [vmem:[%s397 + $0x30] sm:$0xff] %v3240
        %3249 = vst [vmem:[%s397 + $0x38] sm:$0xff] %v3241
        %s3250 = sand.u32 %s253, 1
        %s3251 = scalar_lea.sflag [#allocation4], %s3250
        %s3252 = sand.u32 %s253, 1
        %s3253 = smul.addr %s3252, 64
        %s3254 = scalar_lea.vmem [#allocation6], %s3253
        %s3255 = sand.u32 %s279, 1
        %s3256 = scalar_lea.sflag [#allocation8], %s3255
        %s3257 = sand.u32 %s279, 1
        %s3258 = smul.addr %s3257, 128
        %s3259 = scalar_lea.vmem [#allocation7], %s3258
        // Predicated region
        $region80: #{tpu_custom_call.1} parent=59 // pred_check
          %p3260 = pneg %p263
        $region81: #{tpu_custom_call.1} parent=59 // pred_check_branch
          %3262 = sbr.rel (%p3260) target = $region83
        $region82: #{tpu_custom_call.1} parent=59 // pred_region
          %s3264 = ssub.s32 1024, 1024
          %3265 = vsyncadd %s3251, %s3264
          %s3266 = smul.addr %s30, 8
          %s3267 = smul.addr %s3266, 128
          %s3268 = scalar_lea.hbm %s10, %s3267
          %s3269 = sshll.u32 %s3254, 4
          %s3270 = int_to_ptr.vmem [resolvable:$true] %s3269
          %3275 = dma.vmem_to_hbm [thread:$0]  %s3270, 1024, %s3268, %s3251, 256, 256, 16
        $region83: #{tpu_custom_call.1} parent=59 // pred_fallthru
          _
        // Predicated region
        $region84: #{tpu_custom_call.1} parent=59 // pred_check
          %p3276 = pneg %p289
        $region85: #{tpu_custom_call.1} parent=59 // pred_check_branch
          %3278 = sbr.rel (%p3276) target = $region87
        $region86: #{tpu_custom_call.1} parent=59 // pred_region
          %s3280 = ssub.s32 2048, 2048
          %3281 = vsyncadd %s3256, %s3280
          %s3282 = smul.addr %s30, 16
          %s3283 = smul.addr %s3282, 128
          %s3284 = scalar_lea.hbm %s11, %s3283
          %s3285 = sshll.u32 %s3259, 4
          %s3286 = int_to_ptr.vmem [resolvable:$true] %s3285
          %3291 = dma.vmem_to_hbm [thread:$0]  %s3286, 2048, %s3284, %s3256, 256, 256, 16
        $region87: #{tpu_custom_call.1} parent=59 // pred_fallthru
          _
      $region60: #{tpu_custom_call.1} parent=5 // pred_fallthru
        _
      %p3292 = scmp.le.s32.totalorder 2, %s25
      // Predicated region
      $region88: #{tpu_custom_call.1} parent=5 // pred_check
        %p3293 = pneg %p3292
      $region89: #{tpu_custom_call.1} parent=5 // pred_check_branch
        %3295 = sbr.rel (%p3293) target = $region91
      $region90: #{tpu_custom_call.1} parent=5 // pred_region
        %s3296 = ssub.s32 %s25, 2
        // Predicated region
        $region92: #{tpu_custom_call.1} parent=90 // pred_check
          %p3297 = pneg %p269
        $region93: #{tpu_custom_call.1} parent=90 // pred_check_branch
          %3299 = sbr.rel (%p3297) target = $region95
        $region94: #{tpu_custom_call.1} parent=90 // pred_region
          %s3300 = sand.u32 %s254, 1
          %s3301 = scalar_lea.sflag [#allocation4], %s3300
          %s3302 = sand.u32 %s254, 1
          %s3303 = smul.addr %s3302, 64
          %s3304 = scalar_lea.vmem [#allocation6], %s3303
          %3305 = dma.done %s3301, 1024
        $region95: #{tpu_custom_call.1} parent=90 // pred_fallthru
          _
        // Predicated region
        $region96: #{tpu_custom_call.1} parent=90 // pred_check
          %p3306 = pneg %p295
        $region97: #{tpu_custom_call.1} parent=90 // pred_check_branch
          %3308 = sbr.rel (%p3306) target = $region99
        $region98: #{tpu_custom_call.1} parent=90 // pred_region
          %s3309 = sand.u32 %s280, 1
          %s3310 = scalar_lea.sflag [#allocation8], %s3309
          %s3311 = sand.u32 %s280, 1
          %s3312 = smul.addr %s3311, 128
          %s3313 = scalar_lea.vmem [#allocation7], %s3312
          %3314 = dma.done %s3310, 2048
        $region99: #{tpu_custom_call.1} parent=90 // pred_fallthru
          _
      $region91: #{tpu_custom_call.1} parent=5 // pred_fallthru
        _
    $region6: #{tpu_custom_call.1} parent=1 // loop_footer
      %s29 = sadd.s32 1, %s25
    $region7: #{tpu_custom_call.1} parent=1 // loop_footer_branch
      %24 = sbr.rel target = $region3
    $region8: #{tpu_custom_call.1} parent=1 // loop_exit
      _
    %3315 = vsyncpa [#allocation4], 1
    %s3316 = scalar_lea.sflag [#allocation4], 1
    %3317 = vsyncpa %s3316, 1
    %3318 = vsyncpa [#allocation8], 1
    %s3319 = scalar_lea.sflag [#allocation8], 1
    %3320 = vsyncpa %s3319, 1
    %3321 = vsyncpa [#allocation5], 1
    %s3322 = scalar_lea.sflag [#allocation5], 1
    %3323 = vsyncpa %s3322, 1

</llo_original>
